<compile_context>
chip_gen: v6e
topology: v6e:2x2x1
jax: 0.10.0
libtpu: 0.0.40
codegen_flags: <defaults>
</compile_context>

<pallas_src>
import functools
import math

import jax
import jax.numpy as jnp
from jax import lax
from jax.experimental import pallas as pl
from jax.experimental.pallas import tpu as pltpu


# ----------------------------- shared helpers -------------------------------

def _dot(a, b):
    # Default MXU precision; accumulate in f32.
    return jnp.dot(a, b, preferred_element_type=jnp.float32)


def _layer_norm(x, g, b, eps=1e-5):
    mu = jnp.mean(x, axis=-1, keepdims=True)
    var = jnp.mean((x - mu) ** 2, axis=-1, keepdims=True)
    return (x - mu) * lax.rsqrt(var + eps) * g + b


def _softmax_last(s):
    # Exact reciprocal (same function used by kernel and reference).
    s = s - jnp.max(s, axis=-1, keepdims=True)
    p = jnp.exp(s)
    return p / jnp.sum(p, axis=-1, keepdims=True)


def _r8(n):
    return ((n + 7) // 8) * 8


def _slab_layout(F_in, S, D, H, n_layers):
    """Row offsets of the packed weight slabs (shared by host packer & kernel).

    slab_d   (width D):  [w_in | pos | per layer: wo, w2, 6 D-width vectors | lnf]
    slab_qkv (width 3D): per layer: wqkv (D rows) + bqkv (1 row, padded to 8)
    slab_ff  (width H):  per layer: w1   (D rows) + b1   (1 row, padded to 8)
    All matrix blocks start at multiples of 8 rows (sublane aligned).
    """
    layer0 = _r8(F_in) + _r8(S)
    per_layer_d = D + H + 8
    per_layer_qf = D + 8
    return dict(
        pos=_r8(F_in),
        layer0=layer0,
        per_layer_d=per_layer_d,
        final=layer0 + n_layers * per_layer_d,
        rows_d=layer0 + n_layers * per_layer_d + 8,
        per_layer_qf=per_layer_qf,
        rows_qf=n_layers * per_layer_qf,
    )


# ------------------------------ Pallas kernel --------------------------------

def model_kernel(n_layers, n_heads, Bb, S, F_in, D, H,
                 x_ref, wd_ref, wqkv_ref, wff_ref, out_ref):
    L = _slab_layout(F_in, S, D, H, n_layers)
    N = Bb * S                                   # rows in this slab (batch*seq)
    dh = D // n_heads

    x_in = x_ref[0]                              # [N, F_in]

    # Block-diag projection == concat(Conv1d_a(x_a), Conv1d_v(x_v)); the
    # sqrt(D) embed scale is folded into these weights host-side.
    x = _dot(x_in, wd_ref[0:F_in, :])            # [N, D]

    # Sinusoidal positional embedding, repeated across the Bb examples
    # (b-major / s-minor row order of x).
    pos = wd_ref[L['pos']:L['pos'] + S, :]       # [S, D]
    x = x + jnp.concatenate([pos] * Bb, axis=0)  # [N, D]

    # n_layers=2: Python-unrolled layer loop is fine; switch to lax.fori_loop
    # over stacked weights only if depth grows.
    for l in range(n_layers):
        ld = L['layer0'] + l * L['per_layer_d']
        wo = wd_ref[ld:ld + D, :]                # [D, D]
        w2 = wd_ref[ld + D:ld + D + H, :]        # [H, D]
        vr = ld + D + H
        ln1_g = wd_ref[vr + 0:vr + 1, :]
        ln1_b = wd_ref[vr + 1:vr + 2, :]
        bo    = wd_ref[vr + 2:vr + 3, :]
        ln2_g = wd_ref[vr + 3:vr + 4, :]
        ln2_b = wd_ref[vr + 4:vr + 5, :]
        b2    = wd_ref[vr + 5:vr + 6, :]

        lq = l * L['per_layer_qf']
        wqkv = wqkv_ref[lq:lq + D, :]            # [D, 3D] (Q third pre-scaled)
        bqkv = wqkv_ref[lq + D:lq + D + 1, :]    # [1, 3D]
        w1 = wff_ref[lq:lq + D, :]               # [D, H]
        b1 = wff_ref[lq + D:lq + D + 1, :]       # [1, H]

        # ---------------- pre-LN multi-head self-attention -----------------
        resid = x
        y = _layer_norm(x, ln1_g, ln1_b)
        qkv = _dot(y, wqkv) + bqkv               # [N, 3D]; q already 1/sqrt(dh)
        q = qkv[:, :D].reshape(Bb, S, D)
        k = qkv[:, D:2 * D].reshape(Bb, S, D)
        v = qkv[:, 2 * D:].reshape(Bb, S, D)

        # Per-head loop kept on purpose (dh=8): merging heads into an einsum
        # batch dim needs 4-D transposes whose relayout cost / lowering risk
        # exceeds these 8-lane slices.  Head concat folded into Wo:
        #   concat_h(O_h) @ Wo == sum_h O_h @ Wo[h*dh:(h+1)*dh, :].
        attn = jnp.zeros((N, D), jnp.float32)
        for h in range(n_heads):
            lo, hi = h * dh, (h + 1) * dh
            s = jnp.einsum('bqd,bkd->bqk', q[..., lo:hi], k[..., lo:hi],
                           preferred_element_type=jnp.float32)   # [Bb,S,S]
            p = _softmax_last(s)
            oh = jnp.einsum('bqk,bkd->bqd', p, v[..., lo:hi],
                            preferred_element_type=jnp.float32)  # [Bb,S,dh]
            attn = attn + _dot(oh.reshape(N, dh), wo[lo:hi, :])
        x = resid + attn + bo

        # ------------------------ pre-LN feed-forward -----------------------
        resid = x
        y = _layer_norm(x, ln2_g, ln2_b)
        y = jnp.maximum(_dot(y, w1) + b1, 0.0)
        x = resid + _dot(y, w2) + b2

    # Only the last timestep is consumed downstream: final-LN just those rows.
    last = x.reshape(Bb, S, D)[:, S - 1, :]      # [Bb, D]
    lnf_g = wd_ref[L['final'] + 0:L['final'] + 1, :]
    lnf_b = wd_ref[L['final'] + 1:L['final'] + 2, :]
    out_ref[0] = _layer_norm(last, lnf_g, lnf_b)


# --------------------------- host-side weight packing ------------------------

def pack_params(params, dim_a, dim_v, S, n_layers, n_heads):
    """One-time fusion of all weights into 3 DMA slabs (+ DecisionNet head)."""
    wa, wv = params['wa'], params['wv']
    d_a, d_v = wa.shape[1], wv.shape[1]
    D = d_a + d_v
    H = params['w1'].shape[2]
    F_in = dim_a + dim_v
    dh = D // n_heads
    L = _slab_layout(F_in, S, D, H, n_layers)

    emb_scale = math.sqrt(D)          # fold embed scaling into input proj
    q_scale = 1.0 / math.sqrt(dh)     # fold attention scale into Wq / bq

    slab_d = jnp.zeros((L['rows_d'], D), jnp.float32)
    slab_d = slab_d.at[:dim_a, :d_a].set(emb_scale * wa)
    slab_d = slab_d.at[dim_a:F_in, d_a:].set(emb_scale * wv)
    slab_d = slab_d.at[L['pos']:L['pos'] + S, :].set(params['pos'])
    for l in range(n_layers):
        ld = L['layer0'] + l * L['per_layer_d']
        slab_d = slab_d.at[ld:ld + D, :].set(params['wo'][l])
        slab_d = slab_d.at[ld + D:ld + D + H, :].set(params['w2'][l])
        vr = ld + D + H
        slab_d = slab_d.at[vr + 0].set(params['ln1_g'][l, 0])
        slab_d = slab_d.at[vr + 1].set(params['ln1_b'][l, 0])
        slab_d = slab_d.at[vr + 2].set(params['bo'][l, 0])
        slab_d = slab_d.at[vr + 3].set(params['ln2_g'][l, 0])
        slab_d = slab_d.at[vr + 4].set(params['ln2_b'][l, 0])
        slab_d = slab_d.at[vr + 5].set(params['b2'][l, 0])
    slab_d = slab_d.at[L['final'] + 0].set(params['lnf_g'][0])
    slab_d = slab_d.at[L['final'] + 1].set(params['lnf_b'][0])

    slab_qkv = jnp.zeros((L['rows_qf'], 3 * D), jnp.float32)
    slab_ff = jnp.zeros((L['rows_qf'], H), jnp.float32)
    for l in range(n_layers):
        lq = l * L['per_layer_qf']
        slab_qkv = slab_qkv.at[lq:lq + D, :D].set(q_scale * params['wq'][l])
        slab_qkv = slab_qkv.at[lq:lq + D, D:2 * D].set(params['wk'][l])
        slab_qkv = slab_qkv.at[lq:lq + D, 2 * D:].set(params['wvw'][l])
        slab_qkv = slab_qkv.at[lq + D, :D].set(q_scale * params['bq'][l, 0])
        slab_qkv = slab_qkv.at[lq + D, D:2 * D].set(params['bk'][l, 0])
        slab_qkv = slab_qkv.at[lq + D, 2 * D:].set(params['bv'][l, 0])
        slab_ff = slab_ff.at[lq:lq + D, :].set(params['w1'][l])
        slab_ff = slab_ff.at[lq + D].set(params['b1'][l, 0])

    return dict(slab_d=slab_d, slab_qkv=slab_qkv, slab_ff=slab_ff,
                wd1=params['wd1'], bd1=params['bd1'],
                wd2=params['wd2'], bd2=params['bd2'])


def _num_tensorcores_per_chip():
    # v5e/v6e: 1 TensorCore per chip (grid steps are a serial loop there);
    # v7x: 2 TCs -> a 2-way "parallel" batch split is worth it.
    try:
        kind = jax.devices()[0].device_kind.lower().replace(" ", "")
    except Exception:
        return 1
    return 2 if ("v7" in kind or "tpu7" in kind) else 1


# -------------------------------- wrapper ------------------------------------

def model_forward(packed, x_a, x_v, *, n_layers, n_heads, num_blocks):
    B, S, dim_a = x_a.shape
    dim_v = x_v.shape[2]
    F_in = dim_a + dim_v
    D = packed['slab_d'].shape[1]
    H = packed['slab_ff'].shape[1]

    if num_blocks < 1 or B % num_blocks != 0:
        num_blocks = 1
    Bb = B // num_blocks
    Nb = Bb * S

    x_av = jnp.concatenate([x_a, x_v], axis=-1).reshape(num_blocks, Nb, F_in)
    slab_d = packed['slab_d']
    slab_qkv = packed['slab_qkv']
    slab_ff = packed['slab_ff']

    enc_last = pl.pallas_call(
        functools.partial(model_kernel, n_layers, n_heads, Bb, S, F_in, D, H),
        out_shape=jax.ShapeDtypeStruct((num_blocks, Bb, D), jnp.float32),
        grid=(num_blocks,),
        in_specs=[
            pl.BlockSpec((1, Nb, F_in), lambda b: (b, 0, 0)),
            pl.BlockSpec(slab_d.shape, lambda b: (0, 0)),
            pl.BlockSpec(slab_qkv.shape, lambda b: (0, 0)),
            pl.BlockSpec(slab_ff.shape, lambda b: (0, 0)),
        ],
        out_specs=pl.BlockSpec((1, Bb, D), lambda b: (b, 0, 0)),
        compiler_params=pltpu.CompilerParams(
            dimension_semantics=("parallel",)),
    )(x_av, slab_d, slab_qkv, slab_ff)

    # DecisionNet (out_dim=1 -> a 1-lane store in-kernel) runs in XLA on the
    # [B, D] last-timestep features.
    feats = enc_last.reshape(B, D)
    h = jnp.maximum(_dot(feats, packed['wd1']) + packed['bd1'], 0.0)
    return _dot(h, packed['wd2']) + packed['bd2']         # [B, out_dim]


# --------------------------- parameters / reference --------------------------

def sinusoidal_pos_emb(S, D):
    pos = jnp.arange(S, dtype=jnp.float32)[:, None]
    i = jnp.arange(D // 2, dtype=jnp.float32)[None, :]
    angle = pos / jnp.power(10000.0, 2.0 * i / D)
    return jnp.concatenate([jnp.sin(angle), jnp.cos(angle)], axis=1)


def init_params(key, dim_a, dim_v, d_a, d_v, n_layers, out_dim, seq_len):
    D = d_a + d_v
    H = 4 * D
    ks = jax.random.split(key, 20)

    def nrm(k, shape, scale=0.05):
        return (scale * jax.random.normal(k, shape)).astype(jnp.float32)

    return dict(
        wa=nrm(ks[0], (dim_a, d_a)),
        wv=nrm(ks[1], (dim_v, d_v)),
        pos=sinusoidal_pos_emb(seq_len, D),
        ln1_g=jnp.ones((n_layers, 1, D), jnp.float32),
        ln1_b=jnp.zeros((n_layers, 1, D), jnp.float32),
        wq=nrm(ks[2], (n_layers, D, D)), bq=nrm(ks[3], (n_layers, 1, D)),
        wk=nrm(ks[4], (n_layers, D, D)), bk=nrm(ks[5], (n_layers, 1, D)),
        wvw=nrm(ks[6], (n_layers, D, D)), bv=nrm(ks[7], (n_layers, 1, D)),
        wo=nrm(ks[8], (n_layers, D, D)), bo=nrm(ks[9], (n_layers, 1, D)),
        ln2_g=jnp.ones((n_layers, 1, D), jnp.float32),
        ln2_b=jnp.zeros((n_layers, 1, D), jnp.float32),
        w1=nrm(ks[10], (n_layers, D, H)), b1=nrm(ks[11], (n_layers, 1, H)),
        w2=nrm(ks[12], (n_layers, H, D)), b2=nrm(ks[13], (n_layers, 1, D)),
        lnf_g=jnp.ones((1, D), jnp.float32),
        lnf_b=jnp.zeros((1, D), jnp.float32),
        wd1=nrm(ks[14], (D, D)), bd1=nrm(ks[15], (1, D)),
        wd2=nrm(ks[16], (D, out_dim)), bd2=nrm(ks[17], (1, out_dim)),
    )


def reference_forward(params, x_a, x_v, n_layers, n_heads):
    """Pure-JAX reference using the original (unfused) weights."""
    def one(xa, xv):
        x = jnp.concatenate([_dot(xa, params['wa']), _dot(xv, params['wv'])], -1)
        D = x.shape[-1]
        dh = D // n_heads
        x = x * jnp.float32(math.sqrt(D)) + params['pos']
        for l in range(n_layers):
            resid = x
            y = _layer_norm(x, params['ln1_g'][l], params['ln1_b'][l])
            q = _dot(y, params['wq'][l]) + params['bq'][l]
            k = _dot(y, params['wk'][l]) + params['bk'][l]
            v = _dot(y, params['wvw'][l]) + params['bv'][l]
            heads = []
            for h in range(n_heads):
                qh, kh, vh = (t[:, h * dh:(h + 1) * dh] for t in (q, k, v))
                s = _dot(qh, kh.T) / math.sqrt(dh)
                heads.append(_dot(_softmax_last(s), vh))
            x = resid + _dot(jnp.concatenate(heads, -1), params['wo'][l]) + params['bo'][l]
            resid = x
            y = _layer_norm(x, params['ln2_g'][l], params['ln2_b'][l])
            y = jnp.maximum(_dot(y, params['w1'][l]) + params['b1'][l], 0.0)
            x = resid + _dot(y, params['w2'][l]) + params['b2'][l]
        x = _layer_norm(x, params['lnf_g'], params['lnf_b'])
        last = x[-1:, :]
        h = jnp.maximum(_dot(last, params['wd1']) + params['bd1'], 0.0)
        return (_dot(h, params['wd2']) + params['bd2'])[0]
    return jax.vmap(one)(x_a, x_v)


# ---------------------------------- main --------------------------------------

if __name__ == "__main__":
    B, S = 4, 8                    # batch, seq_len
    dim_a, dim_v = 20, 16          # raw feature dims (ds.dim_a, ds.dim_v)
    d_a, d_v = 16, 16              # projected dims; D = d_a + d_v = 32
    n_heads, n_layers = 4, 2       # (d_a + d_v) % n_head_av == 0
    out_dim = 1                    # ds.output_dim

    key = jax.random.PRNGKey(0)
    k_a, k_v, k_p = jax.random.split(key, 3)
    x_a = jax.random.normal(k_a, (B, S, dim_a), jnp.float32)
    x_v = jax.random.normal(k_v, (B, S, dim_v), jnp.float32)
    params = init_params(k_p, dim_a, dim_v, d_a, d_v, n_layers, out_dim, S)

    # One-time host-side weight packing (not in the per-call path).
    packed = pack_params(params, dim_a, dim_v, S, n_layers, n_heads)

    # Split the batch across grid steps only when the chip has 2 TensorCores.
    num_blocks = 2 if (_num_tensorcores_per_chip() == 2 and B % 2 == 0) else 1

    fwd = jax.jit(functools.partial(model_forward, n_layers=n_layers,
                                    n_heads=n_heads, num_blocks=num_blocks))
    out = jax.block_until_ready(fwd(packed, x_a, x_v))

    ref = reference_forward(params, x_a, x_v, n_layers, n_heads)
    assert out.shape == (B, out_dim)
    # Default-precision MXU matmuls + host-side constant folding: compare with
    # a modest tolerance (exact softmax reciprocal is used in both paths).
    assert jnp.allclose(out, ref, atol=2e-2, rtol=2e-2), (out, ref)

    print("KERNEL_OK")
</pallas_src>

<mosaic_0001>
module attributes {stable_mosaic.version = 11 : i64} {
  func.func @model_kernel(%arg0: i32, %arg1: memref<1x32x36xf32, #tpu.memory_space<vmem>>, %arg2: memref<392x32xf32, #tpu.memory_space<vmem>>, %arg3: memref<80x96xf32, #tpu.memory_space<vmem>>, %arg4: memref<80x128xf32, #tpu.memory_space<vmem>>, %arg5: memref<1x4x32xf32, #tpu.memory_space<vmem>>) attributes {dimension_semantics = [#tpu.dimension_semantics<parallel>], iteration_bounds = array<i64: 1>, scalar_prefetch = 0 : i64, scratch_operands = 0 : i64, tpu.core_type = #tpu.core_type<tc>, window_params = [{transform_indices = @transform_0, window_bounds = array<i64: 1, 32, 36>}, {pipeline_mode = #tpu.pipeline_mode<synchronous>, transform_indices = @transform_1, window_bounds = array<i64: 392, 32>}, {pipeline_mode = #tpu.pipeline_mode<synchronous>, transform_indices = @transform_2, window_bounds = array<i64: 80, 96>}, {pipeline_mode = #tpu.pipeline_mode<synchronous>, transform_indices = @transform_3, window_bounds = array<i64: 80, 128>}, {transform_indices = @transform_4, window_bounds = array<i64: 1, 4, 32>}]} {
    %c0 = arith.constant 0 : index
    %c0_0 = arith.constant 0 : index
    %c0_1 = arith.constant 0 : index
    %0 = vector.load %arg1[%c0, %c0_0, %c0_1] : memref<1x32x36xf32, #tpu.memory_space<vmem>>, vector<1x32x36xf32>
    %1 = vector.shape_cast %0 : vector<1x32x36xf32> to vector<32x36xf32>
    %c0_2 = arith.constant 0 : index
    %c0_3 = arith.constant 0 : index
    %2 = vector.load %arg2[%c0_2, %c0_3] : memref<392x32xf32, #tpu.memory_space<vmem>>, vector<36x32xf32>
    %cst = arith.constant dense<0.000000e+00> : vector<32x32xf32>
    %3 = tpu.matmul %1, %2, %cst {dimension_numbers = #tpu.dot_dimension_numbers<[1], [0], [0], [1], [0, 0, 1, 1], [], []>} : vector<32x36xf32>, vector<36x32xf32>, vector<32x32xf32> -> vector<32x32xf32>
    %c40 = arith.constant 40 : index
    %c0_4 = arith.constant 0 : index
    %4 = vector.load %arg2[%c40, %c0_4] : memref<392x32xf32, #tpu.memory_space<vmem>>, vector<8x32xf32>
    %5 = tpu.concatenate %4, %4, %4, %4 in 0 : vector<8x32xf32>, vector<8x32xf32>, vector<8x32xf32>, vector<8x32xf32> -> vector<32x32xf32>
    %6 = arith.addf %3, %5 : vector<32x32xf32>
    %c48 = arith.constant 48 : index
    %c0_5 = arith.constant 0 : index
    %7 = vector.load %arg2[%c48, %c0_5] : memref<392x32xf32, #tpu.memory_space<vmem>>, vector<32x32xf32>
    %c80 = arith.constant 80 : index
    %c0_6 = arith.constant 0 : index
    %8 = vector.load %arg2[%c80, %c0_6] : memref<392x32xf32, #tpu.memory_space<vmem>>, vector<128x32xf32>
    %c208 = arith.constant 208 : index
    %c0_7 = arith.constant 0 : index
    %9 = vector.load %arg2[%c208, %c0_7] : memref<392x32xf32, #tpu.memory_space<vmem>>, vector<1x32xf32>
    %c209 = arith.constant 209 : index
    %c0_8 = arith.constant 0 : index
    %10 = vector.load %arg2[%c209, %c0_8] : memref<392x32xf32, #tpu.memory_space<vmem>>, vector<1x32xf32>
    %c210 = arith.constant 210 : index
    %c0_9 = arith.constant 0 : index
    %11 = vector.load %arg2[%c210, %c0_9] : memref<392x32xf32, #tpu.memory_space<vmem>>, vector<1x32xf32>
    %c211 = arith.constant 211 : index
    %c0_10 = arith.constant 0 : index
    %12 = vector.load %arg2[%c211, %c0_10] : memref<392x32xf32, #tpu.memory_space<vmem>>, vector<1x32xf32>
    %c212 = arith.constant 212 : index
    %c0_11 = arith.constant 0 : index
    %13 = vector.load %arg2[%c212, %c0_11] : memref<392x32xf32, #tpu.memory_space<vmem>>, vector<1x32xf32>
    %c213 = arith.constant 213 : index
    %c0_12 = arith.constant 0 : index
    %14 = vector.load %arg2[%c213, %c0_12] : memref<392x32xf32, #tpu.memory_space<vmem>>, vector<1x32xf32>
    %c0_13 = arith.constant 0 : index
    %c0_14 = arith.constant 0 : index
    %15 = vector.load %arg3[%c0_13, %c0_14] : memref<80x96xf32, #tpu.memory_space<vmem>>, vector<32x96xf32>
    %c32 = arith.constant 32 : index
    %c0_15 = arith.constant 0 : index
    %16 = vector.load %arg3[%c32, %c0_15] : memref<80x96xf32, #tpu.memory_space<vmem>>, vector<1x96xf32>
    %c0_16 = arith.constant 0 : index
    %c0_17 = arith.constant 0 : index
    %17 = vector.load %arg4[%c0_16, %c0_17] : memref<80x128xf32, #tpu.memory_space<vmem>>, vector<32x128xf32>
    %c32_18 = arith.constant 32 : index
    %c0_19 = arith.constant 0 : index
    %18 = vector.load %arg4[%c32_18, %c0_19] : memref<80x128xf32, #tpu.memory_space<vmem>>, vector<1x128xf32>
    %cst_20 = arith.constant dense<0.000000e+00> : vector<32xf32>
    %19 = vector.multi_reduction <add>, %6, %cst_20 [1] : vector<32x32xf32> to vector<32xf32>
    %20 = vector.shape_cast %19 : vector<32xf32> to vector<32x1xf32>
    %cst_21 = arith.constant 3.200000e+01 : f32
    %21 = vector.broadcast %cst_21 : f32 to vector<32x1xf32>
    %22 = arith.divf %20, %21 : vector<32x1xf32>
    %23 = vector.broadcast %22 : vector<32x1xf32> to vector<32x32xf32>
    %24 = arith.subf %6, %23 : vector<32x32xf32>
    %25 = arith.mulf %24, %24 : vector<32x32xf32>
    %cst_22 = arith.constant dense<0.000000e+00> : vector<32xf32>
    %26 = vector.multi_reduction <add>, %25, %cst_22 [1] : vector<32x32xf32> to vector<32xf32>
    %27 = vector.shape_cast %26 : vector<32xf32> to vector<32x1xf32>
    %cst_23 = arith.constant 3.200000e+01 : f32
    %28 = vector.broadcast %cst_23 : f32 to vector<32x1xf32>
    %29 = arith.divf %27, %28 : vector<32x1xf32>
    %30 = vector.broadcast %22 : vector<32x1xf32> to vector<32x32xf32>
    %31 = arith.subf %6, %30 : vector<32x32xf32>
    %cst_24 = arith.constant 9.99999974E-6 : f32
    %32 = vector.broadcast %cst_24 : f32 to vector<32x1xf32>
    %33 = arith.addf %29, %32 : vector<32x1xf32>
    %34 = math.rsqrt %33 : vector<32x1xf32>
    %35 = vector.broadcast %34 : vector<32x1xf32> to vector<32x32xf32>
    %36 = arith.mulf %31, %35 : vector<32x32xf32>
    %37 = vector.broadcast %9 : vector<1x32xf32> to vector<32x32xf32>
    %38 = arith.mulf %36, %37 : vector<32x32xf32>
    %39 = vector.broadcast %10 : vector<1x32xf32> to vector<32x32xf32>
    %40 = arith.addf %38, %39 : vector<32x32xf32>
    %cst_25 = arith.constant dense<0.000000e+00> : vector<32x96xf32>
    %41 = tpu.matmul %40, %15, %cst_25 {dimension_numbers = #tpu.dot_dimension_numbers<[1], [0], [0], [1], [0, 0, 1, 1], [], []>} : vector<32x32xf32>, vector<32x96xf32>, vector<32x96xf32> -> vector<32x96xf32>
    %42 = vector.broadcast %16 : vector<1x96xf32> to vector<32x96xf32>
    %43 = arith.addf %41, %42 : vector<32x96xf32>
    %44 = vector.extract_strided_slice %43 {offsets = [0, 0], sizes = [32, 32], strides = [1, 1]} : vector<32x96xf32> to vector<32x32xf32>
    %45 = vector.shape_cast %44 : vector<32x32xf32> to vector<4x8x32xf32>
    %46 = vector.extract_strided_slice %43 {offsets = [0, 32], sizes = [32, 32], strides = [1, 1]} : vector<32x96xf32> to vector<32x32xf32>
    %47 = vector.shape_cast %46 : vector<32x32xf32> to vector<4x8x32xf32>
    %48 = vector.extract_strided_slice %43 {offsets = [0, 64], sizes = [32, 32], strides = [1, 1]} : vector<32x96xf32> to vector<32x32xf32>
    %49 = vector.shape_cast %48 : vector<32x32xf32> to vector<4x8x32xf32>
    %cst_26 = arith.constant 0.000000e+00 : f32
    %50 = vector.broadcast %cst_26 : f32 to vector<32x32xf32>
    %51 = vector.extract_strided_slice %45 {offsets = [0, 0, 0], sizes = [4, 8, 8], strides = [1, 1, 1]} : vector<4x8x32xf32> to vector<4x8x8xf32>
    %52 = vector.extract_strided_slice %47 {offsets = [0, 0, 0], sizes = [4, 8, 8], strides = [1, 1, 1]} : vector<4x8x32xf32> to vector<4x8x8xf32>
    "tpu.trace_start"() <{level = 10 : i32, message = "bqd,bkd->bqk"}> : () -> ()
    %cst_27 = arith.constant dense<0.000000e+00> : vector<4x8x8xf32>
    %53 = tpu.matmul %51, %52, %cst_27 {dimension_numbers = #tpu.dot_dimension_numbers<[2], [2], [1], [1], [0, 0, 0, 1, 1, 1], [0], [0]>} : vector<4x8x8xf32>, vector<4x8x8xf32>, vector<4x8x8xf32> -> vector<4x8x8xf32>
    "tpu.trace_stop"() : () -> ()
    %cst_28 = arith.constant dense<0xFF800000> : vector<4x8xf32>
    %54 = vector.multi_reduction <maximumf>, %53, %cst_28 [2] : vector<4x8x8xf32> to vector<4x8xf32>
    %55 = vector.shape_cast %54 : vector<4x8xf32> to vector<4x8x1xf32>
    %56 = vector.broadcast %55 : vector<4x8x1xf32> to vector<4x8x8xf32>
    %57 = arith.subf %53, %56 : vector<4x8x8xf32>
    %58 = math.exp %57 : vector<4x8x8xf32>
    %cst_29 = arith.constant dense<0.000000e+00> : vector<4x8xf32>
    %59 = vector.multi_reduction <add>, %58, %cst_29 [2] : vector<4x8x8xf32> to vector<4x8xf32>
    %60 = vector.shape_cast %59 : vector<4x8xf32> to vector<4x8x1xf32>
    %61 = vector.broadcast %60 : vector<4x8x1xf32> to vector<4x8x8xf32>
    %62 = arith.divf %58, %61 : vector<4x8x8xf32>
    %63 = vector.extract_strided_slice %49 {offsets = [0, 0, 0], sizes = [4, 8, 8], strides = [1, 1, 1]} : vector<4x8x32xf32> to vector<4x8x8xf32>
    "tpu.trace_start"() <{level = 10 : i32, message = "bqk,bkd->bqd"}> : () -> ()
    %cst_30 = arith.constant dense<0.000000e+00> : vector<4x8x8xf32>
    %64 = tpu.matmul %62, %63, %cst_30 {dimension_numbers = #tpu.dot_dimension_numbers<[2], [1], [1], [2], [0, 0, 0, 1, 1, 2], [0], [0]>} : vector<4x8x8xf32>, vector<4x8x8xf32>, vector<4x8x8xf32> -> vector<4x8x8xf32>
    "tpu.trace_stop"() : () -> ()
    %65 = vector.shape_cast %64 : vector<4x8x8xf32> to vector<32x8xf32>
    %66 = vector.extract_strided_slice %7 {offsets = [0, 0], sizes = [8, 32], strides = [1, 1]} : vector<32x32xf32> to vector<8x32xf32>
    %cst_31 = arith.constant dense<0.000000e+00> : vector<32x32xf32>
    %67 = tpu.matmul %65, %66, %cst_31 {dimension_numbers = #tpu.dot_dimension_numbers<[1], [0], [0], [1], [0, 0, 1, 1], [], []>} : vector<32x8xf32>, vector<8x32xf32>, vector<32x32xf32> -> vector<32x32xf32>
    %68 = arith.addf %50, %67 : vector<32x32xf32>
    %69 = vector.extract_strided_slice %45 {offsets = [0, 0, 8], sizes = [4, 8, 8], strides = [1, 1, 1]} : vector<4x8x32xf32> to vector<4x8x8xf32>
    %70 = vector.extract_strided_slice %47 {offsets = [0, 0, 8], sizes = [4, 8, 8], strides = [1, 1, 1]} : vector<4x8x32xf32> to vector<4x8x8xf32>
    "tpu.trace_start"() <{level = 10 : i32, message = "bqd,bkd->bqk"}> : () -> ()
    %cst_32 = arith.constant dense<0.000000e+00> : vector<4x8x8xf32>
    %71 = tpu.matmul %69, %70, %cst_32 {dimension_numbers = #tpu.dot_dimension_numbers<[2], [2], [1], [1], [0, 0, 0, 1, 1, 1], [0], [0]>} : vector<4x8x8xf32>, vector<4x8x8xf32>, vector<4x8x8xf32> -> vector<4x8x8xf32>
    "tpu.trace_stop"() : () -> ()
    %cst_33 = arith.constant dense<0xFF800000> : vector<4x8xf32>
    %72 = vector.multi_reduction <maximumf>, %71, %cst_33 [2] : vector<4x8x8xf32> to vector<4x8xf32>
    %73 = vector.shape_cast %72 : vector<4x8xf32> to vector<4x8x1xf32>
    %74 = vector.broadcast %73 : vector<4x8x1xf32> to vector<4x8x8xf32>
    %75 = arith.subf %71, %74 : vector<4x8x8xf32>
    %76 = math.exp %75 : vector<4x8x8xf32>
    %cst_34 = arith.constant dense<0.000000e+00> : vector<4x8xf32>
    %77 = vector.multi_reduction <add>, %76, %cst_34 [2] : vector<4x8x8xf32> to vector<4x8xf32>
    %78 = vector.shape_cast %77 : vector<4x8xf32> to vector<4x8x1xf32>
    %79 = vector.broadcast %78 : vector<4x8x1xf32> to vector<4x8x8xf32>
    %80 = arith.divf %76, %79 : vector<4x8x8xf32>
    %81 = vector.extract_strided_slice %49 {offsets = [0, 0, 8], sizes = [4, 8, 8], strides = [1, 1, 1]} : vector<4x8x32xf32> to vector<4x8x8xf32>
    "tpu.trace_start"() <{level = 10 : i32, message = "bqk,bkd->bqd"}> : () -> ()
    %cst_35 = arith.constant dense<0.000000e+00> : vector<4x8x8xf32>
    %82 = tpu.matmul %80, %81, %cst_35 {dimension_numbers = #tpu.dot_dimension_numbers<[2], [1], [1], [2], [0, 0, 0, 1, 1, 2], [0], [0]>} : vector<4x8x8xf32>, vector<4x8x8xf32>, vector<4x8x8xf32> -> vector<4x8x8xf32>
    "tpu.trace_stop"() : () -> ()
    %83 = vector.shape_cast %82 : vector<4x8x8xf32> to vector<32x8xf32>
    %84 = vector.extract_strided_slice %7 {offsets = [8, 0], sizes = [8, 32], strides = [1, 1]} : vector<32x32xf32> to vector<8x32xf32>
    %cst_36 = arith.constant dense<0.000000e+00> : vector<32x32xf32>
    %85 = tpu.matmul %83, %84, %cst_36 {dimension_numbers = #tpu.dot_dimension_numbers<[1], [0], [0], [1], [0, 0, 1, 1], [], []>} : vector<32x8xf32>, vector<8x32xf32>, vector<32x32xf32> -> vector<32x32xf32>
    %86 = arith.addf %68, %85 : vector<32x32xf32>
    %87 = vector.extract_strided_slice %45 {offsets = [0, 0, 16], sizes = [4, 8, 8], strides = [1, 1, 1]} : vector<4x8x32xf32> to vector<4x8x8xf32>
    %88 = vector.extract_strided_slice %47 {offsets = [0, 0, 16], sizes = [4, 8, 8], strides = [1, 1, 1]} : vector<4x8x32xf32> to vector<4x8x8xf32>
    "tpu.trace_start"() <{level = 10 : i32, message = "bqd,bkd->bqk"}> : () -> ()
    %cst_37 = arith.constant dense<0.000000e+00> : vector<4x8x8xf32>
    %89 = tpu.matmul %87, %88, %cst_37 {dimension_numbers = #tpu.dot_dimension_numbers<[2], [2], [1], [1], [0, 0, 0, 1, 1, 1], [0], [0]>} : vector<4x8x8xf32>, vector<4x8x8xf32>, vector<4x8x8xf32> -> vector<4x8x8xf32>
    "tpu.trace_stop"() : () -> ()
    %cst_38 = arith.constant dense<0xFF800000> : vector<4x8xf32>
    %90 = vector.multi_reduction <maximumf>, %89, %cst_38 [2] : vector<4x8x8xf32> to vector<4x8xf32>
    %91 = vector.shape_cast %90 : vector<4x8xf32> to vector<4x8x1xf32>
    %92 = vector.broadcast %91 : vector<4x8x1xf32> to vector<4x8x8xf32>
    %93 = arith.subf %89, %92 : vector<4x8x8xf32>
    %94 = math.exp %93 : vector<4x8x8xf32>
    %cst_39 = arith.constant dense<0.000000e+00> : vector<4x8xf32>
    %95 = vector.multi_reduction <add>, %94, %cst_39 [2] : vector<4x8x8xf32> to vector<4x8xf32>
    %96 = vector.shape_cast %95 : vector<4x8xf32> to vector<4x8x1xf32>
    %97 = vector.broadcast %96 : vector<4x8x1xf32> to vector<4x8x8xf32>
    %98 = arith.divf %94, %97 : vector<4x8x8xf32>
    %99 = vector.extract_strided_slice %49 {offsets = [0, 0, 16], sizes = [4, 8, 8], strides = [1, 1, 1]} : vector<4x8x32xf32> to vector<4x8x8xf32>
    "tpu.trace_start"() <{level = 10 : i32, message = "bqk,bkd->bqd"}> : () -> ()
    %cst_40 = arith.constant dense<0.000000e+00> : vector<4x8x8xf32>
    %100 = tpu.matmul %98, %99, %cst_40 {dimension_numbers = #tpu.dot_dimension_numbers<[2], [1], [1], [2], [0, 0, 0, 1, 1, 2], [0], [0]>} : vector<4x8x8xf32>, vector<4x8x8xf32>, vector<4x8x8xf32> -> vector<4x8x8xf32>
    "tpu.trace_stop"() : () -> ()
    %101 = vector.shape_cast %100 : vector<4x8x8xf32> to vector<32x8xf32>
    %102 = vector.extract_strided_slice %7 {offsets = [16, 0], sizes = [8, 32], strides = [1, 1]} : vector<32x32xf32> to vector<8x32xf32>
    %cst_41 = arith.constant dense<0.000000e+00> : vector<32x32xf32>
    %103 = tpu.matmul %101, %102, %cst_41 {dimension_numbers = #tpu.dot_dimension_numbers<[1], [0], [0], [1], [0, 0, 1, 1], [], []>} : vector<32x8xf32>, vector<8x32xf32>, vector<32x32xf32> -> vector<32x32xf32>
    %104 = arith.addf %86, %103 : vector<32x32xf32>
    %105 = vector.extract_strided_slice %45 {offsets = [0, 0, 24], sizes = [4, 8, 8], strides = [1, 1, 1]} : vector<4x8x32xf32> to vector<4x8x8xf32>
    %106 = vector.extract_strided_slice %47 {offsets = [0, 0, 24], sizes = [4, 8, 8], strides = [1, 1, 1]} : vector<4x8x32xf32> to vector<4x8x8xf32>
    "tpu.trace_start"() <{level = 10 : i32, message = "bqd,bkd->bqk"}> : () -> ()
    %cst_42 = arith.constant dense<0.000000e+00> : vector<4x8x8xf32>
    %107 = tpu.matmul %105, %106, %cst_42 {dimension_numbers = #tpu.dot_dimension_numbers<[2], [2], [1], [1], [0, 0, 0, 1, 1, 1], [0], [0]>} : vector<4x8x8xf32>, vector<4x8x8xf32>, vector<4x8x8xf32> -> vector<4x8x8xf32>
    "tpu.trace_stop"() : () -> ()
    %cst_43 = arith.constant dense<0xFF800000> : vector<4x8xf32>
    %108 = vector.multi_reduction <maximumf>, %107, %cst_43 [2] : vector<4x8x8xf32> to vector<4x8xf32>
    %109 = vector.shape_cast %108 : vector<4x8xf32> to vector<4x8x1xf32>
    %110 = vector.broadcast %109 : vector<4x8x1xf32> to vector<4x8x8xf32>
    %111 = arith.subf %107, %110 : vector<4x8x8xf32>
    %112 = math.exp %111 : vector<4x8x8xf32>
    %cst_44 = arith.constant dense<0.000000e+00> : vector<4x8xf32>
    %113 = vector.multi_reduction <add>, %112, %cst_44 [2] : vector<4x8x8xf32> to vector<4x8xf32>
    %114 = vector.shape_cast %113 : vector<4x8xf32> to vector<4x8x1xf32>
    %115 = vector.broadcast %114 : vector<4x8x1xf32> to vector<4x8x8xf32>
    %116 = arith.divf %112, %115 : vector<4x8x8xf32>
    %117 = vector.extract_strided_slice %49 {offsets = [0, 0, 24], sizes = [4, 8, 8], strides = [1, 1, 1]} : vector<4x8x32xf32> to vector<4x8x8xf32>
    "tpu.trace_start"() <{level = 10 : i32, message = "bqk,bkd->bqd"}> : () -> ()
    %cst_45 = arith.constant dense<0.000000e+00> : vector<4x8x8xf32>
    %118 = tpu.matmul %116, %117, %cst_45 {dimension_numbers = #tpu.dot_dimension_numbers<[2], [1], [1], [2], [0, 0, 0, 1, 1, 2], [0], [0]>} : vector<4x8x8xf32>, vector<4x8x8xf32>, vector<4x8x8xf32> -> vector<4x8x8xf32>
    "tpu.trace_stop"() : () -> ()
    %119 = vector.shape_cast %118 : vector<4x8x8xf32> to vector<32x8xf32>
    %120 = vector.extract_strided_slice %7 {offsets = [24, 0], sizes = [8, 32], strides = [1, 1]} : vector<32x32xf32> to vector<8x32xf32>
    %cst_46 = arith.constant dense<0.000000e+00> : vector<32x32xf32>
    %121 = tpu.matmul %119, %120, %cst_46 {dimension_numbers = #tpu.dot_dimension_numbers<[1], [0], [0], [1], [0, 0, 1, 1], [], []>} : vector<32x8xf32>, vector<8x32xf32>, vector<32x32xf32> -> vector<32x32xf32>
    %122 = arith.addf %104, %121 : vector<32x32xf32>
    %123 = arith.addf %6, %122 : vector<32x32xf32>
    %124 = vector.broadcast %11 : vector<1x32xf32> to vector<32x32xf32>
    %125 = arith.addf %123, %124 : vector<32x32xf32>
    %cst_47 = arith.constant dense<0.000000e+00> : vector<32xf32>
    %126 = vector.multi_reduction <add>, %125, %cst_47 [1] : vector<32x32xf32> to vector<32xf32>
    %127 = vector.shape_cast %126 : vector<32xf32> to vector<32x1xf32>
    %cst_48 = arith.constant 3.200000e+01 : f32
    %128 = vector.broadcast %cst_48 : f32 to vector<32x1xf32>
    %129 = arith.divf %127, %128 : vector<32x1xf32>
    %130 = vector.broadcast %129 : vector<32x1xf32> to vector<32x32xf32>
    %131 = arith.subf %125, %130 : vector<32x32xf32>
    %132 = arith.mulf %131, %131 : vector<32x32xf32>
    %cst_49 = arith.constant dense<0.000000e+00> : vector<32xf32>
    %133 = vector.multi_reduction <add>, %132, %cst_49 [1] : vector<32x32xf32> to vector<32xf32>
    %134 = vector.shape_cast %133 : vector<32xf32> to vector<32x1xf32>
    %cst_50 = arith.constant 3.200000e+01 : f32
    %135 = vector.broadcast %cst_50 : f32 to vector<32x1xf32>
    %136 = arith.divf %134, %135 : vector<32x1xf32>
    %137 = vector.broadcast %129 : vector<32x1xf32> to vector<32x32xf32>
    %138 = arith.subf %125, %137 : vector<32x32xf32>
    %cst_51 = arith.constant 9.99999974E-6 : f32
    %139 = vector.broadcast %cst_51 : f32 to vector<32x1xf32>
    %140 = arith.addf %136, %139 : vector<32x1xf32>
    %141 = math.rsqrt %140 : vector<32x1xf32>
    %142 = vector.broadcast %141 : vector<32x1xf32> to vector<32x32xf32>
    %143 = arith.mulf %138, %142 : vector<32x32xf32>
    %144 = vector.broadcast %12 : vector<1x32xf32> to vector<32x32xf32>
    %145 = arith.mulf %143, %144 : vector<32x32xf32>
    %146 = vector.broadcast %13 : vector<1x32xf32> to vector<32x32xf32>
    %147 = arith.addf %145, %146 : vector<32x32xf32>
    %cst_52 = arith.constant dense<0.000000e+00> : vector<32x128xf32>
    %148 = tpu.matmul %147, %17, %cst_52 {dimension_numbers = #tpu.dot_dimension_numbers<[1], [0], [0], [1], [0, 0, 1, 1], [], []>} : vector<32x32xf32>, vector<32x128xf32>, vector<32x128xf32> -> vector<32x128xf32>
    %149 = vector.broadcast %18 : vector<1x128xf32> to vector<32x128xf32>
    %150 = arith.addf %148, %149 : vector<32x128xf32>
    %cst_53 = arith.constant 0.000000e+00 : f32
    %151 = vector.broadcast %cst_53 : f32 to vector<32x128xf32>
    %152 = arith.maximumf %150, %151 : vector<32x128xf32>
    %cst_54 = arith.constant dense<0.000000e+00> : vector<32x32xf32>
    %153 = tpu.matmul %152, %8, %cst_54 {dimension_numbers = #tpu.dot_dimension_numbers<[1], [0], [0], [1], [0, 0, 1, 1], [], []>} : vector<32x128xf32>, vector<128x32xf32>, vector<32x32xf32> -> vector<32x32xf32>
    %154 = arith.addf %125, %153 : vector<32x32xf32>
    %155 = vector.broadcast %14 : vector<1x32xf32> to vector<32x32xf32>
    %156 = arith.addf %154, %155 : vector<32x32xf32>
    %c216 = arith.constant 216 : index
    %c0_55 = arith.constant 0 : index
    %157 = vector.load %arg2[%c216, %c0_55] : memref<392x32xf32, #tpu.memory_space<vmem>>, vector<32x32xf32>
    %c248 = arith.constant 248 : index
    %c0_56 = arith.constant 0 : index
    %158 = vector.load %arg2[%c248, %c0_56] : memref<392x32xf32, #tpu.memory_space<vmem>>, vector<128x32xf32>
    %c376 = arith.constant 376 : index
    %c0_57 = arith.constant 0 : index
    %159 = vector.load %arg2[%c376, %c0_57] : memref<392x32xf32, #tpu.memory_space<vmem>>, vector<1x32xf32>
    %c377 = arith.constant 377 : index
    %c0_58 = arith.constant 0 : index
    %160 = vector.load %arg2[%c377, %c0_58] : memref<392x32xf32, #tpu.memory_space<vmem>>, vector<1x32xf32>
    %c378 = arith.constant 378 : index
    %c0_59 = arith.constant 0 : index
    %161 = vector.load %arg2[%c378, %c0_59] : memref<392x32xf32, #tpu.memory_space<vmem>>, vector<1x32xf32>
    %c379 = arith.constant 379 : index
    %c0_60 = arith.constant 0 : index
    %162 = vector.load %arg2[%c379, %c0_60] : memref<392x32xf32, #tpu.memory_space<vmem>>, vector<1x32xf32>
    %c380 = arith.constant 380 : index
    %c0_61 = arith.constant 0 : index
    %163 = vector.load %arg2[%c380, %c0_61] : memref<392x32xf32, #tpu.memory_space<vmem>>, vector<1x32xf32>
    %c381 = arith.constant 381 : index
    %c0_62 = arith.constant 0 : index
    %164 = vector.load %arg2[%c381, %c0_62] : memref<392x32xf32, #tpu.memory_space<vmem>>, vector<1x32xf32>
    %c40_63 = arith.constant 40 : index
    %c0_64 = arith.constant 0 : index
    %165 = vector.load %arg3[%c40_63, %c0_64] : memref<80x96xf32, #tpu.memory_space<vmem>>, vector<32x96xf32>
    %c72 = arith.constant 72 : index
    %c0_65 = arith.constant 0 : index
    %166 = vector.load %arg3[%c72, %c0_65] : memref<80x96xf32, #tpu.memory_space<vmem>>, vector<1x96xf32>
    %c40_66 = arith.constant 40 : index
    %c0_67 = arith.constant 0 : index
    %167 = vector.load %arg4[%c40_66, %c0_67] : memref<80x128xf32, #tpu.memory_space<vmem>>, vector<32x128xf32>
    %c72_68 = arith.constant 72 : index
    %c0_69 = arith.constant 0 : index
    %168 = vector.load %arg4[%c72_68, %c0_69] : memref<80x128xf32, #tpu.memory_space<vmem>>, vector<1x128xf32>
    %cst_70 = arith.constant dense<0.000000e+00> : vector<32xf32>
    %169 = vector.multi_reduction <add>, %156, %cst_70 [1] : vector<32x32xf32> to vector<32xf32>
    %170 = vector.shape_cast %169 : vector<32xf32> to vector<32x1xf32>
    %cst_71 = arith.constant 3.200000e+01 : f32
    %171 = vector.broadcast %cst_71 : f32 to vector<32x1xf32>
    %172 = arith.divf %170, %171 : vector<32x1xf32>
    %173 = vector.broadcast %172 : vector<32x1xf32> to vector<32x32xf32>
    %174 = arith.subf %156, %173 : vector<32x32xf32>
    %175 = arith.mulf %174, %174 : vector<32x32xf32>
    %cst_72 = arith.constant dense<0.000000e+00> : vector<32xf32>
    %176 = vector.multi_reduction <add>, %175, %cst_72 [1] : vector<32x32xf32> to vector<32xf32>
    %177 = vector.shape_cast %176 : vector<32xf32> to vector<32x1xf32>
    %cst_73 = arith.constant 3.200000e+01 : f32
    %178 = vector.broadcast %cst_73 : f32 to vector<32x1xf32>
    %179 = arith.divf %177, %178 : vector<32x1xf32>
    %180 = vector.broadcast %172 : vector<32x1xf32> to vector<32x32xf32>
    %181 = arith.subf %156, %180 : vector<32x32xf32>
    %cst_74 = arith.constant 9.99999974E-6 : f32
    %182 = vector.broadcast %cst_74 : f32 to vector<32x1xf32>
    %183 = arith.addf %179, %182 : vector<32x1xf32>
    %184 = math.rsqrt %183 : vector<32x1xf32>
    %185 = vector.broadcast %184 : vector<32x1xf32> to vector<32x32xf32>
    %186 = arith.mulf %181, %185 : vector<32x32xf32>
    %187 = vector.broadcast %159 : vector<1x32xf32> to vector<32x32xf32>
    %188 = arith.mulf %186, %187 : vector<32x32xf32>
    %189 = vector.broadcast %160 : vector<1x32xf32> to vector<32x32xf32>
    %190 = arith.addf %188, %189 : vector<32x32xf32>
    %cst_75 = arith.constant dense<0.000000e+00> : vector<32x96xf32>
    %191 = tpu.matmul %190, %165, %cst_75 {dimension_numbers = #tpu.dot_dimension_numbers<[1], [0], [0], [1], [0, 0, 1, 1], [], []>} : vector<32x32xf32>, vector<32x96xf32>, vector<32x96xf32> -> vector<32x96xf32>
    %192 = vector.broadcast %166 : vector<1x96xf32> to vector<32x96xf32>
    %193 = arith.addf %191, %192 : vector<32x96xf32>
    %194 = vector.extract_strided_slice %193 {offsets = [0, 0], sizes = [32, 32], strides = [1, 1]} : vector<32x96xf32> to vector<32x32xf32>
    %195 = vector.shape_cast %194 : vector<32x32xf32> to vector<4x8x32xf32>
    %196 = vector.extract_strided_slice %193 {offsets = [0, 32], sizes = [32, 32], strides = [1, 1]} : vector<32x96xf32> to vector<32x32xf32>
    %197 = vector.shape_cast %196 : vector<32x32xf32> to vector<4x8x32xf32>
    %198 = vector.extract_strided_slice %193 {offsets = [0, 64], sizes = [32, 32], strides = [1, 1]} : vector<32x96xf32> to vector<32x32xf32>
    %199 = vector.shape_cast %198 : vector<32x32xf32> to vector<4x8x32xf32>
    %cst_76 = arith.constant 0.000000e+00 : f32
    %200 = vector.broadcast %cst_76 : f32 to vector<32x32xf32>
    %201 = vector.extract_strided_slice %195 {offsets = [0, 0, 0], sizes = [4, 8, 8], strides = [1, 1, 1]} : vector<4x8x32xf32> to vector<4x8x8xf32>
    %202 = vector.extract_strided_slice %197 {offsets = [0, 0, 0], sizes = [4, 8, 8], strides = [1, 1, 1]} : vector<4x8x32xf32> to vector<4x8x8xf32>
    "tpu.trace_start"() <{level = 10 : i32, message = "bqd,bkd->bqk"}> : () -> ()
    %cst_77 = arith.constant dense<0.000000e+00> : vector<4x8x8xf32>
    %203 = tpu.matmul %201, %202, %cst_77 {dimension_numbers = #tpu.dot_dimension_numbers<[2], [2], [1], [1], [0, 0, 0, 1, 1, 1], [0], [0]>} : vector<4x8x8xf32>, vector<4x8x8xf32>, vector<4x8x8xf32> -> vector<4x8x8xf32>
    "tpu.trace_stop"() : () -> ()
    %cst_78 = arith.constant dense<0xFF800000> : vector<4x8xf32>
    %204 = vector.multi_reduction <maximumf>, %203, %cst_78 [2] : vector<4x8x8xf32> to vector<4x8xf32>
    %205 = vector.shape_cast %204 : vector<4x8xf32> to vector<4x8x1xf32>
    %206 = vector.broadcast %205 : vector<4x8x1xf32> to vector<4x8x8xf32>
    %207 = arith.subf %203, %206 : vector<4x8x8xf32>
    %208 = math.exp %207 : vector<4x8x8xf32>
    %cst_79 = arith.constant dense<0.000000e+00> : vector<4x8xf32>
    %209 = vector.multi_reduction <add>, %208, %cst_79 [2] : vector<4x8x8xf32> to vector<4x8xf32>
    %210 = vector.shape_cast %209 : vector<4x8xf32> to vector<4x8x1xf32>
    %211 = vector.broadcast %210 : vector<4x8x1xf32> to vector<4x8x8xf32>
    %212 = arith.divf %208, %211 : vector<4x8x8xf32>
    %213 = vector.extract_strided_slice %199 {offsets = [0, 0, 0], sizes = [4, 8, 8], strides = [1, 1, 1]} : vector<4x8x32xf32> to vector<4x8x8xf32>
    "tpu.trace_start"() <{level = 10 : i32, message = "bqk,bkd->bqd"}> : () -> ()
    %cst_80 = arith.constant dense<0.000000e+00> : vector<4x8x8xf32>
    %214 = tpu.matmul %212, %213, %cst_80 {dimension_numbers = #tpu.dot_dimension_numbers<[2], [1], [1], [2], [0, 0, 0, 1, 1, 2], [0], [0]>} : vector<4x8x8xf32>, vector<4x8x8xf32>, vector<4x8x8xf32> -> vector<4x8x8xf32>
    "tpu.trace_stop"() : () -> ()
    %215 = vector.shape_cast %214 : vector<4x8x8xf32> to vector<32x8xf32>
    %216 = vector.extract_strided_slice %157 {offsets = [0, 0], sizes = [8, 32], strides = [1, 1]} : vector<32x32xf32> to vector<8x32xf32>
    %cst_81 = arith.constant dense<0.000000e+00> : vector<32x32xf32>
    %217 = tpu.matmul %215, %216, %cst_81 {dimension_numbers = #tpu.dot_dimension_numbers<[1], [0], [0], [1], [0, 0, 1, 1], [], []>} : vector<32x8xf32>, vector<8x32xf32>, vector<32x32xf32> -> vector<32x32xf32>
    %218 = arith.addf %200, %217 : vector<32x32xf32>
    %219 = vector.extract_strided_slice %195 {offsets = [0, 0, 8], sizes = [4, 8, 8], strides = [1, 1, 1]} : vector<4x8x32xf32> to vector<4x8x8xf32>
    %220 = vector.extract_strided_slice %197 {offsets = [0, 0, 8], sizes = [4, 8, 8], strides = [1, 1, 1]} : vector<4x8x32xf32> to vector<4x8x8xf32>
    "tpu.trace_start"() <{level = 10 : i32, message = "bqd,bkd->bqk"}> : () -> ()
    %cst_82 = arith.constant dense<0.000000e+00> : vector<4x8x8xf32>
    %221 = tpu.matmul %219, %220, %cst_82 {dimension_numbers = #tpu.dot_dimension_numbers<[2], [2], [1], [1], [0, 0, 0, 1, 1, 1], [0], [0]>} : vector<4x8x8xf32>, vector<4x8x8xf32>, vector<4x8x8xf32> -> vector<4x8x8xf32>
    "tpu.trace_stop"() : () -> ()
    %cst_83 = arith.constant dense<0xFF800000> : vector<4x8xf32>
    %222 = vector.multi_reduction <maximumf>, %221, %cst_83 [2] : vector<4x8x8xf32> to vector<4x8xf32>
    %223 = vector.shape_cast %222 : vector<4x8xf32> to vector<4x8x1xf32>
    %224 = vector.broadcast %223 : vector<4x8x1xf32> to vector<4x8x8xf32>
    %225 = arith.subf %221, %224 : vector<4x8x8xf32>
    %226 = math.exp %225 : vector<4x8x8xf32>
    %cst_84 = arith.constant dense<0.000000e+00> : vector<4x8xf32>
    %227 = vector.multi_reduction <add>, %226, %cst_84 [2] : vector<4x8x8xf32> to vector<4x8xf32>
    %228 = vector.shape_cast %227 : vector<4x8xf32> to vector<4x8x1xf32>
    %229 = vector.broadcast %228 : vector<4x8x1xf32> to vector<4x8x8xf32>
    %230 = arith.divf %226, %229 : vector<4x8x8xf32>
    %231 = vector.extract_strided_slice %199 {offsets = [0, 0, 8], sizes = [4, 8, 8], strides = [1, 1, 1]} : vector<4x8x32xf32> to vector<4x8x8xf32>
    "tpu.trace_start"() <{level = 10 : i32, message = "bqk,bkd->bqd"}> : () -> ()
    %cst_85 = arith.constant dense<0.000000e+00> : vector<4x8x8xf32>
    %232 = tpu.matmul %230, %231, %cst_85 {dimension_numbers = #tpu.dot_dimension_numbers<[2], [1], [1], [2], [0, 0, 0, 1, 1, 2], [0], [0]>} : vector<4x8x8xf32>, vector<4x8x8xf32>, vector<4x8x8xf32> -> vector<4x8x8xf32>
    "tpu.trace_stop"() : () -> ()
    %233 = vector.shape_cast %232 : vector<4x8x8xf32> to vector<32x8xf32>
    %234 = vector.extract_strided_slice %157 {offsets = [8, 0], sizes = [8, 32], strides = [1, 1]} : vector<32x32xf32> to vector<8x32xf32>
    %cst_86 = arith.constant dense<0.000000e+00> : vector<32x32xf32>
    %235 = tpu.matmul %233, %234, %cst_86 {dimension_numbers = #tpu.dot_dimension_numbers<[1], [0], [0], [1], [0, 0, 1, 1], [], []>} : vector<32x8xf32>, vector<8x32xf32>, vector<32x32xf32> -> vector<32x32xf32>
    %236 = arith.addf %218, %235 : vector<32x32xf32>
    %237 = vector.extract_strided_slice %195 {offsets = [0, 0, 16], sizes = [4, 8, 8], strides = [1, 1, 1]} : vector<4x8x32xf32> to vector<4x8x8xf32>
    %238 = vector.extract_strided_slice %197 {offsets = [0, 0, 16], sizes = [4, 8, 8], strides = [1, 1, 1]} : vector<4x8x32xf32> to vector<4x8x8xf32>
    "tpu.trace_start"() <{level = 10 : i32, message = "bqd,bkd->bqk"}> : () -> ()
    %cst_87 = arith.constant dense<0.000000e+00> : vector<4x8x8xf32>
    %239 = tpu.matmul %237, %238, %cst_87 {dimension_numbers = #tpu.dot_dimension_numbers<[2], [2], [1], [1], [0, 0, 0, 1, 1, 1], [0], [0]>} : vector<4x8x8xf32>, vector<4x8x8xf32>, vector<4x8x8xf32> -> vector<4x8x8xf32>
    "tpu.trace_stop"() : () -> ()
    %cst_88 = arith.constant dense<0xFF800000> : vector<4x8xf32>
    %240 = vector.multi_reduction <maximumf>, %239, %cst_88 [2] : vector<4x8x8xf32> to vector<4x8xf32>
    %241 = vector.shape_cast %240 : vector<4x8xf32> to vector<4x8x1xf32>
    %242 = vector.broadcast %241 : vector<4x8x1xf32> to vector<4x8x8xf32>
    %243 = arith.subf %239, %242 : vector<4x8x8xf32>
    %244 = math.exp %243 : vector<4x8x8xf32>
    %cst_89 = arith.constant dense<0.000000e+00> : vector<4x8xf32>
    %245 = vector.multi_reduction <add>, %244, %cst_89 [2] : vector<4x8x8xf32> to vector<4x8xf32>
    %246 = vector.shape_cast %245 : vector<4x8xf32> to vector<4x8x1xf32>
    %247 = vector.broadcast %246 : vector<4x8x1xf32> to vector<4x8x8xf32>
    %248 = arith.divf %244, %247 : vector<4x8x8xf32>
    %249 = vector.extract_strided_slice %199 {offsets = [0, 0, 16], sizes = [4, 8, 8], strides = [1, 1, 1]} : vector<4x8x32xf32> to vector<4x8x8xf32>
    "tpu.trace_start"() <{level = 10 : i32, message = "bqk,bkd->bqd"}> : () -> ()
    %cst_90 = arith.constant dense<0.000000e+00> : vector<4x8x8xf32>
    %250 = tpu.matmul %248, %249, %cst_90 {dimension_numbers = #tpu.dot_dimension_numbers<[2], [1], [1], [2], [0, 0, 0, 1, 1, 2], [0], [0]>} : vector<4x8x8xf32>, vector<4x8x8xf32>, vector<4x8x8xf32> -> vector<4x8x8xf32>
    "tpu.trace_stop"() : () -> ()
    %251 = vector.shape_cast %250 : vector<4x8x8xf32> to vector<32x8xf32>
    %252 = vector.extract_strided_slice %157 {offsets = [16, 0], sizes = [8, 32], strides = [1, 1]} : vector<32x32xf32> to vector<8x32xf32>
    %cst_91 = arith.constant dense<0.000000e+00> : vector<32x32xf32>
    %253 = tpu.matmul %251, %252, %cst_91 {dimension_numbers = #tpu.dot_dimension_numbers<[1], [0], [0], [1], [0, 0, 1, 1], [], []>} : vector<32x8xf32>, vector<8x32xf32>, vector<32x32xf32> -> vector<32x32xf32>
    %254 = arith.addf %236, %253 : vector<32x32xf32>
    %255 = vector.extract_strided_slice %195 {offsets = [0, 0, 24], sizes = [4, 8, 8], strides = [1, 1, 1]} : vector<4x8x32xf32> to vector<4x8x8xf32>
    %256 = vector.extract_strided_slice %197 {offsets = [0, 0, 24], sizes = [4, 8, 8], strides = [1, 1, 1]} : vector<4x8x32xf32> to vector<4x8x8xf32>
    "tpu.trace_start"() <{level = 10 : i32, message = "bqd,bkd->bqk"}> : () -> ()
    %cst_92 = arith.constant dense<0.000000e+00> : vector<4x8x8xf32>
    %257 = tpu.matmul %255, %256, %cst_92 {dimension_numbers = #tpu.dot_dimension_numbers<[2], [2], [1], [1], [0, 0, 0, 1, 1, 1], [0], [0]>} : vector<4x8x8xf32>, vector<4x8x8xf32>, vector<4x8x8xf32> -> vector<4x8x8xf32>
    "tpu.trace_stop"() : () -> ()
    %cst_93 = arith.constant dense<0xFF800000> : vector<4x8xf32>
    %258 = vector.multi_reduction <maximumf>, %257, %cst_93 [2] : vector<4x8x8xf32> to vector<4x8xf32>
    %259 = vector.shape_cast %258 : vector<4x8xf32> to vector<4x8x1xf32>
    %260 = vector.broadcast %259 : vector<4x8x1xf32> to vector<4x8x8xf32>
    %261 = arith.subf %257, %260 : vector<4x8x8xf32>
    %262 = math.exp %261 : vector<4x8x8xf32>
    %cst_94 = arith.constant dense<0.000000e+00> : vector<4x8xf32>
    %263 = vector.multi_reduction <add>, %262, %cst_94 [2] : vector<4x8x8xf32> to vector<4x8xf32>
    %264 = vector.shape_cast %263 : vector<4x8xf32> to vector<4x8x1xf32>
    %265 = vector.broadcast %264 : vector<4x8x1xf32> to vector<4x8x8xf32>
    %266 = arith.divf %262, %265 : vector<4x8x8xf32>
    %267 = vector.extract_strided_slice %199 {offsets = [0, 0, 24], sizes = [4, 8, 8], strides = [1, 1, 1]} : vector<4x8x32xf32> to vector<4x8x8xf32>
    "tpu.trace_start"() <{level = 10 : i32, message = "bqk,bkd->bqd"}> : () -> ()
    %cst_95 = arith.constant dense<0.000000e+00> : vector<4x8x8xf32>
    %268 = tpu.matmul %266, %267, %cst_95 {dimension_numbers = #tpu.dot_dimension_numbers<[2], [1], [1], [2], [0, 0, 0, 1, 1, 2], [0], [0]>} : vector<4x8x8xf32>, vector<4x8x8xf32>, vector<4x8x8xf32> -> vector<4x8x8xf32>
    "tpu.trace_stop"() : () -> ()
    %269 = vector.shape_cast %268 : vector<4x8x8xf32> to vector<32x8xf32>
    %270 = vector.extract_strided_slice %157 {offsets = [24, 0], sizes = [8, 32], strides = [1, 1]} : vector<32x32xf32> to vector<8x32xf32>
    %cst_96 = arith.constant dense<0.000000e+00> : vector<32x32xf32>
    %271 = tpu.matmul %269, %270, %cst_96 {dimension_numbers = #tpu.dot_dimension_numbers<[1], [0], [0], [1], [0, 0, 1, 1], [], []>} : vector<32x8xf32>, vector<8x32xf32>, vector<32x32xf32> -> vector<32x32xf32>
    %272 = arith.addf %254, %271 : vector<32x32xf32>
    %273 = arith.addf %156, %272 : vector<32x32xf32>
    %274 = vector.broadcast %161 : vector<1x32xf32> to vector<32x32xf32>
    %275 = arith.addf %273, %274 : vector<32x32xf32>
    %cst_97 = arith.constant dense<0.000000e+00> : vector<32xf32>
    %276 = vector.multi_reduction <add>, %275, %cst_97 [1] : vector<32x32xf32> to vector<32xf32>
    %277 = vector.shape_cast %276 : vector<32xf32> to vector<32x1xf32>
    %cst_98 = arith.constant 3.200000e+01 : f32
    %278 = vector.broadcast %cst_98 : f32 to vector<32x1xf32>
    %279 = arith.divf %277, %278 : vector<32x1xf32>
    %280 = vector.broadcast %279 : vector<32x1xf32> to vector<32x32xf32>
    %281 = arith.subf %275, %280 : vector<32x32xf32>
    %282 = arith.mulf %281, %281 : vector<32x32xf32>
    %cst_99 = arith.constant dense<0.000000e+00> : vector<32xf32>
    %283 = vector.multi_reduction <add>, %282, %cst_99 [1] : vector<32x32xf32> to vector<32xf32>
    %284 = vector.shape_cast %283 : vector<32xf32> to vector<32x1xf32>
    %cst_100 = arith.constant 3.200000e+01 : f32
    %285 = vector.broadcast %cst_100 : f32 to vector<32x1xf32>
    %286 = arith.divf %284, %285 : vector<32x1xf32>
    %287 = vector.broadcast %279 : vector<32x1xf32> to vector<32x32xf32>
    %288 = arith.subf %275, %287 : vector<32x32xf32>
    %cst_101 = arith.constant 9.99999974E-6 : f32
    %289 = vector.broadcast %cst_101 : f32 to vector<32x1xf32>
    %290 = arith.addf %286, %289 : vector<32x1xf32>
    %291 = math.rsqrt %290 : vector<32x1xf32>
    %292 = vector.broadcast %291 : vector<32x1xf32> to vector<32x32xf32>
    %293 = arith.mulf %288, %292 : vector<32x32xf32>
    %294 = vector.broadcast %162 : vector<1x32xf32> to vector<32x32xf32>
    %295 = arith.mulf %293, %294 : vector<32x32xf32>
    %296 = vector.broadcast %163 : vector<1x32xf32> to vector<32x32xf32>
    %297 = arith.addf %295, %296 : vector<32x32xf32>
    %cst_102 = arith.constant dense<0.000000e+00> : vector<32x128xf32>
    %298 = tpu.matmul %297, %167, %cst_102 {dimension_numbers = #tpu.dot_dimension_numbers<[1], [0], [0], [1], [0, 0, 1, 1], [], []>} : vector<32x32xf32>, vector<32x128xf32>, vector<32x128xf32> -> vector<32x128xf32>
    %299 = vector.broadcast %168 : vector<1x128xf32> to vector<32x128xf32>
    %300 = arith.addf %298, %299 : vector<32x128xf32>
    %cst_103 = arith.constant 0.000000e+00 : f32
    %301 = vector.broadcast %cst_103 : f32 to vector<32x128xf32>
    %302 = arith.maximumf %300, %301 : vector<32x128xf32>
    %cst_104 = arith.constant dense<0.000000e+00> : vector<32x32xf32>
    %303 = tpu.matmul %302, %158, %cst_104 {dimension_numbers = #tpu.dot_dimension_numbers<[1], [0], [0], [1], [0, 0, 1, 1], [], []>} : vector<32x128xf32>, vector<128x32xf32>, vector<32x32xf32> -> vector<32x32xf32>
    %304 = arith.addf %275, %303 : vector<32x32xf32>
    %305 = vector.broadcast %164 : vector<1x32xf32> to vector<32x32xf32>
    %306 = arith.addf %304, %305 : vector<32x32xf32>
    %307 = vector.shape_cast %306 : vector<32x32xf32> to vector<4x8x32xf32>
    %308 = vector.extract_strided_slice %307 {offsets = [0, 7, 0], sizes = [4, 1, 32], strides = [1, 1, 1]} : vector<4x8x32xf32> to vector<4x1x32xf32>
    %309 = vector.shape_cast %308 : vector<4x1x32xf32> to vector<4x32xf32>
    %c384 = arith.constant 384 : index
    %c0_105 = arith.constant 0 : index
    %310 = vector.load %arg2[%c384, %c0_105] : memref<392x32xf32, #tpu.memory_space<vmem>>, vector<1x32xf32>
    %c385 = arith.constant 385 : index
    %c0_106 = arith.constant 0 : index
    %311 = vector.load %arg2[%c385, %c0_106] : memref<392x32xf32, #tpu.memory_space<vmem>>, vector<1x32xf32>
    %cst_107 = arith.constant dense<0.000000e+00> : vector<4xf32>
    %312 = vector.multi_reduction <add>, %309, %cst_107 [1] : vector<4x32xf32> to vector<4xf32>
    %313 = vector.shape_cast %312 : vector<4xf32> to vector<4x1xf32>
    %cst_108 = arith.constant 3.200000e+01 : f32
    %314 = vector.broadcast %cst_108 : f32 to vector<4x1xf32>
    %315 = arith.divf %313, %314 : vector<4x1xf32>
    %316 = vector.broadcast %315 : vector<4x1xf32> to vector<4x32xf32>
    %317 = arith.subf %309, %316 : vector<4x32xf32>
    %318 = arith.mulf %317, %317 : vector<4x32xf32>
    %cst_109 = arith.constant dense<0.000000e+00> : vector<4xf32>
    %319 = vector.multi_reduction <add>, %318, %cst_109 [1] : vector<4x32xf32> to vector<4xf32>
    %320 = vector.shape_cast %319 : vector<4xf32> to vector<4x1xf32>
    %cst_110 = arith.constant 3.200000e+01 : f32
    %321 = vector.broadcast %cst_110 : f32 to vector<4x1xf32>
    %322 = arith.divf %320, %321 : vector<4x1xf32>
    %323 = vector.broadcast %315 : vector<4x1xf32> to vector<4x32xf32>
    %324 = arith.subf %309, %323 : vector<4x32xf32>
    %cst_111 = arith.constant 9.99999974E-6 : f32
    %325 = vector.broadcast %cst_111 : f32 to vector<4x1xf32>
    %326 = arith.addf %322, %325 : vector<4x1xf32>
    %327 = math.rsqrt %326 : vector<4x1xf32>
    %328 = vector.broadcast %327 : vector<4x1xf32> to vector<4x32xf32>
    %329 = arith.mulf %324, %328 : vector<4x32xf32>
    %330 = vector.broadcast %310 : vector<1x32xf32> to vector<4x32xf32>
    %331 = arith.mulf %329, %330 : vector<4x32xf32>
    %332 = vector.broadcast %311 : vector<1x32xf32> to vector<4x32xf32>
    %333 = arith.addf %331, %332 : vector<4x32xf32>
    %c0_112 = arith.constant 0 : index
    %c0_113 = arith.constant 0 : index
    %c0_114 = arith.constant 0 : index
    %334 = vector.load %arg5[%c0_112, %c0_113, %c0_114] : memref<1x4x32xf32, #tpu.memory_space<vmem>>, vector<1x4x32xf32>
    %335 = vector.shape_cast %334 : vector<1x4x32xf32> to vector<4x32xf32>
    %336 = vector.shape_cast %333 : vector<4x32xf32> to vector<1x4x32xf32>
    tpu.vector_store %arg5[%c0_112, %c0_113, %c0_114], %336 {strides = array<i32>} : memref<1x4x32xf32, #tpu.memory_space<vmem>>, vector<1x4x32xf32>,
    return
  }
  func.func @transform_0(%arg0: i32) -> (i32, i32, i32) {
    %c0_i32 = arith.constant 0 : i32
    %c0_i32_0 = arith.constant 0 : i32
    %c0_i32_1 = arith.constant 0 : i32
    return %arg0, %c0_i32, %c0_i32_0 : i32, i32, i32
  }
  func.func @transform_1(%arg0: i32) -> (i32, i32) {
    %c0_i32 = arith.constant 0 : i32
    %c0_i32_0 = arith.constant 0 : i32
    %c0_i32_1 = arith.constant 0 : i32
    return %c0_i32, %c0_i32_0 : i32, i32
  }
  func.func @transform_2(%arg0: i32) -> (i32, i32) {
    %c0_i32 = arith.constant 0 : i32
    %c0_i32_0 = arith.constant 0 : i32
    %c0_i32_1 = arith.constant 0 : i32
    return %c0_i32, %c0_i32_0 : i32, i32
  }
  func.func @transform_3(%arg0: i32) -> (i32, i32) {
    %c0_i32 = arith.constant 0 : i32
    %c0_i32_0 = arith.constant 0 : i32
    %c0_i32_1 = arith.constant 0 : i32
    return %c0_i32, %c0_i32_0 : i32, i32
  }
  func.func @transform_4(%arg0: i32) -> (i32, i32, i32) {
    %c0_i32 = arith.constant 0 : i32
    %c0_i32_0 = arith.constant 0 : i32
    %c0_i32_1 = arith.constant 0 : i32
    return %arg0, %c0_i32, %c0_i32_0 : i32, i32, i32
  }
}

</mosaic_0001>

<llo_original>
// kernel: model_forward.1
$region0: #{model_forward.1}
  #allocation0 [shape = 'u32[]', space=smem, size = 0x4, offset = 0x4, fixed_abs, tag = 'smem constant byte address 0x4 - core index']
  #allocation1 [shape = 'u32[144,128]{1,0:T(1,128)}', space=vmem, size = 0x12000, scoped, tag = 'internal scratch']
  %s0 = inlined_call_operand.vmem [shape: f32[1,32,36], index: 0, kind: input, shape index: {}]
  %s1 = inlined_call_operand.vmem [shape: f32[392,32], index: 1, kind: input, shape index: {}]
  %s2 = inlined_call_operand.vmem [shape: f32[80,96], index: 2, kind: input, shape index: {}]
  %s3 = inlined_call_operand.vmem [shape: f32[80,128], index: 3, kind: input, shape index: {}]
  %s4 = inlined_call_operand.vmem [shape: f32[1,4,32], index: 4, kind: output, shape index: {}]
  %s5 = sld [smem:[#allocation0]]
  $region26: #{model_forward.1} parent=0
    _
  %s7 = ssub.s32 1, %s5
  %s8 = scalar_select 0, %s7, %s5
  // Predicated region
  $region2: #{model_forward.1} parent=0 // pred_check
    _
  $region3: #{model_forward.1} parent=0 // pred_check_branch
    %10 = sbr.rel (0) target = $region5
  $region4: #{model_forward.1} parent=0 // pred_region
    _
  $region5: #{model_forward.1} parent=0 // pred_fallthru
    _
  // Predicated region
  $region6: #{model_forward.1} parent=0 // pred_check
    _
  $region7: #{model_forward.1} parent=0 // pred_check_branch
    %12 = sbr.rel (0) target = $region9
  $region8: #{model_forward.1} parent=0 // pred_region
    _
  $region9: #{model_forward.1} parent=0 // pred_fallthru
    _
  // Predicated region
  $region10: #{model_forward.1} parent=0 // pred_check
    _
  $region11: #{model_forward.1} parent=0 // pred_check_branch
    %14 = sbr.rel (0) target = $region13
  $region12: #{model_forward.1} parent=0 // pred_region
    _
  $region13: #{model_forward.1} parent=0 // pred_fallthru
    _
  // Predicated region
  $region14: #{model_forward.1} parent=0 // pred_check
    _
  $region15: #{model_forward.1} parent=0 // pred_check_branch
    %16 = sbr.rel (0) target = $region17
  $region16: #{model_forward.1} parent=0 // pred_region
    _
  $region17: #{model_forward.1} parent=0 // pred_fallthru
    _
  %v17 = vld [vmem:[%s0] sm:$0xff]
  %v18 = vld [vmem:[%s0 + $0x8] sm:$0xff]
  %v19 = vld [vmem:[%s0 + $0x10] sm:$0xff]
  %v20 = vld [vmem:[%s0 + $0x18] sm:$0xff]
  %v21 = vld [vmem:[%s1] sm:$0xff]
  %v22 = vld [vmem:[%s1 + $0x8] sm:$0xff]
  %v23 = vld [vmem:[%s1 + $0x10] sm:$0xff]
  %v24 = vld [vmem:[%s1 + $0x18] sm:$0xff]
  %v25 = vld [vmem:[%s1 + $0x20] sm:$0xf]
  %v26 = vld [vmem:[%s1 + $0x28] sm:$0xff]
  %vm27 = vcmask 293888
  %v29 = vsel %vm27, %v17, 0
  %v32 = vsel %vm27, %v18, 0
  %v35 = vsel %vm27, %v19, 0
  %v38 = vsel %vm27, %v20, 0
  %vm40 = vcmask 1043456
  %v42 = vsel %vm40, %v25, 0
  %44 = vmatprep.subr.mxu0 0.0
  %45 = vmatpush1.msra.mxu0 0.0
  %46 = vmatprep.subr.mxu0 0.0
  %47 = vmatpush1.msra.mxu0 0.0
  %48 = vmatprep.subr.mxu0 0.0
  %49 = vmatpush1.msra.mxu0 0.0
  %50 = vmatprep.subr.mxu0 0.0
  %51 = vmatpush1.msra.mxu0 0.0
  %52 = vmatprep.subr.mxu0 0.0
  %53 = vmatpush1.msra.mxu0 0.0
  %54 = vmatprep.subr.mxu0 0.0
  %55 = vmatpush1.msra.mxu0 0.0
  %56 = vmatprep.subr.mxu0 0.0
  %57 = vmatpush1.msra.mxu0 0.0
  %58 = vmatprep.subr.mxu0 0.0
  %59 = vmatpush1.msra.mxu0 0.0
  %60 = vmatprep.subr.mxu0 0.0
  %61 = vmatpush1.msra.mxu0 0.0
  %62 = vmatprep.subr.mxu0 0.0
  %63 = vmatpush1.msra.mxu0 0.0
  %64 = vmatprep.subr.mxu0 0.0
  %65 = vmatpush1.msra.mxu0 0.0
  %66 = vmatprep.subr.mxu0 0.0
  %67 = vmatpush1.msra.mxu0 %v42
  %68 = vmatprep.subr.mxu0 0.0
  %69 = vmatpush1.msra.mxu0 %v24
  %70 = vmatprep.subr.mxu0 0.0
  %71 = vmatpush1.msra.mxu0 %v23
  %72 = vmatprep.subr.mxu0 0.0
  %73 = vmatpush1.msra.mxu0 %v22
  %74 = vmatprep.subr.mxu0 0.0
  %75 = vmatpush1.msra.mxu0 %v21
  %76 = vmatprep.subr.mxu0 0.0
  %77 = vmatpush2.msra.mxu0 0.0
  %78 = vmatprep.subr.mxu0 0.0
  %79 = vmatpush2.msra.mxu0 0.0
  %80 = vmatprep.subr.mxu0 0.0
  %81 = vmatpush2.msra.mxu0 0.0
  %82 = vmatprep.subr.mxu0 0.0
  %83 = vmatpush2.msra.mxu0 0.0
  %84 = vmatprep.subr.mxu0 0.0
  %85 = vmatpush2.msra.mxu0 0.0
  %86 = vmatprep.subr.mxu0 0.0
  %87 = vmatpush2.msra.mxu0 0.0
  %88 = vmatprep.subr.mxu0 0.0
  %89 = vmatpush2.msra.mxu0 0.0
  %90 = vmatprep.subr.mxu0 0.0
  %91 = vmatpush2.msra.mxu0 0.0
  %92 = vmatprep.subr.mxu0 0.0
  %93 = vmatpush2.msra.mxu0 0.0
  %94 = vmatprep.subr.mxu0 0.0
  %95 = vmatpush2.msra.mxu0 0.0
  %96 = vmatprep.subr.mxu0 0.0
  %97 = vmatpush2.msra.mxu0 0.0
  %98 = vmatprep.subr.mxu0 0.0
  %99 = vmatpush2.msra.mxu0 0.0
  %100 = vmatprep.subr.mxu0 0.0
  %101 = vmatpush2.msra.mxu0 0.0
  %102 = vmatprep.subr.mxu0 0.0
  %103 = vmatpush2.msra.mxu0 0.0
  %104 = vmatprep.subr.mxu0 0.0
  %105 = vmatpush2.msra.mxu0 0.0
  %106 = vmatprep.subr.mxu0 0.0
  %107 = vmatpush2.msra.mxu0 0.0
  %108 = vmatprep.mubr.f32.mxu0 0.0
  %109 = vmatmul.mubr.f32.gmra.mxu0 %v29
  %v110 = vpop.f32.mrf.mxu0
  %v111 = vadd.f32 %v26, %v110
  %v112 = vpop.f32.mrf.mxu0
  %113 = vmatprep.mubr.f32.mxu0 0.0
  %114 = vmatmul.mubr.f32.gmra.mxu0 %v32
  %v115 = vpop.f32.mrf.mxu0
  %v116 = vadd.f32 %v26, %v115
  %v117 = vpop.f32.mrf.mxu0
  %118 = vmatprep.mubr.f32.mxu0 0.0
  %119 = vmatmul.mubr.f32.gmra.mxu0 %v35
  %v120 = vpop.f32.mrf.mxu0
  %v121 = vadd.f32 %v26, %v120
  %v122 = vpop.f32.mrf.mxu0
  %123 = vmatprep.mubr.f32.mxu0 0.0
  %124 = vmatmul.mubr.f32.gmra.mxu0 %v38
  %v125 = vpop.f32.mrf.mxu0
  %v126 = vadd.f32 %v26, %v125
  %v127 = vpop.f32.mrf.mxu0
  %128 = vdwg.mxu0
  %v129 = vld [vmem:[%s1 + $0x30] sm:$0xff]
  %v130 = vld [vmem:[%s1 + $0x38] sm:$0xff]
  %v131 = vld [vmem:[%s1 + $0x40] sm:$0xff]
  %v132 = vld [vmem:[%s1 + $0x48] sm:$0xff]
  %v133 = vld [vmem:[%s1 + $0x50] sm:$0xff]
  %v134 = vld [vmem:[%s1 + $0x58] sm:$0xff]
  %v135 = vld [vmem:[%s1 + $0x60] sm:$0xff]
  %v136 = vld [vmem:[%s1 + $0x68] sm:$0xff]
  %v137 = vld [vmem:[%s1 + $0x70] sm:$0xff]
  %v138 = vld [vmem:[%s1 + $0x78] sm:$0xff]
  %v139 = vld [vmem:[%s1 + $0x80] sm:$0xff]
  %v140 = vld [vmem:[%s1 + $0x88] sm:$0xff]
  %v141 = vld [vmem:[%s1 + $0x90] sm:$0xff]
  %v142 = vld [vmem:[%s1 + $0x98] sm:$0xff]
  %v143 = vld [vmem:[%s1 + $0xa0] sm:$0xff]
  %v144 = vld [vmem:[%s1 + $0xa8] sm:$0xff]
  %v145 = vld [vmem:[%s1 + $0xb0] sm:$0xff]
  %v146 = vld [vmem:[%s1 + $0xb8] sm:$0xff]
  %v147 = vld [vmem:[%s1 + $0xc0] sm:$0xff]
  %v148 = vld [vmem:[%s1 + $0xc8] sm:$0xff]
  %v149 = vld [vmem:[%s1 + $0xd0] sm:$0x1]
  %v150 = vld [vmem:[%s1 + $0xd1] sm:$0x1]
  %v151 = vld [vmem:[%s1 + $0xd2] sm:$0x1]
  %v152 = vld [vmem:[%s1 + $0xd3] sm:$0x1]
  %v153 = vld [vmem:[%s1 + $0xd4] sm:$0x1]
  %v154 = vld [vmem:[%s1 + $0xd5] sm:$0x1]
  %v155 = vld [vmem:[%s2] sm:$0xff]
  %v156 = vld [vmem:[%s2 + $0x8] sm:$0xff]
  %v157 = vld [vmem:[%s2 + $0x10] sm:$0xff]
  %v158 = vld [vmem:[%s2 + $0x18] sm:$0xff]
  %v159 = vld [vmem:[%s2 + $0x20] sm:$0x1]
  %v160 = vld [vmem:[%s3] sm:$0xff]
  %v161 = vld [vmem:[%s3 + $0x8] sm:$0xff]
  %v162 = vld [vmem:[%s3 + $0x10] sm:$0xff]
  %v163 = vld [vmem:[%s3 + $0x18] sm:$0xff]
  %v164 = vld [vmem:[%s3 + $0x20] sm:$0x1]
  %vm165 = vcmask 261120
  %v166 = vsel %vm165, %v111, 0.0
  %167 = vadd.xlane.f32.xlu0 %v166
  %v168 = vpop.xlane.xlu0 %167
  %v169 = vsel %vm165, %v116, 0.0
  %170 = vadd.xlane.f32.xlu0 %v169
  %v171 = vpop.xlane.xlu0 %170
  %v172 = vsel %vm165, %v121, 0.0
  %173 = vadd.xlane.f32.xlu0 %v172
  %v174 = vpop.xlane.xlu0 %173
  %v175 = vsel %vm165, %v126, 0.0
  %176 = vadd.xlane.f32.xlu0 %v175
  %v177 = vpop.xlane.xlu0 %176
  %v178 = vrcp.pop 32.0
  %v179 = vmul.f32 %v168, %v178
  %v180 = vmul.f32 %v171, %v178
  %v181 = vmul.f32 %v174, %v178
  %v182 = vmul.f32 %v177, %v178
  %v183 = vsub.f32 %v111, %v179
  %v184 = vsub.f32 %v116, %v180
  %v185 = vsub.f32 %v121, %v181
  %v186 = vsub.f32 %v126, %v182
  %v187 = vmul.f32 %v183, %v183
  %v188 = vmul.f32 %v184, %v184
  %v189 = vmul.f32 %v185, %v185
  %v190 = vmul.f32 %v186, %v186
  %v191 = vsel %vm165, %v187, 0.0
  %192 = vadd.xlane.f32.xlu0 %v191
  %v193 = vpop.xlane.xlu0 %192
  %v194 = vsel %vm165, %v188, 0.0
  %195 = vadd.xlane.f32.xlu0 %v194
  %v196 = vpop.xlane.xlu0 %195
  %v197 = vsel %vm165, %v189, 0.0
  %198 = vadd.xlane.f32.xlu0 %v197
  %v199 = vpop.xlane.xlu0 %198
  %v200 = vsel %vm165, %v190, 0.0
  %201 = vadd.xlane.f32.xlu0 %v200
  %v202 = vpop.xlane.xlu0 %201
  %v203 = vmul.f32 %v193, %v178
  %v204 = vmul.f32 %v196, %v178
  %v205 = vmul.f32 %v199, %v178
  %v206 = vmul.f32 %v202, %v178
  %v207 = vadd.f32 %v203, 1e-05
  %v208 = vadd.f32 %v204, 1e-05
  %v209 = vadd.f32 %v205, 1e-05
  %v210 = vadd.f32 %v206, 1e-05
  %v211 = vrsqrt.pop %v207
  %v212 = vrsqrt.pop %v208
  %v213 = vrsqrt.pop %v209
  %v214 = vrsqrt.pop %v210
  %v215 = vmul.f32 %v183, %v211
  %v216 = vmul.f32 %v184, %v212
  %v217 = vmul.f32 %v185, %v213
  %v218 = vmul.f32 %v186, %v214
  %v219 = vlaneseq
  %v220 = vshrl.u32 %v219, 7
  %v221 = vsub.s32 0, %v220
  %v222 = vrot.slane %v149, %v221
  %v223 = vmul.f32 %v215, %v222
  %v224 = vmul.f32 %v216, %v222
  %v225 = vmul.f32 %v217, %v222
  %v226 = vmul.f32 %v218, %v222
  %v227 = vlaneseq
  %v228 = vshrl.u32 %v227, 7
  %v229 = vsub.s32 0, %v228
  %v230 = vrot.slane %v150, %v229
  %v231 = vadd.f32 %v223, %v230
  %v232 = vadd.f32 %v224, %v230
  %v233 = vadd.f32 %v225, %v230
  %v234 = vadd.f32 %v226, %v230
  %v235 = vlaneseq
  %v236 = vshrl.u32 %v235, 7
  %v237 = vsub.s32 0, %v236
  %v238 = vrot.slane %v159, %v237
  %v240 = vsel %vm165, %v231, 0
  %v243 = vsel %vm165, %v232, 0
  %v246 = vsel %vm165, %v233, 0
  %v249 = vsel %vm165, %v234, 0
  %251 = vmatprep.subr.mxu0 0.0
  %252 = vmatpush1.msra.mxu0 0.0
  %253 = vmatprep.subr.mxu0 0.0
  %254 = vmatpush1.msra.mxu0 0.0
  %255 = vmatprep.subr.mxu0 0.0
  %256 = vmatpush1.msra.mxu0 0.0
  %257 = vmatprep.subr.mxu0 0.0
  %258 = vmatpush1.msra.mxu0 0.0
  %259 = vmatprep.subr.mxu0 0.0
  %260 = vmatpush1.msra.mxu0 0.0
  %261 = vmatprep.subr.mxu0 0.0
  %262 = vmatpush1.msra.mxu0 0.0
  %263 = vmatprep.subr.mxu0 0.0
  %264 = vmatpush1.msra.mxu0 0.0
  %265 = vmatprep.subr.mxu0 0.0
  %266 = vmatpush1.msra.mxu0 0.0
  %267 = vmatprep.subr.mxu0 0.0
  %268 = vmatpush1.msra.mxu0 0.0
  %269 = vmatprep.subr.mxu0 0.0
  %270 = vmatpush1.msra.mxu0 0.0
  %271 = vmatprep.subr.mxu0 0.0
  %272 = vmatpush1.msra.mxu0 0.0
  %273 = vmatprep.subr.mxu0 0.0
  %274 = vmatpush1.msra.mxu0 0.0
  %275 = vmatprep.subr.mxu0 0.0
  %276 = vmatpush1.msra.mxu0 %v158
  %277 = vmatprep.subr.mxu0 0.0
  %278 = vmatpush1.msra.mxu0 %v157
  %279 = vmatprep.subr.mxu0 0.0
  %280 = vmatpush1.msra.mxu0 %v156
  %281 = vmatprep.subr.mxu0 0.0
  %282 = vmatpush1.msra.mxu0 %v155
  %283 = vmatprep.subr.mxu0 0.0
  %284 = vmatpush2.msra.mxu0 0.0
  %285 = vmatprep.subr.mxu0 0.0
  %286 = vmatpush2.msra.mxu0 0.0
  %287 = vmatprep.subr.mxu0 0.0
  %288 = vmatpush2.msra.mxu0 0.0
  %289 = vmatprep.subr.mxu0 0.0
  %290 = vmatpush2.msra.mxu0 0.0
  %291 = vmatprep.subr.mxu0 0.0
  %292 = vmatpush2.msra.mxu0 0.0
  %293 = vmatprep.subr.mxu0 0.0
  %294 = vmatpush2.msra.mxu0 0.0
  %295 = vmatprep.subr.mxu0 0.0
  %296 = vmatpush2.msra.mxu0 0.0
  %297 = vmatprep.subr.mxu0 0.0
  %298 = vmatpush2.msra.mxu0 0.0
  %299 = vmatprep.subr.mxu0 0.0
  %300 = vmatpush2.msra.mxu0 0.0
  %301 = vmatprep.subr.mxu0 0.0
  %302 = vmatpush2.msra.mxu0 0.0
  %303 = vmatprep.subr.mxu0 0.0
  %304 = vmatpush2.msra.mxu0 0.0
  %305 = vmatprep.subr.mxu0 0.0
  %306 = vmatpush2.msra.mxu0 0.0
  %307 = vmatprep.subr.mxu0 0.0
  %308 = vmatpush2.msra.mxu0 0.0
  %309 = vmatprep.subr.mxu0 0.0
  %310 = vmatpush2.msra.mxu0 0.0
  %311 = vmatprep.subr.mxu0 0.0
  %312 = vmatpush2.msra.mxu0 0.0
  %313 = vmatprep.subr.mxu0 0.0
  %314 = vmatpush2.msra.mxu0 0.0
  %315 = vmatprep.mubr.f32.mxu0 0.0
  %316 = vmatmul.mubr.f32.gmra.mxu0 %v240
  %v317 = vpop.f32.mrf.mxu0
  %v318 = vadd.f32 %v238, %v317
  %v319 = vpop.f32.mrf.mxu0
  %320 = vmatprep.mubr.f32.mxu0 0.0
  %321 = vmatmul.mubr.f32.gmra.mxu0 %v243
  %v322 = vpop.f32.mrf.mxu0
  %v323 = vadd.f32 %v238, %v322
  %v324 = vpop.f32.mrf.mxu0
  %325 = vmatprep.mubr.f32.mxu0 0.0
  %326 = vmatmul.mubr.f32.gmra.mxu0 %v246
  %v327 = vpop.f32.mrf.mxu0
  %v328 = vadd.f32 %v238, %v327
  %v329 = vpop.f32.mrf.mxu0
  %330 = vmatprep.mubr.f32.mxu0 0.0
  %331 = vmatmul.mubr.f32.gmra.mxu0 %v249
  %v332 = vpop.f32.mrf.mxu0
  %v333 = vadd.f32 %v238, %v332
  %v334 = vpop.f32.mrf.mxu0
  %335 = vdwg.mxu0
  %337 = vrot.lane.b32.xlu0 %v318, 96
  %v338 = vpop.permute.xlu0 %337
  %vm339 = vcmask 64512
  %v340 = vsel %vm339, %v318, 0
  %v342 = vsel %vm339, %v338, 0
  %344 = vmatprep.subr.mxu0 0.0
  %345 = vmatpush1.xpose.msra.mxu0 0.0
  %346 = vmatprep.subr.mxu0 0.0
  %347 = vmatpush1.xpose.msra.mxu0 0.0
  %348 = vmatprep.subr.mxu0 0.0
  %349 = vmatpush1.xpose.msra.mxu0 0.0
  %350 = vmatprep.subr.mxu0 0.0
  %351 = vmatpush1.xpose.msra.mxu0 0.0
  %352 = vmatprep.subr.mxu0 0.0
  %353 = vmatpush1.xpose.msra.mxu0 0.0
  %354 = vmatprep.subr.mxu0 0.0
  %355 = vmatpush1.xpose.msra.mxu0 0.0
  %356 = vmatprep.subr.mxu0 0.0
  %357 = vmatpush1.xpose.msra.mxu0 0.0
  %358 = vmatprep.subr.mxu0 0.0
  %359 = vmatpush1.xpose.msra.mxu0 0.0
  %360 = vmatprep.subr.mxu0 0.0
  %361 = vmatpush1.xpose.msra.mxu0 0.0
  %362 = vmatprep.subr.mxu0 0.0
  %363 = vmatpush1.xpose.msra.mxu0 0.0
  %364 = vmatprep.subr.mxu0 0.0
  %365 = vmatpush1.xpose.msra.mxu0 0.0
  %366 = vmatprep.subr.mxu0 0.0
  %367 = vmatpush1.xpose.msra.mxu0 0.0
  %368 = vmatprep.subr.mxu0 0.0
  %369 = vmatpush1.xpose.msra.mxu0 0.0
  %370 = vmatprep.subr.mxu0 0.0
  %371 = vmatpush1.xpose.msra.mxu0 0.0
  %372 = vmatprep.subr.mxu0 0.0
  %373 = vmatpush1.xpose.msra.mxu0 0.0
  %374 = vmatprep.subr.mxu0 0.0
  %375 = vmatpush1.xpose.msra.mxu0 %v342
  %376 = vmatprep.subr.mxu0 0.0
  %377 = vmatpush2.xpose.msra.mxu0 0.0
  %378 = vmatprep.subr.mxu0 0.0
  %379 = vmatpush2.xpose.msra.mxu0 0.0
  %380 = vmatprep.subr.mxu0 0.0
  %381 = vmatpush2.xpose.msra.mxu0 0.0
  %382 = vmatprep.subr.mxu0 0.0
  %383 = vmatpush2.xpose.msra.mxu0 0.0
  %384 = vmatprep.subr.mxu0 0.0
  %385 = vmatpush2.xpose.msra.mxu0 0.0
  %386 = vmatprep.subr.mxu0 0.0
  %387 = vmatpush2.xpose.msra.mxu0 0.0
  %388 = vmatprep.subr.mxu0 0.0
  %389 = vmatpush2.xpose.msra.mxu0 0.0
  %390 = vmatprep.subr.mxu0 0.0
  %391 = vmatpush2.xpose.msra.mxu0 0.0
  %392 = vmatprep.subr.mxu0 0.0
  %393 = vmatpush2.xpose.msra.mxu0 0.0
  %394 = vmatprep.subr.mxu0 0.0
  %395 = vmatpush2.xpose.msra.mxu0 0.0
  %396 = vmatprep.subr.mxu0 0.0
  %397 = vmatpush2.xpose.msra.mxu0 0.0
  %398 = vmatprep.subr.mxu0 0.0
  %399 = vmatpush2.xpose.msra.mxu0 0.0
  %400 = vmatprep.subr.mxu0 0.0
  %401 = vmatpush2.xpose.msra.mxu0 0.0
  %402 = vmatprep.subr.mxu0 0.0
  %403 = vmatpush2.xpose.msra.mxu0 0.0
  %404 = vmatprep.subr.mxu0 0.0
  %405 = vmatpush2.xpose.msra.mxu0 0.0
  %406 = vmatprep.subr.mxu0 0.0
  %407 = vmatpush2.xpose.msra.mxu0 0.0
  %408 = vmatprep.mubr.f32.mxu0 0.0
  %409 = vmatmul.mubr.f32.gmra.mxu0 %v340
  %v410 = vpop.f32.mrf.mxu0
  %v411 = vadd.f32 0.0, %v410
  %v412 = vpop.f32.mrf.mxu0
  %413 = vdwg.mxu0
  %415 = vrot.lane.b32.xlu0 %v323, 96
  %v416 = vpop.permute.xlu0 %415
  %v417 = vsel %vm339, %v323, 0
  %v419 = vsel %vm339, %v416, 0
  %421 = vmatprep.subr.mxu0 0.0
  %422 = vmatpush1.xpose.msra.mxu0 0.0
  %423 = vmatprep.subr.mxu0 0.0
  %424 = vmatpush1.xpose.msra.mxu0 0.0
  %425 = vmatprep.subr.mxu0 0.0
  %426 = vmatpush1.xpose.msra.mxu0 0.0
  %427 = vmatprep.subr.mxu0 0.0
  %428 = vmatpush1.xpose.msra.mxu0 0.0
  %429 = vmatprep.subr.mxu0 0.0
  %430 = vmatpush1.xpose.msra.mxu0 0.0
  %431 = vmatprep.subr.mxu0 0.0
  %432 = vmatpush1.xpose.msra.mxu0 0.0
  %433 = vmatprep.subr.mxu0 0.0
  %434 = vmatpush1.xpose.msra.mxu0 0.0
  %435 = vmatprep.subr.mxu0 0.0
  %436 = vmatpush1.xpose.msra.mxu0 0.0
  %437 = vmatprep.subr.mxu0 0.0
  %438 = vmatpush1.xpose.msra.mxu0 0.0
  %439 = vmatprep.subr.mxu0 0.0
  %440 = vmatpush1.xpose.msra.mxu0 0.0
  %441 = vmatprep.subr.mxu0 0.0
  %442 = vmatpush1.xpose.msra.mxu0 0.0
  %443 = vmatprep.subr.mxu0 0.0
  %444 = vmatpush1.xpose.msra.mxu0 0.0
  %445 = vmatprep.subr.mxu0 0.0
  %446 = vmatpush1.xpose.msra.mxu0 0.0
  %447 = vmatprep.subr.mxu0 0.0
  %448 = vmatpush1.xpose.msra.mxu0 0.0
  %449 = vmatprep.subr.mxu0 0.0
  %450 = vmatpush1.xpose.msra.mxu0 0.0
  %451 = vmatprep.subr.mxu0 0.0
  %452 = vmatpush1.xpose.msra.mxu0 %v419
  %453 = vmatprep.subr.mxu0 0.0
  %454 = vmatpush2.xpose.msra.mxu0 0.0
  %455 = vmatprep.subr.mxu0 0.0
  %456 = vmatpush2.xpose.msra.mxu0 0.0
  %457 = vmatprep.subr.mxu0 0.0
  %458 = vmatpush2.xpose.msra.mxu0 0.0
  %459 = vmatprep.subr.mxu0 0.0
  %460 = vmatpush2.xpose.msra.mxu0 0.0
  %461 = vmatprep.subr.mxu0 0.0
  %462 = vmatpush2.xpose.msra.mxu0 0.0
  %463 = vmatprep.subr.mxu0 0.0
  %464 = vmatpush2.xpose.msra.mxu0 0.0
  %465 = vmatprep.subr.mxu0 0.0
  %466 = vmatpush2.xpose.msra.mxu0 0.0
  %467 = vmatprep.subr.mxu0 0.0
  %468 = vmatpush2.xpose.msra.mxu0 0.0
  %469 = vmatprep.subr.mxu0 0.0
  %470 = vmatpush2.xpose.msra.mxu0 0.0
  %471 = vmatprep.subr.mxu0 0.0
  %472 = vmatpush2.xpose.msra.mxu0 0.0
  %473 = vmatprep.subr.mxu0 0.0
  %474 = vmatpush2.xpose.msra.mxu0 0.0
  %475 = vmatprep.subr.mxu0 0.0
  %476 = vmatpush2.xpose.msra.mxu0 0.0
  %477 = vmatprep.subr.mxu0 0.0
  %478 = vmatpush2.xpose.msra.mxu0 0.0
  %479 = vmatprep.subr.mxu0 0.0
  %480 = vmatpush2.xpose.msra.mxu0 0.0
  %481 = vmatprep.subr.mxu0 0.0
  %482 = vmatpush2.xpose.msra.mxu0 0.0
  %483 = vmatprep.subr.mxu0 0.0
  %484 = vmatpush2.xpose.msra.mxu0 0.0
  %485 = vmatprep.mubr.f32.mxu0 0.0
  %486 = vmatmul.mubr.f32.gmra.mxu0 %v417
  %v487 = vpop.f32.mrf.mxu0
  %v488 = vadd.f32 0.0, %v487
  %v489 = vpop.f32.mrf.mxu0
  %490 = vdwg.mxu0
  %492 = vrot.lane.b32.xlu0 %v328, 96
  %v493 = vpop.permute.xlu0 %492
  %v494 = vsel %vm339, %v328, 0
  %v496 = vsel %vm339, %v493, 0
  %498 = vmatprep.subr.mxu0 0.0
  %499 = vmatpush1.xpose.msra.mxu0 0.0
  %500 = vmatprep.subr.mxu0 0.0
  %501 = vmatpush1.xpose.msra.mxu0 0.0
  %502 = vmatprep.subr.mxu0 0.0
  %503 = vmatpush1.xpose.msra.mxu0 0.0
  %504 = vmatprep.subr.mxu0 0.0
  %505 = vmatpush1.xpose.msra.mxu0 0.0
  %506 = vmatprep.subr.mxu0 0.0
  %507 = vmatpush1.xpose.msra.mxu0 0.0
  %508 = vmatprep.subr.mxu0 0.0
  %509 = vmatpush1.xpose.msra.mxu0 0.0
  %510 = vmatprep.subr.mxu0 0.0
  %511 = vmatpush1.xpose.msra.mxu0 0.0
  %512 = vmatprep.subr.mxu0 0.0
  %513 = vmatpush1.xpose.msra.mxu0 0.0
  %514 = vmatprep.subr.mxu0 0.0
  %515 = vmatpush1.xpose.msra.mxu0 0.0
  %516 = vmatprep.subr.mxu0 0.0
  %517 = vmatpush1.xpose.msra.mxu0 0.0
  %518 = vmatprep.subr.mxu0 0.0
  %519 = vmatpush1.xpose.msra.mxu0 0.0
  %520 = vmatprep.subr.mxu0 0.0
  %521 = vmatpush1.xpose.msra.mxu0 0.0
  %522 = vmatprep.subr.mxu0 0.0
  %523 = vmatpush1.xpose.msra.mxu0 0.0
  %524 = vmatprep.subr.mxu0 0.0
  %525 = vmatpush1.xpose.msra.mxu0 0.0
  %526 = vmatprep.subr.mxu0 0.0
  %527 = vmatpush1.xpose.msra.mxu0 0.0
  %528 = vmatprep.subr.mxu0 0.0
  %529 = vmatpush1.xpose.msra.mxu0 %v496
  %530 = vmatprep.subr.mxu0 0.0
  %531 = vmatpush2.xpose.msra.mxu0 0.0
  %532 = vmatprep.subr.mxu0 0.0
  %533 = vmatpush2.xpose.msra.mxu0 0.0
  %534 = vmatprep.subr.mxu0 0.0
  %535 = vmatpush2.xpose.msra.mxu0 0.0
  %536 = vmatprep.subr.mxu0 0.0
  %537 = vmatpush2.xpose.msra.mxu0 0.0
  %538 = vmatprep.subr.mxu0 0.0
  %539 = vmatpush2.xpose.msra.mxu0 0.0
  %540 = vmatprep.subr.mxu0 0.0
  %541 = vmatpush2.xpose.msra.mxu0 0.0
  %542 = vmatprep.subr.mxu0 0.0
  %543 = vmatpush2.xpose.msra.mxu0 0.0
  %544 = vmatprep.subr.mxu0 0.0
  %545 = vmatpush2.xpose.msra.mxu0 0.0
  %546 = vmatprep.subr.mxu0 0.0
  %547 = vmatpush2.xpose.msra.mxu0 0.0
  %548 = vmatprep.subr.mxu0 0.0
  %549 = vmatpush2.xpose.msra.mxu0 0.0
  %550 = vmatprep.subr.mxu0 0.0
  %551 = vmatpush2.xpose.msra.mxu0 0.0
  %552 = vmatprep.subr.mxu0 0.0
  %553 = vmatpush2.xpose.msra.mxu0 0.0
  %554 = vmatprep.subr.mxu0 0.0
  %555 = vmatpush2.xpose.msra.mxu0 0.0
  %556 = vmatprep.subr.mxu0 0.0
  %557 = vmatpush2.xpose.msra.mxu0 0.0
  %558 = vmatprep.subr.mxu0 0.0
  %559 = vmatpush2.xpose.msra.mxu0 0.0
  %560 = vmatprep.subr.mxu0 0.0
  %561 = vmatpush2.xpose.msra.mxu0 0.0
  %562 = vmatprep.mubr.f32.mxu0 0.0
  %563 = vmatmul.mubr.f32.gmra.mxu0 %v494
  %v564 = vpop.f32.mrf.mxu0
  %v565 = vadd.f32 0.0, %v564
  %v566 = vpop.f32.mrf.mxu0
  %567 = vdwg.mxu0
  %569 = vrot.lane.b32.xlu0 %v333, 96
  %v570 = vpop.permute.xlu0 %569
  %v571 = vsel %vm339, %v333, 0
  %v573 = vsel %vm339, %v570, 0
  %575 = vmatprep.subr.mxu0 0.0
  %576 = vmatpush1.xpose.msra.mxu0 0.0
  %577 = vmatprep.subr.mxu0 0.0
  %578 = vmatpush1.xpose.msra.mxu0 0.0
  %579 = vmatprep.subr.mxu0 0.0
  %580 = vmatpush1.xpose.msra.mxu0 0.0
  %581 = vmatprep.subr.mxu0 0.0
  %582 = vmatpush1.xpose.msra.mxu0 0.0
  %583 = vmatprep.subr.mxu0 0.0
  %584 = vmatpush1.xpose.msra.mxu0 0.0
  %585 = vmatprep.subr.mxu0 0.0
  %586 = vmatpush1.xpose.msra.mxu0 0.0
  %587 = vmatprep.subr.mxu0 0.0
  %588 = vmatpush1.xpose.msra.mxu0 0.0
  %589 = vmatprep.subr.mxu0 0.0
  %590 = vmatpush1.xpose.msra.mxu0 0.0
  %591 = vmatprep.subr.mxu0 0.0
  %592 = vmatpush1.xpose.msra.mxu0 0.0
  %593 = vmatprep.subr.mxu0 0.0
  %594 = vmatpush1.xpose.msra.mxu0 0.0
  %595 = vmatprep.subr.mxu0 0.0
  %596 = vmatpush1.xpose.msra.mxu0 0.0
  %597 = vmatprep.subr.mxu0 0.0
  %598 = vmatpush1.xpose.msra.mxu0 0.0
  %599 = vmatprep.subr.mxu0 0.0
  %600 = vmatpush1.xpose.msra.mxu0 0.0
  %601 = vmatprep.subr.mxu0 0.0
  %602 = vmatpush1.xpose.msra.mxu0 0.0
  %603 = vmatprep.subr.mxu0 0.0
  %604 = vmatpush1.xpose.msra.mxu0 0.0
  %605 = vmatprep.subr.mxu0 0.0
  %606 = vmatpush1.xpose.msra.mxu0 %v573
  %607 = vmatprep.subr.mxu0 0.0
  %608 = vmatpush2.xpose.msra.mxu0 0.0
  %609 = vmatprep.subr.mxu0 0.0
  %610 = vmatpush2.xpose.msra.mxu0 0.0
  %611 = vmatprep.subr.mxu0 0.0
  %612 = vmatpush2.xpose.msra.mxu0 0.0
  %613 = vmatprep.subr.mxu0 0.0
  %614 = vmatpush2.xpose.msra.mxu0 0.0
  %615 = vmatprep.subr.mxu0 0.0
  %616 = vmatpush2.xpose.msra.mxu0 0.0
  %617 = vmatprep.subr.mxu0 0.0
  %618 = vmatpush2.xpose.msra.mxu0 0.0
  %619 = vmatprep.subr.mxu0 0.0
  %620 = vmatpush2.xpose.msra.mxu0 0.0
  %621 = vmatprep.subr.mxu0 0.0
  %622 = vmatpush2.xpose.msra.mxu0 0.0
  %623 = vmatprep.subr.mxu0 0.0
  %624 = vmatpush2.xpose.msra.mxu0 0.0
  %625 = vmatprep.subr.mxu0 0.0
  %626 = vmatpush2.xpose.msra.mxu0 0.0
  %627 = vmatprep.subr.mxu0 0.0
  %628 = vmatpush2.xpose.msra.mxu0 0.0
  %629 = vmatprep.subr.mxu0 0.0
  %630 = vmatpush2.xpose.msra.mxu0 0.0
  %631 = vmatprep.subr.mxu0 0.0
  %632 = vmatpush2.xpose.msra.mxu0 0.0
  %633 = vmatprep.subr.mxu0 0.0
  %634 = vmatpush2.xpose.msra.mxu0 0.0
  %635 = vmatprep.subr.mxu0 0.0
  %636 = vmatpush2.xpose.msra.mxu0 0.0
  %637 = vmatprep.subr.mxu0 0.0
  %638 = vmatpush2.xpose.msra.mxu0 0.0
  %639 = vmatprep.mubr.f32.mxu0 0.0
  %640 = vmatmul.mubr.f32.gmra.mxu0 %v571
  %v641 = vpop.f32.mrf.mxu0
  %v642 = vadd.f32 0.0, %v641
  %v643 = vpop.f32.mrf.mxu0
  %644 = vdwg.mxu0
  %v645 = vsel %vm339, %v411, -inf
  %646 = vmax.xlane.f32.xlu0 %v645
  %v647 = vpop.xlane.xlu0 %646
  %v648 = vsel %vm339, %v488, -inf
  %649 = vmax.xlane.f32.xlu0 %v648
  %v650 = vpop.xlane.xlu0 %649
  %v651 = vsel %vm339, %v565, -inf
  %652 = vmax.xlane.f32.xlu0 %v651
  %v653 = vpop.xlane.xlu0 %652
  %v654 = vsel %vm339, %v642, -inf
  %655 = vmax.xlane.f32.xlu0 %v654
  %v656 = vpop.xlane.xlu0 %655
  %v657 = vsub.f32 %v411, %v647
  %v658 = vsub.f32 %v488, %v650
  %v659 = vsub.f32 %v565, %v653
  %v660 = vsub.f32 %v642, %v656
  %v661 = vmul.f32 %v657, 1.442695
  %v662 = vpow.pop %v661
  %v663 = vmul.f32 %v658, 1.442695
  %v664 = vpow.pop %v663
  %v665 = vmul.f32 %v659, 1.442695
  %v666 = vpow.pop %v665
  %v667 = vmul.f32 %v660, 1.442695
  %v668 = vpow.pop %v667
  %v669 = vsel %vm339, %v662, 0.0
  %670 = vadd.xlane.f32.xlu0 %v669
  %v671 = vpop.xlane.xlu0 %670
  %v672 = vsel %vm339, %v664, 0.0
  %673 = vadd.xlane.f32.xlu0 %v672
  %v674 = vpop.xlane.xlu0 %673
  %v675 = vsel %vm339, %v666, 0.0
  %676 = vadd.xlane.f32.xlu0 %v675
  %v677 = vpop.xlane.xlu0 %676
  %v678 = vsel %vm339, %v668, 0.0
  %679 = vadd.xlane.f32.xlu0 %v678
  %v680 = vpop.xlane.xlu0 %679
  %v681 = vrcp.pop %v671
  %v682 = vmul.f32 %v662, %v681
  %v683 = vrcp.pop %v674
  %v684 = vmul.f32 %v664, %v683
  %v685 = vrcp.pop %v677
  %v686 = vmul.f32 %v666, %v685
  %v687 = vrcp.pop %v680
  %v688 = vmul.f32 %v668, %v687
  %689 = vrot.lane.b32.xlu0 %v318, 64
  %v690 = vpop.permute.xlu0 %689
  %v693 = vsel %vm339, %v682, 0
  %695 = vmatprep.subr.mxu0 0.0
  %696 = vmatpush1.msra.mxu0 0.0
  %697 = vmatprep.subr.mxu0 0.0
  %698 = vmatpush1.msra.mxu0 0.0
  %699 = vmatprep.subr.mxu0 0.0
  %700 = vmatpush1.msra.mxu0 0.0
  %701 = vmatprep.subr.mxu0 0.0
  %702 = vmatpush1.msra.mxu0 0.0
  %703 = vmatprep.subr.mxu0 0.0
  %704 = vmatpush1.msra.mxu0 0.0
  %705 = vmatprep.subr.mxu0 0.0
  %706 = vmatpush1.msra.mxu0 0.0
  %707 = vmatprep.subr.mxu0 0.0
  %708 = vmatpush1.msra.mxu0 0.0
  %709 = vmatprep.subr.mxu0 0.0
  %710 = vmatpush1.msra.mxu0 0.0
  %711 = vmatprep.subr.mxu0 0.0
  %712 = vmatpush1.msra.mxu0 0.0
  %713 = vmatprep.subr.mxu0 0.0
  %714 = vmatpush1.msra.mxu0 0.0
  %715 = vmatprep.subr.mxu0 0.0
  %716 = vmatpush1.msra.mxu0 0.0
  %717 = vmatprep.subr.mxu0 0.0
  %718 = vmatpush1.msra.mxu0 0.0
  %719 = vmatprep.subr.mxu0 0.0
  %720 = vmatpush1.msra.mxu0 0.0
  %721 = vmatprep.subr.mxu0 0.0
  %722 = vmatpush1.msra.mxu0 0.0
  %723 = vmatprep.subr.mxu0 0.0
  %724 = vmatpush1.msra.mxu0 0.0
  %725 = vmatprep.subr.mxu0 0.0
  %726 = vmatpush1.msra.mxu0 %v690
  %727 = vmatprep.subr.mxu0 0.0
  %728 = vmatpush2.msra.mxu0 0.0
  %729 = vmatprep.subr.mxu0 0.0
  %730 = vmatpush2.msra.mxu0 0.0
  %731 = vmatprep.subr.mxu0 0.0
  %732 = vmatpush2.msra.mxu0 0.0
  %733 = vmatprep.subr.mxu0 0.0
  %734 = vmatpush2.msra.mxu0 0.0
  %735 = vmatprep.subr.mxu0 0.0
  %736 = vmatpush2.msra.mxu0 0.0
  %737 = vmatprep.subr.mxu0 0.0
  %738 = vmatpush2.msra.mxu0 0.0
  %739 = vmatprep.subr.mxu0 0.0
  %740 = vmatpush2.msra.mxu0 0.0
  %741 = vmatprep.subr.mxu0 0.0
  %742 = vmatpush2.msra.mxu0 0.0
  %743 = vmatprep.subr.mxu0 0.0
  %744 = vmatpush2.msra.mxu0 0.0
  %745 = vmatprep.subr.mxu0 0.0
  %746 = vmatpush2.msra.mxu0 0.0
  %747 = vmatprep.subr.mxu0 0.0
  %748 = vmatpush2.msra.mxu0 0.0
  %749 = vmatprep.subr.mxu0 0.0
  %750 = vmatpush2.msra.mxu0 0.0
  %751 = vmatprep.subr.mxu0 0.0
  %752 = vmatpush2.msra.mxu0 0.0
  %753 = vmatprep.subr.mxu0 0.0
  %754 = vmatpush2.msra.mxu0 0.0
  %755 = vmatprep.subr.mxu0 0.0
  %756 = vmatpush2.msra.mxu0 0.0
  %757 = vmatprep.subr.mxu0 0.0
  %758 = vmatpush2.msra.mxu0 0.0
  %759 = vmatprep.mubr.f32.mxu0 0.0
  %760 = vmatmul.mubr.f32.gmra.mxu0 %v693
  %v761 = vpop.f32.mrf.mxu0
  %v762 = vadd.f32 0.0, %v761
  %v763 = vpop.f32.mrf.mxu0
  %764 = vdwg.mxu0
  %765 = vrot.lane.b32.xlu0 %v323, 64
  %v766 = vpop.permute.xlu0 %765
  %v769 = vsel %vm339, %v684, 0
  %771 = vmatprep.subr.mxu0 0.0
  %772 = vmatpush1.msra.mxu0 0.0
  %773 = vmatprep.subr.mxu0 0.0
  %774 = vmatpush1.msra.mxu0 0.0
  %775 = vmatprep.subr.mxu0 0.0
  %776 = vmatpush1.msra.mxu0 0.0
  %777 = vmatprep.subr.mxu0 0.0
  %778 = vmatpush1.msra.mxu0 0.0
  %779 = vmatprep.subr.mxu0 0.0
  %780 = vmatpush1.msra.mxu0 0.0
  %781 = vmatprep.subr.mxu0 0.0
  %782 = vmatpush1.msra.mxu0 0.0
  %783 = vmatprep.subr.mxu0 0.0
  %784 = vmatpush1.msra.mxu0 0.0
  %785 = vmatprep.subr.mxu0 0.0
  %786 = vmatpush1.msra.mxu0 0.0
  %787 = vmatprep.subr.mxu0 0.0
  %788 = vmatpush1.msra.mxu0 0.0
  %789 = vmatprep.subr.mxu0 0.0
  %790 = vmatpush1.msra.mxu0 0.0
  %791 = vmatprep.subr.mxu0 0.0
  %792 = vmatpush1.msra.mxu0 0.0
  %793 = vmatprep.subr.mxu0 0.0
  %794 = vmatpush1.msra.mxu0 0.0
  %795 = vmatprep.subr.mxu0 0.0
  %796 = vmatpush1.msra.mxu0 0.0
  %797 = vmatprep.subr.mxu0 0.0
  %798 = vmatpush1.msra.mxu0 0.0
  %799 = vmatprep.subr.mxu0 0.0
  %800 = vmatpush1.msra.mxu0 0.0
  %801 = vmatprep.subr.mxu0 0.0
  %802 = vmatpush1.msra.mxu0 %v766
  %803 = vmatprep.subr.mxu0 0.0
  %804 = vmatpush2.msra.mxu0 0.0
  %805 = vmatprep.subr.mxu0 0.0
  %806 = vmatpush2.msra.mxu0 0.0
  %807 = vmatprep.subr.mxu0 0.0
  %808 = vmatpush2.msra.mxu0 0.0
  %809 = vmatprep.subr.mxu0 0.0
  %810 = vmatpush2.msra.mxu0 0.0
  %811 = vmatprep.subr.mxu0 0.0
  %812 = vmatpush2.msra.mxu0 0.0
  %813 = vmatprep.subr.mxu0 0.0
  %814 = vmatpush2.msra.mxu0 0.0
  %815 = vmatprep.subr.mxu0 0.0
  %816 = vmatpush2.msra.mxu0 0.0
  %817 = vmatprep.subr.mxu0 0.0
  %818 = vmatpush2.msra.mxu0 0.0
  %819 = vmatprep.subr.mxu0 0.0
  %820 = vmatpush2.msra.mxu0 0.0
  %821 = vmatprep.subr.mxu0 0.0
  %822 = vmatpush2.msra.mxu0 0.0
  %823 = vmatprep.subr.mxu0 0.0
  %824 = vmatpush2.msra.mxu0 0.0
  %825 = vmatprep.subr.mxu0 0.0
  %826 = vmatpush2.msra.mxu0 0.0
  %827 = vmatprep.subr.mxu0 0.0
  %828 = vmatpush2.msra.mxu0 0.0
  %829 = vmatprep.subr.mxu0 0.0
  %830 = vmatpush2.msra.mxu0 0.0
  %831 = vmatprep.subr.mxu0 0.0
  %832 = vmatpush2.msra.mxu0 0.0
  %833 = vmatprep.subr.mxu0 0.0
  %834 = vmatpush2.msra.mxu0 0.0
  %835 = vmatprep.mubr.f32.mxu0 0.0
  %836 = vmatmul.mubr.f32.gmra.mxu0 %v769
  %v837 = vpop.f32.mrf.mxu0
  %v838 = vadd.f32 0.0, %v837
  %v839 = vpop.f32.mrf.mxu0
  %840 = vdwg.mxu0
  %841 = vrot.lane.b32.xlu0 %v328, 64
  %v842 = vpop.permute.xlu0 %841
  %v845 = vsel %vm339, %v686, 0
  %847 = vmatprep.subr.mxu0 0.0
  %848 = vmatpush1.msra.mxu0 0.0
  %849 = vmatprep.subr.mxu0 0.0
  %850 = vmatpush1.msra.mxu0 0.0
  %851 = vmatprep.subr.mxu0 0.0
  %852 = vmatpush1.msra.mxu0 0.0
  %853 = vmatprep.subr.mxu0 0.0
  %854 = vmatpush1.msra.mxu0 0.0
  %855 = vmatprep.subr.mxu0 0.0
  %856 = vmatpush1.msra.mxu0 0.0
  %857 = vmatprep.subr.mxu0 0.0
  %858 = vmatpush1.msra.mxu0 0.0
  %859 = vmatprep.subr.mxu0 0.0
  %860 = vmatpush1.msra.mxu0 0.0
  %861 = vmatprep.subr.mxu0 0.0
  %862 = vmatpush1.msra.mxu0 0.0
  %863 = vmatprep.subr.mxu0 0.0
  %864 = vmatpush1.msra.mxu0 0.0
  %865 = vmatprep.subr.mxu0 0.0
  %866 = vmatpush1.msra.mxu0 0.0
  %867 = vmatprep.subr.mxu0 0.0
  %868 = vmatpush1.msra.mxu0 0.0
  %869 = vmatprep.subr.mxu0 0.0
  %870 = vmatpush1.msra.mxu0 0.0
  %871 = vmatprep.subr.mxu0 0.0
  %872 = vmatpush1.msra.mxu0 0.0
  %873 = vmatprep.subr.mxu0 0.0
  %874 = vmatpush1.msra.mxu0 0.0
  %875 = vmatprep.subr.mxu0 0.0
  %876 = vmatpush1.msra.mxu0 0.0
  %877 = vmatprep.subr.mxu0 0.0
  %878 = vmatpush1.msra.mxu0 %v842
  %879 = vmatprep.subr.mxu0 0.0
  %880 = vmatpush2.msra.mxu0 0.0
  %881 = vmatprep.subr.mxu0 0.0
  %882 = vmatpush2.msra.mxu0 0.0
  %883 = vmatprep.subr.mxu0 0.0
  %884 = vmatpush2.msra.mxu0 0.0
  %885 = vmatprep.subr.mxu0 0.0
  %886 = vmatpush2.msra.mxu0 0.0
  %887 = vmatprep.subr.mxu0 0.0
  %888 = vmatpush2.msra.mxu0 0.0
  %889 = vmatprep.subr.mxu0 0.0
  %890 = vmatpush2.msra.mxu0 0.0
  %891 = vmatprep.subr.mxu0 0.0
  %892 = vmatpush2.msra.mxu0 0.0
  %893 = vmatprep.subr.mxu0 0.0
  %894 = vmatpush2.msra.mxu0 0.0
  %895 = vmatprep.subr.mxu0 0.0
  %896 = vmatpush2.msra.mxu0 0.0
  %897 = vmatprep.subr.mxu0 0.0
  %898 = vmatpush2.msra.mxu0 0.0
  %899 = vmatprep.subr.mxu0 0.0
  %900 = vmatpush2.msra.mxu0 0.0
  %901 = vmatprep.subr.mxu0 0.0
  %902 = vmatpush2.msra.mxu0 0.0
  %903 = vmatprep.subr.mxu0 0.0
  %904 = vmatpush2.msra.mxu0 0.0
  %905 = vmatprep.subr.mxu0 0.0
  %906 = vmatpush2.msra.mxu0 0.0
  %907 = vmatprep.subr.mxu0 0.0
  %908 = vmatpush2.msra.mxu0 0.0
  %909 = vmatprep.subr.mxu0 0.0
  %910 = vmatpush2.msra.mxu0 0.0
  %911 = vmatprep.mubr.f32.mxu0 0.0
  %912 = vmatmul.mubr.f32.gmra.mxu0 %v845
  %v913 = vpop.f32.mrf.mxu0
  %v914 = vadd.f32 0.0, %v913
  %v915 = vpop.f32.mrf.mxu0
  %916 = vdwg.mxu0
  %917 = vrot.lane.b32.xlu0 %v333, 64
  %v918 = vpop.permute.xlu0 %917
  %v921 = vsel %vm339, %v688, 0
  %923 = vmatprep.subr.mxu0 0.0
  %924 = vmatpush1.msra.mxu0 0.0
  %925 = vmatprep.subr.mxu0 0.0
  %926 = vmatpush1.msra.mxu0 0.0
  %927 = vmatprep.subr.mxu0 0.0
  %928 = vmatpush1.msra.mxu0 0.0
  %929 = vmatprep.subr.mxu0 0.0
  %930 = vmatpush1.msra.mxu0 0.0
  %931 = vmatprep.subr.mxu0 0.0
  %932 = vmatpush1.msra.mxu0 0.0
  %933 = vmatprep.subr.mxu0 0.0
  %934 = vmatpush1.msra.mxu0 0.0
  %935 = vmatprep.subr.mxu0 0.0
  %936 = vmatpush1.msra.mxu0 0.0
  %937 = vmatprep.subr.mxu0 0.0
  %938 = vmatpush1.msra.mxu0 0.0
  %939 = vmatprep.subr.mxu0 0.0
  %940 = vmatpush1.msra.mxu0 0.0
  %941 = vmatprep.subr.mxu0 0.0
  %942 = vmatpush1.msra.mxu0 0.0
  %943 = vmatprep.subr.mxu0 0.0
  %944 = vmatpush1.msra.mxu0 0.0
  %945 = vmatprep.subr.mxu0 0.0
  %946 = vmatpush1.msra.mxu0 0.0
  %947 = vmatprep.subr.mxu0 0.0
  %948 = vmatpush1.msra.mxu0 0.0
  %949 = vmatprep.subr.mxu0 0.0
  %950 = vmatpush1.msra.mxu0 0.0
  %951 = vmatprep.subr.mxu0 0.0
  %952 = vmatpush1.msra.mxu0 0.0
  %953 = vmatprep.subr.mxu0 0.0
  %954 = vmatpush1.msra.mxu0 %v918
  %955 = vmatprep.subr.mxu0 0.0
  %956 = vmatpush2.msra.mxu0 0.0
  %957 = vmatprep.subr.mxu0 0.0
  %958 = vmatpush2.msra.mxu0 0.0
  %959 = vmatprep.subr.mxu0 0.0
  %960 = vmatpush2.msra.mxu0 0.0
  %961 = vmatprep.subr.mxu0 0.0
  %962 = vmatpush2.msra.mxu0 0.0
  %963 = vmatprep.subr.mxu0 0.0
  %964 = vmatpush2.msra.mxu0 0.0
  %965 = vmatprep.subr.mxu0 0.0
  %966 = vmatpush2.msra.mxu0 0.0
  %967 = vmatprep.subr.mxu0 0.0
  %968 = vmatpush2.msra.mxu0 0.0
  %969 = vmatprep.subr.mxu0 0.0
  %970 = vmatpush2.msra.mxu0 0.0
  %971 = vmatprep.subr.mxu0 0.0
  %972 = vmatpush2.msra.mxu0 0.0
  %973 = vmatprep.subr.mxu0 0.0
  %974 = vmatpush2.msra.mxu0 0.0
  %975 = vmatprep.subr.mxu0 0.0
  %976 = vmatpush2.msra.mxu0 0.0
  %977 = vmatprep.subr.mxu0 0.0
  %978 = vmatpush2.msra.mxu0 0.0
  %979 = vmatprep.subr.mxu0 0.0
  %980 = vmatpush2.msra.mxu0 0.0
  %981 = vmatprep.subr.mxu0 0.0
  %982 = vmatpush2.msra.mxu0 0.0
  %983 = vmatprep.subr.mxu0 0.0
  %984 = vmatpush2.msra.mxu0 0.0
  %985 = vmatprep.subr.mxu0 0.0
  %986 = vmatpush2.msra.mxu0 0.0
  %987 = vmatprep.mubr.f32.mxu0 0.0
  %988 = vmatmul.mubr.f32.gmra.mxu0 %v921
  %v989 = vpop.f32.mrf.mxu0
  %v990 = vadd.f32 0.0, %v989
  %v991 = vpop.f32.mrf.mxu0
  %992 = vdwg.mxu0
  %993 = vrot.lane.b32.xlu0 %v318, 120
  %v994 = vpop.permute.xlu0 %993
  %995 = vrot.lane.b32.xlu0 %v318, 88
  %v996 = vpop.permute.xlu0 %995
  %v997 = vsel %vm339, %v994, 0
  %v999 = vsel %vm339, %v996, 0
  %1001 = vmatprep.subr.mxu0 0.0
  %1002 = vmatpush1.xpose.msra.mxu0 0.0
  %1003 = vmatprep.subr.mxu0 0.0
  %1004 = vmatpush1.xpose.msra.mxu0 0.0
  %1005 = vmatprep.subr.mxu0 0.0
  %1006 = vmatpush1.xpose.msra.mxu0 0.0
  %1007 = vmatprep.subr.mxu0 0.0
  %1008 = vmatpush1.xpose.msra.mxu0 0.0
  %1009 = vmatprep.subr.mxu0 0.0
  %1010 = vmatpush1.xpose.msra.mxu0 0.0
  %1011 = vmatprep.subr.mxu0 0.0
  %1012 = vmatpush1.xpose.msra.mxu0 0.0
  %1013 = vmatprep.subr.mxu0 0.0
  %1014 = vmatpush1.xpose.msra.mxu0 0.0
  %1015 = vmatprep.subr.mxu0 0.0
  %1016 = vmatpush1.xpose.msra.mxu0 0.0
  %1017 = vmatprep.subr.mxu0 0.0
  %1018 = vmatpush1.xpose.msra.mxu0 0.0
  %1019 = vmatprep.subr.mxu0 0.0
  %1020 = vmatpush1.xpose.msra.mxu0 0.0
  %1021 = vmatprep.subr.mxu0 0.0
  %1022 = vmatpush1.xpose.msra.mxu0 0.0
  %1023 = vmatprep.subr.mxu0 0.0
  %1024 = vmatpush1.xpose.msra.mxu0 0.0
  %1025 = vmatprep.subr.mxu0 0.0
  %1026 = vmatpush1.xpose.msra.mxu0 0.0
  %1027 = vmatprep.subr.mxu0 0.0
  %1028 = vmatpush1.xpose.msra.mxu0 0.0
  %1029 = vmatprep.subr.mxu0 0.0
  %1030 = vmatpush1.xpose.msra.mxu0 0.0
  %1031 = vmatprep.subr.mxu0 0.0
  %1032 = vmatpush1.xpose.msra.mxu0 %v999
  %1033 = vmatprep.subr.mxu0 0.0
  %1034 = vmatpush2.xpose.msra.mxu0 0.0
  %1035 = vmatprep.subr.mxu0 0.0
  %1036 = vmatpush2.xpose.msra.mxu0 0.0
  %1037 = vmatprep.subr.mxu0 0.0
  %1038 = vmatpush2.xpose.msra.mxu0 0.0
  %1039 = vmatprep.subr.mxu0 0.0
  %1040 = vmatpush2.xpose.msra.mxu0 0.0
  %1041 = vmatprep.subr.mxu0 0.0
  %1042 = vmatpush2.xpose.msra.mxu0 0.0
  %1043 = vmatprep.subr.mxu0 0.0
  %1044 = vmatpush2.xpose.msra.mxu0 0.0
  %1045 = vmatprep.subr.mxu0 0.0
  %1046 = vmatpush2.xpose.msra.mxu0 0.0
  %1047 = vmatprep.subr.mxu0 0.0
  %1048 = vmatpush2.xpose.msra.mxu0 0.0
  %1049 = vmatprep.subr.mxu0 0.0
  %1050 = vmatpush2.xpose.msra.mxu0 0.0
  %1051 = vmatprep.subr.mxu0 0.0
  %1052 = vmatpush2.xpose.msra.mxu0 0.0
  %1053 = vmatprep.subr.mxu0 0.0
  %1054 = vmatpush2.xpose.msra.mxu0 0.0
  %1055 = vmatprep.subr.mxu0 0.0
  %1056 = vmatpush2.xpose.msra.mxu0 0.0
  %1057 = vmatprep.subr.mxu0 0.0
  %1058 = vmatpush2.xpose.msra.mxu0 0.0
  %1059 = vmatprep.subr.mxu0 0.0
  %1060 = vmatpush2.xpose.msra.mxu0 0.0
  %1061 = vmatprep.subr.mxu0 0.0
  %1062 = vmatpush2.xpose.msra.mxu0 0.0
  %1063 = vmatprep.subr.mxu0 0.0
  %1064 = vmatpush2.xpose.msra.mxu0 0.0
  %1065 = vmatprep.mubr.f32.mxu0 0.0
  %1066 = vmatmul.mubr.f32.gmra.mxu0 %v997
  %v1067 = vpop.f32.mrf.mxu0
  %v1068 = vadd.f32 0.0, %v1067
  %v1069 = vpop.f32.mrf.mxu0
  %1070 = vdwg.mxu0
  %1071 = vrot.lane.b32.xlu0 %v323, 120
  %v1072 = vpop.permute.xlu0 %1071
  %1073 = vrot.lane.b32.xlu0 %v323, 88
  %v1074 = vpop.permute.xlu0 %1073
  %v1075 = vsel %vm339, %v1072, 0
  %v1077 = vsel %vm339, %v1074, 0
  %1079 = vmatprep.subr.mxu0 0.0
  %1080 = vmatpush1.xpose.msra.mxu0 0.0
  %1081 = vmatprep.subr.mxu0 0.0
  %1082 = vmatpush1.xpose.msra.mxu0 0.0
  %1083 = vmatprep.subr.mxu0 0.0
  %1084 = vmatpush1.xpose.msra.mxu0 0.0
  %1085 = vmatprep.subr.mxu0 0.0
  %1086 = vmatpush1.xpose.msra.mxu0 0.0
  %1087 = vmatprep.subr.mxu0 0.0
  %1088 = vmatpush1.xpose.msra.mxu0 0.0
  %1089 = vmatprep.subr.mxu0 0.0
  %1090 = vmatpush1.xpose.msra.mxu0 0.0
  %1091 = vmatprep.subr.mxu0 0.0
  %1092 = vmatpush1.xpose.msra.mxu0 0.0
  %1093 = vmatprep.subr.mxu0 0.0
  %1094 = vmatpush1.xpose.msra.mxu0 0.0
  %1095 = vmatprep.subr.mxu0 0.0
  %1096 = vmatpush1.xpose.msra.mxu0 0.0
  %1097 = vmatprep.subr.mxu0 0.0
  %1098 = vmatpush1.xpose.msra.mxu0 0.0
  %1099 = vmatprep.subr.mxu0 0.0
  %1100 = vmatpush1.xpose.msra.mxu0 0.0
  %1101 = vmatprep.subr.mxu0 0.0
  %1102 = vmatpush1.xpose.msra.mxu0 0.0
  %1103 = vmatprep.subr.mxu0 0.0
  %1104 = vmatpush1.xpose.msra.mxu0 0.0
  %1105 = vmatprep.subr.mxu0 0.0
  %1106 = vmatpush1.xpose.msra.mxu0 0.0
  %1107 = vmatprep.subr.mxu0 0.0
  %1108 = vmatpush1.xpose.msra.mxu0 0.0
  %1109 = vmatprep.subr.mxu0 0.0
  %1110 = vmatpush1.xpose.msra.mxu0 %v1077
  %1111 = vmatprep.subr.mxu0 0.0
  %1112 = vmatpush2.xpose.msra.mxu0 0.0
  %1113 = vmatprep.subr.mxu0 0.0
  %1114 = vmatpush2.xpose.msra.mxu0 0.0
  %1115 = vmatprep.subr.mxu0 0.0
  %1116 = vmatpush2.xpose.msra.mxu0 0.0
  %1117 = vmatprep.subr.mxu0 0.0
  %1118 = vmatpush2.xpose.msra.mxu0 0.0
  %1119 = vmatprep.subr.mxu0 0.0
  %1120 = vmatpush2.xpose.msra.mxu0 0.0
  %1121 = vmatprep.subr.mxu0 0.0
  %1122 = vmatpush2.xpose.msra.mxu0 0.0
  %1123 = vmatprep.subr.mxu0 0.0
  %1124 = vmatpush2.xpose.msra.mxu0 0.0
  %1125 = vmatprep.subr.mxu0 0.0
  %1126 = vmatpush2.xpose.msra.mxu0 0.0
  %1127 = vmatprep.subr.mxu0 0.0
  %1128 = vmatpush2.xpose.msra.mxu0 0.0
  %1129 = vmatprep.subr.mxu0 0.0
  %1130 = vmatpush2.xpose.msra.mxu0 0.0
  %1131 = vmatprep.subr.mxu0 0.0
  %1132 = vmatpush2.xpose.msra.mxu0 0.0
  %1133 = vmatprep.subr.mxu0 0.0
  %1134 = vmatpush2.xpose.msra.mxu0 0.0
  %1135 = vmatprep.subr.mxu0 0.0
  %1136 = vmatpush2.xpose.msra.mxu0 0.0
  %1137 = vmatprep.subr.mxu0 0.0
  %1138 = vmatpush2.xpose.msra.mxu0 0.0
  %1139 = vmatprep.subr.mxu0 0.0
  %1140 = vmatpush2.xpose.msra.mxu0 0.0
  %1141 = vmatprep.subr.mxu0 0.0
  %1142 = vmatpush2.xpose.msra.mxu0 0.0
  %1143 = vmatprep.mubr.f32.mxu0 0.0
  %1144 = vmatmul.mubr.f32.gmra.mxu0 %v1075
  %v1145 = vpop.f32.mrf.mxu0
  %v1146 = vadd.f32 0.0, %v1145
  %v1147 = vpop.f32.mrf.mxu0
  %1148 = vdwg.mxu0
  %1149 = vrot.lane.b32.xlu0 %v328, 120
  %v1150 = vpop.permute.xlu0 %1149
  %1151 = vrot.lane.b32.xlu0 %v328, 88
  %v1152 = vpop.permute.xlu0 %1151
  %v1153 = vsel %vm339, %v1150, 0
  %v1155 = vsel %vm339, %v1152, 0
  %1157 = vmatprep.subr.mxu0 0.0
  %1158 = vmatpush1.xpose.msra.mxu0 0.0
  %1159 = vmatprep.subr.mxu0 0.0
  %1160 = vmatpush1.xpose.msra.mxu0 0.0
  %1161 = vmatprep.subr.mxu0 0.0
  %1162 = vmatpush1.xpose.msra.mxu0 0.0
  %1163 = vmatprep.subr.mxu0 0.0
  %1164 = vmatpush1.xpose.msra.mxu0 0.0
  %1165 = vmatprep.subr.mxu0 0.0
  %1166 = vmatpush1.xpose.msra.mxu0 0.0
  %1167 = vmatprep.subr.mxu0 0.0
  %1168 = vmatpush1.xpose.msra.mxu0 0.0
  %1169 = vmatprep.subr.mxu0 0.0
  %1170 = vmatpush1.xpose.msra.mxu0 0.0
  %1171 = vmatprep.subr.mxu0 0.0
  %1172 = vmatpush1.xpose.msra.mxu0 0.0
  %1173 = vmatprep.subr.mxu0 0.0
  %1174 = vmatpush1.xpose.msra.mxu0 0.0
  %1175 = vmatprep.subr.mxu0 0.0
  %1176 = vmatpush1.xpose.msra.mxu0 0.0
  %1177 = vmatprep.subr.mxu0 0.0
  %1178 = vmatpush1.xpose.msra.mxu0 0.0
  %1179 = vmatprep.subr.mxu0 0.0
  %1180 = vmatpush1.xpose.msra.mxu0 0.0
  %1181 = vmatprep.subr.mxu0 0.0
  %1182 = vmatpush1.xpose.msra.mxu0 0.0
  %1183 = vmatprep.subr.mxu0 0.0
  %1184 = vmatpush1.xpose.msra.mxu0 0.0
  %1185 = vmatprep.subr.mxu0 0.0
  %1186 = vmatpush1.xpose.msra.mxu0 0.0
  %1187 = vmatprep.subr.mxu0 0.0
  %1188 = vmatpush1.xpose.msra.mxu0 %v1155
  %1189 = vmatprep.subr.mxu0 0.0
  %1190 = vmatpush2.xpose.msra.mxu0 0.0
  %1191 = vmatprep.subr.mxu0 0.0
  %1192 = vmatpush2.xpose.msra.mxu0 0.0
  %1193 = vmatprep.subr.mxu0 0.0
  %1194 = vmatpush2.xpose.msra.mxu0 0.0
  %1195 = vmatprep.subr.mxu0 0.0
  %1196 = vmatpush2.xpose.msra.mxu0 0.0
  %1197 = vmatprep.subr.mxu0 0.0
  %1198 = vmatpush2.xpose.msra.mxu0 0.0
  %1199 = vmatprep.subr.mxu0 0.0
  %1200 = vmatpush2.xpose.msra.mxu0 0.0
  %1201 = vmatprep.subr.mxu0 0.0
  %1202 = vmatpush2.xpose.msra.mxu0 0.0
  %1203 = vmatprep.subr.mxu0 0.0
  %1204 = vmatpush2.xpose.msra.mxu0 0.0
  %1205 = vmatprep.subr.mxu0 0.0
  %1206 = vmatpush2.xpose.msra.mxu0 0.0
  %1207 = vmatprep.subr.mxu0 0.0
  %1208 = vmatpush2.xpose.msra.mxu0 0.0
  %1209 = vmatprep.subr.mxu0 0.0
  %1210 = vmatpush2.xpose.msra.mxu0 0.0
  %1211 = vmatprep.subr.mxu0 0.0
  %1212 = vmatpush2.xpose.msra.mxu0 0.0
  %1213 = vmatprep.subr.mxu0 0.0
  %1214 = vmatpush2.xpose.msra.mxu0 0.0
  %1215 = vmatprep.subr.mxu0 0.0
  %1216 = vmatpush2.xpose.msra.mxu0 0.0
  %1217 = vmatprep.subr.mxu0 0.0
  %1218 = vmatpush2.xpose.msra.mxu0 0.0
  %1219 = vmatprep.subr.mxu0 0.0
  %1220 = vmatpush2.xpose.msra.mxu0 0.0
  %1221 = vmatprep.mubr.f32.mxu0 0.0
  %1222 = vmatmul.mubr.f32.gmra.mxu0 %v1153
  %v1223 = vpop.f32.mrf.mxu0
  %v1224 = vadd.f32 0.0, %v1223
  %v1225 = vpop.f32.mrf.mxu0
  %1226 = vdwg.mxu0
  %1227 = vrot.lane.b32.xlu0 %v333, 120
  %v1228 = vpop.permute.xlu0 %1227
  %1229 = vrot.lane.b32.xlu0 %v333, 88
  %v1230 = vpop.permute.xlu0 %1229
  %v1231 = vsel %vm339, %v1228, 0
  %v1233 = vsel %vm339, %v1230, 0
  %1235 = vmatprep.subr.mxu0 0.0
  %1236 = vmatpush1.xpose.msra.mxu0 0.0
  %1237 = vmatprep.subr.mxu0 0.0
  %1238 = vmatpush1.xpose.msra.mxu0 0.0
  %1239 = vmatprep.subr.mxu0 0.0
  %1240 = vmatpush1.xpose.msra.mxu0 0.0
  %1241 = vmatprep.subr.mxu0 0.0
  %1242 = vmatpush1.xpose.msra.mxu0 0.0
  %1243 = vmatprep.subr.mxu0 0.0
  %1244 = vmatpush1.xpose.msra.mxu0 0.0
  %1245 = vmatprep.subr.mxu0 0.0
  %1246 = vmatpush1.xpose.msra.mxu0 0.0
  %1247 = vmatprep.subr.mxu0 0.0
  %1248 = vmatpush1.xpose.msra.mxu0 0.0
  %1249 = vmatprep.subr.mxu0 0.0
  %1250 = vmatpush1.xpose.msra.mxu0 0.0
  %1251 = vmatprep.subr.mxu0 0.0
  %1252 = vmatpush1.xpose.msra.mxu0 0.0
  %1253 = vmatprep.subr.mxu0 0.0
  %1254 = vmatpush1.xpose.msra.mxu0 0.0
  %1255 = vmatprep.subr.mxu0 0.0
  %1256 = vmatpush1.xpose.msra.mxu0 0.0
  %1257 = vmatprep.subr.mxu0 0.0
  %1258 = vmatpush1.xpose.msra.mxu0 0.0
  %1259 = vmatprep.subr.mxu0 0.0
  %1260 = vmatpush1.xpose.msra.mxu0 0.0
  %1261 = vmatprep.subr.mxu0 0.0
  %1262 = vmatpush1.xpose.msra.mxu0 0.0
  %1263 = vmatprep.subr.mxu0 0.0
  %1264 = vmatpush1.xpose.msra.mxu0 0.0
  %1265 = vmatprep.subr.mxu0 0.0
  %1266 = vmatpush1.xpose.msra.mxu0 %v1233
  %1267 = vmatprep.subr.mxu0 0.0
  %1268 = vmatpush2.xpose.msra.mxu0 0.0
  %1269 = vmatprep.subr.mxu0 0.0
  %1270 = vmatpush2.xpose.msra.mxu0 0.0
  %1271 = vmatprep.subr.mxu0 0.0
  %1272 = vmatpush2.xpose.msra.mxu0 0.0
  %1273 = vmatprep.subr.mxu0 0.0
  %1274 = vmatpush2.xpose.msra.mxu0 0.0
  %1275 = vmatprep.subr.mxu0 0.0
  %1276 = vmatpush2.xpose.msra.mxu0 0.0
  %1277 = vmatprep.subr.mxu0 0.0
  %1278 = vmatpush2.xpose.msra.mxu0 0.0
  %1279 = vmatprep.subr.mxu0 0.0
  %1280 = vmatpush2.xpose.msra.mxu0 0.0
  %1281 = vmatprep.subr.mxu0 0.0
  %1282 = vmatpush2.xpose.msra.mxu0 0.0
  %1283 = vmatprep.subr.mxu0 0.0
  %1284 = vmatpush2.xpose.msra.mxu0 0.0
  %1285 = vmatprep.subr.mxu0 0.0
  %1286 = vmatpush2.xpose.msra.mxu0 0.0
  %1287 = vmatprep.subr.mxu0 0.0
  %1288 = vmatpush2.xpose.msra.mxu0 0.0
  %1289 = vmatprep.subr.mxu0 0.0
  %1290 = vmatpush2.xpose.msra.mxu0 0.0
  %1291 = vmatprep.subr.mxu0 0.0
  %1292 = vmatpush2.xpose.msra.mxu0 0.0
  %1293 = vmatprep.subr.mxu0 0.0
  %1294 = vmatpush2.xpose.msra.mxu0 0.0
  %1295 = vmatprep.subr.mxu0 0.0
  %1296 = vmatpush2.xpose.msra.mxu0 0.0
  %1297 = vmatprep.subr.mxu0 0.0
  %1298 = vmatpush2.xpose.msra.mxu0 0.0
  %1299 = vmatprep.mubr.f32.mxu0 0.0
  %1300 = vmatmul.mubr.f32.gmra.mxu0 %v1231
  %v1301 = vpop.f32.mrf.mxu0
  %v1302 = vadd.f32 0.0, %v1301
  %v1303 = vpop.f32.mrf.mxu0
  %1304 = vdwg.mxu0
  %v1305 = vsel %vm339, %v1068, -inf
  %1306 = vmax.xlane.f32.xlu0 %v1305
  %v1307 = vpop.xlane.xlu0 %1306
  %v1308 = vsel %vm339, %v1146, -inf
  %1309 = vmax.xlane.f32.xlu0 %v1308
  %v1310 = vpop.xlane.xlu0 %1309
  %v1311 = vsel %vm339, %v1224, -inf
  %1312 = vmax.xlane.f32.xlu0 %v1311
  %v1313 = vpop.xlane.xlu0 %1312
  %v1314 = vsel %vm339, %v1302, -inf
  %1315 = vmax.xlane.f32.xlu0 %v1314
  %v1316 = vpop.xlane.xlu0 %1315
  %v1317 = vsub.f32 %v1068, %v1307
  %v1318 = vsub.f32 %v1146, %v1310
  %v1319 = vsub.f32 %v1224, %v1313
  %v1320 = vsub.f32 %v1302, %v1316
  %v1321 = vmul.f32 %v1317, 1.442695
  %v1322 = vpow.pop %v1321
  %v1323 = vmul.f32 %v1318, 1.442695
  %v1324 = vpow.pop %v1323
  %v1325 = vmul.f32 %v1319, 1.442695
  %v1326 = vpow.pop %v1325
  %v1327 = vmul.f32 %v1320, 1.442695
  %v1328 = vpow.pop %v1327
  %v1329 = vsel %vm339, %v1322, 0.0
  %1330 = vadd.xlane.f32.xlu0 %v1329
  %v1331 = vpop.xlane.xlu0 %1330
  %v1332 = vsel %vm339, %v1324, 0.0
  %1333 = vadd.xlane.f32.xlu0 %v1332
  %v1334 = vpop.xlane.xlu0 %1333
  %v1335 = vsel %vm339, %v1326, 0.0
  %1336 = vadd.xlane.f32.xlu0 %v1335
  %v1337 = vpop.xlane.xlu0 %1336
  %v1338 = vsel %vm339, %v1328, 0.0
  %1339 = vadd.xlane.f32.xlu0 %v1338
  %v1340 = vpop.xlane.xlu0 %1339
  %v1341 = vrcp.pop %v1331
  %v1342 = vmul.f32 %v1322, %v1341
  %v1343 = vrcp.pop %v1334
  %v1344 = vmul.f32 %v1324, %v1343
  %v1345 = vrcp.pop %v1337
  %v1346 = vmul.f32 %v1326, %v1345
  %v1347 = vrcp.pop %v1340
  %v1348 = vmul.f32 %v1328, %v1347
  %1349 = vrot.lane.b32.xlu0 %v318, 56
  %v1350 = vpop.permute.xlu0 %1349
  %v1353 = vsel %vm339, %v1342, 0
  %1355 = vmatprep.subr.mxu0 0.0
  %1356 = vmatpush1.msra.mxu0 0.0
  %1357 = vmatprep.subr.mxu0 0.0
  %1358 = vmatpush1.msra.mxu0 0.0
  %1359 = vmatprep.subr.mxu0 0.0
  %1360 = vmatpush1.msra.mxu0 0.0
  %1361 = vmatprep.subr.mxu0 0.0
  %1362 = vmatpush1.msra.mxu0 0.0
  %1363 = vmatprep.subr.mxu0 0.0
  %1364 = vmatpush1.msra.mxu0 0.0
  %1365 = vmatprep.subr.mxu0 0.0
  %1366 = vmatpush1.msra.mxu0 0.0
  %1367 = vmatprep.subr.mxu0 0.0
  %1368 = vmatpush1.msra.mxu0 0.0
  %1369 = vmatprep.subr.mxu0 0.0
  %1370 = vmatpush1.msra.mxu0 0.0
  %1371 = vmatprep.subr.mxu0 0.0
  %1372 = vmatpush1.msra.mxu0 0.0
  %1373 = vmatprep.subr.mxu0 0.0
  %1374 = vmatpush1.msra.mxu0 0.0
  %1375 = vmatprep.subr.mxu0 0.0
  %1376 = vmatpush1.msra.mxu0 0.0
  %1377 = vmatprep.subr.mxu0 0.0
  %1378 = vmatpush1.msra.mxu0 0.0
  %1379 = vmatprep.subr.mxu0 0.0
  %1380 = vmatpush1.msra.mxu0 0.0
  %1381 = vmatprep.subr.mxu0 0.0
  %1382 = vmatpush1.msra.mxu0 0.0
  %1383 = vmatprep.subr.mxu0 0.0
  %1384 = vmatpush1.msra.mxu0 0.0
  %1385 = vmatprep.subr.mxu0 0.0
  %1386 = vmatpush1.msra.mxu0 %v1350
  %1387 = vmatprep.subr.mxu0 0.0
  %1388 = vmatpush2.msra.mxu0 0.0
  %1389 = vmatprep.subr.mxu0 0.0
  %1390 = vmatpush2.msra.mxu0 0.0
  %1391 = vmatprep.subr.mxu0 0.0
  %1392 = vmatpush2.msra.mxu0 0.0
  %1393 = vmatprep.subr.mxu0 0.0
  %1394 = vmatpush2.msra.mxu0 0.0
  %1395 = vmatprep.subr.mxu0 0.0
  %1396 = vmatpush2.msra.mxu0 0.0
  %1397 = vmatprep.subr.mxu0 0.0
  %1398 = vmatpush2.msra.mxu0 0.0
  %1399 = vmatprep.subr.mxu0 0.0
  %1400 = vmatpush2.msra.mxu0 0.0
  %1401 = vmatprep.subr.mxu0 0.0
  %1402 = vmatpush2.msra.mxu0 0.0
  %1403 = vmatprep.subr.mxu0 0.0
  %1404 = vmatpush2.msra.mxu0 0.0
  %1405 = vmatprep.subr.mxu0 0.0
  %1406 = vmatpush2.msra.mxu0 0.0
  %1407 = vmatprep.subr.mxu0 0.0
  %1408 = vmatpush2.msra.mxu0 0.0
  %1409 = vmatprep.subr.mxu0 0.0
  %1410 = vmatpush2.msra.mxu0 0.0
  %1411 = vmatprep.subr.mxu0 0.0
  %1412 = vmatpush2.msra.mxu0 0.0
  %1413 = vmatprep.subr.mxu0 0.0
  %1414 = vmatpush2.msra.mxu0 0.0
  %1415 = vmatprep.subr.mxu0 0.0
  %1416 = vmatpush2.msra.mxu0 0.0
  %1417 = vmatprep.subr.mxu0 0.0
  %1418 = vmatpush2.msra.mxu0 0.0
  %1419 = vmatprep.mubr.f32.mxu0 0.0
  %1420 = vmatmul.mubr.f32.gmra.mxu0 %v1353
  %v1421 = vpop.f32.mrf.mxu0
  %v1422 = vadd.f32 0.0, %v1421
  %v1423 = vpop.f32.mrf.mxu0
  %1424 = vdwg.mxu0
  %1425 = vrot.lane.b32.xlu0 %v323, 56
  %v1426 = vpop.permute.xlu0 %1425
  %v1429 = vsel %vm339, %v1344, 0
  %1431 = vmatprep.subr.mxu0 0.0
  %1432 = vmatpush1.msra.mxu0 0.0
  %1433 = vmatprep.subr.mxu0 0.0
  %1434 = vmatpush1.msra.mxu0 0.0
  %1435 = vmatprep.subr.mxu0 0.0
  %1436 = vmatpush1.msra.mxu0 0.0
  %1437 = vmatprep.subr.mxu0 0.0
  %1438 = vmatpush1.msra.mxu0 0.0
  %1439 = vmatprep.subr.mxu0 0.0
  %1440 = vmatpush1.msra.mxu0 0.0
  %1441 = vmatprep.subr.mxu0 0.0
  %1442 = vmatpush1.msra.mxu0 0.0
  %1443 = vmatprep.subr.mxu0 0.0
  %1444 = vmatpush1.msra.mxu0 0.0
  %1445 = vmatprep.subr.mxu0 0.0
  %1446 = vmatpush1.msra.mxu0 0.0
  %1447 = vmatprep.subr.mxu0 0.0
  %1448 = vmatpush1.msra.mxu0 0.0
  %1449 = vmatprep.subr.mxu0 0.0
  %1450 = vmatpush1.msra.mxu0 0.0
  %1451 = vmatprep.subr.mxu0 0.0
  %1452 = vmatpush1.msra.mxu0 0.0
  %1453 = vmatprep.subr.mxu0 0.0
  %1454 = vmatpush1.msra.mxu0 0.0
  %1455 = vmatprep.subr.mxu0 0.0
  %1456 = vmatpush1.msra.mxu0 0.0
  %1457 = vmatprep.subr.mxu0 0.0
  %1458 = vmatpush1.msra.mxu0 0.0
  %1459 = vmatprep.subr.mxu0 0.0
  %1460 = vmatpush1.msra.mxu0 0.0
  %1461 = vmatprep.subr.mxu0 0.0
  %1462 = vmatpush1.msra.mxu0 %v1426
  %1463 = vmatprep.subr.mxu0 0.0
  %1464 = vmatpush2.msra.mxu0 0.0
  %1465 = vmatprep.subr.mxu0 0.0
  %1466 = vmatpush2.msra.mxu0 0.0
  %1467 = vmatprep.subr.mxu0 0.0
  %1468 = vmatpush2.msra.mxu0 0.0
  %1469 = vmatprep.subr.mxu0 0.0
  %1470 = vmatpush2.msra.mxu0 0.0
  %1471 = vmatprep.subr.mxu0 0.0
  %1472 = vmatpush2.msra.mxu0 0.0
  %1473 = vmatprep.subr.mxu0 0.0
  %1474 = vmatpush2.msra.mxu0 0.0
  %1475 = vmatprep.subr.mxu0 0.0
  %1476 = vmatpush2.msra.mxu0 0.0
  %1477 = vmatprep.subr.mxu0 0.0
  %1478 = vmatpush2.msra.mxu0 0.0
  %1479 = vmatprep.subr.mxu0 0.0
  %1480 = vmatpush2.msra.mxu0 0.0
  %1481 = vmatprep.subr.mxu0 0.0
  %1482 = vmatpush2.msra.mxu0 0.0
  %1483 = vmatprep.subr.mxu0 0.0
  %1484 = vmatpush2.msra.mxu0 0.0
  %1485 = vmatprep.subr.mxu0 0.0
  %1486 = vmatpush2.msra.mxu0 0.0
  %1487 = vmatprep.subr.mxu0 0.0
  %1488 = vmatpush2.msra.mxu0 0.0
  %1489 = vmatprep.subr.mxu0 0.0
  %1490 = vmatpush2.msra.mxu0 0.0
  %1491 = vmatprep.subr.mxu0 0.0
  %1492 = vmatpush2.msra.mxu0 0.0
  %1493 = vmatprep.subr.mxu0 0.0
  %1494 = vmatpush2.msra.mxu0 0.0
  %1495 = vmatprep.mubr.f32.mxu0 0.0
  %1496 = vmatmul.mubr.f32.gmra.mxu0 %v1429
  %v1497 = vpop.f32.mrf.mxu0
  %v1498 = vadd.f32 0.0, %v1497
  %v1499 = vpop.f32.mrf.mxu0
  %1500 = vdwg.mxu0
  %1501 = vrot.lane.b32.xlu0 %v328, 56
  %v1502 = vpop.permute.xlu0 %1501
  %v1505 = vsel %vm339, %v1346, 0
  %1507 = vmatprep.subr.mxu0 0.0
  %1508 = vmatpush1.msra.mxu0 0.0
  %1509 = vmatprep.subr.mxu0 0.0
  %1510 = vmatpush1.msra.mxu0 0.0
  %1511 = vmatprep.subr.mxu0 0.0
  %1512 = vmatpush1.msra.mxu0 0.0
  %1513 = vmatprep.subr.mxu0 0.0
  %1514 = vmatpush1.msra.mxu0 0.0
  %1515 = vmatprep.subr.mxu0 0.0
  %1516 = vmatpush1.msra.mxu0 0.0
  %1517 = vmatprep.subr.mxu0 0.0
  %1518 = vmatpush1.msra.mxu0 0.0
  %1519 = vmatprep.subr.mxu0 0.0
  %1520 = vmatpush1.msra.mxu0 0.0
  %1521 = vmatprep.subr.mxu0 0.0
  %1522 = vmatpush1.msra.mxu0 0.0
  %1523 = vmatprep.subr.mxu0 0.0
  %1524 = vmatpush1.msra.mxu0 0.0
  %1525 = vmatprep.subr.mxu0 0.0
  %1526 = vmatpush1.msra.mxu0 0.0
  %1527 = vmatprep.subr.mxu0 0.0
  %1528 = vmatpush1.msra.mxu0 0.0
  %1529 = vmatprep.subr.mxu0 0.0
  %1530 = vmatpush1.msra.mxu0 0.0
  %1531 = vmatprep.subr.mxu0 0.0
  %1532 = vmatpush1.msra.mxu0 0.0
  %1533 = vmatprep.subr.mxu0 0.0
  %1534 = vmatpush1.msra.mxu0 0.0
  %1535 = vmatprep.subr.mxu0 0.0
  %1536 = vmatpush1.msra.mxu0 0.0
  %1537 = vmatprep.subr.mxu0 0.0
  %1538 = vmatpush1.msra.mxu0 %v1502
  %1539 = vmatprep.subr.mxu0 0.0
  %1540 = vmatpush2.msra.mxu0 0.0
  %1541 = vmatprep.subr.mxu0 0.0
  %1542 = vmatpush2.msra.mxu0 0.0
  %1543 = vmatprep.subr.mxu0 0.0
  %1544 = vmatpush2.msra.mxu0 0.0
  %1545 = vmatprep.subr.mxu0 0.0
  %1546 = vmatpush2.msra.mxu0 0.0
  %1547 = vmatprep.subr.mxu0 0.0
  %1548 = vmatpush2.msra.mxu0 0.0
  %1549 = vmatprep.subr.mxu0 0.0
  %1550 = vmatpush2.msra.mxu0 0.0
  %1551 = vmatprep.subr.mxu0 0.0
  %1552 = vmatpush2.msra.mxu0 0.0
  %1553 = vmatprep.subr.mxu0 0.0
  %1554 = vmatpush2.msra.mxu0 0.0
  %1555 = vmatprep.subr.mxu0 0.0
  %1556 = vmatpush2.msra.mxu0 0.0
  %1557 = vmatprep.subr.mxu0 0.0
  %1558 = vmatpush2.msra.mxu0 0.0
  %1559 = vmatprep.subr.mxu0 0.0
  %1560 = vmatpush2.msra.mxu0 0.0
  %1561 = vmatprep.subr.mxu0 0.0
  %1562 = vmatpush2.msra.mxu0 0.0
  %1563 = vmatprep.subr.mxu0 0.0
  %1564 = vmatpush2.msra.mxu0 0.0
  %1565 = vmatprep.subr.mxu0 0.0
  %1566 = vmatpush2.msra.mxu0 0.0
  %1567 = vmatprep.subr.mxu0 0.0
  %1568 = vmatpush2.msra.mxu0 0.0
  %1569 = vmatprep.subr.mxu0 0.0
  %1570 = vmatpush2.msra.mxu0 0.0
  %1571 = vmatprep.mubr.f32.mxu0 0.0
  %1572 = vmatmul.mubr.f32.gmra.mxu0 %v1505
  %v1573 = vpop.f32.mrf.mxu0
  %v1574 = vadd.f32 0.0, %v1573
  %v1575 = vpop.f32.mrf.mxu0
  %1576 = vdwg.mxu0
  %1577 = vrot.lane.b32.xlu0 %v333, 56
  %v1578 = vpop.permute.xlu0 %1577
  %v1581 = vsel %vm339, %v1348, 0
  %1583 = vmatprep.subr.mxu0 0.0
  %1584 = vmatpush1.msra.mxu0 0.0
  %1585 = vmatprep.subr.mxu0 0.0
  %1586 = vmatpush1.msra.mxu0 0.0
  %1587 = vmatprep.subr.mxu0 0.0
  %1588 = vmatpush1.msra.mxu0 0.0
  %1589 = vmatprep.subr.mxu0 0.0
  %1590 = vmatpush1.msra.mxu0 0.0
  %1591 = vmatprep.subr.mxu0 0.0
  %1592 = vmatpush1.msra.mxu0 0.0
  %1593 = vmatprep.subr.mxu0 0.0
  %1594 = vmatpush1.msra.mxu0 0.0
  %1595 = vmatprep.subr.mxu0 0.0
  %1596 = vmatpush1.msra.mxu0 0.0
  %1597 = vmatprep.subr.mxu0 0.0
  %1598 = vmatpush1.msra.mxu0 0.0
  %1599 = vmatprep.subr.mxu0 0.0
  %1600 = vmatpush1.msra.mxu0 0.0
  %1601 = vmatprep.subr.mxu0 0.0
  %1602 = vmatpush1.msra.mxu0 0.0
  %1603 = vmatprep.subr.mxu0 0.0
  %1604 = vmatpush1.msra.mxu0 0.0
  %1605 = vmatprep.subr.mxu0 0.0
  %1606 = vmatpush1.msra.mxu0 0.0
  %1607 = vmatprep.subr.mxu0 0.0
  %1608 = vmatpush1.msra.mxu0 0.0
  %1609 = vmatprep.subr.mxu0 0.0
  %1610 = vmatpush1.msra.mxu0 0.0
  %1611 = vmatprep.subr.mxu0 0.0
  %1612 = vmatpush1.msra.mxu0 0.0
  %1613 = vmatprep.subr.mxu0 0.0
  %1614 = vmatpush1.msra.mxu0 %v1578
  %1615 = vmatprep.subr.mxu0 0.0
  %1616 = vmatpush2.msra.mxu0 0.0
  %1617 = vmatprep.subr.mxu0 0.0
  %1618 = vmatpush2.msra.mxu0 0.0
  %1619 = vmatprep.subr.mxu0 0.0
  %1620 = vmatpush2.msra.mxu0 0.0
  %1621 = vmatprep.subr.mxu0 0.0
  %1622 = vmatpush2.msra.mxu0 0.0
  %1623 = vmatprep.subr.mxu0 0.0
  %1624 = vmatpush2.msra.mxu0 0.0
  %1625 = vmatprep.subr.mxu0 0.0
  %1626 = vmatpush2.msra.mxu0 0.0
  %1627 = vmatprep.subr.mxu0 0.0
  %1628 = vmatpush2.msra.mxu0 0.0
  %1629 = vmatprep.subr.mxu0 0.0
  %1630 = vmatpush2.msra.mxu0 0.0
  %1631 = vmatprep.subr.mxu0 0.0
  %1632 = vmatpush2.msra.mxu0 0.0
  %1633 = vmatprep.subr.mxu0 0.0
  %1634 = vmatpush2.msra.mxu0 0.0
  %1635 = vmatprep.subr.mxu0 0.0
  %1636 = vmatpush2.msra.mxu0 0.0
  %1637 = vmatprep.subr.mxu0 0.0
  %1638 = vmatpush2.msra.mxu0 0.0
  %1639 = vmatprep.subr.mxu0 0.0
  %1640 = vmatpush2.msra.mxu0 0.0
  %1641 = vmatprep.subr.mxu0 0.0
  %1642 = vmatpush2.msra.mxu0 0.0
  %1643 = vmatprep.subr.mxu0 0.0
  %1644 = vmatpush2.msra.mxu0 0.0
  %1645 = vmatprep.subr.mxu0 0.0
  %1646 = vmatpush2.msra.mxu0 0.0
  %1647 = vmatprep.mubr.f32.mxu0 0.0
  %1648 = vmatmul.mubr.f32.gmra.mxu0 %v1581
  %v1649 = vpop.f32.mrf.mxu0
  %v1650 = vadd.f32 0.0, %v1649
  %v1651 = vpop.f32.mrf.mxu0
  %1652 = vdwg.mxu0
  %v1654 = vsel %vm339, %v1422, 0
  %v1657 = vsel %vm339, %v1498, 0
  %v1660 = vsel %vm339, %v1574, 0
  %v1663 = vsel %vm339, %v1650, 0
  %1665 = vmatprep.subr.mxu0 0.0
  %1666 = vmatpush1.msra.mxu0 0.0
  %1667 = vmatprep.subr.mxu0 0.0
  %1668 = vmatpush1.msra.mxu0 0.0
  %1669 = vmatprep.subr.mxu0 0.0
  %1670 = vmatpush1.msra.mxu0 0.0
  %1671 = vmatprep.subr.mxu0 0.0
  %1672 = vmatpush1.msra.mxu0 0.0
  %1673 = vmatprep.subr.mxu0 0.0
  %1674 = vmatpush1.msra.mxu0 0.0
  %1675 = vmatprep.subr.mxu0 0.0
  %1676 = vmatpush1.msra.mxu0 0.0
  %1677 = vmatprep.subr.mxu0 0.0
  %1678 = vmatpush1.msra.mxu0 0.0
  %1679 = vmatprep.subr.mxu0 0.0
  %1680 = vmatpush1.msra.mxu0 0.0
  %1681 = vmatprep.subr.mxu0 0.0
  %1682 = vmatpush1.msra.mxu0 0.0
  %1683 = vmatprep.subr.mxu0 0.0
  %1684 = vmatpush1.msra.mxu0 0.0
  %1685 = vmatprep.subr.mxu0 0.0
  %1686 = vmatpush1.msra.mxu0 0.0
  %1687 = vmatprep.subr.mxu0 0.0
  %1688 = vmatpush1.msra.mxu0 0.0
  %1689 = vmatprep.subr.mxu0 0.0
  %1690 = vmatpush1.msra.mxu0 0.0
  %1691 = vmatprep.subr.mxu0 0.0
  %1692 = vmatpush1.msra.mxu0 0.0
  %1693 = vmatprep.subr.mxu0 0.0
  %1694 = vmatpush1.msra.mxu0 0.0
  %1695 = vmatprep.subr.mxu0 0.0
  %1696 = vmatpush1.msra.mxu0 %v130
  %1697 = vmatprep.subr.mxu0 0.0
  %1698 = vmatpush2.msra.mxu0 0.0
  %1699 = vmatprep.subr.mxu0 0.0
  %1700 = vmatpush2.msra.mxu0 0.0
  %1701 = vmatprep.subr.mxu0 0.0
  %1702 = vmatpush2.msra.mxu0 0.0
  %1703 = vmatprep.subr.mxu0 0.0
  %1704 = vmatpush2.msra.mxu0 0.0
  %1705 = vmatprep.subr.mxu0 0.0
  %1706 = vmatpush2.msra.mxu0 0.0
  %1707 = vmatprep.subr.mxu0 0.0
  %1708 = vmatpush2.msra.mxu0 0.0
  %1709 = vmatprep.subr.mxu0 0.0
  %1710 = vmatpush2.msra.mxu0 0.0
  %1711 = vmatprep.subr.mxu0 0.0
  %1712 = vmatpush2.msra.mxu0 0.0
  %1713 = vmatprep.subr.mxu0 0.0
  %1714 = vmatpush2.msra.mxu0 0.0
  %1715 = vmatprep.subr.mxu0 0.0
  %1716 = vmatpush2.msra.mxu0 0.0
  %1717 = vmatprep.subr.mxu0 0.0
  %1718 = vmatpush2.msra.mxu0 0.0
  %1719 = vmatprep.subr.mxu0 0.0
  %1720 = vmatpush2.msra.mxu0 0.0
  %1721 = vmatprep.subr.mxu0 0.0
  %1722 = vmatpush2.msra.mxu0 0.0
  %1723 = vmatprep.subr.mxu0 0.0
  %1724 = vmatpush2.msra.mxu0 0.0
  %1725 = vmatprep.subr.mxu0 0.0
  %1726 = vmatpush2.msra.mxu0 0.0
  %1727 = vmatprep.subr.mxu0 0.0
  %1728 = vmatpush2.msra.mxu0 0.0
  %1729 = vmatprep.mubr.f32.mxu0 0.0
  %1730 = vmatmul.mubr.f32.gmra.mxu0 %v1654
  %v1731 = vpop.f32.mrf.mxu0
  %v1732 = vadd.f32 0.0, %v1731
  %v1733 = vpop.f32.mrf.mxu0
  %1734 = vmatprep.mubr.f32.mxu0 0.0
  %1735 = vmatmul.mubr.f32.gmra.mxu0 %v1657
  %v1736 = vpop.f32.mrf.mxu0
  %v1737 = vadd.f32 0.0, %v1736
  %v1738 = vpop.f32.mrf.mxu0
  %1739 = vmatprep.mubr.f32.mxu0 0.0
  %1740 = vmatmul.mubr.f32.gmra.mxu0 %v1660
  %v1741 = vpop.f32.mrf.mxu0
  %v1742 = vadd.f32 0.0, %v1741
  %v1743 = vpop.f32.mrf.mxu0
  %1744 = vmatprep.mubr.f32.mxu0 0.0
  %1745 = vmatmul.mubr.f32.gmra.mxu0 %v1663
  %v1746 = vpop.f32.mrf.mxu0
  %v1747 = vadd.f32 0.0, %v1746
  %v1748 = vpop.f32.mrf.mxu0
  %1749 = vdwg.mxu0
  %v1751 = vsel %vm339, %v762, 0
  %v1754 = vsel %vm339, %v838, 0
  %v1757 = vsel %vm339, %v914, 0
  %v1760 = vsel %vm339, %v990, 0
  %1762 = vmatprep.subr.mxu0 0.0
  %1763 = vmatpush1.msra.mxu0 0.0
  %1764 = vmatprep.subr.mxu0 0.0
  %1765 = vmatpush1.msra.mxu0 0.0
  %1766 = vmatprep.subr.mxu0 0.0
  %1767 = vmatpush1.msra.mxu0 0.0
  %1768 = vmatprep.subr.mxu0 0.0
  %1769 = vmatpush1.msra.mxu0 0.0
  %1770 = vmatprep.subr.mxu0 0.0
  %1771 = vmatpush1.msra.mxu0 0.0
  %1772 = vmatprep.subr.mxu0 0.0
  %1773 = vmatpush1.msra.mxu0 0.0
  %1774 = vmatprep.subr.mxu0 0.0
  %1775 = vmatpush1.msra.mxu0 0.0
  %1776 = vmatprep.subr.mxu0 0.0
  %1777 = vmatpush1.msra.mxu0 0.0
  %1778 = vmatprep.subr.mxu0 0.0
  %1779 = vmatpush1.msra.mxu0 0.0
  %1780 = vmatprep.subr.mxu0 0.0
  %1781 = vmatpush1.msra.mxu0 0.0
  %1782 = vmatprep.subr.mxu0 0.0
  %1783 = vmatpush1.msra.mxu0 0.0
  %1784 = vmatprep.subr.mxu0 0.0
  %1785 = vmatpush1.msra.mxu0 0.0
  %1786 = vmatprep.subr.mxu0 0.0
  %1787 = vmatpush1.msra.mxu0 0.0
  %1788 = vmatprep.subr.mxu0 0.0
  %1789 = vmatpush1.msra.mxu0 0.0
  %1790 = vmatprep.subr.mxu0 0.0
  %1791 = vmatpush1.msra.mxu0 0.0
  %1792 = vmatprep.subr.mxu0 0.0
  %1793 = vmatpush1.msra.mxu0 %v129
  %1794 = vmatprep.subr.mxu0 0.0
  %1795 = vmatpush2.msra.mxu0 0.0
  %1796 = vmatprep.subr.mxu0 0.0
  %1797 = vmatpush2.msra.mxu0 0.0
  %1798 = vmatprep.subr.mxu0 0.0
  %1799 = vmatpush2.msra.mxu0 0.0
  %1800 = vmatprep.subr.mxu0 0.0
  %1801 = vmatpush2.msra.mxu0 0.0
  %1802 = vmatprep.subr.mxu0 0.0
  %1803 = vmatpush2.msra.mxu0 0.0
  %1804 = vmatprep.subr.mxu0 0.0
  %1805 = vmatpush2.msra.mxu0 0.0
  %1806 = vmatprep.subr.mxu0 0.0
  %1807 = vmatpush2.msra.mxu0 0.0
  %1808 = vmatprep.subr.mxu0 0.0
  %1809 = vmatpush2.msra.mxu0 0.0
  %1810 = vmatprep.subr.mxu0 0.0
  %1811 = vmatpush2.msra.mxu0 0.0
  %1812 = vmatprep.subr.mxu0 0.0
  %1813 = vmatpush2.msra.mxu0 0.0
  %1814 = vmatprep.subr.mxu0 0.0
  %1815 = vmatpush2.msra.mxu0 0.0
  %1816 = vmatprep.subr.mxu0 0.0
  %1817 = vmatpush2.msra.mxu0 0.0
  %1818 = vmatprep.subr.mxu0 0.0
  %1819 = vmatpush2.msra.mxu0 0.0
  %1820 = vmatprep.subr.mxu0 0.0
  %1821 = vmatpush2.msra.mxu0 0.0
  %1822 = vmatprep.subr.mxu0 0.0
  %1823 = vmatpush2.msra.mxu0 0.0
  %1824 = vmatprep.subr.mxu0 0.0
  %1825 = vmatpush2.msra.mxu0 0.0
  %1826 = vmatprep.mubr.f32.mxu0 0.0
  %1827 = vmatmul.mubr.f32.gmra.mxu0 %v1751
  %v1828 = vpop.f32.mrf.mxu0
  %v1829 = vadd.f32 %v1732, %v1828
  %v1830 = vpop.f32.mrf.mxu0
  %1831 = vmatprep.mubr.f32.mxu0 0.0
  %1832 = vmatmul.mubr.f32.gmra.mxu0 %v1754
  %v1833 = vpop.f32.mrf.mxu0
  %v1834 = vadd.f32 %v1737, %v1833
  %v1835 = vpop.f32.mrf.mxu0
  %1836 = vmatprep.mubr.f32.mxu0 0.0
  %1837 = vmatmul.mubr.f32.gmra.mxu0 %v1757
  %v1838 = vpop.f32.mrf.mxu0
  %v1839 = vadd.f32 %v1742, %v1838
  %v1840 = vpop.f32.mrf.mxu0
  %1841 = vmatprep.mubr.f32.mxu0 0.0
  %1842 = vmatmul.mubr.f32.gmra.mxu0 %v1760
  %v1843 = vpop.f32.mrf.mxu0
  %v1844 = vadd.f32 %v1747, %v1843
  %v1845 = vpop.f32.mrf.mxu0
  %1846 = vdwg.mxu0
  %1847 = vrot.lane.b32.xlu0 %v318, 112
  %v1848 = vpop.permute.xlu0 %1847
  %1849 = vrot.lane.b32.xlu0 %v318, 80
  %v1850 = vpop.permute.xlu0 %1849
  %v1851 = vsel %vm339, %v1848, 0
  %v1853 = vsel %vm339, %v1850, 0
  %1855 = vmatprep.subr.mxu0 0.0
  %1856 = vmatpush1.xpose.msra.mxu0 0.0
  %1857 = vmatprep.subr.mxu0 0.0
  %1858 = vmatpush1.xpose.msra.mxu0 0.0
  %1859 = vmatprep.subr.mxu0 0.0
  %1860 = vmatpush1.xpose.msra.mxu0 0.0
  %1861 = vmatprep.subr.mxu0 0.0
  %1862 = vmatpush1.xpose.msra.mxu0 0.0
  %1863 = vmatprep.subr.mxu0 0.0
  %1864 = vmatpush1.xpose.msra.mxu0 0.0
  %1865 = vmatprep.subr.mxu0 0.0
  %1866 = vmatpush1.xpose.msra.mxu0 0.0
  %1867 = vmatprep.subr.mxu0 0.0
  %1868 = vmatpush1.xpose.msra.mxu0 0.0
  %1869 = vmatprep.subr.mxu0 0.0
  %1870 = vmatpush1.xpose.msra.mxu0 0.0
  %1871 = vmatprep.subr.mxu0 0.0
  %1872 = vmatpush1.xpose.msra.mxu0 0.0
  %1873 = vmatprep.subr.mxu0 0.0
  %1874 = vmatpush1.xpose.msra.mxu0 0.0
  %1875 = vmatprep.subr.mxu0 0.0
  %1876 = vmatpush1.xpose.msra.mxu0 0.0
  %1877 = vmatprep.subr.mxu0 0.0
  %1878 = vmatpush1.xpose.msra.mxu0 0.0
  %1879 = vmatprep.subr.mxu0 0.0
  %1880 = vmatpush1.xpose.msra.mxu0 0.0
  %1881 = vmatprep.subr.mxu0 0.0
  %1882 = vmatpush1.xpose.msra.mxu0 0.0
  %1883 = vmatprep.subr.mxu0 0.0
  %1884 = vmatpush1.xpose.msra.mxu0 0.0
  %1885 = vmatprep.subr.mxu0 0.0
  %1886 = vmatpush1.xpose.msra.mxu0 %v1853
  %1887 = vmatprep.subr.mxu0 0.0
  %1888 = vmatpush2.xpose.msra.mxu0 0.0
  %1889 = vmatprep.subr.mxu0 0.0
  %1890 = vmatpush2.xpose.msra.mxu0 0.0
  %1891 = vmatprep.subr.mxu0 0.0
  %1892 = vmatpush2.xpose.msra.mxu0 0.0
  %1893 = vmatprep.subr.mxu0 0.0
  %1894 = vmatpush2.xpose.msra.mxu0 0.0
  %1895 = vmatprep.subr.mxu0 0.0
  %1896 = vmatpush2.xpose.msra.mxu0 0.0
  %1897 = vmatprep.subr.mxu0 0.0
  %1898 = vmatpush2.xpose.msra.mxu0 0.0
  %1899 = vmatprep.subr.mxu0 0.0
  %1900 = vmatpush2.xpose.msra.mxu0 0.0
  %1901 = vmatprep.subr.mxu0 0.0
  %1902 = vmatpush2.xpose.msra.mxu0 0.0
  %1903 = vmatprep.subr.mxu0 0.0
  %1904 = vmatpush2.xpose.msra.mxu0 0.0
  %1905 = vmatprep.subr.mxu0 0.0
  %1906 = vmatpush2.xpose.msra.mxu0 0.0
  %1907 = vmatprep.subr.mxu0 0.0
  %1908 = vmatpush2.xpose.msra.mxu0 0.0
  %1909 = vmatprep.subr.mxu0 0.0
  %1910 = vmatpush2.xpose.msra.mxu0 0.0
  %1911 = vmatprep.subr.mxu0 0.0
  %1912 = vmatpush2.xpose.msra.mxu0 0.0
  %1913 = vmatprep.subr.mxu0 0.0
  %1914 = vmatpush2.xpose.msra.mxu0 0.0
  %1915 = vmatprep.subr.mxu0 0.0
  %1916 = vmatpush2.xpose.msra.mxu0 0.0
  %1917 = vmatprep.subr.mxu0 0.0
  %1918 = vmatpush2.xpose.msra.mxu0 0.0
  %1919 = vmatprep.mubr.f32.mxu0 0.0
  %1920 = vmatmul.mubr.f32.gmra.mxu0 %v1851
  %v1921 = vpop.f32.mrf.mxu0
  %v1922 = vadd.f32 0.0, %v1921
  %v1923 = vpop.f32.mrf.mxu0
  %1924 = vdwg.mxu0
  %1925 = vrot.lane.b32.xlu0 %v323, 112
  %v1926 = vpop.permute.xlu0 %1925
  %1927 = vrot.lane.b32.xlu0 %v323, 80
  %v1928 = vpop.permute.xlu0 %1927
  %v1929 = vsel %vm339, %v1926, 0
  %v1931 = vsel %vm339, %v1928, 0
  %1933 = vmatprep.subr.mxu0 0.0
  %1934 = vmatpush1.xpose.msra.mxu0 0.0
  %1935 = vmatprep.subr.mxu0 0.0
  %1936 = vmatpush1.xpose.msra.mxu0 0.0
  %1937 = vmatprep.subr.mxu0 0.0
  %1938 = vmatpush1.xpose.msra.mxu0 0.0
  %1939 = vmatprep.subr.mxu0 0.0
  %1940 = vmatpush1.xpose.msra.mxu0 0.0
  %1941 = vmatprep.subr.mxu0 0.0
  %1942 = vmatpush1.xpose.msra.mxu0 0.0
  %1943 = vmatprep.subr.mxu0 0.0
  %1944 = vmatpush1.xpose.msra.mxu0 0.0
  %1945 = vmatprep.subr.mxu0 0.0
  %1946 = vmatpush1.xpose.msra.mxu0 0.0
  %1947 = vmatprep.subr.mxu0 0.0
  %1948 = vmatpush1.xpose.msra.mxu0 0.0
  %1949 = vmatprep.subr.mxu0 0.0
  %1950 = vmatpush1.xpose.msra.mxu0 0.0
  %1951 = vmatprep.subr.mxu0 0.0
  %1952 = vmatpush1.xpose.msra.mxu0 0.0
  %1953 = vmatprep.subr.mxu0 0.0
  %1954 = vmatpush1.xpose.msra.mxu0 0.0
  %1955 = vmatprep.subr.mxu0 0.0
  %1956 = vmatpush1.xpose.msra.mxu0 0.0
  %1957 = vmatprep.subr.mxu0 0.0
  %1958 = vmatpush1.xpose.msra.mxu0 0.0
  %1959 = vmatprep.subr.mxu0 0.0
  %1960 = vmatpush1.xpose.msra.mxu0 0.0
  %1961 = vmatprep.subr.mxu0 0.0
  %1962 = vmatpush1.xpose.msra.mxu0 0.0
  %1963 = vmatprep.subr.mxu0 0.0
  %1964 = vmatpush1.xpose.msra.mxu0 %v1931
  %1965 = vmatprep.subr.mxu0 0.0
  %1966 = vmatpush2.xpose.msra.mxu0 0.0
  %1967 = vmatprep.subr.mxu0 0.0
  %1968 = vmatpush2.xpose.msra.mxu0 0.0
  %1969 = vmatprep.subr.mxu0 0.0
  %1970 = vmatpush2.xpose.msra.mxu0 0.0
  %1971 = vmatprep.subr.mxu0 0.0
  %1972 = vmatpush2.xpose.msra.mxu0 0.0
  %1973 = vmatprep.subr.mxu0 0.0
  %1974 = vmatpush2.xpose.msra.mxu0 0.0
  %1975 = vmatprep.subr.mxu0 0.0
  %1976 = vmatpush2.xpose.msra.mxu0 0.0
  %1977 = vmatprep.subr.mxu0 0.0
  %1978 = vmatpush2.xpose.msra.mxu0 0.0
  %1979 = vmatprep.subr.mxu0 0.0
  %1980 = vmatpush2.xpose.msra.mxu0 0.0
  %1981 = vmatprep.subr.mxu0 0.0
  %1982 = vmatpush2.xpose.msra.mxu0 0.0
  %1983 = vmatprep.subr.mxu0 0.0
  %1984 = vmatpush2.xpose.msra.mxu0 0.0
  %1985 = vmatprep.subr.mxu0 0.0
  %1986 = vmatpush2.xpose.msra.mxu0 0.0
  %1987 = vmatprep.subr.mxu0 0.0
  %1988 = vmatpush2.xpose.msra.mxu0 0.0
  %1989 = vmatprep.subr.mxu0 0.0
  %1990 = vmatpush2.xpose.msra.mxu0 0.0
  %1991 = vmatprep.subr.mxu0 0.0
  %1992 = vmatpush2.xpose.msra.mxu0 0.0
  %1993 = vmatprep.subr.mxu0 0.0
  %1994 = vmatpush2.xpose.msra.mxu0 0.0
  %1995 = vmatprep.subr.mxu0 0.0
  %1996 = vmatpush2.xpose.msra.mxu0 0.0
  %1997 = vmatprep.mubr.f32.mxu0 0.0
  %1998 = vmatmul.mubr.f32.gmra.mxu0 %v1929
  %v1999 = vpop.f32.mrf.mxu0
  %v2000 = vadd.f32 0.0, %v1999
  %v2001 = vpop.f32.mrf.mxu0
  %2002 = vdwg.mxu0
  %2003 = vrot.lane.b32.xlu0 %v328, 112
  %v2004 = vpop.permute.xlu0 %2003
  %2005 = vrot.lane.b32.xlu0 %v328, 80
  %v2006 = vpop.permute.xlu0 %2005
  %v2007 = vsel %vm339, %v2004, 0
  %v2009 = vsel %vm339, %v2006, 0
  %2011 = vmatprep.subr.mxu0 0.0
  %2012 = vmatpush1.xpose.msra.mxu0 0.0
  %2013 = vmatprep.subr.mxu0 0.0
  %2014 = vmatpush1.xpose.msra.mxu0 0.0
  %2015 = vmatprep.subr.mxu0 0.0
  %2016 = vmatpush1.xpose.msra.mxu0 0.0
  %2017 = vmatprep.subr.mxu0 0.0
  %2018 = vmatpush1.xpose.msra.mxu0 0.0
  %2019 = vmatprep.subr.mxu0 0.0
  %2020 = vmatpush1.xpose.msra.mxu0 0.0
  %2021 = vmatprep.subr.mxu0 0.0
  %2022 = vmatpush1.xpose.msra.mxu0 0.0
  %2023 = vmatprep.subr.mxu0 0.0
  %2024 = vmatpush1.xpose.msra.mxu0 0.0
  %2025 = vmatprep.subr.mxu0 0.0
  %2026 = vmatpush1.xpose.msra.mxu0 0.0
  %2027 = vmatprep.subr.mxu0 0.0
  %2028 = vmatpush1.xpose.msra.mxu0 0.0
  %2029 = vmatprep.subr.mxu0 0.0
  %2030 = vmatpush1.xpose.msra.mxu0 0.0
  %2031 = vmatprep.subr.mxu0 0.0
  %2032 = vmatpush1.xpose.msra.mxu0 0.0
  %2033 = vmatprep.subr.mxu0 0.0
  %2034 = vmatpush1.xpose.msra.mxu0 0.0
  %2035 = vmatprep.subr.mxu0 0.0
  %2036 = vmatpush1.xpose.msra.mxu0 0.0
  %2037 = vmatprep.subr.mxu0 0.0
  %2038 = vmatpush1.xpose.msra.mxu0 0.0
  %2039 = vmatprep.subr.mxu0 0.0
  %2040 = vmatpush1.xpose.msra.mxu0 0.0
  %2041 = vmatprep.subr.mxu0 0.0
  %2042 = vmatpush1.xpose.msra.mxu0 %v2009
  %2043 = vmatprep.subr.mxu0 0.0
  %2044 = vmatpush2.xpose.msra.mxu0 0.0
  %2045 = vmatprep.subr.mxu0 0.0
  %2046 = vmatpush2.xpose.msra.mxu0 0.0
  %2047 = vmatprep.subr.mxu0 0.0
  %2048 = vmatpush2.xpose.msra.mxu0 0.0
  %2049 = vmatprep.subr.mxu0 0.0
  %2050 = vmatpush2.xpose.msra.mxu0 0.0
  %2051 = vmatprep.subr.mxu0 0.0
  %2052 = vmatpush2.xpose.msra.mxu0 0.0
  %2053 = vmatprep.subr.mxu0 0.0
  %2054 = vmatpush2.xpose.msra.mxu0 0.0
  %2055 = vmatprep.subr.mxu0 0.0
  %2056 = vmatpush2.xpose.msra.mxu0 0.0
  %2057 = vmatprep.subr.mxu0 0.0
  %2058 = vmatpush2.xpose.msra.mxu0 0.0
  %2059 = vmatprep.subr.mxu0 0.0
  %2060 = vmatpush2.xpose.msra.mxu0 0.0
  %2061 = vmatprep.subr.mxu0 0.0
  %2062 = vmatpush2.xpose.msra.mxu0 0.0
  %2063 = vmatprep.subr.mxu0 0.0
  %2064 = vmatpush2.xpose.msra.mxu0 0.0
  %2065 = vmatprep.subr.mxu0 0.0
  %2066 = vmatpush2.xpose.msra.mxu0 0.0
  %2067 = vmatprep.subr.mxu0 0.0
  %2068 = vmatpush2.xpose.msra.mxu0 0.0
  %2069 = vmatprep.subr.mxu0 0.0
  %2070 = vmatpush2.xpose.msra.mxu0 0.0
  %2071 = vmatprep.subr.mxu0 0.0
  %2072 = vmatpush2.xpose.msra.mxu0 0.0
  %2073 = vmatprep.subr.mxu0 0.0
  %2074 = vmatpush2.xpose.msra.mxu0 0.0
  %2075 = vmatprep.mubr.f32.mxu0 0.0
  %2076 = vmatmul.mubr.f32.gmra.mxu0 %v2007
  %v2077 = vpop.f32.mrf.mxu0
  %v2078 = vadd.f32 0.0, %v2077
  %v2079 = vpop.f32.mrf.mxu0
  %2080 = vdwg.mxu0
  %2081 = vrot.lane.b32.xlu0 %v333, 112
  %v2082 = vpop.permute.xlu0 %2081
  %2083 = vrot.lane.b32.xlu0 %v333, 80
  %v2084 = vpop.permute.xlu0 %2083
  %v2085 = vsel %vm339, %v2082, 0
  %v2087 = vsel %vm339, %v2084, 0
  %2089 = vmatprep.subr.mxu0 0.0
  %2090 = vmatpush1.xpose.msra.mxu0 0.0
  %2091 = vmatprep.subr.mxu0 0.0
  %2092 = vmatpush1.xpose.msra.mxu0 0.0
  %2093 = vmatprep.subr.mxu0 0.0
  %2094 = vmatpush1.xpose.msra.mxu0 0.0
  %2095 = vmatprep.subr.mxu0 0.0
  %2096 = vmatpush1.xpose.msra.mxu0 0.0
  %2097 = vmatprep.subr.mxu0 0.0
  %2098 = vmatpush1.xpose.msra.mxu0 0.0
  %2099 = vmatprep.subr.mxu0 0.0
  %2100 = vmatpush1.xpose.msra.mxu0 0.0
  %2101 = vmatprep.subr.mxu0 0.0
  %2102 = vmatpush1.xpose.msra.mxu0 0.0
  %2103 = vmatprep.subr.mxu0 0.0
  %2104 = vmatpush1.xpose.msra.mxu0 0.0
  %2105 = vmatprep.subr.mxu0 0.0
  %2106 = vmatpush1.xpose.msra.mxu0 0.0
  %2107 = vmatprep.subr.mxu0 0.0
  %2108 = vmatpush1.xpose.msra.mxu0 0.0
  %2109 = vmatprep.subr.mxu0 0.0
  %2110 = vmatpush1.xpose.msra.mxu0 0.0
  %2111 = vmatprep.subr.mxu0 0.0
  %2112 = vmatpush1.xpose.msra.mxu0 0.0
  %2113 = vmatprep.subr.mxu0 0.0
  %2114 = vmatpush1.xpose.msra.mxu0 0.0
  %2115 = vmatprep.subr.mxu0 0.0
  %2116 = vmatpush1.xpose.msra.mxu0 0.0
  %2117 = vmatprep.subr.mxu0 0.0
  %2118 = vmatpush1.xpose.msra.mxu0 0.0
  %2119 = vmatprep.subr.mxu0 0.0
  %2120 = vmatpush1.xpose.msra.mxu0 %v2087
  %2121 = vmatprep.subr.mxu0 0.0
  %2122 = vmatpush2.xpose.msra.mxu0 0.0
  %2123 = vmatprep.subr.mxu0 0.0
  %2124 = vmatpush2.xpose.msra.mxu0 0.0
  %2125 = vmatprep.subr.mxu0 0.0
  %2126 = vmatpush2.xpose.msra.mxu0 0.0
  %2127 = vmatprep.subr.mxu0 0.0
  %2128 = vmatpush2.xpose.msra.mxu0 0.0
  %2129 = vmatprep.subr.mxu0 0.0
  %2130 = vmatpush2.xpose.msra.mxu0 0.0
  %2131 = vmatprep.subr.mxu0 0.0
  %2132 = vmatpush2.xpose.msra.mxu0 0.0
  %2133 = vmatprep.subr.mxu0 0.0
  %2134 = vmatpush2.xpose.msra.mxu0 0.0
  %2135 = vmatprep.subr.mxu0 0.0
  %2136 = vmatpush2.xpose.msra.mxu0 0.0
  %2137 = vmatprep.subr.mxu0 0.0
  %2138 = vmatpush2.xpose.msra.mxu0 0.0
  %2139 = vmatprep.subr.mxu0 0.0
  %2140 = vmatpush2.xpose.msra.mxu0 0.0
  %2141 = vmatprep.subr.mxu0 0.0
  %2142 = vmatpush2.xpose.msra.mxu0 0.0
  %2143 = vmatprep.subr.mxu0 0.0
  %2144 = vmatpush2.xpose.msra.mxu0 0.0
  %2145 = vmatprep.subr.mxu0 0.0
  %2146 = vmatpush2.xpose.msra.mxu0 0.0
  %2147 = vmatprep.subr.mxu0 0.0
  %2148 = vmatpush2.xpose.msra.mxu0 0.0
  %2149 = vmatprep.subr.mxu0 0.0
  %2150 = vmatpush2.xpose.msra.mxu0 0.0
  %2151 = vmatprep.subr.mxu0 0.0
  %2152 = vmatpush2.xpose.msra.mxu0 0.0
  %2153 = vmatprep.mubr.f32.mxu0 0.0
  %2154 = vmatmul.mubr.f32.gmra.mxu0 %v2085
  %v2155 = vpop.f32.mrf.mxu0
  %v2156 = vadd.f32 0.0, %v2155
  %v2157 = vpop.f32.mrf.mxu0
  %2158 = vdwg.mxu0
  %v2159 = vsel %vm339, %v1922, -inf
  %2160 = vmax.xlane.f32.xlu0 %v2159
  %v2161 = vpop.xlane.xlu0 %2160
  %v2162 = vsel %vm339, %v2000, -inf
  %2163 = vmax.xlane.f32.xlu0 %v2162
  %v2164 = vpop.xlane.xlu0 %2163
  %v2165 = vsel %vm339, %v2078, -inf
  %2166 = vmax.xlane.f32.xlu0 %v2165
  %v2167 = vpop.xlane.xlu0 %2166
  %v2168 = vsel %vm339, %v2156, -inf
  %2169 = vmax.xlane.f32.xlu0 %v2168
  %v2170 = vpop.xlane.xlu0 %2169
  %v2171 = vsub.f32 %v1922, %v2161
  %v2172 = vsub.f32 %v2000, %v2164
  %v2173 = vsub.f32 %v2078, %v2167
  %v2174 = vsub.f32 %v2156, %v2170
  %v2175 = vmul.f32 %v2171, 1.442695
  %v2176 = vpow.pop %v2175
  %v2177 = vmul.f32 %v2172, 1.442695
  %v2178 = vpow.pop %v2177
  %v2179 = vmul.f32 %v2173, 1.442695
  %v2180 = vpow.pop %v2179
  %v2181 = vmul.f32 %v2174, 1.442695
  %v2182 = vpow.pop %v2181
  %v2183 = vsel %vm339, %v2176, 0.0
  %2184 = vadd.xlane.f32.xlu0 %v2183
  %v2185 = vpop.xlane.xlu0 %2184
  %v2186 = vsel %vm339, %v2178, 0.0
  %2187 = vadd.xlane.f32.xlu0 %v2186
  %v2188 = vpop.xlane.xlu0 %2187
  %v2189 = vsel %vm339, %v2180, 0.0
  %2190 = vadd.xlane.f32.xlu0 %v2189
  %v2191 = vpop.xlane.xlu0 %2190
  %v2192 = vsel %vm339, %v2182, 0.0
  %2193 = vadd.xlane.f32.xlu0 %v2192
  %v2194 = vpop.xlane.xlu0 %2193
  %v2195 = vrcp.pop %v2185
  %v2196 = vmul.f32 %v2176, %v2195
  %v2197 = vrcp.pop %v2188
  %v2198 = vmul.f32 %v2178, %v2197
  %v2199 = vrcp.pop %v2191
  %v2200 = vmul.f32 %v2180, %v2199
  %v2201 = vrcp.pop %v2194
  %v2202 = vmul.f32 %v2182, %v2201
  %2203 = vrot.lane.b32.xlu0 %v318, 48
  %v2204 = vpop.permute.xlu0 %2203
  %v2207 = vsel %vm339, %v2196, 0
  %2209 = vmatprep.subr.mxu0 0.0
  %2210 = vmatpush1.msra.mxu0 0.0
  %2211 = vmatprep.subr.mxu0 0.0
  %2212 = vmatpush1.msra.mxu0 0.0
  %2213 = vmatprep.subr.mxu0 0.0
  %2214 = vmatpush1.msra.mxu0 0.0
  %2215 = vmatprep.subr.mxu0 0.0
  %2216 = vmatpush1.msra.mxu0 0.0
  %2217 = vmatprep.subr.mxu0 0.0
  %2218 = vmatpush1.msra.mxu0 0.0
  %2219 = vmatprep.subr.mxu0 0.0
  %2220 = vmatpush1.msra.mxu0 0.0
  %2221 = vmatprep.subr.mxu0 0.0
  %2222 = vmatpush1.msra.mxu0 0.0
  %2223 = vmatprep.subr.mxu0 0.0
  %2224 = vmatpush1.msra.mxu0 0.0
  %2225 = vmatprep.subr.mxu0 0.0
  %2226 = vmatpush1.msra.mxu0 0.0
  %2227 = vmatprep.subr.mxu0 0.0
  %2228 = vmatpush1.msra.mxu0 0.0
  %2229 = vmatprep.subr.mxu0 0.0
  %2230 = vmatpush1.msra.mxu0 0.0
  %2231 = vmatprep.subr.mxu0 0.0
  %2232 = vmatpush1.msra.mxu0 0.0
  %2233 = vmatprep.subr.mxu0 0.0
  %2234 = vmatpush1.msra.mxu0 0.0
  %2235 = vmatprep.subr.mxu0 0.0
  %2236 = vmatpush1.msra.mxu0 0.0
  %2237 = vmatprep.subr.mxu0 0.0
  %2238 = vmatpush1.msra.mxu0 0.0
  %2239 = vmatprep.subr.mxu0 0.0
  %2240 = vmatpush1.msra.mxu0 %v2204
  %2241 = vmatprep.subr.mxu0 0.0
  %2242 = vmatpush2.msra.mxu0 0.0
  %2243 = vmatprep.subr.mxu0 0.0
  %2244 = vmatpush2.msra.mxu0 0.0
  %2245 = vmatprep.subr.mxu0 0.0
  %2246 = vmatpush2.msra.mxu0 0.0
  %2247 = vmatprep.subr.mxu0 0.0
  %2248 = vmatpush2.msra.mxu0 0.0
  %2249 = vmatprep.subr.mxu0 0.0
  %2250 = vmatpush2.msra.mxu0 0.0
  %2251 = vmatprep.subr.mxu0 0.0
  %2252 = vmatpush2.msra.mxu0 0.0
  %2253 = vmatprep.subr.mxu0 0.0
  %2254 = vmatpush2.msra.mxu0 0.0
  %2255 = vmatprep.subr.mxu0 0.0
  %2256 = vmatpush2.msra.mxu0 0.0
  %2257 = vmatprep.subr.mxu0 0.0
  %2258 = vmatpush2.msra.mxu0 0.0
  %2259 = vmatprep.subr.mxu0 0.0
  %2260 = vmatpush2.msra.mxu0 0.0
  %2261 = vmatprep.subr.mxu0 0.0
  %2262 = vmatpush2.msra.mxu0 0.0
  %2263 = vmatprep.subr.mxu0 0.0
  %2264 = vmatpush2.msra.mxu0 0.0
  %2265 = vmatprep.subr.mxu0 0.0
  %2266 = vmatpush2.msra.mxu0 0.0
  %2267 = vmatprep.subr.mxu0 0.0
  %2268 = vmatpush2.msra.mxu0 0.0
  %2269 = vmatprep.subr.mxu0 0.0
  %2270 = vmatpush2.msra.mxu0 0.0
  %2271 = vmatprep.subr.mxu0 0.0
  %2272 = vmatpush2.msra.mxu0 0.0
  %2273 = vmatprep.mubr.f32.mxu0 0.0
  %2274 = vmatmul.mubr.f32.gmra.mxu0 %v2207
  %v2275 = vpop.f32.mrf.mxu0
  %v2276 = vadd.f32 0.0, %v2275
  %v2277 = vpop.f32.mrf.mxu0
  %2278 = vdwg.mxu0
  %2279 = vrot.lane.b32.xlu0 %v323, 48
  %v2280 = vpop.permute.xlu0 %2279
  %v2283 = vsel %vm339, %v2198, 0
  %2285 = vmatprep.subr.mxu0 0.0
  %2286 = vmatpush1.msra.mxu0 0.0
  %2287 = vmatprep.subr.mxu0 0.0
  %2288 = vmatpush1.msra.mxu0 0.0
  %2289 = vmatprep.subr.mxu0 0.0
  %2290 = vmatpush1.msra.mxu0 0.0
  %2291 = vmatprep.subr.mxu0 0.0
  %2292 = vmatpush1.msra.mxu0 0.0
  %2293 = vmatprep.subr.mxu0 0.0
  %2294 = vmatpush1.msra.mxu0 0.0
  %2295 = vmatprep.subr.mxu0 0.0
  %2296 = vmatpush1.msra.mxu0 0.0
  %2297 = vmatprep.subr.mxu0 0.0
  %2298 = vmatpush1.msra.mxu0 0.0
  %2299 = vmatprep.subr.mxu0 0.0
  %2300 = vmatpush1.msra.mxu0 0.0
  %2301 = vmatprep.subr.mxu0 0.0
  %2302 = vmatpush1.msra.mxu0 0.0
  %2303 = vmatprep.subr.mxu0 0.0
  %2304 = vmatpush1.msra.mxu0 0.0
  %2305 = vmatprep.subr.mxu0 0.0
  %2306 = vmatpush1.msra.mxu0 0.0
  %2307 = vmatprep.subr.mxu0 0.0
  %2308 = vmatpush1.msra.mxu0 0.0
  %2309 = vmatprep.subr.mxu0 0.0
  %2310 = vmatpush1.msra.mxu0 0.0
  %2311 = vmatprep.subr.mxu0 0.0
  %2312 = vmatpush1.msra.mxu0 0.0
  %2313 = vmatprep.subr.mxu0 0.0
  %2314 = vmatpush1.msra.mxu0 0.0
  %2315 = vmatprep.subr.mxu0 0.0
  %2316 = vmatpush1.msra.mxu0 %v2280
  %2317 = vmatprep.subr.mxu0 0.0
  %2318 = vmatpush2.msra.mxu0 0.0
  %2319 = vmatprep.subr.mxu0 0.0
  %2320 = vmatpush2.msra.mxu0 0.0
  %2321 = vmatprep.subr.mxu0 0.0
  %2322 = vmatpush2.msra.mxu0 0.0
  %2323 = vmatprep.subr.mxu0 0.0
  %2324 = vmatpush2.msra.mxu0 0.0
  %2325 = vmatprep.subr.mxu0 0.0
  %2326 = vmatpush2.msra.mxu0 0.0
  %2327 = vmatprep.subr.mxu0 0.0
  %2328 = vmatpush2.msra.mxu0 0.0
  %2329 = vmatprep.subr.mxu0 0.0
  %2330 = vmatpush2.msra.mxu0 0.0
  %2331 = vmatprep.subr.mxu0 0.0
  %2332 = vmatpush2.msra.mxu0 0.0
  %2333 = vmatprep.subr.mxu0 0.0
  %2334 = vmatpush2.msra.mxu0 0.0
  %2335 = vmatprep.subr.mxu0 0.0
  %2336 = vmatpush2.msra.mxu0 0.0
  %2337 = vmatprep.subr.mxu0 0.0
  %2338 = vmatpush2.msra.mxu0 0.0
  %2339 = vmatprep.subr.mxu0 0.0
  %2340 = vmatpush2.msra.mxu0 0.0
  %2341 = vmatprep.subr.mxu0 0.0
  %2342 = vmatpush2.msra.mxu0 0.0
  %2343 = vmatprep.subr.mxu0 0.0
  %2344 = vmatpush2.msra.mxu0 0.0
  %2345 = vmatprep.subr.mxu0 0.0
  %2346 = vmatpush2.msra.mxu0 0.0
  %2347 = vmatprep.subr.mxu0 0.0
  %2348 = vmatpush2.msra.mxu0 0.0
  %2349 = vmatprep.mubr.f32.mxu0 0.0
  %2350 = vmatmul.mubr.f32.gmra.mxu0 %v2283
  %v2351 = vpop.f32.mrf.mxu0
  %v2352 = vadd.f32 0.0, %v2351
  %v2353 = vpop.f32.mrf.mxu0
  %2354 = vdwg.mxu0
  %2355 = vrot.lane.b32.xlu0 %v328, 48
  %v2356 = vpop.permute.xlu0 %2355
  %v2359 = vsel %vm339, %v2200, 0
  %2361 = vmatprep.subr.mxu0 0.0
  %2362 = vmatpush1.msra.mxu0 0.0
  %2363 = vmatprep.subr.mxu0 0.0
  %2364 = vmatpush1.msra.mxu0 0.0
  %2365 = vmatprep.subr.mxu0 0.0
  %2366 = vmatpush1.msra.mxu0 0.0
  %2367 = vmatprep.subr.mxu0 0.0
  %2368 = vmatpush1.msra.mxu0 0.0
  %2369 = vmatprep.subr.mxu0 0.0
  %2370 = vmatpush1.msra.mxu0 0.0
  %2371 = vmatprep.subr.mxu0 0.0
  %2372 = vmatpush1.msra.mxu0 0.0
  %2373 = vmatprep.subr.mxu0 0.0
  %2374 = vmatpush1.msra.mxu0 0.0
  %2375 = vmatprep.subr.mxu0 0.0
  %2376 = vmatpush1.msra.mxu0 0.0
  %2377 = vmatprep.subr.mxu0 0.0
  %2378 = vmatpush1.msra.mxu0 0.0
  %2379 = vmatprep.subr.mxu0 0.0
  %2380 = vmatpush1.msra.mxu0 0.0
  %2381 = vmatprep.subr.mxu0 0.0
  %2382 = vmatpush1.msra.mxu0 0.0
  %2383 = vmatprep.subr.mxu0 0.0
  %2384 = vmatpush1.msra.mxu0 0.0
  %2385 = vmatprep.subr.mxu0 0.0
  %2386 = vmatpush1.msra.mxu0 0.0
  %2387 = vmatprep.subr.mxu0 0.0
  %2388 = vmatpush1.msra.mxu0 0.0
  %2389 = vmatprep.subr.mxu0 0.0
  %2390 = vmatpush1.msra.mxu0 0.0
  %2391 = vmatprep.subr.mxu0 0.0
  %2392 = vmatpush1.msra.mxu0 %v2356
  %2393 = vmatprep.subr.mxu0 0.0
  %2394 = vmatpush2.msra.mxu0 0.0
  %2395 = vmatprep.subr.mxu0 0.0
  %2396 = vmatpush2.msra.mxu0 0.0
  %2397 = vmatprep.subr.mxu0 0.0
  %2398 = vmatpush2.msra.mxu0 0.0
  %2399 = vmatprep.subr.mxu0 0.0
  %2400 = vmatpush2.msra.mxu0 0.0
  %2401 = vmatprep.subr.mxu0 0.0
  %2402 = vmatpush2.msra.mxu0 0.0
  %2403 = vmatprep.subr.mxu0 0.0
  %2404 = vmatpush2.msra.mxu0 0.0
  %2405 = vmatprep.subr.mxu0 0.0
  %2406 = vmatpush2.msra.mxu0 0.0
  %2407 = vmatprep.subr.mxu0 0.0
  %2408 = vmatpush2.msra.mxu0 0.0
  %2409 = vmatprep.subr.mxu0 0.0
  %2410 = vmatpush2.msra.mxu0 0.0
  %2411 = vmatprep.subr.mxu0 0.0
  %2412 = vmatpush2.msra.mxu0 0.0
  %2413 = vmatprep.subr.mxu0 0.0
  %2414 = vmatpush2.msra.mxu0 0.0
  %2415 = vmatprep.subr.mxu0 0.0
  %2416 = vmatpush2.msra.mxu0 0.0
  %2417 = vmatprep.subr.mxu0 0.0
  %2418 = vmatpush2.msra.mxu0 0.0
  %2419 = vmatprep.subr.mxu0 0.0
  %2420 = vmatpush2.msra.mxu0 0.0
  %2421 = vmatprep.subr.mxu0 0.0
  %2422 = vmatpush2.msra.mxu0 0.0
  %2423 = vmatprep.subr.mxu0 0.0
  %2424 = vmatpush2.msra.mxu0 0.0
  %2425 = vmatprep.mubr.f32.mxu0 0.0
  %2426 = vmatmul.mubr.f32.gmra.mxu0 %v2359
  %v2427 = vpop.f32.mrf.mxu0
  %v2428 = vadd.f32 0.0, %v2427
  %v2429 = vpop.f32.mrf.mxu0
  %2430 = vdwg.mxu0
  %2431 = vrot.lane.b32.xlu0 %v333, 48
  %v2432 = vpop.permute.xlu0 %2431
  %v2435 = vsel %vm339, %v2202, 0
  %2437 = vmatprep.subr.mxu0 0.0
  %2438 = vmatpush1.msra.mxu0 0.0
  %2439 = vmatprep.subr.mxu0 0.0
  %2440 = vmatpush1.msra.mxu0 0.0
  %2441 = vmatprep.subr.mxu0 0.0
  %2442 = vmatpush1.msra.mxu0 0.0
  %2443 = vmatprep.subr.mxu0 0.0
  %2444 = vmatpush1.msra.mxu0 0.0
  %2445 = vmatprep.subr.mxu0 0.0
  %2446 = vmatpush1.msra.mxu0 0.0
  %2447 = vmatprep.subr.mxu0 0.0
  %2448 = vmatpush1.msra.mxu0 0.0
  %2449 = vmatprep.subr.mxu0 0.0
  %2450 = vmatpush1.msra.mxu0 0.0
  %2451 = vmatprep.subr.mxu0 0.0
  %2452 = vmatpush1.msra.mxu0 0.0
  %2453 = vmatprep.subr.mxu0 0.0
  %2454 = vmatpush1.msra.mxu0 0.0
  %2455 = vmatprep.subr.mxu0 0.0
  %2456 = vmatpush1.msra.mxu0 0.0
  %2457 = vmatprep.subr.mxu0 0.0
  %2458 = vmatpush1.msra.mxu0 0.0
  %2459 = vmatprep.subr.mxu0 0.0
  %2460 = vmatpush1.msra.mxu0 0.0
  %2461 = vmatprep.subr.mxu0 0.0
  %2462 = vmatpush1.msra.mxu0 0.0
  %2463 = vmatprep.subr.mxu0 0.0
  %2464 = vmatpush1.msra.mxu0 0.0
  %2465 = vmatprep.subr.mxu0 0.0
  %2466 = vmatpush1.msra.mxu0 0.0
  %2467 = vmatprep.subr.mxu0 0.0
  %2468 = vmatpush1.msra.mxu0 %v2432
  %2469 = vmatprep.subr.mxu0 0.0
  %2470 = vmatpush2.msra.mxu0 0.0
  %2471 = vmatprep.subr.mxu0 0.0
  %2472 = vmatpush2.msra.mxu0 0.0
  %2473 = vmatprep.subr.mxu0 0.0
  %2474 = vmatpush2.msra.mxu0 0.0
  %2475 = vmatprep.subr.mxu0 0.0
  %2476 = vmatpush2.msra.mxu0 0.0
  %2477 = vmatprep.subr.mxu0 0.0
  %2478 = vmatpush2.msra.mxu0 0.0
  %2479 = vmatprep.subr.mxu0 0.0
  %2480 = vmatpush2.msra.mxu0 0.0
  %2481 = vmatprep.subr.mxu0 0.0
  %2482 = vmatpush2.msra.mxu0 0.0
  %2483 = vmatprep.subr.mxu0 0.0
  %2484 = vmatpush2.msra.mxu0 0.0
  %2485 = vmatprep.subr.mxu0 0.0
  %2486 = vmatpush2.msra.mxu0 0.0
  %2487 = vmatprep.subr.mxu0 0.0
  %2488 = vmatpush2.msra.mxu0 0.0
  %2489 = vmatprep.subr.mxu0 0.0
  %2490 = vmatpush2.msra.mxu0 0.0
  %2491 = vmatprep.subr.mxu0 0.0
  %2492 = vmatpush2.msra.mxu0 0.0
  %2493 = vmatprep.subr.mxu0 0.0
  %2494 = vmatpush2.msra.mxu0 0.0
  %2495 = vmatprep.subr.mxu0 0.0
  %2496 = vmatpush2.msra.mxu0 0.0
  %2497 = vmatprep.subr.mxu0 0.0
  %2498 = vmatpush2.msra.mxu0 0.0
  %2499 = vmatprep.subr.mxu0 0.0
  %2500 = vmatpush2.msra.mxu0 0.0
  %2501 = vmatprep.mubr.f32.mxu0 0.0
  %2502 = vmatmul.mubr.f32.gmra.mxu0 %v2435
  %v2503 = vpop.f32.mrf.mxu0
  %v2504 = vadd.f32 0.0, %v2503
  %v2505 = vpop.f32.mrf.mxu0
  %2506 = vdwg.mxu0
  %v2508 = vsel %vm339, %v2276, 0
  %v2511 = vsel %vm339, %v2352, 0
  %v2514 = vsel %vm339, %v2428, 0
  %v2517 = vsel %vm339, %v2504, 0
  %2519 = vmatprep.subr.mxu0 0.0
  %2520 = vmatpush1.msra.mxu0 0.0
  %2521 = vmatprep.subr.mxu0 0.0
  %2522 = vmatpush1.msra.mxu0 0.0
  %2523 = vmatprep.subr.mxu0 0.0
  %2524 = vmatpush1.msra.mxu0 0.0
  %2525 = vmatprep.subr.mxu0 0.0
  %2526 = vmatpush1.msra.mxu0 0.0
  %2527 = vmatprep.subr.mxu0 0.0
  %2528 = vmatpush1.msra.mxu0 0.0
  %2529 = vmatprep.subr.mxu0 0.0
  %2530 = vmatpush1.msra.mxu0 0.0
  %2531 = vmatprep.subr.mxu0 0.0
  %2532 = vmatpush1.msra.mxu0 0.0
  %2533 = vmatprep.subr.mxu0 0.0
  %2534 = vmatpush1.msra.mxu0 0.0
  %2535 = vmatprep.subr.mxu0 0.0
  %2536 = vmatpush1.msra.mxu0 0.0
  %2537 = vmatprep.subr.mxu0 0.0
  %2538 = vmatpush1.msra.mxu0 0.0
  %2539 = vmatprep.subr.mxu0 0.0
  %2540 = vmatpush1.msra.mxu0 0.0
  %2541 = vmatprep.subr.mxu0 0.0
  %2542 = vmatpush1.msra.mxu0 0.0
  %2543 = vmatprep.subr.mxu0 0.0
  %2544 = vmatpush1.msra.mxu0 0.0
  %2545 = vmatprep.subr.mxu0 0.0
  %2546 = vmatpush1.msra.mxu0 0.0
  %2547 = vmatprep.subr.mxu0 0.0
  %2548 = vmatpush1.msra.mxu0 0.0
  %2549 = vmatprep.subr.mxu0 0.0
  %2550 = vmatpush1.msra.mxu0 %v131
  %2551 = vmatprep.subr.mxu0 0.0
  %2552 = vmatpush2.msra.mxu0 0.0
  %2553 = vmatprep.subr.mxu0 0.0
  %2554 = vmatpush2.msra.mxu0 0.0
  %2555 = vmatprep.subr.mxu0 0.0
  %2556 = vmatpush2.msra.mxu0 0.0
  %2557 = vmatprep.subr.mxu0 0.0
  %2558 = vmatpush2.msra.mxu0 0.0
  %2559 = vmatprep.subr.mxu0 0.0
  %2560 = vmatpush2.msra.mxu0 0.0
  %2561 = vmatprep.subr.mxu0 0.0
  %2562 = vmatpush2.msra.mxu0 0.0
  %2563 = vmatprep.subr.mxu0 0.0
  %2564 = vmatpush2.msra.mxu0 0.0
  %2565 = vmatprep.subr.mxu0 0.0
  %2566 = vmatpush2.msra.mxu0 0.0
  %2567 = vmatprep.subr.mxu0 0.0
  %2568 = vmatpush2.msra.mxu0 0.0
  %2569 = vmatprep.subr.mxu0 0.0
  %2570 = vmatpush2.msra.mxu0 0.0
  %2571 = vmatprep.subr.mxu0 0.0
  %2572 = vmatpush2.msra.mxu0 0.0
  %2573 = vmatprep.subr.mxu0 0.0
  %2574 = vmatpush2.msra.mxu0 0.0
  %2575 = vmatprep.subr.mxu0 0.0
  %2576 = vmatpush2.msra.mxu0 0.0
  %2577 = vmatprep.subr.mxu0 0.0
  %2578 = vmatpush2.msra.mxu0 0.0
  %2579 = vmatprep.subr.mxu0 0.0
  %2580 = vmatpush2.msra.mxu0 0.0
  %2581 = vmatprep.subr.mxu0 0.0
  %2582 = vmatpush2.msra.mxu0 0.0
  %2583 = vmatprep.mubr.f32.mxu0 0.0
  %2584 = vmatmul.mubr.f32.gmra.mxu0 %v2508
  %v2585 = vpop.f32.mrf.mxu0
  %v2586 = vadd.f32 0.0, %v2585
  %v2587 = vpop.f32.mrf.mxu0
  %2588 = vmatprep.mubr.f32.mxu0 0.0
  %2589 = vmatmul.mubr.f32.gmra.mxu0 %v2511
  %v2590 = vpop.f32.mrf.mxu0
  %v2591 = vadd.f32 0.0, %v2590
  %v2592 = vpop.f32.mrf.mxu0
  %2593 = vmatprep.mubr.f32.mxu0 0.0
  %2594 = vmatmul.mubr.f32.gmra.mxu0 %v2514
  %v2595 = vpop.f32.mrf.mxu0
  %v2596 = vadd.f32 0.0, %v2595
  %v2597 = vpop.f32.mrf.mxu0
  %2598 = vmatprep.mubr.f32.mxu0 0.0
  %2599 = vmatmul.mubr.f32.gmra.mxu0 %v2517
  %v2600 = vpop.f32.mrf.mxu0
  %v2601 = vadd.f32 0.0, %v2600
  %v2602 = vpop.f32.mrf.mxu0
  %2603 = vdwg.mxu0
  %v2604 = vadd.f32 %v1829, %v2586
  %v2605 = vadd.f32 %v1834, %v2591
  %v2606 = vadd.f32 %v1839, %v2596
  %v2607 = vadd.f32 %v1844, %v2601
  %2608 = vrot.lane.b32.xlu0 %v318, 104
  %v2609 = vpop.permute.xlu0 %2608
  %2610 = vrot.lane.b32.xlu0 %v318, 72
  %v2611 = vpop.permute.xlu0 %2610
  %v2612 = vsel %vm339, %v2609, 0
  %v2614 = vsel %vm339, %v2611, 0
  %2616 = vmatprep.subr.mxu0 0.0
  %2617 = vmatpush1.xpose.msra.mxu0 0.0
  %2618 = vmatprep.subr.mxu0 0.0
  %2619 = vmatpush1.xpose.msra.mxu0 0.0
  %2620 = vmatprep.subr.mxu0 0.0
  %2621 = vmatpush1.xpose.msra.mxu0 0.0
  %2622 = vmatprep.subr.mxu0 0.0
  %2623 = vmatpush1.xpose.msra.mxu0 0.0
  %2624 = vmatprep.subr.mxu0 0.0
  %2625 = vmatpush1.xpose.msra.mxu0 0.0
  %2626 = vmatprep.subr.mxu0 0.0
  %2627 = vmatpush1.xpose.msra.mxu0 0.0
  %2628 = vmatprep.subr.mxu0 0.0
  %2629 = vmatpush1.xpose.msra.mxu0 0.0
  %2630 = vmatprep.subr.mxu0 0.0
  %2631 = vmatpush1.xpose.msra.mxu0 0.0
  %2632 = vmatprep.subr.mxu0 0.0
  %2633 = vmatpush1.xpose.msra.mxu0 0.0
  %2634 = vmatprep.subr.mxu0 0.0
  %2635 = vmatpush1.xpose.msra.mxu0 0.0
  %2636 = vmatprep.subr.mxu0 0.0
  %2637 = vmatpush1.xpose.msra.mxu0 0.0
  %2638 = vmatprep.subr.mxu0 0.0
  %2639 = vmatpush1.xpose.msra.mxu0 0.0
  %2640 = vmatprep.subr.mxu0 0.0
  %2641 = vmatpush1.xpose.msra.mxu0 0.0
  %2642 = vmatprep.subr.mxu0 0.0
  %2643 = vmatpush1.xpose.msra.mxu0 0.0
  %2644 = vmatprep.subr.mxu0 0.0
  %2645 = vmatpush1.xpose.msra.mxu0 0.0
  %2646 = vmatprep.subr.mxu0 0.0
  %2647 = vmatpush1.xpose.msra.mxu0 %v2614
  %2648 = vmatprep.subr.mxu0 0.0
  %2649 = vmatpush2.xpose.msra.mxu0 0.0
  %2650 = vmatprep.subr.mxu0 0.0
  %2651 = vmatpush2.xpose.msra.mxu0 0.0
  %2652 = vmatprep.subr.mxu0 0.0
  %2653 = vmatpush2.xpose.msra.mxu0 0.0
  %2654 = vmatprep.subr.mxu0 0.0
  %2655 = vmatpush2.xpose.msra.mxu0 0.0
  %2656 = vmatprep.subr.mxu0 0.0
  %2657 = vmatpush2.xpose.msra.mxu0 0.0
  %2658 = vmatprep.subr.mxu0 0.0
  %2659 = vmatpush2.xpose.msra.mxu0 0.0
  %2660 = vmatprep.subr.mxu0 0.0
  %2661 = vmatpush2.xpose.msra.mxu0 0.0
  %2662 = vmatprep.subr.mxu0 0.0
  %2663 = vmatpush2.xpose.msra.mxu0 0.0
  %2664 = vmatprep.subr.mxu0 0.0
  %2665 = vmatpush2.xpose.msra.mxu0 0.0
  %2666 = vmatprep.subr.mxu0 0.0
  %2667 = vmatpush2.xpose.msra.mxu0 0.0
  %2668 = vmatprep.subr.mxu0 0.0
  %2669 = vmatpush2.xpose.msra.mxu0 0.0
  %2670 = vmatprep.subr.mxu0 0.0
  %2671 = vmatpush2.xpose.msra.mxu0 0.0
  %2672 = vmatprep.subr.mxu0 0.0
  %2673 = vmatpush2.xpose.msra.mxu0 0.0
  %2674 = vmatprep.subr.mxu0 0.0
  %2675 = vmatpush2.xpose.msra.mxu0 0.0
  %2676 = vmatprep.subr.mxu0 0.0
  %2677 = vmatpush2.xpose.msra.mxu0 0.0
  %2678 = vmatprep.subr.mxu0 0.0
  %2679 = vmatpush2.xpose.msra.mxu0 0.0
  %2680 = vmatprep.mubr.f32.mxu0 0.0
  %2681 = vmatmul.mubr.f32.gmra.mxu0 %v2612
  %v2682 = vpop.f32.mrf.mxu0
  %v2683 = vadd.f32 0.0, %v2682
  %v2684 = vpop.f32.mrf.mxu0
  %2685 = vdwg.mxu0
  %2686 = vrot.lane.b32.xlu0 %v323, 104
  %v2687 = vpop.permute.xlu0 %2686
  %2688 = vrot.lane.b32.xlu0 %v323, 72
  %v2689 = vpop.permute.xlu0 %2688
  %v2690 = vsel %vm339, %v2687, 0
  %v2692 = vsel %vm339, %v2689, 0
  %2694 = vmatprep.subr.mxu0 0.0
  %2695 = vmatpush1.xpose.msra.mxu0 0.0
  %2696 = vmatprep.subr.mxu0 0.0
  %2697 = vmatpush1.xpose.msra.mxu0 0.0
  %2698 = vmatprep.subr.mxu0 0.0
  %2699 = vmatpush1.xpose.msra.mxu0 0.0
  %2700 = vmatprep.subr.mxu0 0.0
  %2701 = vmatpush1.xpose.msra.mxu0 0.0
  %2702 = vmatprep.subr.mxu0 0.0
  %2703 = vmatpush1.xpose.msra.mxu0 0.0
  %2704 = vmatprep.subr.mxu0 0.0
  %2705 = vmatpush1.xpose.msra.mxu0 0.0
  %2706 = vmatprep.subr.mxu0 0.0
  %2707 = vmatpush1.xpose.msra.mxu0 0.0
  %2708 = vmatprep.subr.mxu0 0.0
  %2709 = vmatpush1.xpose.msra.mxu0 0.0
  %2710 = vmatprep.subr.mxu0 0.0
  %2711 = vmatpush1.xpose.msra.mxu0 0.0
  %2712 = vmatprep.subr.mxu0 0.0
  %2713 = vmatpush1.xpose.msra.mxu0 0.0
  %2714 = vmatprep.subr.mxu0 0.0
  %2715 = vmatpush1.xpose.msra.mxu0 0.0
  %2716 = vmatprep.subr.mxu0 0.0
  %2717 = vmatpush1.xpose.msra.mxu0 0.0
  %2718 = vmatprep.subr.mxu0 0.0
  %2719 = vmatpush1.xpose.msra.mxu0 0.0
  %2720 = vmatprep.subr.mxu0 0.0
  %2721 = vmatpush1.xpose.msra.mxu0 0.0
  %2722 = vmatprep.subr.mxu0 0.0
  %2723 = vmatpush1.xpose.msra.mxu0 0.0
  %2724 = vmatprep.subr.mxu0 0.0
  %2725 = vmatpush1.xpose.msra.mxu0 %v2692
  %2726 = vmatprep.subr.mxu0 0.0
  %2727 = vmatpush2.xpose.msra.mxu0 0.0
  %2728 = vmatprep.subr.mxu0 0.0
  %2729 = vmatpush2.xpose.msra.mxu0 0.0
  %2730 = vmatprep.subr.mxu0 0.0
  %2731 = vmatpush2.xpose.msra.mxu0 0.0
  %2732 = vmatprep.subr.mxu0 0.0
  %2733 = vmatpush2.xpose.msra.mxu0 0.0
  %2734 = vmatprep.subr.mxu0 0.0
  %2735 = vmatpush2.xpose.msra.mxu0 0.0
  %2736 = vmatprep.subr.mxu0 0.0
  %2737 = vmatpush2.xpose.msra.mxu0 0.0
  %2738 = vmatprep.subr.mxu0 0.0
  %2739 = vmatpush2.xpose.msra.mxu0 0.0
  %2740 = vmatprep.subr.mxu0 0.0
  %2741 = vmatpush2.xpose.msra.mxu0 0.0
  %2742 = vmatprep.subr.mxu0 0.0
  %2743 = vmatpush2.xpose.msra.mxu0 0.0
  %2744 = vmatprep.subr.mxu0 0.0
  %2745 = vmatpush2.xpose.msra.mxu0 0.0
  %2746 = vmatprep.subr.mxu0 0.0
  %2747 = vmatpush2.xpose.msra.mxu0 0.0
  %2748 = vmatprep.subr.mxu0 0.0
  %2749 = vmatpush2.xpose.msra.mxu0 0.0
  %2750 = vmatprep.subr.mxu0 0.0
  %2751 = vmatpush2.xpose.msra.mxu0 0.0
  %2752 = vmatprep.subr.mxu0 0.0
  %2753 = vmatpush2.xpose.msra.mxu0 0.0
  %2754 = vmatprep.subr.mxu0 0.0
  %2755 = vmatpush2.xpose.msra.mxu0 0.0
  %2756 = vmatprep.subr.mxu0 0.0
  %2757 = vmatpush2.xpose.msra.mxu0 0.0
  %2758 = vmatprep.mubr.f32.mxu0 0.0
  %2759 = vmatmul.mubr.f32.gmra.mxu0 %v2690
  %v2760 = vpop.f32.mrf.mxu0
  %v2761 = vadd.f32 0.0, %v2760
  %v2762 = vpop.f32.mrf.mxu0
  %2763 = vdwg.mxu0
  %2764 = vrot.lane.b32.xlu0 %v328, 104
  %v2765 = vpop.permute.xlu0 %2764
  %2766 = vrot.lane.b32.xlu0 %v328, 72
  %v2767 = vpop.permute.xlu0 %2766
  %v2768 = vsel %vm339, %v2765, 0
  %v2770 = vsel %vm339, %v2767, 0
  %2772 = vmatprep.subr.mxu0 0.0
  %2773 = vmatpush1.xpose.msra.mxu0 0.0
  %2774 = vmatprep.subr.mxu0 0.0
  %2775 = vmatpush1.xpose.msra.mxu0 0.0
  %2776 = vmatprep.subr.mxu0 0.0
  %2777 = vmatpush1.xpose.msra.mxu0 0.0
  %2778 = vmatprep.subr.mxu0 0.0
  %2779 = vmatpush1.xpose.msra.mxu0 0.0
  %2780 = vmatprep.subr.mxu0 0.0
  %2781 = vmatpush1.xpose.msra.mxu0 0.0
  %2782 = vmatprep.subr.mxu0 0.0
  %2783 = vmatpush1.xpose.msra.mxu0 0.0
  %2784 = vmatprep.subr.mxu0 0.0
  %2785 = vmatpush1.xpose.msra.mxu0 0.0
  %2786 = vmatprep.subr.mxu0 0.0
  %2787 = vmatpush1.xpose.msra.mxu0 0.0
  %2788 = vmatprep.subr.mxu0 0.0
  %2789 = vmatpush1.xpose.msra.mxu0 0.0
  %2790 = vmatprep.subr.mxu0 0.0
  %2791 = vmatpush1.xpose.msra.mxu0 0.0
  %2792 = vmatprep.subr.mxu0 0.0
  %2793 = vmatpush1.xpose.msra.mxu0 0.0
  %2794 = vmatprep.subr.mxu0 0.0
  %2795 = vmatpush1.xpose.msra.mxu0 0.0
  %2796 = vmatprep.subr.mxu0 0.0
  %2797 = vmatpush1.xpose.msra.mxu0 0.0
  %2798 = vmatprep.subr.mxu0 0.0
  %2799 = vmatpush1.xpose.msra.mxu0 0.0
  %2800 = vmatprep.subr.mxu0 0.0
  %2801 = vmatpush1.xpose.msra.mxu0 0.0
  %2802 = vmatprep.subr.mxu0 0.0
  %2803 = vmatpush1.xpose.msra.mxu0 %v2770
  %2804 = vmatprep.subr.mxu0 0.0
  %2805 = vmatpush2.xpose.msra.mxu0 0.0
  %2806 = vmatprep.subr.mxu0 0.0
  %2807 = vmatpush2.xpose.msra.mxu0 0.0
  %2808 = vmatprep.subr.mxu0 0.0
  %2809 = vmatpush2.xpose.msra.mxu0 0.0
  %2810 = vmatprep.subr.mxu0 0.0
  %2811 = vmatpush2.xpose.msra.mxu0 0.0
  %2812 = vmatprep.subr.mxu0 0.0
  %2813 = vmatpush2.xpose.msra.mxu0 0.0
  %2814 = vmatprep.subr.mxu0 0.0
  %2815 = vmatpush2.xpose.msra.mxu0 0.0
  %2816 = vmatprep.subr.mxu0 0.0
  %2817 = vmatpush2.xpose.msra.mxu0 0.0
  %2818 = vmatprep.subr.mxu0 0.0
  %2819 = vmatpush2.xpose.msra.mxu0 0.0
  %2820 = vmatprep.subr.mxu0 0.0
  %2821 = vmatpush2.xpose.msra.mxu0 0.0
  %2822 = vmatprep.subr.mxu0 0.0
  %2823 = vmatpush2.xpose.msra.mxu0 0.0
  %2824 = vmatprep.subr.mxu0 0.0
  %2825 = vmatpush2.xpose.msra.mxu0 0.0
  %2826 = vmatprep.subr.mxu0 0.0
  %2827 = vmatpush2.xpose.msra.mxu0 0.0
  %2828 = vmatprep.subr.mxu0 0.0
  %2829 = vmatpush2.xpose.msra.mxu0 0.0
  %2830 = vmatprep.subr.mxu0 0.0
  %2831 = vmatpush2.xpose.msra.mxu0 0.0
  %2832 = vmatprep.subr.mxu0 0.0
  %2833 = vmatpush2.xpose.msra.mxu0 0.0
  %2834 = vmatprep.subr.mxu0 0.0
  %2835 = vmatpush2.xpose.msra.mxu0 0.0
  %2836 = vmatprep.mubr.f32.mxu0 0.0
  %2837 = vmatmul.mubr.f32.gmra.mxu0 %v2768
  %v2838 = vpop.f32.mrf.mxu0
  %v2839 = vadd.f32 0.0, %v2838
  %v2840 = vpop.f32.mrf.mxu0
  %2841 = vdwg.mxu0
  %2842 = vrot.lane.b32.xlu0 %v333, 104
  %v2843 = vpop.permute.xlu0 %2842
  %2844 = vrot.lane.b32.xlu0 %v333, 72
  %v2845 = vpop.permute.xlu0 %2844
  %v2846 = vsel %vm339, %v2843, 0
  %v2848 = vsel %vm339, %v2845, 0
  %2850 = vmatprep.subr.mxu0 0.0
  %2851 = vmatpush1.xpose.msra.mxu0 0.0
  %2852 = vmatprep.subr.mxu0 0.0
  %2853 = vmatpush1.xpose.msra.mxu0 0.0
  %2854 = vmatprep.subr.mxu0 0.0
  %2855 = vmatpush1.xpose.msra.mxu0 0.0
  %2856 = vmatprep.subr.mxu0 0.0
  %2857 = vmatpush1.xpose.msra.mxu0 0.0
  %2858 = vmatprep.subr.mxu0 0.0
  %2859 = vmatpush1.xpose.msra.mxu0 0.0
  %2860 = vmatprep.subr.mxu0 0.0
  %2861 = vmatpush1.xpose.msra.mxu0 0.0
  %2862 = vmatprep.subr.mxu0 0.0
  %2863 = vmatpush1.xpose.msra.mxu0 0.0
  %2864 = vmatprep.subr.mxu0 0.0
  %2865 = vmatpush1.xpose.msra.mxu0 0.0
  %2866 = vmatprep.subr.mxu0 0.0
  %2867 = vmatpush1.xpose.msra.mxu0 0.0
  %2868 = vmatprep.subr.mxu0 0.0
  %2869 = vmatpush1.xpose.msra.mxu0 0.0
  %2870 = vmatprep.subr.mxu0 0.0
  %2871 = vmatpush1.xpose.msra.mxu0 0.0
  %2872 = vmatprep.subr.mxu0 0.0
  %2873 = vmatpush1.xpose.msra.mxu0 0.0
  %2874 = vmatprep.subr.mxu0 0.0
  %2875 = vmatpush1.xpose.msra.mxu0 0.0
  %2876 = vmatprep.subr.mxu0 0.0
  %2877 = vmatpush1.xpose.msra.mxu0 0.0
  %2878 = vmatprep.subr.mxu0 0.0
  %2879 = vmatpush1.xpose.msra.mxu0 0.0
  %2880 = vmatprep.subr.mxu0 0.0
  %2881 = vmatpush1.xpose.msra.mxu0 %v2848
  %2882 = vmatprep.subr.mxu0 0.0
  %2883 = vmatpush2.xpose.msra.mxu0 0.0
  %2884 = vmatprep.subr.mxu0 0.0
  %2885 = vmatpush2.xpose.msra.mxu0 0.0
  %2886 = vmatprep.subr.mxu0 0.0
  %2887 = vmatpush2.xpose.msra.mxu0 0.0
  %2888 = vmatprep.subr.mxu0 0.0
  %2889 = vmatpush2.xpose.msra.mxu0 0.0
  %2890 = vmatprep.subr.mxu0 0.0
  %2891 = vmatpush2.xpose.msra.mxu0 0.0
  %2892 = vmatprep.subr.mxu0 0.0
  %2893 = vmatpush2.xpose.msra.mxu0 0.0
  %2894 = vmatprep.subr.mxu0 0.0
  %2895 = vmatpush2.xpose.msra.mxu0 0.0
  %2896 = vmatprep.subr.mxu0 0.0
  %2897 = vmatpush2.xpose.msra.mxu0 0.0
  %2898 = vmatprep.subr.mxu0 0.0
  %2899 = vmatpush2.xpose.msra.mxu0 0.0
  %2900 = vmatprep.subr.mxu0 0.0
  %2901 = vmatpush2.xpose.msra.mxu0 0.0
  %2902 = vmatprep.subr.mxu0 0.0
  %2903 = vmatpush2.xpose.msra.mxu0 0.0
  %2904 = vmatprep.subr.mxu0 0.0
  %2905 = vmatpush2.xpose.msra.mxu0 0.0
  %2906 = vmatprep.subr.mxu0 0.0
  %2907 = vmatpush2.xpose.msra.mxu0 0.0
  %2908 = vmatprep.subr.mxu0 0.0
  %2909 = vmatpush2.xpose.msra.mxu0 0.0
  %2910 = vmatprep.subr.mxu0 0.0
  %2911 = vmatpush2.xpose.msra.mxu0 0.0
  %2912 = vmatprep.subr.mxu0 0.0
  %2913 = vmatpush2.xpose.msra.mxu0 0.0
  %2914 = vmatprep.mubr.f32.mxu0 0.0
  %2915 = vmatmul.mubr.f32.gmra.mxu0 %v2846
  %v2916 = vpop.f32.mrf.mxu0
  %v2917 = vadd.f32 0.0, %v2916
  %v2918 = vpop.f32.mrf.mxu0
  %2919 = vdwg.mxu0
  %v2920 = vsel %vm339, %v2683, -inf
  %2921 = vmax.xlane.f32.xlu0 %v2920
  %v2922 = vpop.xlane.xlu0 %2921
  %v2923 = vsel %vm339, %v2761, -inf
  %2924 = vmax.xlane.f32.xlu0 %v2923
  %v2925 = vpop.xlane.xlu0 %2924
  %v2926 = vsel %vm339, %v2839, -inf
  %2927 = vmax.xlane.f32.xlu0 %v2926
  %v2928 = vpop.xlane.xlu0 %2927
  %v2929 = vsel %vm339, %v2917, -inf
  %2930 = vmax.xlane.f32.xlu0 %v2929
  %v2931 = vpop.xlane.xlu0 %2930
  %v2932 = vsub.f32 %v2683, %v2922
  %v2933 = vsub.f32 %v2761, %v2925
  %v2934 = vsub.f32 %v2839, %v2928
  %v2935 = vsub.f32 %v2917, %v2931
  %v2936 = vmul.f32 %v2932, 1.442695
  %v2937 = vpow.pop %v2936
  %v2938 = vmul.f32 %v2933, 1.442695
  %v2939 = vpow.pop %v2938
  %v2940 = vmul.f32 %v2934, 1.442695
  %v2941 = vpow.pop %v2940
  %v2942 = vmul.f32 %v2935, 1.442695
  %v2943 = vpow.pop %v2942
  %v2944 = vsel %vm339, %v2937, 0.0
  %2945 = vadd.xlane.f32.xlu0 %v2944
  %v2946 = vpop.xlane.xlu0 %2945
  %v2947 = vsel %vm339, %v2939, 0.0
  %2948 = vadd.xlane.f32.xlu0 %v2947
  %v2949 = vpop.xlane.xlu0 %2948
  %v2950 = vsel %vm339, %v2941, 0.0
  %2951 = vadd.xlane.f32.xlu0 %v2950
  %v2952 = vpop.xlane.xlu0 %2951
  %v2953 = vsel %vm339, %v2943, 0.0
  %2954 = vadd.xlane.f32.xlu0 %v2953
  %v2955 = vpop.xlane.xlu0 %2954
  %v2956 = vrcp.pop %v2946
  %v2957 = vmul.f32 %v2937, %v2956
  %v2958 = vrcp.pop %v2949
  %v2959 = vmul.f32 %v2939, %v2958
  %v2960 = vrcp.pop %v2952
  %v2961 = vmul.f32 %v2941, %v2960
  %v2962 = vrcp.pop %v2955
  %v2963 = vmul.f32 %v2943, %v2962
  %2964 = vrot.lane.b32.xlu0 %v318, 40
  %v2965 = vpop.permute.xlu0 %2964
  %v2968 = vsel %vm339, %v2957, 0
  %2970 = vmatprep.subr.mxu0 0.0
  %2971 = vmatpush1.msra.mxu0 0.0
  %2972 = vmatprep.subr.mxu0 0.0
  %2973 = vmatpush1.msra.mxu0 0.0
  %2974 = vmatprep.subr.mxu0 0.0
  %2975 = vmatpush1.msra.mxu0 0.0
  %2976 = vmatprep.subr.mxu0 0.0
  %2977 = vmatpush1.msra.mxu0 0.0
  %2978 = vmatprep.subr.mxu0 0.0
  %2979 = vmatpush1.msra.mxu0 0.0
  %2980 = vmatprep.subr.mxu0 0.0
  %2981 = vmatpush1.msra.mxu0 0.0
  %2982 = vmatprep.subr.mxu0 0.0
  %2983 = vmatpush1.msra.mxu0 0.0
  %2984 = vmatprep.subr.mxu0 0.0
  %2985 = vmatpush1.msra.mxu0 0.0
  %2986 = vmatprep.subr.mxu0 0.0
  %2987 = vmatpush1.msra.mxu0 0.0
  %2988 = vmatprep.subr.mxu0 0.0
  %2989 = vmatpush1.msra.mxu0 0.0
  %2990 = vmatprep.subr.mxu0 0.0
  %2991 = vmatpush1.msra.mxu0 0.0
  %2992 = vmatprep.subr.mxu0 0.0
  %2993 = vmatpush1.msra.mxu0 0.0
  %2994 = vmatprep.subr.mxu0 0.0
  %2995 = vmatpush1.msra.mxu0 0.0
  %2996 = vmatprep.subr.mxu0 0.0
  %2997 = vmatpush1.msra.mxu0 0.0
  %2998 = vmatprep.subr.mxu0 0.0
  %2999 = vmatpush1.msra.mxu0 0.0
  %3000 = vmatprep.subr.mxu0 0.0
  %3001 = vmatpush1.msra.mxu0 %v2965
  %3002 = vmatprep.subr.mxu0 0.0
  %3003 = vmatpush2.msra.mxu0 0.0
  %3004 = vmatprep.subr.mxu0 0.0
  %3005 = vmatpush2.msra.mxu0 0.0
  %3006 = vmatprep.subr.mxu0 0.0
  %3007 = vmatpush2.msra.mxu0 0.0
  %3008 = vmatprep.subr.mxu0 0.0
  %3009 = vmatpush2.msra.mxu0 0.0
  %3010 = vmatprep.subr.mxu0 0.0
  %3011 = vmatpush2.msra.mxu0 0.0
  %3012 = vmatprep.subr.mxu0 0.0
  %3013 = vmatpush2.msra.mxu0 0.0
  %3014 = vmatprep.subr.mxu0 0.0
  %3015 = vmatpush2.msra.mxu0 0.0
  %3016 = vmatprep.subr.mxu0 0.0
  %3017 = vmatpush2.msra.mxu0 0.0
  %3018 = vmatprep.subr.mxu0 0.0
  %3019 = vmatpush2.msra.mxu0 0.0
  %3020 = vmatprep.subr.mxu0 0.0
  %3021 = vmatpush2.msra.mxu0 0.0
  %3022 = vmatprep.subr.mxu0 0.0
  %3023 = vmatpush2.msra.mxu0 0.0
  %3024 = vmatprep.subr.mxu0 0.0
  %3025 = vmatpush2.msra.mxu0 0.0
  %3026 = vmatprep.subr.mxu0 0.0
  %3027 = vmatpush2.msra.mxu0 0.0
  %3028 = vmatprep.subr.mxu0 0.0
  %3029 = vmatpush2.msra.mxu0 0.0
  %3030 = vmatprep.subr.mxu0 0.0
  %3031 = vmatpush2.msra.mxu0 0.0
  %3032 = vmatprep.subr.mxu0 0.0
  %3033 = vmatpush2.msra.mxu0 0.0
  %3034 = vmatprep.mubr.f32.mxu0 0.0
  %3035 = vmatmul.mubr.f32.gmra.mxu0 %v2968
  %v3036 = vpop.f32.mrf.mxu0
  %v3037 = vadd.f32 0.0, %v3036
  %v3038 = vpop.f32.mrf.mxu0
  %3039 = vdwg.mxu0
  %3040 = vrot.lane.b32.xlu0 %v323, 40
  %v3041 = vpop.permute.xlu0 %3040
  %v3044 = vsel %vm339, %v2959, 0
  %3046 = vmatprep.subr.mxu0 0.0
  %3047 = vmatpush1.msra.mxu0 0.0
  %3048 = vmatprep.subr.mxu0 0.0
  %3049 = vmatpush1.msra.mxu0 0.0
  %3050 = vmatprep.subr.mxu0 0.0
  %3051 = vmatpush1.msra.mxu0 0.0
  %3052 = vmatprep.subr.mxu0 0.0
  %3053 = vmatpush1.msra.mxu0 0.0
  %3054 = vmatprep.subr.mxu0 0.0
  %3055 = vmatpush1.msra.mxu0 0.0
  %3056 = vmatprep.subr.mxu0 0.0
  %3057 = vmatpush1.msra.mxu0 0.0
  %3058 = vmatprep.subr.mxu0 0.0
  %3059 = vmatpush1.msra.mxu0 0.0
  %3060 = vmatprep.subr.mxu0 0.0
  %3061 = vmatpush1.msra.mxu0 0.0
  %3062 = vmatprep.subr.mxu0 0.0
  %3063 = vmatpush1.msra.mxu0 0.0
  %3064 = vmatprep.subr.mxu0 0.0
  %3065 = vmatpush1.msra.mxu0 0.0
  %3066 = vmatprep.subr.mxu0 0.0
  %3067 = vmatpush1.msra.mxu0 0.0
  %3068 = vmatprep.subr.mxu0 0.0
  %3069 = vmatpush1.msra.mxu0 0.0
  %3070 = vmatprep.subr.mxu0 0.0
  %3071 = vmatpush1.msra.mxu0 0.0
  %3072 = vmatprep.subr.mxu0 0.0
  %3073 = vmatpush1.msra.mxu0 0.0
  %3074 = vmatprep.subr.mxu0 0.0
  %3075 = vmatpush1.msra.mxu0 0.0
  %3076 = vmatprep.subr.mxu0 0.0
  %3077 = vmatpush1.msra.mxu0 %v3041
  %3078 = vmatprep.subr.mxu0 0.0
  %3079 = vmatpush2.msra.mxu0 0.0
  %3080 = vmatprep.subr.mxu0 0.0
  %3081 = vmatpush2.msra.mxu0 0.0
  %3082 = vmatprep.subr.mxu0 0.0
  %3083 = vmatpush2.msra.mxu0 0.0
  %3084 = vmatprep.subr.mxu0 0.0
  %3085 = vmatpush2.msra.mxu0 0.0
  %3086 = vmatprep.subr.mxu0 0.0
  %3087 = vmatpush2.msra.mxu0 0.0
  %3088 = vmatprep.subr.mxu0 0.0
  %3089 = vmatpush2.msra.mxu0 0.0
  %3090 = vmatprep.subr.mxu0 0.0
  %3091 = vmatpush2.msra.mxu0 0.0
  %3092 = vmatprep.subr.mxu0 0.0
  %3093 = vmatpush2.msra.mxu0 0.0
  %3094 = vmatprep.subr.mxu0 0.0
  %3095 = vmatpush2.msra.mxu0 0.0
  %3096 = vmatprep.subr.mxu0 0.0
  %3097 = vmatpush2.msra.mxu0 0.0
  %3098 = vmatprep.subr.mxu0 0.0
  %3099 = vmatpush2.msra.mxu0 0.0
  %3100 = vmatprep.subr.mxu0 0.0
  %3101 = vmatpush2.msra.mxu0 0.0
  %3102 = vmatprep.subr.mxu0 0.0
  %3103 = vmatpush2.msra.mxu0 0.0
  %3104 = vmatprep.subr.mxu0 0.0
  %3105 = vmatpush2.msra.mxu0 0.0
  %3106 = vmatprep.subr.mxu0 0.0
  %3107 = vmatpush2.msra.mxu0 0.0
  %3108 = vmatprep.subr.mxu0 0.0
  %3109 = vmatpush2.msra.mxu0 0.0
  %3110 = vmatprep.mubr.f32.mxu0 0.0
  %3111 = vmatmul.mubr.f32.gmra.mxu0 %v3044
  %v3112 = vpop.f32.mrf.mxu0
  %v3113 = vadd.f32 0.0, %v3112
  %v3114 = vpop.f32.mrf.mxu0
  %3115 = vdwg.mxu0
  %3116 = vrot.lane.b32.xlu0 %v328, 40
  %v3117 = vpop.permute.xlu0 %3116
  %v3120 = vsel %vm339, %v2961, 0
  %3122 = vmatprep.subr.mxu0 0.0
  %3123 = vmatpush1.msra.mxu0 0.0
  %3124 = vmatprep.subr.mxu0 0.0
  %3125 = vmatpush1.msra.mxu0 0.0
  %3126 = vmatprep.subr.mxu0 0.0
  %3127 = vmatpush1.msra.mxu0 0.0
  %3128 = vmatprep.subr.mxu0 0.0
  %3129 = vmatpush1.msra.mxu0 0.0
  %3130 = vmatprep.subr.mxu0 0.0
  %3131 = vmatpush1.msra.mxu0 0.0
  %3132 = vmatprep.subr.mxu0 0.0
  %3133 = vmatpush1.msra.mxu0 0.0
  %3134 = vmatprep.subr.mxu0 0.0
  %3135 = vmatpush1.msra.mxu0 0.0
  %3136 = vmatprep.subr.mxu0 0.0
  %3137 = vmatpush1.msra.mxu0 0.0
  %3138 = vmatprep.subr.mxu0 0.0
  %3139 = vmatpush1.msra.mxu0 0.0
  %3140 = vmatprep.subr.mxu0 0.0
  %3141 = vmatpush1.msra.mxu0 0.0
  %3142 = vmatprep.subr.mxu0 0.0
  %3143 = vmatpush1.msra.mxu0 0.0
  %3144 = vmatprep.subr.mxu0 0.0
  %3145 = vmatpush1.msra.mxu0 0.0
  %3146 = vmatprep.subr.mxu0 0.0
  %3147 = vmatpush1.msra.mxu0 0.0
  %3148 = vmatprep.subr.mxu0 0.0
  %3149 = vmatpush1.msra.mxu0 0.0
  %3150 = vmatprep.subr.mxu0 0.0
  %3151 = vmatpush1.msra.mxu0 0.0
  %3152 = vmatprep.subr.mxu0 0.0
  %3153 = vmatpush1.msra.mxu0 %v3117
  %3154 = vmatprep.subr.mxu0 0.0
  %3155 = vmatpush2.msra.mxu0 0.0
  %3156 = vmatprep.subr.mxu0 0.0
  %3157 = vmatpush2.msra.mxu0 0.0
  %3158 = vmatprep.subr.mxu0 0.0
  %3159 = vmatpush2.msra.mxu0 0.0
  %3160 = vmatprep.subr.mxu0 0.0
  %3161 = vmatpush2.msra.mxu0 0.0
  %3162 = vmatprep.subr.mxu0 0.0
  %3163 = vmatpush2.msra.mxu0 0.0
  %3164 = vmatprep.subr.mxu0 0.0
  %3165 = vmatpush2.msra.mxu0 0.0
  %3166 = vmatprep.subr.mxu0 0.0
  %3167 = vmatpush2.msra.mxu0 0.0
  %3168 = vmatprep.subr.mxu0 0.0
  %3169 = vmatpush2.msra.mxu0 0.0
  %3170 = vmatprep.subr.mxu0 0.0
  %3171 = vmatpush2.msra.mxu0 0.0
  %3172 = vmatprep.subr.mxu0 0.0
  %3173 = vmatpush2.msra.mxu0 0.0
  %3174 = vmatprep.subr.mxu0 0.0
  %3175 = vmatpush2.msra.mxu0 0.0
  %3176 = vmatprep.subr.mxu0 0.0
  %3177 = vmatpush2.msra.mxu0 0.0
  %3178 = vmatprep.subr.mxu0 0.0
  %3179 = vmatpush2.msra.mxu0 0.0
  %3180 = vmatprep.subr.mxu0 0.0
  %3181 = vmatpush2.msra.mxu0 0.0
  %3182 = vmatprep.subr.mxu0 0.0
  %3183 = vmatpush2.msra.mxu0 0.0
  %3184 = vmatprep.subr.mxu0 0.0
  %3185 = vmatpush2.msra.mxu0 0.0
  %3186 = vmatprep.mubr.f32.mxu0 0.0
  %3187 = vmatmul.mubr.f32.gmra.mxu0 %v3120
  %v3188 = vpop.f32.mrf.mxu0
  %v3189 = vadd.f32 0.0, %v3188
  %v3190 = vpop.f32.mrf.mxu0
  %3191 = vdwg.mxu0
  %3192 = vrot.lane.b32.xlu0 %v333, 40
  %v3193 = vpop.permute.xlu0 %3192
  %v3196 = vsel %vm339, %v2963, 0
  %3198 = vmatprep.subr.mxu0 0.0
  %3199 = vmatpush1.msra.mxu0 0.0
  %3200 = vmatprep.subr.mxu0 0.0
  %3201 = vmatpush1.msra.mxu0 0.0
  %3202 = vmatprep.subr.mxu0 0.0
  %3203 = vmatpush1.msra.mxu0 0.0
  %3204 = vmatprep.subr.mxu0 0.0
  %3205 = vmatpush1.msra.mxu0 0.0
  %3206 = vmatprep.subr.mxu0 0.0
  %3207 = vmatpush1.msra.mxu0 0.0
  %3208 = vmatprep.subr.mxu0 0.0
  %3209 = vmatpush1.msra.mxu0 0.0
  %3210 = vmatprep.subr.mxu0 0.0
  %3211 = vmatpush1.msra.mxu0 0.0
  %3212 = vmatprep.subr.mxu0 0.0
  %3213 = vmatpush1.msra.mxu0 0.0
  %3214 = vmatprep.subr.mxu0 0.0
  %3215 = vmatpush1.msra.mxu0 0.0
  %3216 = vmatprep.subr.mxu0 0.0
  %3217 = vmatpush1.msra.mxu0 0.0
  %3218 = vmatprep.subr.mxu0 0.0
  %3219 = vmatpush1.msra.mxu0 0.0
  %3220 = vmatprep.subr.mxu0 0.0
  %3221 = vmatpush1.msra.mxu0 0.0
  %3222 = vmatprep.subr.mxu0 0.0
  %3223 = vmatpush1.msra.mxu0 0.0
  %3224 = vmatprep.subr.mxu0 0.0
  %3225 = vmatpush1.msra.mxu0 0.0
  %3226 = vmatprep.subr.mxu0 0.0
  %3227 = vmatpush1.msra.mxu0 0.0
  %3228 = vmatprep.subr.mxu0 0.0
  %3229 = vmatpush1.msra.mxu0 %v3193
  %3230 = vmatprep.subr.mxu0 0.0
  %3231 = vmatpush2.msra.mxu0 0.0
  %3232 = vmatprep.subr.mxu0 0.0
  %3233 = vmatpush2.msra.mxu0 0.0
  %3234 = vmatprep.subr.mxu0 0.0
  %3235 = vmatpush2.msra.mxu0 0.0
  %3236 = vmatprep.subr.mxu0 0.0
  %3237 = vmatpush2.msra.mxu0 0.0
  %3238 = vmatprep.subr.mxu0 0.0
  %3239 = vmatpush2.msra.mxu0 0.0
  %3240 = vmatprep.subr.mxu0 0.0
  %3241 = vmatpush2.msra.mxu0 0.0
  %3242 = vmatprep.subr.mxu0 0.0
  %3243 = vmatpush2.msra.mxu0 0.0
  %3244 = vmatprep.subr.mxu0 0.0
  %3245 = vmatpush2.msra.mxu0 0.0
  %3246 = vmatprep.subr.mxu0 0.0
  %3247 = vmatpush2.msra.mxu0 0.0
  %3248 = vmatprep.subr.mxu0 0.0
  %3249 = vmatpush2.msra.mxu0 0.0
  %3250 = vmatprep.subr.mxu0 0.0
  %3251 = vmatpush2.msra.mxu0 0.0
  %3252 = vmatprep.subr.mxu0 0.0
  %3253 = vmatpush2.msra.mxu0 0.0
  %3254 = vmatprep.subr.mxu0 0.0
  %3255 = vmatpush2.msra.mxu0 0.0
  %3256 = vmatprep.subr.mxu0 0.0
  %3257 = vmatpush2.msra.mxu0 0.0
  %3258 = vmatprep.subr.mxu0 0.0
  %3259 = vmatpush2.msra.mxu0 0.0
  %3260 = vmatprep.subr.mxu0 0.0
  %3261 = vmatpush2.msra.mxu0 0.0
  %3262 = vmatprep.mubr.f32.mxu0 0.0
  %3263 = vmatmul.mubr.f32.gmra.mxu0 %v3196
  %v3264 = vpop.f32.mrf.mxu0
  %v3265 = vadd.f32 0.0, %v3264
  %v3266 = vpop.f32.mrf.mxu0
  %3267 = vdwg.mxu0
  %v3269 = vsel %vm339, %v3037, 0
  %v3272 = vsel %vm339, %v3113, 0
  %v3275 = vsel %vm339, %v3189, 0
  %v3278 = vsel %vm339, %v3265, 0
  %3280 = vmatprep.subr.mxu0 0.0
  %3281 = vmatpush1.msra.mxu0 0.0
  %3282 = vmatprep.subr.mxu0 0.0
  %3283 = vmatpush1.msra.mxu0 0.0
  %3284 = vmatprep.subr.mxu0 0.0
  %3285 = vmatpush1.msra.mxu0 0.0
  %3286 = vmatprep.subr.mxu0 0.0
  %3287 = vmatpush1.msra.mxu0 0.0
  %3288 = vmatprep.subr.mxu0 0.0
  %3289 = vmatpush1.msra.mxu0 0.0
  %3290 = vmatprep.subr.mxu0 0.0
  %3291 = vmatpush1.msra.mxu0 0.0
  %3292 = vmatprep.subr.mxu0 0.0
  %3293 = vmatpush1.msra.mxu0 0.0
  %3294 = vmatprep.subr.mxu0 0.0
  %3295 = vmatpush1.msra.mxu0 0.0
  %3296 = vmatprep.subr.mxu0 0.0
  %3297 = vmatpush1.msra.mxu0 0.0
  %3298 = vmatprep.subr.mxu0 0.0
  %3299 = vmatpush1.msra.mxu0 0.0
  %3300 = vmatprep.subr.mxu0 0.0
  %3301 = vmatpush1.msra.mxu0 0.0
  %3302 = vmatprep.subr.mxu0 0.0
  %3303 = vmatpush1.msra.mxu0 0.0
  %3304 = vmatprep.subr.mxu0 0.0
  %3305 = vmatpush1.msra.mxu0 0.0
  %3306 = vmatprep.subr.mxu0 0.0
  %3307 = vmatpush1.msra.mxu0 0.0
  %3308 = vmatprep.subr.mxu0 0.0
  %3309 = vmatpush1.msra.mxu0 0.0
  %3310 = vmatprep.subr.mxu0 0.0
  %3311 = vmatpush1.msra.mxu0 %v132
  %3312 = vmatprep.subr.mxu0 0.0
  %3313 = vmatpush2.msra.mxu0 0.0
  %3314 = vmatprep.subr.mxu0 0.0
  %3315 = vmatpush2.msra.mxu0 0.0
  %3316 = vmatprep.subr.mxu0 0.0
  %3317 = vmatpush2.msra.mxu0 0.0
  %3318 = vmatprep.subr.mxu0 0.0
  %3319 = vmatpush2.msra.mxu0 0.0
  %3320 = vmatprep.subr.mxu0 0.0
  %3321 = vmatpush2.msra.mxu0 0.0
  %3322 = vmatprep.subr.mxu0 0.0
  %3323 = vmatpush2.msra.mxu0 0.0
  %3324 = vmatprep.subr.mxu0 0.0
  %3325 = vmatpush2.msra.mxu0 0.0
  %3326 = vmatprep.subr.mxu0 0.0
  %3327 = vmatpush2.msra.mxu0 0.0
  %3328 = vmatprep.subr.mxu0 0.0
  %3329 = vmatpush2.msra.mxu0 0.0
  %3330 = vmatprep.subr.mxu0 0.0
  %3331 = vmatpush2.msra.mxu0 0.0
  %3332 = vmatprep.subr.mxu0 0.0
  %3333 = vmatpush2.msra.mxu0 0.0
  %3334 = vmatprep.subr.mxu0 0.0
  %3335 = vmatpush2.msra.mxu0 0.0
  %3336 = vmatprep.subr.mxu0 0.0
  %3337 = vmatpush2.msra.mxu0 0.0
  %3338 = vmatprep.subr.mxu0 0.0
  %3339 = vmatpush2.msra.mxu0 0.0
  %3340 = vmatprep.subr.mxu0 0.0
  %3341 = vmatpush2.msra.mxu0 0.0
  %3342 = vmatprep.subr.mxu0 0.0
  %3343 = vmatpush2.msra.mxu0 0.0
  %3344 = vmatprep.mubr.f32.mxu0 0.0
  %3345 = vmatmul.mubr.f32.gmra.mxu0 %v3269
  %v3346 = vpop.f32.mrf.mxu0
  %v3347 = vadd.f32 0.0, %v3346
  %v3348 = vpop.f32.mrf.mxu0
  %3349 = vmatprep.mubr.f32.mxu0 0.0
  %3350 = vmatmul.mubr.f32.gmra.mxu0 %v3272
  %v3351 = vpop.f32.mrf.mxu0
  %v3352 = vadd.f32 0.0, %v3351
  %v3353 = vpop.f32.mrf.mxu0
  %3354 = vmatprep.mubr.f32.mxu0 0.0
  %3355 = vmatmul.mubr.f32.gmra.mxu0 %v3275
  %v3356 = vpop.f32.mrf.mxu0
  %v3357 = vadd.f32 0.0, %v3356
  %v3358 = vpop.f32.mrf.mxu0
  %3359 = vmatprep.mubr.f32.mxu0 0.0
  %3360 = vmatmul.mubr.f32.gmra.mxu0 %v3278
  %v3361 = vpop.f32.mrf.mxu0
  %v3362 = vadd.f32 0.0, %v3361
  %v3363 = vpop.f32.mrf.mxu0
  %3364 = vdwg.mxu0
  %v3365 = vadd.f32 %v2604, %v3347
  %v3366 = vadd.f32 %v2605, %v3352
  %v3367 = vadd.f32 %v2606, %v3357
  %v3368 = vadd.f32 %v2607, %v3362
  %v3369 = vadd.f32 %v111, %v3365
  %v3370 = vadd.f32 %v116, %v3366
  %v3371 = vadd.f32 %v121, %v3367
  %v3372 = vadd.f32 %v126, %v3368
  %v3373 = vlaneseq
  %v3374 = vshrl.u32 %v3373, 7
  %v3375 = vsub.s32 0, %v3374
  %v3376 = vrot.slane %v151, %v3375
  %v3377 = vadd.f32 %v3369, %v3376
  %v3378 = vadd.f32 %v3370, %v3376
  %v3379 = vadd.f32 %v3371, %v3376
  %v3380 = vadd.f32 %v3372, %v3376
  %v3381 = vsel %vm165, %v3377, 0.0
  %3382 = vadd.xlane.f32.xlu0 %v3381
  %v3383 = vpop.xlane.xlu0 %3382
  %v3384 = vsel %vm165, %v3378, 0.0
  %3385 = vadd.xlane.f32.xlu0 %v3384
  %v3386 = vpop.xlane.xlu0 %3385
  %v3387 = vsel %vm165, %v3379, 0.0
  %3388 = vadd.xlane.f32.xlu0 %v3387
  %v3389 = vpop.xlane.xlu0 %3388
  %v3390 = vsel %vm165, %v3380, 0.0
  %3391 = vadd.xlane.f32.xlu0 %v3390
  %v3392 = vpop.xlane.xlu0 %3391
  %v3393 = vmul.f32 %v3383, %v178
  %v3394 = vmul.f32 %v3386, %v178
  %v3395 = vmul.f32 %v3389, %v178
  %v3396 = vmul.f32 %v3392, %v178
  %v3397 = vsub.f32 %v3377, %v3393
  %v3398 = vsub.f32 %v3378, %v3394
  %v3399 = vsub.f32 %v3379, %v3395
  %v3400 = vsub.f32 %v3380, %v3396
  %v3401 = vmul.f32 %v3397, %v3397
  %v3402 = vmul.f32 %v3398, %v3398
  %v3403 = vmul.f32 %v3399, %v3399
  %v3404 = vmul.f32 %v3400, %v3400
  %v3405 = vsel %vm165, %v3401, 0.0
  %3406 = vadd.xlane.f32.xlu0 %v3405
  %v3407 = vpop.xlane.xlu0 %3406
  %v3408 = vsel %vm165, %v3402, 0.0
  %3409 = vadd.xlane.f32.xlu0 %v3408
  %v3410 = vpop.xlane.xlu0 %3409
  %v3411 = vsel %vm165, %v3403, 0.0
  %3412 = vadd.xlane.f32.xlu0 %v3411
  %v3413 = vpop.xlane.xlu0 %3412
  %v3414 = vsel %vm165, %v3404, 0.0
  %3415 = vadd.xlane.f32.xlu0 %v3414
  %v3416 = vpop.xlane.xlu0 %3415
  %v3417 = vmul.f32 %v3407, %v178
  %v3418 = vmul.f32 %v3410, %v178
  %v3419 = vmul.f32 %v3413, %v178
  %v3420 = vmul.f32 %v3416, %v178
  %v3421 = vadd.f32 %v3417, 1e-05
  %v3422 = vadd.f32 %v3418, 1e-05
  %v3423 = vadd.f32 %v3419, 1e-05
  %v3424 = vadd.f32 %v3420, 1e-05
  %v3425 = vrsqrt.pop %v3421
  %v3426 = vrsqrt.pop %v3422
  %v3427 = vrsqrt.pop %v3423
  %v3428 = vrsqrt.pop %v3424
  %v3429 = vmul.f32 %v3397, %v3425
  %v3430 = vmul.f32 %v3398, %v3426
  %v3431 = vmul.f32 %v3399, %v3427
  %v3432 = vmul.f32 %v3400, %v3428
  %v3433 = vlaneseq
  %v3434 = vshrl.u32 %v3433, 7
  %v3435 = vsub.s32 0, %v3434
  %v3436 = vrot.slane %v152, %v3435
  %v3437 = vmul.f32 %v3429, %v3436
  %v3438 = vmul.f32 %v3430, %v3436
  %v3439 = vmul.f32 %v3431, %v3436
  %v3440 = vmul.f32 %v3432, %v3436
  %v3441 = vlaneseq
  %v3442 = vshrl.u32 %v3441, 7
  %v3443 = vsub.s32 0, %v3442
  %v3444 = vrot.slane %v153, %v3443
  %v3445 = vadd.f32 %v3437, %v3444
  %v3446 = vadd.f32 %v3438, %v3444
  %v3447 = vadd.f32 %v3439, %v3444
  %v3448 = vadd.f32 %v3440, %v3444
  %v3449 = vlaneseq
  %v3450 = vshrl.u32 %v3449, 7
  %v3451 = vsub.s32 0, %v3450
  %v3452 = vrot.slane %v164, %v3451
  %v3454 = vsel %vm165, %v3445, 0
  %v3457 = vsel %vm165, %v3446, 0
  %v3460 = vsel %vm165, %v3447, 0
  %v3463 = vsel %vm165, %v3448, 0
  %3465 = vmatprep.subr.mxu0 0.0
  %3466 = vmatpush1.msra.mxu0 0.0
  %3467 = vmatprep.subr.mxu0 0.0
  %3468 = vmatpush1.msra.mxu0 0.0
  %3469 = vmatprep.subr.mxu0 0.0
  %3470 = vmatpush1.msra.mxu0 0.0
  %3471 = vmatprep.subr.mxu0 0.0
  %3472 = vmatpush1.msra.mxu0 0.0
  %3473 = vmatprep.subr.mxu0 0.0
  %3474 = vmatpush1.msra.mxu0 0.0
  %3475 = vmatprep.subr.mxu0 0.0
  %3476 = vmatpush1.msra.mxu0 0.0
  %3477 = vmatprep.subr.mxu0 0.0
  %3478 = vmatpush1.msra.mxu0 0.0
  %3479 = vmatprep.subr.mxu0 0.0
  %3480 = vmatpush1.msra.mxu0 0.0
  %3481 = vmatprep.subr.mxu0 0.0
  %3482 = vmatpush1.msra.mxu0 0.0
  %3483 = vmatprep.subr.mxu0 0.0
  %3484 = vmatpush1.msra.mxu0 0.0
  %3485 = vmatprep.subr.mxu0 0.0
  %3486 = vmatpush1.msra.mxu0 0.0
  %3487 = vmatprep.subr.mxu0 0.0
  %3488 = vmatpush1.msra.mxu0 0.0
  %3489 = vmatprep.subr.mxu0 0.0
  %3490 = vmatpush1.msra.mxu0 %v163
  %3491 = vmatprep.subr.mxu0 0.0
  %3492 = vmatpush1.msra.mxu0 %v162
  %3493 = vmatprep.subr.mxu0 0.0
  %3494 = vmatpush1.msra.mxu0 %v161
  %3495 = vmatprep.subr.mxu0 0.0
  %3496 = vmatpush1.msra.mxu0 %v160
  %3497 = vmatprep.subr.mxu0 0.0
  %3498 = vmatpush2.msra.mxu0 0.0
  %3499 = vmatprep.subr.mxu0 0.0
  %3500 = vmatpush2.msra.mxu0 0.0
  %3501 = vmatprep.subr.mxu0 0.0
  %3502 = vmatpush2.msra.mxu0 0.0
  %3503 = vmatprep.subr.mxu0 0.0
  %3504 = vmatpush2.msra.mxu0 0.0
  %3505 = vmatprep.subr.mxu0 0.0
  %3506 = vmatpush2.msra.mxu0 0.0
  %3507 = vmatprep.subr.mxu0 0.0
  %3508 = vmatpush2.msra.mxu0 0.0
  %3509 = vmatprep.subr.mxu0 0.0
  %3510 = vmatpush2.msra.mxu0 0.0
  %3511 = vmatprep.subr.mxu0 0.0
  %3512 = vmatpush2.msra.mxu0 0.0
  %3513 = vmatprep.subr.mxu0 0.0
  %3514 = vmatpush2.msra.mxu0 0.0
  %3515 = vmatprep.subr.mxu0 0.0
  %3516 = vmatpush2.msra.mxu0 0.0
  %3517 = vmatprep.subr.mxu0 0.0
  %3518 = vmatpush2.msra.mxu0 0.0
  %3519 = vmatprep.subr.mxu0 0.0
  %3520 = vmatpush2.msra.mxu0 0.0
  %3521 = vmatprep.subr.mxu0 0.0
  %3522 = vmatpush2.msra.mxu0 0.0
  %3523 = vmatprep.subr.mxu0 0.0
  %3524 = vmatpush2.msra.mxu0 0.0
  %3525 = vmatprep.subr.mxu0 0.0
  %3526 = vmatpush2.msra.mxu0 0.0
  %3527 = vmatprep.subr.mxu0 0.0
  %3528 = vmatpush2.msra.mxu0 0.0
  %3529 = vmatprep.mubr.f32.mxu0 0.0
  %3530 = vmatmul.mubr.f32.gmra.mxu0 %v3454
  %v3531 = vpop.f32.mrf.mxu0
  %v3532 = vadd.f32 %v3452, %v3531
  %v3533 = vpop.f32.mrf.mxu0
  %3534 = vmatprep.mubr.f32.mxu0 0.0
  %3535 = vmatmul.mubr.f32.gmra.mxu0 %v3457
  %v3536 = vpop.f32.mrf.mxu0
  %v3537 = vadd.f32 %v3452, %v3536
  %v3538 = vpop.f32.mrf.mxu0
  %3539 = vmatprep.mubr.f32.mxu0 0.0
  %3540 = vmatmul.mubr.f32.gmra.mxu0 %v3460
  %v3541 = vpop.f32.mrf.mxu0
  %v3542 = vadd.f32 %v3452, %v3541
  %v3543 = vpop.f32.mrf.mxu0
  %3544 = vmatprep.mubr.f32.mxu0 0.0
  %3545 = vmatmul.mubr.f32.gmra.mxu0 %v3463
  %v3546 = vpop.f32.mrf.mxu0
  %v3547 = vadd.f32 %v3452, %v3546
  %v3548 = vpop.f32.mrf.mxu0
  %3549 = vdwg.mxu0
  %v3550 = vmax.f32 %v3532, 0.0
  %v3551 = vmax.f32 %v3537, 0.0
  %v3552 = vmax.f32 %v3542, 0.0
  %v3553 = vmax.f32 %v3547, 0.0
  %3554 = vmatprep.subr.mxu0 0.0
  %3555 = vmatpush1.msra.mxu0 %v148
  %3556 = vmatprep.subr.mxu0 0.0
  %3557 = vmatpush1.msra.mxu0 %v147
  %3558 = vmatprep.subr.mxu0 0.0
  %3559 = vmatpush1.msra.mxu0 %v146
  %3560 = vmatprep.subr.mxu0 0.0
  %3561 = vmatpush1.msra.mxu0 %v145
  %3562 = vmatprep.subr.mxu0 0.0
  %3563 = vmatpush1.msra.mxu0 %v144
  %3564 = vmatprep.subr.mxu0 0.0
  %3565 = vmatpush1.msra.mxu0 %v143
  %3566 = vmatprep.subr.mxu0 0.0
  %3567 = vmatpush1.msra.mxu0 %v142
  %3568 = vmatprep.subr.mxu0 0.0
  %3569 = vmatpush1.msra.mxu0 %v141
  %3570 = vmatprep.subr.mxu0 0.0
  %3571 = vmatpush1.msra.mxu0 %v140
  %3572 = vmatprep.subr.mxu0 0.0
  %3573 = vmatpush1.msra.mxu0 %v139
  %3574 = vmatprep.subr.mxu0 0.0
  %3575 = vmatpush1.msra.mxu0 %v138
  %3576 = vmatprep.subr.mxu0 0.0
  %3577 = vmatpush1.msra.mxu0 %v137
  %3578 = vmatprep.subr.mxu0 0.0
  %3579 = vmatpush1.msra.mxu0 %v136
  %3580 = vmatprep.subr.mxu0 0.0
  %3581 = vmatpush1.msra.mxu0 %v135
  %3582 = vmatprep.subr.mxu0 0.0
  %3583 = vmatpush1.msra.mxu0 %v134
  %3584 = vmatprep.subr.mxu0 0.0
  %3585 = vmatpush1.msra.mxu0 %v133
  %3586 = vmatprep.subr.mxu0 0.0
  %3587 = vmatpush2.msra.mxu0 0.0
  %3588 = vmatprep.subr.mxu0 0.0
  %3589 = vmatpush2.msra.mxu0 0.0
  %3590 = vmatprep.subr.mxu0 0.0
  %3591 = vmatpush2.msra.mxu0 0.0
  %3592 = vmatprep.subr.mxu0 0.0
  %3593 = vmatpush2.msra.mxu0 0.0
  %3594 = vmatprep.subr.mxu0 0.0
  %3595 = vmatpush2.msra.mxu0 0.0
  %3596 = vmatprep.subr.mxu0 0.0
  %3597 = vmatpush2.msra.mxu0 0.0
  %3598 = vmatprep.subr.mxu0 0.0
  %3599 = vmatpush2.msra.mxu0 0.0
  %3600 = vmatprep.subr.mxu0 0.0
  %3601 = vmatpush2.msra.mxu0 0.0
  %3602 = vmatprep.subr.mxu0 0.0
  %3603 = vmatpush2.msra.mxu0 0.0
  %3604 = vmatprep.subr.mxu0 0.0
  %3605 = vmatpush2.msra.mxu0 0.0
  %3606 = vmatprep.subr.mxu0 0.0
  %3607 = vmatpush2.msra.mxu0 0.0
  %3608 = vmatprep.subr.mxu0 0.0
  %3609 = vmatpush2.msra.mxu0 0.0
  %3610 = vmatprep.subr.mxu0 0.0
  %3611 = vmatpush2.msra.mxu0 0.0
  %3612 = vmatprep.subr.mxu0 0.0
  %3613 = vmatpush2.msra.mxu0 0.0
  %3614 = vmatprep.subr.mxu0 0.0
  %3615 = vmatpush2.msra.mxu0 0.0
  %3616 = vmatprep.subr.mxu0 0.0
  %3617 = vmatpush2.msra.mxu0 0.0
  %3618 = vmatprep.mubr.f32.mxu0 0.0
  %3619 = vmatmul.mubr.f32.gmra.mxu0 %v3550
  %v3620 = vpop.f32.mrf.mxu0
  %v3621 = vadd.f32 0.0, %v3620
  %v3622 = vpop.f32.mrf.mxu0
  %3623 = vmatprep.mubr.f32.mxu0 0.0
  %3624 = vmatmul.mubr.f32.gmra.mxu0 %v3551
  %v3625 = vpop.f32.mrf.mxu0
  %v3626 = vadd.f32 0.0, %v3625
  %v3627 = vpop.f32.mrf.mxu0
  %3628 = vmatprep.mubr.f32.mxu0 0.0
  %3629 = vmatmul.mubr.f32.gmra.mxu0 %v3552
  %v3630 = vpop.f32.mrf.mxu0
  %v3631 = vadd.f32 0.0, %v3630
  %v3632 = vpop.f32.mrf.mxu0
  %3633 = vmatprep.mubr.f32.mxu0 0.0
  %3634 = vmatmul.mubr.f32.gmra.mxu0 %v3553
  %v3635 = vpop.f32.mrf.mxu0
  %v3636 = vadd.f32 0.0, %v3635
  %v3637 = vpop.f32.mrf.mxu0
  %3638 = vdwg.mxu0
  %v3639 = vadd.f32 %v3377, %v3621
  %v3640 = vadd.f32 %v3378, %v3626
  %v3641 = vadd.f32 %v3379, %v3631
  %v3642 = vadd.f32 %v3380, %v3636
  %v3643 = vlaneseq
  %v3644 = vshrl.u32 %v3643, 7
  %v3645 = vsub.s32 0, %v3644
  %v3646 = vrot.slane %v154, %v3645
  %v3647 = vadd.f32 %v3639, %v3646
  %v3648 = vadd.f32 %v3640, %v3646
  %v3649 = vadd.f32 %v3641, %v3646
  %v3650 = vadd.f32 %v3642, %v3646
  %v3651 = vld [vmem:[%s1 + $0xd8] sm:$0xff]
  %v3652 = vld [vmem:[%s1 + $0xe0] sm:$0xff]
  %v3653 = vld [vmem:[%s1 + $0xe8] sm:$0xff]
  %v3654 = vld [vmem:[%s1 + $0xf0] sm:$0xff]
  %v3655 = vld [vmem:[%s1 + $0xf8] sm:$0xff]
  %v3656 = vld [vmem:[%s1 + $0x100] sm:$0xff]
  %v3657 = vld [vmem:[%s1 + $0x108] sm:$0xff]
  %v3658 = vld [vmem:[%s1 + $0x110] sm:$0xff]
  %v3659 = vld [vmem:[%s1 + $0x118] sm:$0xff]
  %v3660 = vld [vmem:[%s1 + $0x120] sm:$0xff]
  %v3661 = vld [vmem:[%s1 + $0x128] sm:$0xff]
  %v3662 = vld [vmem:[%s1 + $0x130] sm:$0xff]
  %v3663 = vld [vmem:[%s1 + $0x138] sm:$0xff]
  %v3664 = vld [vmem:[%s1 + $0x140] sm:$0xff]
  %v3665 = vld [vmem:[%s1 + $0x148] sm:$0xff]
  %v3666 = vld [vmem:[%s1 + $0x150] sm:$0xff]
  %v3667 = vld [vmem:[%s1 + $0x158] sm:$0xff]
  %v3668 = vld [vmem:[%s1 + $0x160] sm:$0xff]
  %v3669 = vld [vmem:[%s1 + $0x168] sm:$0xff]
  %v3670 = vld [vmem:[%s1 + $0x170] sm:$0xff]
  %v3671 = vld [vmem:[%s1 + $0x178] sm:$0x1]
  %v3672 = vld [vmem:[%s1 + $0x179] sm:$0x1]
  %v3673 = vld [vmem:[%s1 + $0x17a] sm:$0x1]
  %v3674 = vld [vmem:[%s1 + $0x17b] sm:$0x1]
  %v3675 = vld [vmem:[%s1 + $0x17c] sm:$0x1]
  %v3676 = vld [vmem:[%s1 + $0x17d] sm:$0x1]
  %v3677 = vld [vmem:[%s2 + $0x28] sm:$0xff]
  %v3678 = vld [vmem:[%s2 + $0x30] sm:$0xff]
  %v3679 = vld [vmem:[%s2 + $0x38] sm:$0xff]
  %v3680 = vld [vmem:[%s2 + $0x40] sm:$0xff]
  %v3681 = vld [vmem:[%s2 + $0x48] sm:$0x1]
  %v3682 = vld [vmem:[%s3 + $0x28] sm:$0xff]
  %v3683 = vld [vmem:[%s3 + $0x30] sm:$0xff]
  %v3684 = vld [vmem:[%s3 + $0x38] sm:$0xff]
  %v3685 = vld [vmem:[%s3 + $0x40] sm:$0xff]
  %v3686 = vld [vmem:[%s3 + $0x48] sm:$0x1]
  %v3687 = vsel %vm165, %v3647, 0.0
  %3688 = vadd.xlane.f32.xlu0 %v3687
  %v3689 = vpop.xlane.xlu0 %3688
  %v3690 = vsel %vm165, %v3648, 0.0
  %3691 = vadd.xlane.f32.xlu0 %v3690
  %v3692 = vpop.xlane.xlu0 %3691
  %v3693 = vsel %vm165, %v3649, 0.0
  %3694 = vadd.xlane.f32.xlu0 %v3693
  %v3695 = vpop.xlane.xlu0 %3694
  %v3696 = vsel %vm165, %v3650, 0.0
  %3697 = vadd.xlane.f32.xlu0 %v3696
  %v3698 = vpop.xlane.xlu0 %3697
  %v3699 = vmul.f32 %v3689, %v178
  %v3700 = vmul.f32 %v3692, %v178
  %v3701 = vmul.f32 %v3695, %v178
  %v3702 = vmul.f32 %v3698, %v178
  %v3703 = vsub.f32 %v3647, %v3699
  %v3704 = vsub.f32 %v3648, %v3700
  %v3705 = vsub.f32 %v3649, %v3701
  %v3706 = vsub.f32 %v3650, %v3702
  %v3707 = vmul.f32 %v3703, %v3703
  %v3708 = vmul.f32 %v3704, %v3704
  %v3709 = vmul.f32 %v3705, %v3705
  %v3710 = vmul.f32 %v3706, %v3706
  %v3711 = vsel %vm165, %v3707, 0.0
  %3712 = vadd.xlane.f32.xlu0 %v3711
  %v3713 = vpop.xlane.xlu0 %3712
  %v3714 = vsel %vm165, %v3708, 0.0
  %3715 = vadd.xlane.f32.xlu0 %v3714
  %v3716 = vpop.xlane.xlu0 %3715
  %v3717 = vsel %vm165, %v3709, 0.0
  %3718 = vadd.xlane.f32.xlu0 %v3717
  %v3719 = vpop.xlane.xlu0 %3718
  %v3720 = vsel %vm165, %v3710, 0.0
  %3721 = vadd.xlane.f32.xlu0 %v3720
  %v3722 = vpop.xlane.xlu0 %3721
  %v3723 = vmul.f32 %v3713, %v178
  %v3724 = vmul.f32 %v3716, %v178
  %v3725 = vmul.f32 %v3719, %v178
  %v3726 = vmul.f32 %v3722, %v178
  %v3727 = vadd.f32 %v3723, 1e-05
  %v3728 = vadd.f32 %v3724, 1e-05
  %v3729 = vadd.f32 %v3725, 1e-05
  %v3730 = vadd.f32 %v3726, 1e-05
  %v3731 = vrsqrt.pop %v3727
  %v3732 = vrsqrt.pop %v3728
  %v3733 = vrsqrt.pop %v3729
  %v3734 = vrsqrt.pop %v3730
  %v3735 = vmul.f32 %v3703, %v3731
  %v3736 = vmul.f32 %v3704, %v3732
  %v3737 = vmul.f32 %v3705, %v3733
  %v3738 = vmul.f32 %v3706, %v3734
  %v3739 = vlaneseq
  %v3740 = vshrl.u32 %v3739, 7
  %v3741 = vsub.s32 0, %v3740
  %v3742 = vrot.slane %v3671, %v3741
  %v3743 = vmul.f32 %v3735, %v3742
  %v3744 = vmul.f32 %v3736, %v3742
  %v3745 = vmul.f32 %v3737, %v3742
  %v3746 = vmul.f32 %v3738, %v3742
  %v3747 = vlaneseq
  %v3748 = vshrl.u32 %v3747, 7
  %v3749 = vsub.s32 0, %v3748
  %v3750 = vrot.slane %v3672, %v3749
  %v3751 = vadd.f32 %v3743, %v3750
  %v3752 = vadd.f32 %v3744, %v3750
  %v3753 = vadd.f32 %v3745, %v3750
  %v3754 = vadd.f32 %v3746, %v3750
  %v3755 = vlaneseq
  %v3756 = vshrl.u32 %v3755, 7
  %v3757 = vsub.s32 0, %v3756
  %v3758 = vrot.slane %v3681, %v3757
  %v3760 = vsel %vm165, %v3751, 0
  %v3763 = vsel %vm165, %v3752, 0
  %v3766 = vsel %vm165, %v3753, 0
  %v3769 = vsel %vm165, %v3754, 0
  %3771 = vmatprep.subr.mxu0 0.0
  %3772 = vmatpush1.msra.mxu0 0.0
  %3773 = vmatprep.subr.mxu0 0.0
  %3774 = vmatpush1.msra.mxu0 0.0
  %3775 = vmatprep.subr.mxu0 0.0
  %3776 = vmatpush1.msra.mxu0 0.0
  %3777 = vmatprep.subr.mxu0 0.0
  %3778 = vmatpush1.msra.mxu0 0.0
  %3779 = vmatprep.subr.mxu0 0.0
  %3780 = vmatpush1.msra.mxu0 0.0
  %3781 = vmatprep.subr.mxu0 0.0
  %3782 = vmatpush1.msra.mxu0 0.0
  %3783 = vmatprep.subr.mxu0 0.0
  %3784 = vmatpush1.msra.mxu0 0.0
  %3785 = vmatprep.subr.mxu0 0.0
  %3786 = vmatpush1.msra.mxu0 0.0
  %3787 = vmatprep.subr.mxu0 0.0
  %3788 = vmatpush1.msra.mxu0 0.0
  %3789 = vmatprep.subr.mxu0 0.0
  %3790 = vmatpush1.msra.mxu0 0.0
  %3791 = vmatprep.subr.mxu0 0.0
  %3792 = vmatpush1.msra.mxu0 0.0
  %3793 = vmatprep.subr.mxu0 0.0
  %3794 = vmatpush1.msra.mxu0 0.0
  %3795 = vmatprep.subr.mxu0 0.0
  %3796 = vmatpush1.msra.mxu0 %v3680
  %3797 = vmatprep.subr.mxu0 0.0
  %3798 = vmatpush1.msra.mxu0 %v3679
  %3799 = vmatprep.subr.mxu0 0.0
  %3800 = vmatpush1.msra.mxu0 %v3678
  %3801 = vmatprep.subr.mxu0 0.0
  %3802 = vmatpush1.msra.mxu0 %v3677
  %3803 = vmatprep.subr.mxu0 0.0
  %3804 = vmatpush2.msra.mxu0 0.0
  %3805 = vmatprep.subr.mxu0 0.0
  %3806 = vmatpush2.msra.mxu0 0.0
  %3807 = vmatprep.subr.mxu0 0.0
  %3808 = vmatpush2.msra.mxu0 0.0
  %3809 = vmatprep.subr.mxu0 0.0
  %3810 = vmatpush2.msra.mxu0 0.0
  %3811 = vmatprep.subr.mxu0 0.0
  %3812 = vmatpush2.msra.mxu0 0.0
  %3813 = vmatprep.subr.mxu0 0.0
  %3814 = vmatpush2.msra.mxu0 0.0
  %3815 = vmatprep.subr.mxu0 0.0
  %3816 = vmatpush2.msra.mxu0 0.0
  %3817 = vmatprep.subr.mxu0 0.0
  %3818 = vmatpush2.msra.mxu0 0.0
  %3819 = vmatprep.subr.mxu0 0.0
  %3820 = vmatpush2.msra.mxu0 0.0
  %3821 = vmatprep.subr.mxu0 0.0
  %3822 = vmatpush2.msra.mxu0 0.0
  %3823 = vmatprep.subr.mxu0 0.0
  %3824 = vmatpush2.msra.mxu0 0.0
  %3825 = vmatprep.subr.mxu0 0.0
  %3826 = vmatpush2.msra.mxu0 0.0
  %3827 = vmatprep.subr.mxu0 0.0
  %3828 = vmatpush2.msra.mxu0 0.0
  %3829 = vmatprep.subr.mxu0 0.0
  %3830 = vmatpush2.msra.mxu0 0.0
  %3831 = vmatprep.subr.mxu0 0.0
  %3832 = vmatpush2.msra.mxu0 0.0
  %3833 = vmatprep.subr.mxu0 0.0
  %3834 = vmatpush2.msra.mxu0 0.0
  %3835 = vmatprep.mubr.f32.mxu0 0.0
  %3836 = vmatmul.mubr.f32.gmra.mxu0 %v3760
  %v3837 = vpop.f32.mrf.mxu0
  %v3838 = vadd.f32 %v3758, %v3837
  %v3839 = vpop.f32.mrf.mxu0
  %3840 = vmatprep.mubr.f32.mxu0 0.0
  %3841 = vmatmul.mubr.f32.gmra.mxu0 %v3763
  %v3842 = vpop.f32.mrf.mxu0
  %v3843 = vadd.f32 %v3758, %v3842
  %v3844 = vpop.f32.mrf.mxu0
  %3845 = vmatprep.mubr.f32.mxu0 0.0
  %3846 = vmatmul.mubr.f32.gmra.mxu0 %v3766
  %v3847 = vpop.f32.mrf.mxu0
  %v3848 = vadd.f32 %v3758, %v3847
  %v3849 = vpop.f32.mrf.mxu0
  %3850 = vmatprep.mubr.f32.mxu0 0.0
  %3851 = vmatmul.mubr.f32.gmra.mxu0 %v3769
  %v3852 = vpop.f32.mrf.mxu0
  %v3853 = vadd.f32 %v3758, %v3852
  %v3854 = vpop.f32.mrf.mxu0
  %3855 = vdwg.mxu0
  %3857 = vrot.lane.b32.xlu0 %v3838, 96
  %v3858 = vpop.permute.xlu0 %3857
  %v3859 = vsel %vm339, %v3838, 0
  %v3861 = vsel %vm339, %v3858, 0
  %3863 = vmatprep.subr.mxu0 0.0
  %3864 = vmatpush1.xpose.msra.mxu0 0.0
  %3865 = vmatprep.subr.mxu0 0.0
  %3866 = vmatpush1.xpose.msra.mxu0 0.0
  %3867 = vmatprep.subr.mxu0 0.0
  %3868 = vmatpush1.xpose.msra.mxu0 0.0
  %3869 = vmatprep.subr.mxu0 0.0
  %3870 = vmatpush1.xpose.msra.mxu0 0.0
  %3871 = vmatprep.subr.mxu0 0.0
  %3872 = vmatpush1.xpose.msra.mxu0 0.0
  %3873 = vmatprep.subr.mxu0 0.0
  %3874 = vmatpush1.xpose.msra.mxu0 0.0
  %3875 = vmatprep.subr.mxu0 0.0
  %3876 = vmatpush1.xpose.msra.mxu0 0.0
  %3877 = vmatprep.subr.mxu0 0.0
  %3878 = vmatpush1.xpose.msra.mxu0 0.0
  %3879 = vmatprep.subr.mxu0 0.0
  %3880 = vmatpush1.xpose.msra.mxu0 0.0
  %3881 = vmatprep.subr.mxu0 0.0
  %3882 = vmatpush1.xpose.msra.mxu0 0.0
  %3883 = vmatprep.subr.mxu0 0.0
  %3884 = vmatpush1.xpose.msra.mxu0 0.0
  %3885 = vmatprep.subr.mxu0 0.0
  %3886 = vmatpush1.xpose.msra.mxu0 0.0
  %3887 = vmatprep.subr.mxu0 0.0
  %3888 = vmatpush1.xpose.msra.mxu0 0.0
  %3889 = vmatprep.subr.mxu0 0.0
  %3890 = vmatpush1.xpose.msra.mxu0 0.0
  %3891 = vmatprep.subr.mxu0 0.0
  %3892 = vmatpush1.xpose.msra.mxu0 0.0
  %3893 = vmatprep.subr.mxu0 0.0
  %3894 = vmatpush1.xpose.msra.mxu0 %v3861
  %3895 = vmatprep.subr.mxu0 0.0
  %3896 = vmatpush2.xpose.msra.mxu0 0.0
  %3897 = vmatprep.subr.mxu0 0.0
  %3898 = vmatpush2.xpose.msra.mxu0 0.0
  %3899 = vmatprep.subr.mxu0 0.0
  %3900 = vmatpush2.xpose.msra.mxu0 0.0
  %3901 = vmatprep.subr.mxu0 0.0
  %3902 = vmatpush2.xpose.msra.mxu0 0.0
  %3903 = vmatprep.subr.mxu0 0.0
  %3904 = vmatpush2.xpose.msra.mxu0 0.0
  %3905 = vmatprep.subr.mxu0 0.0
  %3906 = vmatpush2.xpose.msra.mxu0 0.0
  %3907 = vmatprep.subr.mxu0 0.0
  %3908 = vmatpush2.xpose.msra.mxu0 0.0
  %3909 = vmatprep.subr.mxu0 0.0
  %3910 = vmatpush2.xpose.msra.mxu0 0.0
  %3911 = vmatprep.subr.mxu0 0.0
  %3912 = vmatpush2.xpose.msra.mxu0 0.0
  %3913 = vmatprep.subr.mxu0 0.0
  %3914 = vmatpush2.xpose.msra.mxu0 0.0
  %3915 = vmatprep.subr.mxu0 0.0
  %3916 = vmatpush2.xpose.msra.mxu0 0.0
  %3917 = vmatprep.subr.mxu0 0.0
  %3918 = vmatpush2.xpose.msra.mxu0 0.0
  %3919 = vmatprep.subr.mxu0 0.0
  %3920 = vmatpush2.xpose.msra.mxu0 0.0
  %3921 = vmatprep.subr.mxu0 0.0
  %3922 = vmatpush2.xpose.msra.mxu0 0.0
  %3923 = vmatprep.subr.mxu0 0.0
  %3924 = vmatpush2.xpose.msra.mxu0 0.0
  %3925 = vmatprep.subr.mxu0 0.0
  %3926 = vmatpush2.xpose.msra.mxu0 0.0
  %3927 = vmatprep.mubr.f32.mxu0 0.0
  %3928 = vmatmul.mubr.f32.gmra.mxu0 %v3859
  %v3929 = vpop.f32.mrf.mxu0
  %v3930 = vadd.f32 0.0, %v3929
  %v3931 = vpop.f32.mrf.mxu0
  %3932 = vdwg.mxu0
  %3934 = vrot.lane.b32.xlu0 %v3843, 96
  %v3935 = vpop.permute.xlu0 %3934
  %v3936 = vsel %vm339, %v3843, 0
  %v3938 = vsel %vm339, %v3935, 0
  %3940 = vmatprep.subr.mxu0 0.0
  %3941 = vmatpush1.xpose.msra.mxu0 0.0
  %3942 = vmatprep.subr.mxu0 0.0
  %3943 = vmatpush1.xpose.msra.mxu0 0.0
  %3944 = vmatprep.subr.mxu0 0.0
  %3945 = vmatpush1.xpose.msra.mxu0 0.0
  %3946 = vmatprep.subr.mxu0 0.0
  %3947 = vmatpush1.xpose.msra.mxu0 0.0
  %3948 = vmatprep.subr.mxu0 0.0
  %3949 = vmatpush1.xpose.msra.mxu0 0.0
  %3950 = vmatprep.subr.mxu0 0.0
  %3951 = vmatpush1.xpose.msra.mxu0 0.0
  %3952 = vmatprep.subr.mxu0 0.0
  %3953 = vmatpush1.xpose.msra.mxu0 0.0
  %3954 = vmatprep.subr.mxu0 0.0
  %3955 = vmatpush1.xpose.msra.mxu0 0.0
  %3956 = vmatprep.subr.mxu0 0.0
  %3957 = vmatpush1.xpose.msra.mxu0 0.0
  %3958 = vmatprep.subr.mxu0 0.0
  %3959 = vmatpush1.xpose.msra.mxu0 0.0
  %3960 = vmatprep.subr.mxu0 0.0
  %3961 = vmatpush1.xpose.msra.mxu0 0.0
  %3962 = vmatprep.subr.mxu0 0.0
  %3963 = vmatpush1.xpose.msra.mxu0 0.0
  %3964 = vmatprep.subr.mxu0 0.0
  %3965 = vmatpush1.xpose.msra.mxu0 0.0
  %3966 = vmatprep.subr.mxu0 0.0
  %3967 = vmatpush1.xpose.msra.mxu0 0.0
  %3968 = vmatprep.subr.mxu0 0.0
  %3969 = vmatpush1.xpose.msra.mxu0 0.0
  %3970 = vmatprep.subr.mxu0 0.0
  %3971 = vmatpush1.xpose.msra.mxu0 %v3938
  %3972 = vmatprep.subr.mxu0 0.0
  %3973 = vmatpush2.xpose.msra.mxu0 0.0
  %3974 = vmatprep.subr.mxu0 0.0
  %3975 = vmatpush2.xpose.msra.mxu0 0.0
  %3976 = vmatprep.subr.mxu0 0.0
  %3977 = vmatpush2.xpose.msra.mxu0 0.0
  %3978 = vmatprep.subr.mxu0 0.0
  %3979 = vmatpush2.xpose.msra.mxu0 0.0
  %3980 = vmatprep.subr.mxu0 0.0
  %3981 = vmatpush2.xpose.msra.mxu0 0.0
  %3982 = vmatprep.subr.mxu0 0.0
  %3983 = vmatpush2.xpose.msra.mxu0 0.0
  %3984 = vmatprep.subr.mxu0 0.0
  %3985 = vmatpush2.xpose.msra.mxu0 0.0
  %3986 = vmatprep.subr.mxu0 0.0
  %3987 = vmatpush2.xpose.msra.mxu0 0.0
  %3988 = vmatprep.subr.mxu0 0.0
  %3989 = vmatpush2.xpose.msra.mxu0 0.0
  %3990 = vmatprep.subr.mxu0 0.0
  %3991 = vmatpush2.xpose.msra.mxu0 0.0
  %3992 = vmatprep.subr.mxu0 0.0
  %3993 = vmatpush2.xpose.msra.mxu0 0.0
  %3994 = vmatprep.subr.mxu0 0.0
  %3995 = vmatpush2.xpose.msra.mxu0 0.0
  %3996 = vmatprep.subr.mxu0 0.0
  %3997 = vmatpush2.xpose.msra.mxu0 0.0
  %3998 = vmatprep.subr.mxu0 0.0
  %3999 = vmatpush2.xpose.msra.mxu0 0.0
  %4000 = vmatprep.subr.mxu0 0.0
  %4001 = vmatpush2.xpose.msra.mxu0 0.0
  %4002 = vmatprep.subr.mxu0 0.0
  %4003 = vmatpush2.xpose.msra.mxu0 0.0
  %4004 = vmatprep.mubr.f32.mxu0 0.0
  %4005 = vmatmul.mubr.f32.gmra.mxu0 %v3936
  %v4006 = vpop.f32.mrf.mxu0
  %v4007 = vadd.f32 0.0, %v4006
  %v4008 = vpop.f32.mrf.mxu0
  %4009 = vdwg.mxu0
  %4011 = vrot.lane.b32.xlu0 %v3848, 96
  %v4012 = vpop.permute.xlu0 %4011
  %v4013 = vsel %vm339, %v3848, 0
  %v4015 = vsel %vm339, %v4012, 0
  %4017 = vmatprep.subr.mxu0 0.0
  %4018 = vmatpush1.xpose.msra.mxu0 0.0
  %4019 = vmatprep.subr.mxu0 0.0
  %4020 = vmatpush1.xpose.msra.mxu0 0.0
  %4021 = vmatprep.subr.mxu0 0.0
  %4022 = vmatpush1.xpose.msra.mxu0 0.0
  %4023 = vmatprep.subr.mxu0 0.0
  %4024 = vmatpush1.xpose.msra.mxu0 0.0
  %4025 = vmatprep.subr.mxu0 0.0
  %4026 = vmatpush1.xpose.msra.mxu0 0.0
  %4027 = vmatprep.subr.mxu0 0.0
  %4028 = vmatpush1.xpose.msra.mxu0 0.0
  %4029 = vmatprep.subr.mxu0 0.0
  %4030 = vmatpush1.xpose.msra.mxu0 0.0
  %4031 = vmatprep.subr.mxu0 0.0
  %4032 = vmatpush1.xpose.msra.mxu0 0.0
  %4033 = vmatprep.subr.mxu0 0.0
  %4034 = vmatpush1.xpose.msra.mxu0 0.0
  %4035 = vmatprep.subr.mxu0 0.0
  %4036 = vmatpush1.xpose.msra.mxu0 0.0
  %4037 = vmatprep.subr.mxu0 0.0
  %4038 = vmatpush1.xpose.msra.mxu0 0.0
  %4039 = vmatprep.subr.mxu0 0.0
  %4040 = vmatpush1.xpose.msra.mxu0 0.0
  %4041 = vmatprep.subr.mxu0 0.0
  %4042 = vmatpush1.xpose.msra.mxu0 0.0
  %4043 = vmatprep.subr.mxu0 0.0
  %4044 = vmatpush1.xpose.msra.mxu0 0.0
  %4045 = vmatprep.subr.mxu0 0.0
  %4046 = vmatpush1.xpose.msra.mxu0 0.0
  %4047 = vmatprep.subr.mxu0 0.0
  %4048 = vmatpush1.xpose.msra.mxu0 %v4015
  %4049 = vmatprep.subr.mxu0 0.0
  %4050 = vmatpush2.xpose.msra.mxu0 0.0
  %4051 = vmatprep.subr.mxu0 0.0
  %4052 = vmatpush2.xpose.msra.mxu0 0.0
  %4053 = vmatprep.subr.mxu0 0.0
  %4054 = vmatpush2.xpose.msra.mxu0 0.0
  %4055 = vmatprep.subr.mxu0 0.0
  %4056 = vmatpush2.xpose.msra.mxu0 0.0
  %4057 = vmatprep.subr.mxu0 0.0
  %4058 = vmatpush2.xpose.msra.mxu0 0.0
  %4059 = vmatprep.subr.mxu0 0.0
  %4060 = vmatpush2.xpose.msra.mxu0 0.0
  %4061 = vmatprep.subr.mxu0 0.0
  %4062 = vmatpush2.xpose.msra.mxu0 0.0
  %4063 = vmatprep.subr.mxu0 0.0
  %4064 = vmatpush2.xpose.msra.mxu0 0.0
  %4065 = vmatprep.subr.mxu0 0.0
  %4066 = vmatpush2.xpose.msra.mxu0 0.0
  %4067 = vmatprep.subr.mxu0 0.0
  %4068 = vmatpush2.xpose.msra.mxu0 0.0
  %4069 = vmatprep.subr.mxu0 0.0
  %4070 = vmatpush2.xpose.msra.mxu0 0.0
  %4071 = vmatprep.subr.mxu0 0.0
  %4072 = vmatpush2.xpose.msra.mxu0 0.0
  %4073 = vmatprep.subr.mxu0 0.0
  %4074 = vmatpush2.xpose.msra.mxu0 0.0
  %4075 = vmatprep.subr.mxu0 0.0
  %4076 = vmatpush2.xpose.msra.mxu0 0.0
  %4077 = vmatprep.subr.mxu0 0.0
  %4078 = vmatpush2.xpose.msra.mxu0 0.0
  %4079 = vmatprep.subr.mxu0 0.0
  %4080 = vmatpush2.xpose.msra.mxu0 0.0
  %4081 = vmatprep.mubr.f32.mxu0 0.0
  %4082 = vmatmul.mubr.f32.gmra.mxu0 %v4013
  %v4083 = vpop.f32.mrf.mxu0
  %v4084 = vadd.f32 0.0, %v4083
  %v4085 = vpop.f32.mrf.mxu0
  %4086 = vdwg.mxu0
  %4088 = vrot.lane.b32.xlu0 %v3853, 96
  %v4089 = vpop.permute.xlu0 %4088
  %v4090 = vsel %vm339, %v3853, 0
  %v4092 = vsel %vm339, %v4089, 0
  %4094 = vmatprep.subr.mxu0 0.0
  %4095 = vmatpush1.xpose.msra.mxu0 0.0
  %4096 = vmatprep.subr.mxu0 0.0
  %4097 = vmatpush1.xpose.msra.mxu0 0.0
  %4098 = vmatprep.subr.mxu0 0.0
  %4099 = vmatpush1.xpose.msra.mxu0 0.0
  %4100 = vmatprep.subr.mxu0 0.0
  %4101 = vmatpush1.xpose.msra.mxu0 0.0
  %4102 = vmatprep.subr.mxu0 0.0
  %4103 = vmatpush1.xpose.msra.mxu0 0.0
  %4104 = vmatprep.subr.mxu0 0.0
  %4105 = vmatpush1.xpose.msra.mxu0 0.0
  %4106 = vmatprep.subr.mxu0 0.0
  %4107 = vmatpush1.xpose.msra.mxu0 0.0
  %4108 = vmatprep.subr.mxu0 0.0
  %4109 = vmatpush1.xpose.msra.mxu0 0.0
  %4110 = vmatprep.subr.mxu0 0.0
  %4111 = vmatpush1.xpose.msra.mxu0 0.0
  %4112 = vmatprep.subr.mxu0 0.0
  %4113 = vmatpush1.xpose.msra.mxu0 0.0
  %4114 = vmatprep.subr.mxu0 0.0
  %4115 = vmatpush1.xpose.msra.mxu0 0.0
  %4116 = vmatprep.subr.mxu0 0.0
  %4117 = vmatpush1.xpose.msra.mxu0 0.0
  %4118 = vmatprep.subr.mxu0 0.0
  %4119 = vmatpush1.xpose.msra.mxu0 0.0
  %4120 = vmatprep.subr.mxu0 0.0
  %4121 = vmatpush1.xpose.msra.mxu0 0.0
  %4122 = vmatprep.subr.mxu0 0.0
  %4123 = vmatpush1.xpose.msra.mxu0 0.0
  %4124 = vmatprep.subr.mxu0 0.0
  %4125 = vmatpush1.xpose.msra.mxu0 %v4092
  %4126 = vmatprep.subr.mxu0 0.0
  %4127 = vmatpush2.xpose.msra.mxu0 0.0
  %4128 = vmatprep.subr.mxu0 0.0
  %4129 = vmatpush2.xpose.msra.mxu0 0.0
  %4130 = vmatprep.subr.mxu0 0.0
  %4131 = vmatpush2.xpose.msra.mxu0 0.0
  %4132 = vmatprep.subr.mxu0 0.0
  %4133 = vmatpush2.xpose.msra.mxu0 0.0
  %4134 = vmatprep.subr.mxu0 0.0
  %4135 = vmatpush2.xpose.msra.mxu0 0.0
  %4136 = vmatprep.subr.mxu0 0.0
  %4137 = vmatpush2.xpose.msra.mxu0 0.0
  %4138 = vmatprep.subr.mxu0 0.0
  %4139 = vmatpush2.xpose.msra.mxu0 0.0
  %4140 = vmatprep.subr.mxu0 0.0
  %4141 = vmatpush2.xpose.msra.mxu0 0.0
  %4142 = vmatprep.subr.mxu0 0.0
  %4143 = vmatpush2.xpose.msra.mxu0 0.0
  %4144 = vmatprep.subr.mxu0 0.0
  %4145 = vmatpush2.xpose.msra.mxu0 0.0
  %4146 = vmatprep.subr.mxu0 0.0
  %4147 = vmatpush2.xpose.msra.mxu0 0.0
  %4148 = vmatprep.subr.mxu0 0.0
  %4149 = vmatpush2.xpose.msra.mxu0 0.0
  %4150 = vmatprep.subr.mxu0 0.0
  %4151 = vmatpush2.xpose.msra.mxu0 0.0
  %4152 = vmatprep.subr.mxu0 0.0
  %4153 = vmatpush2.xpose.msra.mxu0 0.0
  %4154 = vmatprep.subr.mxu0 0.0
  %4155 = vmatpush2.xpose.msra.mxu0 0.0
  %4156 = vmatprep.subr.mxu0 0.0
  %4157 = vmatpush2.xpose.msra.mxu0 0.0
  %4158 = vmatprep.mubr.f32.mxu0 0.0
  %4159 = vmatmul.mubr.f32.gmra.mxu0 %v4090
  %v4160 = vpop.f32.mrf.mxu0
  %v4161 = vadd.f32 0.0, %v4160
  %v4162 = vpop.f32.mrf.mxu0
  %4163 = vdwg.mxu0
  %v4164 = vsel %vm339, %v3930, -inf
  %4165 = vmax.xlane.f32.xlu0 %v4164
  %v4166 = vpop.xlane.xlu0 %4165
  %v4167 = vsel %vm339, %v4007, -inf
  %4168 = vmax.xlane.f32.xlu0 %v4167
  %v4169 = vpop.xlane.xlu0 %4168
  %v4170 = vsel %vm339, %v4084, -inf
  %4171 = vmax.xlane.f32.xlu0 %v4170
  %v4172 = vpop.xlane.xlu0 %4171
  %v4173 = vsel %vm339, %v4161, -inf
  %4174 = vmax.xlane.f32.xlu0 %v4173
  %v4175 = vpop.xlane.xlu0 %4174
  %v4176 = vsub.f32 %v3930, %v4166
  %v4177 = vsub.f32 %v4007, %v4169
  %v4178 = vsub.f32 %v4084, %v4172
  %v4179 = vsub.f32 %v4161, %v4175
  %v4180 = vmul.f32 %v4176, 1.442695
  %v4181 = vpow.pop %v4180
  %v4182 = vmul.f32 %v4177, 1.442695
  %v4183 = vpow.pop %v4182
  %v4184 = vmul.f32 %v4178, 1.442695
  %v4185 = vpow.pop %v4184
  %v4186 = vmul.f32 %v4179, 1.442695
  %v4187 = vpow.pop %v4186
  %v4188 = vsel %vm339, %v4181, 0.0
  %4189 = vadd.xlane.f32.xlu0 %v4188
  %v4190 = vpop.xlane.xlu0 %4189
  %v4191 = vsel %vm339, %v4183, 0.0
  %4192 = vadd.xlane.f32.xlu0 %v4191
  %v4193 = vpop.xlane.xlu0 %4192
  %v4194 = vsel %vm339, %v4185, 0.0
  %4195 = vadd.xlane.f32.xlu0 %v4194
  %v4196 = vpop.xlane.xlu0 %4195
  %v4197 = vsel %vm339, %v4187, 0.0
  %4198 = vadd.xlane.f32.xlu0 %v4197
  %v4199 = vpop.xlane.xlu0 %4198
  %v4200 = vrcp.pop %v4190
  %v4201 = vmul.f32 %v4181, %v4200
  %v4202 = vrcp.pop %v4193
  %v4203 = vmul.f32 %v4183, %v4202
  %v4204 = vrcp.pop %v4196
  %v4205 = vmul.f32 %v4185, %v4204
  %v4206 = vrcp.pop %v4199
  %v4207 = vmul.f32 %v4187, %v4206
  %4208 = vrot.lane.b32.xlu0 %v3838, 64
  %v4209 = vpop.permute.xlu0 %4208
  %v4212 = vsel %vm339, %v4201, 0
  %4214 = vmatprep.subr.mxu0 0.0
  %4215 = vmatpush1.msra.mxu0 0.0
  %4216 = vmatprep.subr.mxu0 0.0
  %4217 = vmatpush1.msra.mxu0 0.0
  %4218 = vmatprep.subr.mxu0 0.0
  %4219 = vmatpush1.msra.mxu0 0.0
  %4220 = vmatprep.subr.mxu0 0.0
  %4221 = vmatpush1.msra.mxu0 0.0
  %4222 = vmatprep.subr.mxu0 0.0
  %4223 = vmatpush1.msra.mxu0 0.0
  %4224 = vmatprep.subr.mxu0 0.0
  %4225 = vmatpush1.msra.mxu0 0.0
  %4226 = vmatprep.subr.mxu0 0.0
  %4227 = vmatpush1.msra.mxu0 0.0
  %4228 = vmatprep.subr.mxu0 0.0
  %4229 = vmatpush1.msra.mxu0 0.0
  %4230 = vmatprep.subr.mxu0 0.0
  %4231 = vmatpush1.msra.mxu0 0.0
  %4232 = vmatprep.subr.mxu0 0.0
  %4233 = vmatpush1.msra.mxu0 0.0
  %4234 = vmatprep.subr.mxu0 0.0
  %4235 = vmatpush1.msra.mxu0 0.0
  %4236 = vmatprep.subr.mxu0 0.0
  %4237 = vmatpush1.msra.mxu0 0.0
  %4238 = vmatprep.subr.mxu0 0.0
  %4239 = vmatpush1.msra.mxu0 0.0
  %4240 = vmatprep.subr.mxu0 0.0
  %4241 = vmatpush1.msra.mxu0 0.0
  %4242 = vmatprep.subr.mxu0 0.0
  %4243 = vmatpush1.msra.mxu0 0.0
  %4244 = vmatprep.subr.mxu0 0.0
  %4245 = vmatpush1.msra.mxu0 %v4209
  %4246 = vmatprep.subr.mxu0 0.0
  %4247 = vmatpush2.msra.mxu0 0.0
  %4248 = vmatprep.subr.mxu0 0.0
  %4249 = vmatpush2.msra.mxu0 0.0
  %4250 = vmatprep.subr.mxu0 0.0
  %4251 = vmatpush2.msra.mxu0 0.0
  %4252 = vmatprep.subr.mxu0 0.0
  %4253 = vmatpush2.msra.mxu0 0.0
  %4254 = vmatprep.subr.mxu0 0.0
  %4255 = vmatpush2.msra.mxu0 0.0
  %4256 = vmatprep.subr.mxu0 0.0
  %4257 = vmatpush2.msra.mxu0 0.0
  %4258 = vmatprep.subr.mxu0 0.0
  %4259 = vmatpush2.msra.mxu0 0.0
  %4260 = vmatprep.subr.mxu0 0.0
  %4261 = vmatpush2.msra.mxu0 0.0
  %4262 = vmatprep.subr.mxu0 0.0
  %4263 = vmatpush2.msra.mxu0 0.0
  %4264 = vmatprep.subr.mxu0 0.0
  %4265 = vmatpush2.msra.mxu0 0.0
  %4266 = vmatprep.subr.mxu0 0.0
  %4267 = vmatpush2.msra.mxu0 0.0
  %4268 = vmatprep.subr.mxu0 0.0
  %4269 = vmatpush2.msra.mxu0 0.0
  %4270 = vmatprep.subr.mxu0 0.0
  %4271 = vmatpush2.msra.mxu0 0.0
  %4272 = vmatprep.subr.mxu0 0.0
  %4273 = vmatpush2.msra.mxu0 0.0
  %4274 = vmatprep.subr.mxu0 0.0
  %4275 = vmatpush2.msra.mxu0 0.0
  %4276 = vmatprep.subr.mxu0 0.0
  %4277 = vmatpush2.msra.mxu0 0.0
  %4278 = vmatprep.mubr.f32.mxu0 0.0
  %4279 = vmatmul.mubr.f32.gmra.mxu0 %v4212
  %v4280 = vpop.f32.mrf.mxu0
  %v4281 = vadd.f32 0.0, %v4280
  %v4282 = vpop.f32.mrf.mxu0
  %4283 = vdwg.mxu0
  %4284 = vrot.lane.b32.xlu0 %v3843, 64
  %v4285 = vpop.permute.xlu0 %4284
  %v4288 = vsel %vm339, %v4203, 0
  %4290 = vmatprep.subr.mxu0 0.0
  %4291 = vmatpush1.msra.mxu0 0.0
  %4292 = vmatprep.subr.mxu0 0.0
  %4293 = vmatpush1.msra.mxu0 0.0
  %4294 = vmatprep.subr.mxu0 0.0
  %4295 = vmatpush1.msra.mxu0 0.0
  %4296 = vmatprep.subr.mxu0 0.0
  %4297 = vmatpush1.msra.mxu0 0.0
  %4298 = vmatprep.subr.mxu0 0.0
  %4299 = vmatpush1.msra.mxu0 0.0
  %4300 = vmatprep.subr.mxu0 0.0
  %4301 = vmatpush1.msra.mxu0 0.0
  %4302 = vmatprep.subr.mxu0 0.0
  %4303 = vmatpush1.msra.mxu0 0.0
  %4304 = vmatprep.subr.mxu0 0.0
  %4305 = vmatpush1.msra.mxu0 0.0
  %4306 = vmatprep.subr.mxu0 0.0
  %4307 = vmatpush1.msra.mxu0 0.0
  %4308 = vmatprep.subr.mxu0 0.0
  %4309 = vmatpush1.msra.mxu0 0.0
  %4310 = vmatprep.subr.mxu0 0.0
  %4311 = vmatpush1.msra.mxu0 0.0
  %4312 = vmatprep.subr.mxu0 0.0
  %4313 = vmatpush1.msra.mxu0 0.0
  %4314 = vmatprep.subr.mxu0 0.0
  %4315 = vmatpush1.msra.mxu0 0.0
  %4316 = vmatprep.subr.mxu0 0.0
  %4317 = vmatpush1.msra.mxu0 0.0
  %4318 = vmatprep.subr.mxu0 0.0
  %4319 = vmatpush1.msra.mxu0 0.0
  %4320 = vmatprep.subr.mxu0 0.0
  %4321 = vmatpush1.msra.mxu0 %v4285
  %4322 = vmatprep.subr.mxu0 0.0
  %4323 = vmatpush2.msra.mxu0 0.0
  %4324 = vmatprep.subr.mxu0 0.0
  %4325 = vmatpush2.msra.mxu0 0.0
  %4326 = vmatprep.subr.mxu0 0.0
  %4327 = vmatpush2.msra.mxu0 0.0
  %4328 = vmatprep.subr.mxu0 0.0
  %4329 = vmatpush2.msra.mxu0 0.0
  %4330 = vmatprep.subr.mxu0 0.0
  %4331 = vmatpush2.msra.mxu0 0.0
  %4332 = vmatprep.subr.mxu0 0.0
  %4333 = vmatpush2.msra.mxu0 0.0
  %4334 = vmatprep.subr.mxu0 0.0
  %4335 = vmatpush2.msra.mxu0 0.0
  %4336 = vmatprep.subr.mxu0 0.0
  %4337 = vmatpush2.msra.mxu0 0.0
  %4338 = vmatprep.subr.mxu0 0.0
  %4339 = vmatpush2.msra.mxu0 0.0
  %4340 = vmatprep.subr.mxu0 0.0
  %4341 = vmatpush2.msra.mxu0 0.0
  %4342 = vmatprep.subr.mxu0 0.0
  %4343 = vmatpush2.msra.mxu0 0.0
  %4344 = vmatprep.subr.mxu0 0.0
  %4345 = vmatpush2.msra.mxu0 0.0
  %4346 = vmatprep.subr.mxu0 0.0
  %4347 = vmatpush2.msra.mxu0 0.0
  %4348 = vmatprep.subr.mxu0 0.0
  %4349 = vmatpush2.msra.mxu0 0.0
  %4350 = vmatprep.subr.mxu0 0.0
  %4351 = vmatpush2.msra.mxu0 0.0
  %4352 = vmatprep.subr.mxu0 0.0
  %4353 = vmatpush2.msra.mxu0 0.0
  %4354 = vmatprep.mubr.f32.mxu0 0.0
  %4355 = vmatmul.mubr.f32.gmra.mxu0 %v4288
  %v4356 = vpop.f32.mrf.mxu0
  %v4357 = vadd.f32 0.0, %v4356
  %v4358 = vpop.f32.mrf.mxu0
  %4359 = vdwg.mxu0
  %4360 = vrot.lane.b32.xlu0 %v3848, 64
  %v4361 = vpop.permute.xlu0 %4360
  %v4364 = vsel %vm339, %v4205, 0
  %4366 = vmatprep.subr.mxu0 0.0
  %4367 = vmatpush1.msra.mxu0 0.0
  %4368 = vmatprep.subr.mxu0 0.0
  %4369 = vmatpush1.msra.mxu0 0.0
  %4370 = vmatprep.subr.mxu0 0.0
  %4371 = vmatpush1.msra.mxu0 0.0
  %4372 = vmatprep.subr.mxu0 0.0
  %4373 = vmatpush1.msra.mxu0 0.0
  %4374 = vmatprep.subr.mxu0 0.0
  %4375 = vmatpush1.msra.mxu0 0.0
  %4376 = vmatprep.subr.mxu0 0.0
  %4377 = vmatpush1.msra.mxu0 0.0
  %4378 = vmatprep.subr.mxu0 0.0
  %4379 = vmatpush1.msra.mxu0 0.0
  %4380 = vmatprep.subr.mxu0 0.0
  %4381 = vmatpush1.msra.mxu0 0.0
  %4382 = vmatprep.subr.mxu0 0.0
  %4383 = vmatpush1.msra.mxu0 0.0
  %4384 = vmatprep.subr.mxu0 0.0
  %4385 = vmatpush1.msra.mxu0 0.0
  %4386 = vmatprep.subr.mxu0 0.0
  %4387 = vmatpush1.msra.mxu0 0.0
  %4388 = vmatprep.subr.mxu0 0.0
  %4389 = vmatpush1.msra.mxu0 0.0
  %4390 = vmatprep.subr.mxu0 0.0
  %4391 = vmatpush1.msra.mxu0 0.0
  %4392 = vmatprep.subr.mxu0 0.0
  %4393 = vmatpush1.msra.mxu0 0.0
  %4394 = vmatprep.subr.mxu0 0.0
  %4395 = vmatpush1.msra.mxu0 0.0
  %4396 = vmatprep.subr.mxu0 0.0
  %4397 = vmatpush1.msra.mxu0 %v4361
  %4398 = vmatprep.subr.mxu0 0.0
  %4399 = vmatpush2.msra.mxu0 0.0
  %4400 = vmatprep.subr.mxu0 0.0
  %4401 = vmatpush2.msra.mxu0 0.0
  %4402 = vmatprep.subr.mxu0 0.0
  %4403 = vmatpush2.msra.mxu0 0.0
  %4404 = vmatprep.subr.mxu0 0.0
  %4405 = vmatpush2.msra.mxu0 0.0
  %4406 = vmatprep.subr.mxu0 0.0
  %4407 = vmatpush2.msra.mxu0 0.0
  %4408 = vmatprep.subr.mxu0 0.0
  %4409 = vmatpush2.msra.mxu0 0.0
  %4410 = vmatprep.subr.mxu0 0.0
  %4411 = vmatpush2.msra.mxu0 0.0
  %4412 = vmatprep.subr.mxu0 0.0
  %4413 = vmatpush2.msra.mxu0 0.0
  %4414 = vmatprep.subr.mxu0 0.0
  %4415 = vmatpush2.msra.mxu0 0.0
  %4416 = vmatprep.subr.mxu0 0.0
  %4417 = vmatpush2.msra.mxu0 0.0
  %4418 = vmatprep.subr.mxu0 0.0
  %4419 = vmatpush2.msra.mxu0 0.0
  %4420 = vmatprep.subr.mxu0 0.0
  %4421 = vmatpush2.msra.mxu0 0.0
  %4422 = vmatprep.subr.mxu0 0.0
  %4423 = vmatpush2.msra.mxu0 0.0
  %4424 = vmatprep.subr.mxu0 0.0
  %4425 = vmatpush2.msra.mxu0 0.0
  %4426 = vmatprep.subr.mxu0 0.0
  %4427 = vmatpush2.msra.mxu0 0.0
  %4428 = vmatprep.subr.mxu0 0.0
  %4429 = vmatpush2.msra.mxu0 0.0
  %4430 = vmatprep.mubr.f32.mxu0 0.0
  %4431 = vmatmul.mubr.f32.gmra.mxu0 %v4364
  %v4432 = vpop.f32.mrf.mxu0
  %v4433 = vadd.f32 0.0, %v4432
  %v4434 = vpop.f32.mrf.mxu0
  %4435 = vdwg.mxu0
  %4436 = vrot.lane.b32.xlu0 %v3853, 64
  %v4437 = vpop.permute.xlu0 %4436
  %v4440 = vsel %vm339, %v4207, 0
  %4442 = vmatprep.subr.mxu0 0.0
  %4443 = vmatpush1.msra.mxu0 0.0
  %4444 = vmatprep.subr.mxu0 0.0
  %4445 = vmatpush1.msra.mxu0 0.0
  %4446 = vmatprep.subr.mxu0 0.0
  %4447 = vmatpush1.msra.mxu0 0.0
  %4448 = vmatprep.subr.mxu0 0.0
  %4449 = vmatpush1.msra.mxu0 0.0
  %4450 = vmatprep.subr.mxu0 0.0
  %4451 = vmatpush1.msra.mxu0 0.0
  %4452 = vmatprep.subr.mxu0 0.0
  %4453 = vmatpush1.msra.mxu0 0.0
  %4454 = vmatprep.subr.mxu0 0.0
  %4455 = vmatpush1.msra.mxu0 0.0
  %4456 = vmatprep.subr.mxu0 0.0
  %4457 = vmatpush1.msra.mxu0 0.0
  %4458 = vmatprep.subr.mxu0 0.0
  %4459 = vmatpush1.msra.mxu0 0.0
  %4460 = vmatprep.subr.mxu0 0.0
  %4461 = vmatpush1.msra.mxu0 0.0
  %4462 = vmatprep.subr.mxu0 0.0
  %4463 = vmatpush1.msra.mxu0 0.0
  %4464 = vmatprep.subr.mxu0 0.0
  %4465 = vmatpush1.msra.mxu0 0.0
  %4466 = vmatprep.subr.mxu0 0.0
  %4467 = vmatpush1.msra.mxu0 0.0
  %4468 = vmatprep.subr.mxu0 0.0
  %4469 = vmatpush1.msra.mxu0 0.0
  %4470 = vmatprep.subr.mxu0 0.0
  %4471 = vmatpush1.msra.mxu0 0.0
  %4472 = vmatprep.subr.mxu0 0.0
  %4473 = vmatpush1.msra.mxu0 %v4437
  %4474 = vmatprep.subr.mxu0 0.0
  %4475 = vmatpush2.msra.mxu0 0.0
  %4476 = vmatprep.subr.mxu0 0.0
  %4477 = vmatpush2.msra.mxu0 0.0
  %4478 = vmatprep.subr.mxu0 0.0
  %4479 = vmatpush2.msra.mxu0 0.0
  %4480 = vmatprep.subr.mxu0 0.0
  %4481 = vmatpush2.msra.mxu0 0.0
  %4482 = vmatprep.subr.mxu0 0.0
  %4483 = vmatpush2.msra.mxu0 0.0
  %4484 = vmatprep.subr.mxu0 0.0
  %4485 = vmatpush2.msra.mxu0 0.0
  %4486 = vmatprep.subr.mxu0 0.0
  %4487 = vmatpush2.msra.mxu0 0.0
  %4488 = vmatprep.subr.mxu0 0.0
  %4489 = vmatpush2.msra.mxu0 0.0
  %4490 = vmatprep.subr.mxu0 0.0
  %4491 = vmatpush2.msra.mxu0 0.0
  %4492 = vmatprep.subr.mxu0 0.0
  %4493 = vmatpush2.msra.mxu0 0.0
  %4494 = vmatprep.subr.mxu0 0.0
  %4495 = vmatpush2.msra.mxu0 0.0
  %4496 = vmatprep.subr.mxu0 0.0
  %4497 = vmatpush2.msra.mxu0 0.0
  %4498 = vmatprep.subr.mxu0 0.0
  %4499 = vmatpush2.msra.mxu0 0.0
  %4500 = vmatprep.subr.mxu0 0.0
  %4501 = vmatpush2.msra.mxu0 0.0
  %4502 = vmatprep.subr.mxu0 0.0
  %4503 = vmatpush2.msra.mxu0 0.0
  %4504 = vmatprep.subr.mxu0 0.0
  %4505 = vmatpush2.msra.mxu0 0.0
  %4506 = vmatprep.mubr.f32.mxu0 0.0
  %4507 = vmatmul.mubr.f32.gmra.mxu0 %v4440
  %v4508 = vpop.f32.mrf.mxu0
  %v4509 = vadd.f32 0.0, %v4508
  %v4510 = vpop.f32.mrf.mxu0
  %4511 = vdwg.mxu0
  %4512 = vrot.lane.b32.xlu0 %v3838, 120
  %v4513 = vpop.permute.xlu0 %4512
  %4514 = vrot.lane.b32.xlu0 %v3838, 88
  %v4515 = vpop.permute.xlu0 %4514
  %v4516 = vsel %vm339, %v4513, 0
  %v4518 = vsel %vm339, %v4515, 0
  %4520 = vmatprep.subr.mxu0 0.0
  %4521 = vmatpush1.xpose.msra.mxu0 0.0
  %4522 = vmatprep.subr.mxu0 0.0
  %4523 = vmatpush1.xpose.msra.mxu0 0.0
  %4524 = vmatprep.subr.mxu0 0.0
  %4525 = vmatpush1.xpose.msra.mxu0 0.0
  %4526 = vmatprep.subr.mxu0 0.0
  %4527 = vmatpush1.xpose.msra.mxu0 0.0
  %4528 = vmatprep.subr.mxu0 0.0
  %4529 = vmatpush1.xpose.msra.mxu0 0.0
  %4530 = vmatprep.subr.mxu0 0.0
  %4531 = vmatpush1.xpose.msra.mxu0 0.0
  %4532 = vmatprep.subr.mxu0 0.0
  %4533 = vmatpush1.xpose.msra.mxu0 0.0
  %4534 = vmatprep.subr.mxu0 0.0
  %4535 = vmatpush1.xpose.msra.mxu0 0.0
  %4536 = vmatprep.subr.mxu0 0.0
  %4537 = vmatpush1.xpose.msra.mxu0 0.0
  %4538 = vmatprep.subr.mxu0 0.0
  %4539 = vmatpush1.xpose.msra.mxu0 0.0
  %4540 = vmatprep.subr.mxu0 0.0
  %4541 = vmatpush1.xpose.msra.mxu0 0.0
  %4542 = vmatprep.subr.mxu0 0.0
  %4543 = vmatpush1.xpose.msra.mxu0 0.0
  %4544 = vmatprep.subr.mxu0 0.0
  %4545 = vmatpush1.xpose.msra.mxu0 0.0
  %4546 = vmatprep.subr.mxu0 0.0
  %4547 = vmatpush1.xpose.msra.mxu0 0.0
  %4548 = vmatprep.subr.mxu0 0.0
  %4549 = vmatpush1.xpose.msra.mxu0 0.0
  %4550 = vmatprep.subr.mxu0 0.0
  %4551 = vmatpush1.xpose.msra.mxu0 %v4518
  %4552 = vmatprep.subr.mxu0 0.0
  %4553 = vmatpush2.xpose.msra.mxu0 0.0
  %4554 = vmatprep.subr.mxu0 0.0
  %4555 = vmatpush2.xpose.msra.mxu0 0.0
  %4556 = vmatprep.subr.mxu0 0.0
  %4557 = vmatpush2.xpose.msra.mxu0 0.0
  %4558 = vmatprep.subr.mxu0 0.0
  %4559 = vmatpush2.xpose.msra.mxu0 0.0
  %4560 = vmatprep.subr.mxu0 0.0
  %4561 = vmatpush2.xpose.msra.mxu0 0.0
  %4562 = vmatprep.subr.mxu0 0.0
  %4563 = vmatpush2.xpose.msra.mxu0 0.0
  %4564 = vmatprep.subr.mxu0 0.0
  %4565 = vmatpush2.xpose.msra.mxu0 0.0
  %4566 = vmatprep.subr.mxu0 0.0
  %4567 = vmatpush2.xpose.msra.mxu0 0.0
  %4568 = vmatprep.subr.mxu0 0.0
  %4569 = vmatpush2.xpose.msra.mxu0 0.0
  %4570 = vmatprep.subr.mxu0 0.0
  %4571 = vmatpush2.xpose.msra.mxu0 0.0
  %4572 = vmatprep.subr.mxu0 0.0
  %4573 = vmatpush2.xpose.msra.mxu0 0.0
  %4574 = vmatprep.subr.mxu0 0.0
  %4575 = vmatpush2.xpose.msra.mxu0 0.0
  %4576 = vmatprep.subr.mxu0 0.0
  %4577 = vmatpush2.xpose.msra.mxu0 0.0
  %4578 = vmatprep.subr.mxu0 0.0
  %4579 = vmatpush2.xpose.msra.mxu0 0.0
  %4580 = vmatprep.subr.mxu0 0.0
  %4581 = vmatpush2.xpose.msra.mxu0 0.0
  %4582 = vmatprep.subr.mxu0 0.0
  %4583 = vmatpush2.xpose.msra.mxu0 0.0
  %4584 = vmatprep.mubr.f32.mxu0 0.0
  %4585 = vmatmul.mubr.f32.gmra.mxu0 %v4516
  %v4586 = vpop.f32.mrf.mxu0
  %v4587 = vadd.f32 0.0, %v4586
  %v4588 = vpop.f32.mrf.mxu0
  %4589 = vdwg.mxu0
  %4590 = vrot.lane.b32.xlu0 %v3843, 120
  %v4591 = vpop.permute.xlu0 %4590
  %4592 = vrot.lane.b32.xlu0 %v3843, 88
  %v4593 = vpop.permute.xlu0 %4592
  %v4594 = vsel %vm339, %v4591, 0
  %v4596 = vsel %vm339, %v4593, 0
  %4598 = vmatprep.subr.mxu0 0.0
  %4599 = vmatpush1.xpose.msra.mxu0 0.0
  %4600 = vmatprep.subr.mxu0 0.0
  %4601 = vmatpush1.xpose.msra.mxu0 0.0
  %4602 = vmatprep.subr.mxu0 0.0
  %4603 = vmatpush1.xpose.msra.mxu0 0.0
  %4604 = vmatprep.subr.mxu0 0.0
  %4605 = vmatpush1.xpose.msra.mxu0 0.0
  %4606 = vmatprep.subr.mxu0 0.0
  %4607 = vmatpush1.xpose.msra.mxu0 0.0
  %4608 = vmatprep.subr.mxu0 0.0
  %4609 = vmatpush1.xpose.msra.mxu0 0.0
  %4610 = vmatprep.subr.mxu0 0.0
  %4611 = vmatpush1.xpose.msra.mxu0 0.0
  %4612 = vmatprep.subr.mxu0 0.0
  %4613 = vmatpush1.xpose.msra.mxu0 0.0
  %4614 = vmatprep.subr.mxu0 0.0
  %4615 = vmatpush1.xpose.msra.mxu0 0.0
  %4616 = vmatprep.subr.mxu0 0.0
  %4617 = vmatpush1.xpose.msra.mxu0 0.0
  %4618 = vmatprep.subr.mxu0 0.0
  %4619 = vmatpush1.xpose.msra.mxu0 0.0
  %4620 = vmatprep.subr.mxu0 0.0
  %4621 = vmatpush1.xpose.msra.mxu0 0.0
  %4622 = vmatprep.subr.mxu0 0.0
  %4623 = vmatpush1.xpose.msra.mxu0 0.0
  %4624 = vmatprep.subr.mxu0 0.0
  %4625 = vmatpush1.xpose.msra.mxu0 0.0
  %4626 = vmatprep.subr.mxu0 0.0
  %4627 = vmatpush1.xpose.msra.mxu0 0.0
  %4628 = vmatprep.subr.mxu0 0.0
  %4629 = vmatpush1.xpose.msra.mxu0 %v4596
  %4630 = vmatprep.subr.mxu0 0.0
  %4631 = vmatpush2.xpose.msra.mxu0 0.0
  %4632 = vmatprep.subr.mxu0 0.0
  %4633 = vmatpush2.xpose.msra.mxu0 0.0
  %4634 = vmatprep.subr.mxu0 0.0
  %4635 = vmatpush2.xpose.msra.mxu0 0.0
  %4636 = vmatprep.subr.mxu0 0.0
  %4637 = vmatpush2.xpose.msra.mxu0 0.0
  %4638 = vmatprep.subr.mxu0 0.0
  %4639 = vmatpush2.xpose.msra.mxu0 0.0
  %4640 = vmatprep.subr.mxu0 0.0
  %4641 = vmatpush2.xpose.msra.mxu0 0.0
  %4642 = vmatprep.subr.mxu0 0.0
  %4643 = vmatpush2.xpose.msra.mxu0 0.0
  %4644 = vmatprep.subr.mxu0 0.0
  %4645 = vmatpush2.xpose.msra.mxu0 0.0
  %4646 = vmatprep.subr.mxu0 0.0
  %4647 = vmatpush2.xpose.msra.mxu0 0.0
  %4648 = vmatprep.subr.mxu0 0.0
  %4649 = vmatpush2.xpose.msra.mxu0 0.0
  %4650 = vmatprep.subr.mxu0 0.0
  %4651 = vmatpush2.xpose.msra.mxu0 0.0
  %4652 = vmatprep.subr.mxu0 0.0
  %4653 = vmatpush2.xpose.msra.mxu0 0.0
  %4654 = vmatprep.subr.mxu0 0.0
  %4655 = vmatpush2.xpose.msra.mxu0 0.0
  %4656 = vmatprep.subr.mxu0 0.0
  %4657 = vmatpush2.xpose.msra.mxu0 0.0
  %4658 = vmatprep.subr.mxu0 0.0
  %4659 = vmatpush2.xpose.msra.mxu0 0.0
  %4660 = vmatprep.subr.mxu0 0.0
  %4661 = vmatpush2.xpose.msra.mxu0 0.0
  %4662 = vmatprep.mubr.f32.mxu0 0.0
  %4663 = vmatmul.mubr.f32.gmra.mxu0 %v4594
  %v4664 = vpop.f32.mrf.mxu0
  %v4665 = vadd.f32 0.0, %v4664
  %v4666 = vpop.f32.mrf.mxu0
  %4667 = vdwg.mxu0
  %4668 = vrot.lane.b32.xlu0 %v3848, 120
  %v4669 = vpop.permute.xlu0 %4668
  %4670 = vrot.lane.b32.xlu0 %v3848, 88
  %v4671 = vpop.permute.xlu0 %4670
  %v4672 = vsel %vm339, %v4669, 0
  %v4674 = vsel %vm339, %v4671, 0
  %4676 = vmatprep.subr.mxu0 0.0
  %4677 = vmatpush1.xpose.msra.mxu0 0.0
  %4678 = vmatprep.subr.mxu0 0.0
  %4679 = vmatpush1.xpose.msra.mxu0 0.0
  %4680 = vmatprep.subr.mxu0 0.0
  %4681 = vmatpush1.xpose.msra.mxu0 0.0
  %4682 = vmatprep.subr.mxu0 0.0
  %4683 = vmatpush1.xpose.msra.mxu0 0.0
  %4684 = vmatprep.subr.mxu0 0.0
  %4685 = vmatpush1.xpose.msra.mxu0 0.0
  %4686 = vmatprep.subr.mxu0 0.0
  %4687 = vmatpush1.xpose.msra.mxu0 0.0
  %4688 = vmatprep.subr.mxu0 0.0
  %4689 = vmatpush1.xpose.msra.mxu0 0.0
  %4690 = vmatprep.subr.mxu0 0.0
  %4691 = vmatpush1.xpose.msra.mxu0 0.0
  %4692 = vmatprep.subr.mxu0 0.0
  %4693 = vmatpush1.xpose.msra.mxu0 0.0
  %4694 = vmatprep.subr.mxu0 0.0
  %4695 = vmatpush1.xpose.msra.mxu0 0.0
  %4696 = vmatprep.subr.mxu0 0.0
  %4697 = vmatpush1.xpose.msra.mxu0 0.0
  %4698 = vmatprep.subr.mxu0 0.0
  %4699 = vmatpush1.xpose.msra.mxu0 0.0
  %4700 = vmatprep.subr.mxu0 0.0
  %4701 = vmatpush1.xpose.msra.mxu0 0.0
  %4702 = vmatprep.subr.mxu0 0.0
  %4703 = vmatpush1.xpose.msra.mxu0 0.0
  %4704 = vmatprep.subr.mxu0 0.0
  %4705 = vmatpush1.xpose.msra.mxu0 0.0
  %4706 = vmatprep.subr.mxu0 0.0
  %4707 = vmatpush1.xpose.msra.mxu0 %v4674
  %4708 = vmatprep.subr.mxu0 0.0
  %4709 = vmatpush2.xpose.msra.mxu0 0.0
  %4710 = vmatprep.subr.mxu0 0.0
  %4711 = vmatpush2.xpose.msra.mxu0 0.0
  %4712 = vmatprep.subr.mxu0 0.0
  %4713 = vmatpush2.xpose.msra.mxu0 0.0
  %4714 = vmatprep.subr.mxu0 0.0
  %4715 = vmatpush2.xpose.msra.mxu0 0.0
  %4716 = vmatprep.subr.mxu0 0.0
  %4717 = vmatpush2.xpose.msra.mxu0 0.0
  %4718 = vmatprep.subr.mxu0 0.0
  %4719 = vmatpush2.xpose.msra.mxu0 0.0
  %4720 = vmatprep.subr.mxu0 0.0
  %4721 = vmatpush2.xpose.msra.mxu0 0.0
  %4722 = vmatprep.subr.mxu0 0.0
  %4723 = vmatpush2.xpose.msra.mxu0 0.0
  %4724 = vmatprep.subr.mxu0 0.0
  %4725 = vmatpush2.xpose.msra.mxu0 0.0
  %4726 = vmatprep.subr.mxu0 0.0
  %4727 = vmatpush2.xpose.msra.mxu0 0.0
  %4728 = vmatprep.subr.mxu0 0.0
  %4729 = vmatpush2.xpose.msra.mxu0 0.0
  %4730 = vmatprep.subr.mxu0 0.0
  %4731 = vmatpush2.xpose.msra.mxu0 0.0
  %4732 = vmatprep.subr.mxu0 0.0
  %4733 = vmatpush2.xpose.msra.mxu0 0.0
  %4734 = vmatprep.subr.mxu0 0.0
  %4735 = vmatpush2.xpose.msra.mxu0 0.0
  %4736 = vmatprep.subr.mxu0 0.0
  %4737 = vmatpush2.xpose.msra.mxu0 0.0
  %4738 = vmatprep.subr.mxu0 0.0
  %4739 = vmatpush2.xpose.msra.mxu0 0.0
  %4740 = vmatprep.mubr.f32.mxu0 0.0
  %4741 = vmatmul.mubr.f32.gmra.mxu0 %v4672
  %v4742 = vpop.f32.mrf.mxu0
  %v4743 = vadd.f32 0.0, %v4742
  %v4744 = vpop.f32.mrf.mxu0
  %4745 = vdwg.mxu0
  %4746 = vrot.lane.b32.xlu0 %v3853, 120
  %v4747 = vpop.permute.xlu0 %4746
  %4748 = vrot.lane.b32.xlu0 %v3853, 88
  %v4749 = vpop.permute.xlu0 %4748
  %v4750 = vsel %vm339, %v4747, 0
  %v4752 = vsel %vm339, %v4749, 0
  %4754 = vmatprep.subr.mxu0 0.0
  %4755 = vmatpush1.xpose.msra.mxu0 0.0
  %4756 = vmatprep.subr.mxu0 0.0
  %4757 = vmatpush1.xpose.msra.mxu0 0.0
  %4758 = vmatprep.subr.mxu0 0.0
  %4759 = vmatpush1.xpose.msra.mxu0 0.0
  %4760 = vmatprep.subr.mxu0 0.0
  %4761 = vmatpush1.xpose.msra.mxu0 0.0
  %4762 = vmatprep.subr.mxu0 0.0
  %4763 = vmatpush1.xpose.msra.mxu0 0.0
  %4764 = vmatprep.subr.mxu0 0.0
  %4765 = vmatpush1.xpose.msra.mxu0 0.0
  %4766 = vmatprep.subr.mxu0 0.0
  %4767 = vmatpush1.xpose.msra.mxu0 0.0
  %4768 = vmatprep.subr.mxu0 0.0
  %4769 = vmatpush1.xpose.msra.mxu0 0.0
  %4770 = vmatprep.subr.mxu0 0.0
  %4771 = vmatpush1.xpose.msra.mxu0 0.0
  %4772 = vmatprep.subr.mxu0 0.0
  %4773 = vmatpush1.xpose.msra.mxu0 0.0
  %4774 = vmatprep.subr.mxu0 0.0
  %4775 = vmatpush1.xpose.msra.mxu0 0.0
  %4776 = vmatprep.subr.mxu0 0.0
  %4777 = vmatpush1.xpose.msra.mxu0 0.0
  %4778 = vmatprep.subr.mxu0 0.0
  %4779 = vmatpush1.xpose.msra.mxu0 0.0
  %4780 = vmatprep.subr.mxu0 0.0
  %4781 = vmatpush1.xpose.msra.mxu0 0.0
  %4782 = vmatprep.subr.mxu0 0.0
  %4783 = vmatpush1.xpose.msra.mxu0 0.0
  %4784 = vmatprep.subr.mxu0 0.0
  %4785 = vmatpush1.xpose.msra.mxu0 %v4752
  %4786 = vmatprep.subr.mxu0 0.0
  %4787 = vmatpush2.xpose.msra.mxu0 0.0
  %4788 = vmatprep.subr.mxu0 0.0
  %4789 = vmatpush2.xpose.msra.mxu0 0.0
  %4790 = vmatprep.subr.mxu0 0.0
  %4791 = vmatpush2.xpose.msra.mxu0 0.0
  %4792 = vmatprep.subr.mxu0 0.0
  %4793 = vmatpush2.xpose.msra.mxu0 0.0
  %4794 = vmatprep.subr.mxu0 0.0
  %4795 = vmatpush2.xpose.msra.mxu0 0.0
  %4796 = vmatprep.subr.mxu0 0.0
  %4797 = vmatpush2.xpose.msra.mxu0 0.0
  %4798 = vmatprep.subr.mxu0 0.0
  %4799 = vmatpush2.xpose.msra.mxu0 0.0
  %4800 = vmatprep.subr.mxu0 0.0
  %4801 = vmatpush2.xpose.msra.mxu0 0.0
  %4802 = vmatprep.subr.mxu0 0.0
  %4803 = vmatpush2.xpose.msra.mxu0 0.0
  %4804 = vmatprep.subr.mxu0 0.0
  %4805 = vmatpush2.xpose.msra.mxu0 0.0
  %4806 = vmatprep.subr.mxu0 0.0
  %4807 = vmatpush2.xpose.msra.mxu0 0.0
  %4808 = vmatprep.subr.mxu0 0.0
  %4809 = vmatpush2.xpose.msra.mxu0 0.0
  %4810 = vmatprep.subr.mxu0 0.0
  %4811 = vmatpush2.xpose.msra.mxu0 0.0
  %4812 = vmatprep.subr.mxu0 0.0
  %4813 = vmatpush2.xpose.msra.mxu0 0.0
  %4814 = vmatprep.subr.mxu0 0.0
  %4815 = vmatpush2.xpose.msra.mxu0 0.0
  %4816 = vmatprep.subr.mxu0 0.0
  %4817 = vmatpush2.xpose.msra.mxu0 0.0
  %4818 = vmatprep.mubr.f32.mxu0 0.0
  %4819 = vmatmul.mubr.f32.gmra.mxu0 %v4750
  %v4820 = vpop.f32.mrf.mxu0
  %v4821 = vadd.f32 0.0, %v4820
  %v4822 = vpop.f32.mrf.mxu0
  %4823 = vdwg.mxu0
  %v4824 = vsel %vm339, %v4587, -inf
  %4825 = vmax.xlane.f32.xlu0 %v4824
  %v4826 = vpop.xlane.xlu0 %4825
  %v4827 = vsel %vm339, %v4665, -inf
  %4828 = vmax.xlane.f32.xlu0 %v4827
  %v4829 = vpop.xlane.xlu0 %4828
  %v4830 = vsel %vm339, %v4743, -inf
  %4831 = vmax.xlane.f32.xlu0 %v4830
  %v4832 = vpop.xlane.xlu0 %4831
  %v4833 = vsel %vm339, %v4821, -inf
  %4834 = vmax.xlane.f32.xlu0 %v4833
  %v4835 = vpop.xlane.xlu0 %4834
  %v4836 = vsub.f32 %v4587, %v4826
  %v4837 = vsub.f32 %v4665, %v4829
  %v4838 = vsub.f32 %v4743, %v4832
  %v4839 = vsub.f32 %v4821, %v4835
  %v4840 = vmul.f32 %v4836, 1.442695
  %v4841 = vpow.pop %v4840
  %v4842 = vmul.f32 %v4837, 1.442695
  %v4843 = vpow.pop %v4842
  %v4844 = vmul.f32 %v4838, 1.442695
  %v4845 = vpow.pop %v4844
  %v4846 = vmul.f32 %v4839, 1.442695
  %v4847 = vpow.pop %v4846
  %v4848 = vsel %vm339, %v4841, 0.0
  %4849 = vadd.xlane.f32.xlu0 %v4848
  %v4850 = vpop.xlane.xlu0 %4849
  %v4851 = vsel %vm339, %v4843, 0.0
  %4852 = vadd.xlane.f32.xlu0 %v4851
  %v4853 = vpop.xlane.xlu0 %4852
  %v4854 = vsel %vm339, %v4845, 0.0
  %4855 = vadd.xlane.f32.xlu0 %v4854
  %v4856 = vpop.xlane.xlu0 %4855
  %v4857 = vsel %vm339, %v4847, 0.0
  %4858 = vadd.xlane.f32.xlu0 %v4857
  %v4859 = vpop.xlane.xlu0 %4858
  %v4860 = vrcp.pop %v4850
  %v4861 = vmul.f32 %v4841, %v4860
  %v4862 = vrcp.pop %v4853
  %v4863 = vmul.f32 %v4843, %v4862
  %v4864 = vrcp.pop %v4856
  %v4865 = vmul.f32 %v4845, %v4864
  %v4866 = vrcp.pop %v4859
  %v4867 = vmul.f32 %v4847, %v4866
  %4868 = vrot.lane.b32.xlu0 %v3838, 56
  %v4869 = vpop.permute.xlu0 %4868
  %v4872 = vsel %vm339, %v4861, 0
  %4874 = vmatprep.subr.mxu0 0.0
  %4875 = vmatpush1.msra.mxu0 0.0
  %4876 = vmatprep.subr.mxu0 0.0
  %4877 = vmatpush1.msra.mxu0 0.0
  %4878 = vmatprep.subr.mxu0 0.0
  %4879 = vmatpush1.msra.mxu0 0.0
  %4880 = vmatprep.subr.mxu0 0.0
  %4881 = vmatpush1.msra.mxu0 0.0
  %4882 = vmatprep.subr.mxu0 0.0
  %4883 = vmatpush1.msra.mxu0 0.0
  %4884 = vmatprep.subr.mxu0 0.0
  %4885 = vmatpush1.msra.mxu0 0.0
  %4886 = vmatprep.subr.mxu0 0.0
  %4887 = vmatpush1.msra.mxu0 0.0
  %4888 = vmatprep.subr.mxu0 0.0
  %4889 = vmatpush1.msra.mxu0 0.0
  %4890 = vmatprep.subr.mxu0 0.0
  %4891 = vmatpush1.msra.mxu0 0.0
  %4892 = vmatprep.subr.mxu0 0.0
  %4893 = vmatpush1.msra.mxu0 0.0
  %4894 = vmatprep.subr.mxu0 0.0
  %4895 = vmatpush1.msra.mxu0 0.0
  %4896 = vmatprep.subr.mxu0 0.0
  %4897 = vmatpush1.msra.mxu0 0.0
  %4898 = vmatprep.subr.mxu0 0.0
  %4899 = vmatpush1.msra.mxu0 0.0
  %4900 = vmatprep.subr.mxu0 0.0
  %4901 = vmatpush1.msra.mxu0 0.0
  %4902 = vmatprep.subr.mxu0 0.0
  %4903 = vmatpush1.msra.mxu0 0.0
  %4904 = vmatprep.subr.mxu0 0.0
  %4905 = vmatpush1.msra.mxu0 %v4869
  %4906 = vmatprep.subr.mxu0 0.0
  %4907 = vmatpush2.msra.mxu0 0.0
  %4908 = vmatprep.subr.mxu0 0.0
  %4909 = vmatpush2.msra.mxu0 0.0
  %4910 = vmatprep.subr.mxu0 0.0
  %4911 = vmatpush2.msra.mxu0 0.0
  %4912 = vmatprep.subr.mxu0 0.0
  %4913 = vmatpush2.msra.mxu0 0.0
  %4914 = vmatprep.subr.mxu0 0.0
  %4915 = vmatpush2.msra.mxu0 0.0
  %4916 = vmatprep.subr.mxu0 0.0
  %4917 = vmatpush2.msra.mxu0 0.0
  %4918 = vmatprep.subr.mxu0 0.0
  %4919 = vmatpush2.msra.mxu0 0.0
  %4920 = vmatprep.subr.mxu0 0.0
  %4921 = vmatpush2.msra.mxu0 0.0
  %4922 = vmatprep.subr.mxu0 0.0
  %4923 = vmatpush2.msra.mxu0 0.0
  %4924 = vmatprep.subr.mxu0 0.0
  %4925 = vmatpush2.msra.mxu0 0.0
  %4926 = vmatprep.subr.mxu0 0.0
  %4927 = vmatpush2.msra.mxu0 0.0
  %4928 = vmatprep.subr.mxu0 0.0
  %4929 = vmatpush2.msra.mxu0 0.0
  %4930 = vmatprep.subr.mxu0 0.0
  %4931 = vmatpush2.msra.mxu0 0.0
  %4932 = vmatprep.subr.mxu0 0.0
  %4933 = vmatpush2.msra.mxu0 0.0
  %4934 = vmatprep.subr.mxu0 0.0
  %4935 = vmatpush2.msra.mxu0 0.0
  %4936 = vmatprep.subr.mxu0 0.0
  %4937 = vmatpush2.msra.mxu0 0.0
  %4938 = vmatprep.mubr.f32.mxu0 0.0
  %4939 = vmatmul.mubr.f32.gmra.mxu0 %v4872
  %v4940 = vpop.f32.mrf.mxu0
  %v4941 = vadd.f32 0.0, %v4940
  %v4942 = vpop.f32.mrf.mxu0
  %4943 = vdwg.mxu0
  %4944 = vrot.lane.b32.xlu0 %v3843, 56
  %v4945 = vpop.permute.xlu0 %4944
  %v4948 = vsel %vm339, %v4863, 0
  %4950 = vmatprep.subr.mxu0 0.0
  %4951 = vmatpush1.msra.mxu0 0.0
  %4952 = vmatprep.subr.mxu0 0.0
  %4953 = vmatpush1.msra.mxu0 0.0
  %4954 = vmatprep.subr.mxu0 0.0
  %4955 = vmatpush1.msra.mxu0 0.0
  %4956 = vmatprep.subr.mxu0 0.0
  %4957 = vmatpush1.msra.mxu0 0.0
  %4958 = vmatprep.subr.mxu0 0.0
  %4959 = vmatpush1.msra.mxu0 0.0
  %4960 = vmatprep.subr.mxu0 0.0
  %4961 = vmatpush1.msra.mxu0 0.0
  %4962 = vmatprep.subr.mxu0 0.0
  %4963 = vmatpush1.msra.mxu0 0.0
  %4964 = vmatprep.subr.mxu0 0.0
  %4965 = vmatpush1.msra.mxu0 0.0
  %4966 = vmatprep.subr.mxu0 0.0
  %4967 = vmatpush1.msra.mxu0 0.0
  %4968 = vmatprep.subr.mxu0 0.0
  %4969 = vmatpush1.msra.mxu0 0.0
  %4970 = vmatprep.subr.mxu0 0.0
  %4971 = vmatpush1.msra.mxu0 0.0
  %4972 = vmatprep.subr.mxu0 0.0
  %4973 = vmatpush1.msra.mxu0 0.0
  %4974 = vmatprep.subr.mxu0 0.0
  %4975 = vmatpush1.msra.mxu0 0.0
  %4976 = vmatprep.subr.mxu0 0.0
  %4977 = vmatpush1.msra.mxu0 0.0
  %4978 = vmatprep.subr.mxu0 0.0
  %4979 = vmatpush1.msra.mxu0 0.0
  %4980 = vmatprep.subr.mxu0 0.0
  %4981 = vmatpush1.msra.mxu0 %v4945
  %4982 = vmatprep.subr.mxu0 0.0
  %4983 = vmatpush2.msra.mxu0 0.0
  %4984 = vmatprep.subr.mxu0 0.0
  %4985 = vmatpush2.msra.mxu0 0.0
  %4986 = vmatprep.subr.mxu0 0.0
  %4987 = vmatpush2.msra.mxu0 0.0
  %4988 = vmatprep.subr.mxu0 0.0
  %4989 = vmatpush2.msra.mxu0 0.0
  %4990 = vmatprep.subr.mxu0 0.0
  %4991 = vmatpush2.msra.mxu0 0.0
  %4992 = vmatprep.subr.mxu0 0.0
  %4993 = vmatpush2.msra.mxu0 0.0
  %4994 = vmatprep.subr.mxu0 0.0
  %4995 = vmatpush2.msra.mxu0 0.0
  %4996 = vmatprep.subr.mxu0 0.0
  %4997 = vmatpush2.msra.mxu0 0.0
  %4998 = vmatprep.subr.mxu0 0.0
  %4999 = vmatpush2.msra.mxu0 0.0
  %5000 = vmatprep.subr.mxu0 0.0
  %5001 = vmatpush2.msra.mxu0 0.0
  %5002 = vmatprep.subr.mxu0 0.0
  %5003 = vmatpush2.msra.mxu0 0.0
  %5004 = vmatprep.subr.mxu0 0.0
  %5005 = vmatpush2.msra.mxu0 0.0
  %5006 = vmatprep.subr.mxu0 0.0
  %5007 = vmatpush2.msra.mxu0 0.0
  %5008 = vmatprep.subr.mxu0 0.0
  %5009 = vmatpush2.msra.mxu0 0.0
  %5010 = vmatprep.subr.mxu0 0.0
  %5011 = vmatpush2.msra.mxu0 0.0
  %5012 = vmatprep.subr.mxu0 0.0
  %5013 = vmatpush2.msra.mxu0 0.0
  %5014 = vmatprep.mubr.f32.mxu0 0.0
  %5015 = vmatmul.mubr.f32.gmra.mxu0 %v4948
  %v5016 = vpop.f32.mrf.mxu0
  %v5017 = vadd.f32 0.0, %v5016
  %v5018 = vpop.f32.mrf.mxu0
  %5019 = vdwg.mxu0
  %5020 = vrot.lane.b32.xlu0 %v3848, 56
  %v5021 = vpop.permute.xlu0 %5020
  %v5024 = vsel %vm339, %v4865, 0
  %5026 = vmatprep.subr.mxu0 0.0
  %5027 = vmatpush1.msra.mxu0 0.0
  %5028 = vmatprep.subr.mxu0 0.0
  %5029 = vmatpush1.msra.mxu0 0.0
  %5030 = vmatprep.subr.mxu0 0.0
  %5031 = vmatpush1.msra.mxu0 0.0
  %5032 = vmatprep.subr.mxu0 0.0
  %5033 = vmatpush1.msra.mxu0 0.0
  %5034 = vmatprep.subr.mxu0 0.0
  %5035 = vmatpush1.msra.mxu0 0.0
  %5036 = vmatprep.subr.mxu0 0.0
  %5037 = vmatpush1.msra.mxu0 0.0
  %5038 = vmatprep.subr.mxu0 0.0
  %5039 = vmatpush1.msra.mxu0 0.0
  %5040 = vmatprep.subr.mxu0 0.0
  %5041 = vmatpush1.msra.mxu0 0.0
  %5042 = vmatprep.subr.mxu0 0.0
  %5043 = vmatpush1.msra.mxu0 0.0
  %5044 = vmatprep.subr.mxu0 0.0
  %5045 = vmatpush1.msra.mxu0 0.0
  %5046 = vmatprep.subr.mxu0 0.0
  %5047 = vmatpush1.msra.mxu0 0.0
  %5048 = vmatprep.subr.mxu0 0.0
  %5049 = vmatpush1.msra.mxu0 0.0
  %5050 = vmatprep.subr.mxu0 0.0
  %5051 = vmatpush1.msra.mxu0 0.0
  %5052 = vmatprep.subr.mxu0 0.0
  %5053 = vmatpush1.msra.mxu0 0.0
  %5054 = vmatprep.subr.mxu0 0.0
  %5055 = vmatpush1.msra.mxu0 0.0
  %5056 = vmatprep.subr.mxu0 0.0
  %5057 = vmatpush1.msra.mxu0 %v5021
  %5058 = vmatprep.subr.mxu0 0.0
  %5059 = vmatpush2.msra.mxu0 0.0
  %5060 = vmatprep.subr.mxu0 0.0
  %5061 = vmatpush2.msra.mxu0 0.0
  %5062 = vmatprep.subr.mxu0 0.0
  %5063 = vmatpush2.msra.mxu0 0.0
  %5064 = vmatprep.subr.mxu0 0.0
  %5065 = vmatpush2.msra.mxu0 0.0
  %5066 = vmatprep.subr.mxu0 0.0
  %5067 = vmatpush2.msra.mxu0 0.0
  %5068 = vmatprep.subr.mxu0 0.0
  %5069 = vmatpush2.msra.mxu0 0.0
  %5070 = vmatprep.subr.mxu0 0.0
  %5071 = vmatpush2.msra.mxu0 0.0
  %5072 = vmatprep.subr.mxu0 0.0
  %5073 = vmatpush2.msra.mxu0 0.0
  %5074 = vmatprep.subr.mxu0 0.0
  %5075 = vmatpush2.msra.mxu0 0.0
  %5076 = vmatprep.subr.mxu0 0.0
  %5077 = vmatpush2.msra.mxu0 0.0
  %5078 = vmatprep.subr.mxu0 0.0
  %5079 = vmatpush2.msra.mxu0 0.0
  %5080 = vmatprep.subr.mxu0 0.0
  %5081 = vmatpush2.msra.mxu0 0.0
  %5082 = vmatprep.subr.mxu0 0.0
  %5083 = vmatpush2.msra.mxu0 0.0
  %5084 = vmatprep.subr.mxu0 0.0
  %5085 = vmatpush2.msra.mxu0 0.0
  %5086 = vmatprep.subr.mxu0 0.0
  %5087 = vmatpush2.msra.mxu0 0.0
  %5088 = vmatprep.subr.mxu0 0.0
  %5089 = vmatpush2.msra.mxu0 0.0
  %5090 = vmatprep.mubr.f32.mxu0 0.0
  %5091 = vmatmul.mubr.f32.gmra.mxu0 %v5024
  %v5092 = vpop.f32.mrf.mxu0
  %v5093 = vadd.f32 0.0, %v5092
  %v5094 = vpop.f32.mrf.mxu0
  %5095 = vdwg.mxu0
  %5096 = vrot.lane.b32.xlu0 %v3853, 56
  %v5097 = vpop.permute.xlu0 %5096
  %v5100 = vsel %vm339, %v4867, 0
  %5102 = vmatprep.subr.mxu0 0.0
  %5103 = vmatpush1.msra.mxu0 0.0
  %5104 = vmatprep.subr.mxu0 0.0
  %5105 = vmatpush1.msra.mxu0 0.0
  %5106 = vmatprep.subr.mxu0 0.0
  %5107 = vmatpush1.msra.mxu0 0.0
  %5108 = vmatprep.subr.mxu0 0.0
  %5109 = vmatpush1.msra.mxu0 0.0
  %5110 = vmatprep.subr.mxu0 0.0
  %5111 = vmatpush1.msra.mxu0 0.0
  %5112 = vmatprep.subr.mxu0 0.0
  %5113 = vmatpush1.msra.mxu0 0.0
  %5114 = vmatprep.subr.mxu0 0.0
  %5115 = vmatpush1.msra.mxu0 0.0
  %5116 = vmatprep.subr.mxu0 0.0
  %5117 = vmatpush1.msra.mxu0 0.0
  %5118 = vmatprep.subr.mxu0 0.0
  %5119 = vmatpush1.msra.mxu0 0.0
  %5120 = vmatprep.subr.mxu0 0.0
  %5121 = vmatpush1.msra.mxu0 0.0
  %5122 = vmatprep.subr.mxu0 0.0
  %5123 = vmatpush1.msra.mxu0 0.0
  %5124 = vmatprep.subr.mxu0 0.0
  %5125 = vmatpush1.msra.mxu0 0.0
  %5126 = vmatprep.subr.mxu0 0.0
  %5127 = vmatpush1.msra.mxu0 0.0
  %5128 = vmatprep.subr.mxu0 0.0
  %5129 = vmatpush1.msra.mxu0 0.0
  %5130 = vmatprep.subr.mxu0 0.0
  %5131 = vmatpush1.msra.mxu0 0.0
  %5132 = vmatprep.subr.mxu0 0.0
  %5133 = vmatpush1.msra.mxu0 %v5097
  %5134 = vmatprep.subr.mxu0 0.0
  %5135 = vmatpush2.msra.mxu0 0.0
  %5136 = vmatprep.subr.mxu0 0.0
  %5137 = vmatpush2.msra.mxu0 0.0
  %5138 = vmatprep.subr.mxu0 0.0
  %5139 = vmatpush2.msra.mxu0 0.0
  %5140 = vmatprep.subr.mxu0 0.0
  %5141 = vmatpush2.msra.mxu0 0.0
  %5142 = vmatprep.subr.mxu0 0.0
  %5143 = vmatpush2.msra.mxu0 0.0
  %5144 = vmatprep.subr.mxu0 0.0
  %5145 = vmatpush2.msra.mxu0 0.0
  %5146 = vmatprep.subr.mxu0 0.0
  %5147 = vmatpush2.msra.mxu0 0.0
  %5148 = vmatprep.subr.mxu0 0.0
  %5149 = vmatpush2.msra.mxu0 0.0
  %5150 = vmatprep.subr.mxu0 0.0
  %5151 = vmatpush2.msra.mxu0 0.0
  %5152 = vmatprep.subr.mxu0 0.0
  %5153 = vmatpush2.msra.mxu0 0.0
  %5154 = vmatprep.subr.mxu0 0.0
  %5155 = vmatpush2.msra.mxu0 0.0
  %5156 = vmatprep.subr.mxu0 0.0
  %5157 = vmatpush2.msra.mxu0 0.0
  %5158 = vmatprep.subr.mxu0 0.0
  %5159 = vmatpush2.msra.mxu0 0.0
  %5160 = vmatprep.subr.mxu0 0.0
  %5161 = vmatpush2.msra.mxu0 0.0
  %5162 = vmatprep.subr.mxu0 0.0
  %5163 = vmatpush2.msra.mxu0 0.0
  %5164 = vmatprep.subr.mxu0 0.0
  %5165 = vmatpush2.msra.mxu0 0.0
  %5166 = vmatprep.mubr.f32.mxu0 0.0
  %5167 = vmatmul.mubr.f32.gmra.mxu0 %v5100
  %v5168 = vpop.f32.mrf.mxu0
  %v5169 = vadd.f32 0.0, %v5168
  %v5170 = vpop.f32.mrf.mxu0
  %5171 = vdwg.mxu0
  %v5173 = vsel %vm339, %v4941, 0
  %v5176 = vsel %vm339, %v5017, 0
  %v5179 = vsel %vm339, %v5093, 0
  %v5182 = vsel %vm339, %v5169, 0
  %5184 = vmatprep.subr.mxu0 0.0
  %5185 = vmatpush1.msra.mxu0 0.0
  %5186 = vmatprep.subr.mxu0 0.0
  %5187 = vmatpush1.msra.mxu0 0.0
  %5188 = vmatprep.subr.mxu0 0.0
  %5189 = vmatpush1.msra.mxu0 0.0
  %5190 = vmatprep.subr.mxu0 0.0
  %5191 = vmatpush1.msra.mxu0 0.0
  %5192 = vmatprep.subr.mxu0 0.0
  %5193 = vmatpush1.msra.mxu0 0.0
  %5194 = vmatprep.subr.mxu0 0.0
  %5195 = vmatpush1.msra.mxu0 0.0
  %5196 = vmatprep.subr.mxu0 0.0
  %5197 = vmatpush1.msra.mxu0 0.0
  %5198 = vmatprep.subr.mxu0 0.0
  %5199 = vmatpush1.msra.mxu0 0.0
  %5200 = vmatprep.subr.mxu0 0.0
  %5201 = vmatpush1.msra.mxu0 0.0
  %5202 = vmatprep.subr.mxu0 0.0
  %5203 = vmatpush1.msra.mxu0 0.0
  %5204 = vmatprep.subr.mxu0 0.0
  %5205 = vmatpush1.msra.mxu0 0.0
  %5206 = vmatprep.subr.mxu0 0.0
  %5207 = vmatpush1.msra.mxu0 0.0
  %5208 = vmatprep.subr.mxu0 0.0
  %5209 = vmatpush1.msra.mxu0 0.0
  %5210 = vmatprep.subr.mxu0 0.0
  %5211 = vmatpush1.msra.mxu0 0.0
  %5212 = vmatprep.subr.mxu0 0.0
  %5213 = vmatpush1.msra.mxu0 0.0
  %5214 = vmatprep.subr.mxu0 0.0
  %5215 = vmatpush1.msra.mxu0 %v3652
  %5216 = vmatprep.subr.mxu0 0.0
  %5217 = vmatpush2.msra.mxu0 0.0
  %5218 = vmatprep.subr.mxu0 0.0
  %5219 = vmatpush2.msra.mxu0 0.0
  %5220 = vmatprep.subr.mxu0 0.0
  %5221 = vmatpush2.msra.mxu0 0.0
  %5222 = vmatprep.subr.mxu0 0.0
  %5223 = vmatpush2.msra.mxu0 0.0
  %5224 = vmatprep.subr.mxu0 0.0
  %5225 = vmatpush2.msra.mxu0 0.0
  %5226 = vmatprep.subr.mxu0 0.0
  %5227 = vmatpush2.msra.mxu0 0.0
  %5228 = vmatprep.subr.mxu0 0.0
  %5229 = vmatpush2.msra.mxu0 0.0
  %5230 = vmatprep.subr.mxu0 0.0
  %5231 = vmatpush2.msra.mxu0 0.0
  %5232 = vmatprep.subr.mxu0 0.0
  %5233 = vmatpush2.msra.mxu0 0.0
  %5234 = vmatprep.subr.mxu0 0.0
  %5235 = vmatpush2.msra.mxu0 0.0
  %5236 = vmatprep.subr.mxu0 0.0
  %5237 = vmatpush2.msra.mxu0 0.0
  %5238 = vmatprep.subr.mxu0 0.0
  %5239 = vmatpush2.msra.mxu0 0.0
  %5240 = vmatprep.subr.mxu0 0.0
  %5241 = vmatpush2.msra.mxu0 0.0
  %5242 = vmatprep.subr.mxu0 0.0
  %5243 = vmatpush2.msra.mxu0 0.0
  %5244 = vmatprep.subr.mxu0 0.0
  %5245 = vmatpush2.msra.mxu0 0.0
  %5246 = vmatprep.subr.mxu0 0.0
  %5247 = vmatpush2.msra.mxu0 0.0
  %5248 = vmatprep.mubr.f32.mxu0 0.0
  %5249 = vmatmul.mubr.f32.gmra.mxu0 %v5173
  %v5250 = vpop.f32.mrf.mxu0
  %v5251 = vadd.f32 0.0, %v5250
  %v5252 = vpop.f32.mrf.mxu0
  %5253 = vmatprep.mubr.f32.mxu0 0.0
  %5254 = vmatmul.mubr.f32.gmra.mxu0 %v5176
  %v5255 = vpop.f32.mrf.mxu0
  %v5256 = vadd.f32 0.0, %v5255
  %v5257 = vpop.f32.mrf.mxu0
  %5258 = vmatprep.mubr.f32.mxu0 0.0
  %5259 = vmatmul.mubr.f32.gmra.mxu0 %v5179
  %v5260 = vpop.f32.mrf.mxu0
  %v5261 = vadd.f32 0.0, %v5260
  %v5262 = vpop.f32.mrf.mxu0
  %5263 = vmatprep.mubr.f32.mxu0 0.0
  %5264 = vmatmul.mubr.f32.gmra.mxu0 %v5182
  %v5265 = vpop.f32.mrf.mxu0
  %v5266 = vadd.f32 0.0, %v5265
  %v5267 = vpop.f32.mrf.mxu0
  %5268 = vdwg.mxu0
  %v5270 = vsel %vm339, %v4281, 0
  %v5273 = vsel %vm339, %v4357, 0
  %v5276 = vsel %vm339, %v4433, 0
  %v5279 = vsel %vm339, %v4509, 0
  %5281 = vmatprep.subr.mxu0 0.0
  %5282 = vmatpush1.msra.mxu0 0.0
  %5283 = vmatprep.subr.mxu0 0.0
  %5284 = vmatpush1.msra.mxu0 0.0
  %5285 = vmatprep.subr.mxu0 0.0
  %5286 = vmatpush1.msra.mxu0 0.0
  %5287 = vmatprep.subr.mxu0 0.0
  %5288 = vmatpush1.msra.mxu0 0.0
  %5289 = vmatprep.subr.mxu0 0.0
  %5290 = vmatpush1.msra.mxu0 0.0
  %5291 = vmatprep.subr.mxu0 0.0
  %5292 = vmatpush1.msra.mxu0 0.0
  %5293 = vmatprep.subr.mxu0 0.0
  %5294 = vmatpush1.msra.mxu0 0.0
  %5295 = vmatprep.subr.mxu0 0.0
  %5296 = vmatpush1.msra.mxu0 0.0
  %5297 = vmatprep.subr.mxu0 0.0
  %5298 = vmatpush1.msra.mxu0 0.0
  %5299 = vmatprep.subr.mxu0 0.0
  %5300 = vmatpush1.msra.mxu0 0.0
  %5301 = vmatprep.subr.mxu0 0.0
  %5302 = vmatpush1.msra.mxu0 0.0
  %5303 = vmatprep.subr.mxu0 0.0
  %5304 = vmatpush1.msra.mxu0 0.0
  %5305 = vmatprep.subr.mxu0 0.0
  %5306 = vmatpush1.msra.mxu0 0.0
  %5307 = vmatprep.subr.mxu0 0.0
  %5308 = vmatpush1.msra.mxu0 0.0
  %5309 = vmatprep.subr.mxu0 0.0
  %5310 = vmatpush1.msra.mxu0 0.0
  %5311 = vmatprep.subr.mxu0 0.0
  %5312 = vmatpush1.msra.mxu0 %v3651
  %5313 = vmatprep.subr.mxu0 0.0
  %5314 = vmatpush2.msra.mxu0 0.0
  %5315 = vmatprep.subr.mxu0 0.0
  %5316 = vmatpush2.msra.mxu0 0.0
  %5317 = vmatprep.subr.mxu0 0.0
  %5318 = vmatpush2.msra.mxu0 0.0
  %5319 = vmatprep.subr.mxu0 0.0
  %5320 = vmatpush2.msra.mxu0 0.0
  %5321 = vmatprep.subr.mxu0 0.0
  %5322 = vmatpush2.msra.mxu0 0.0
  %5323 = vmatprep.subr.mxu0 0.0
  %5324 = vmatpush2.msra.mxu0 0.0
  %5325 = vmatprep.subr.mxu0 0.0
  %5326 = vmatpush2.msra.mxu0 0.0
  %5327 = vmatprep.subr.mxu0 0.0
  %5328 = vmatpush2.msra.mxu0 0.0
  %5329 = vmatprep.subr.mxu0 0.0
  %5330 = vmatpush2.msra.mxu0 0.0
  %5331 = vmatprep.subr.mxu0 0.0
  %5332 = vmatpush2.msra.mxu0 0.0
  %5333 = vmatprep.subr.mxu0 0.0
  %5334 = vmatpush2.msra.mxu0 0.0
  %5335 = vmatprep.subr.mxu0 0.0
  %5336 = vmatpush2.msra.mxu0 0.0
  %5337 = vmatprep.subr.mxu0 0.0
  %5338 = vmatpush2.msra.mxu0 0.0
  %5339 = vmatprep.subr.mxu0 0.0
  %5340 = vmatpush2.msra.mxu0 0.0
  %5341 = vmatprep.subr.mxu0 0.0
  %5342 = vmatpush2.msra.mxu0 0.0
  %5343 = vmatprep.subr.mxu0 0.0
  %5344 = vmatpush2.msra.mxu0 0.0
  %5345 = vmatprep.mubr.f32.mxu0 0.0
  %5346 = vmatmul.mubr.f32.gmra.mxu0 %v5270
  %v5347 = vpop.f32.mrf.mxu0
  %v5348 = vadd.f32 %v5251, %v5347
  %v5349 = vpop.f32.mrf.mxu0
  %5350 = vmatprep.mubr.f32.mxu0 0.0
  %5351 = vmatmul.mubr.f32.gmra.mxu0 %v5273
  %v5352 = vpop.f32.mrf.mxu0
  %v5353 = vadd.f32 %v5256, %v5352
  %v5354 = vpop.f32.mrf.mxu0
  %5355 = vmatprep.mubr.f32.mxu0 0.0
  %5356 = vmatmul.mubr.f32.gmra.mxu0 %v5276
  %v5357 = vpop.f32.mrf.mxu0
  %v5358 = vadd.f32 %v5261, %v5357
  %v5359 = vpop.f32.mrf.mxu0
  %5360 = vmatprep.mubr.f32.mxu0 0.0
  %5361 = vmatmul.mubr.f32.gmra.mxu0 %v5279
  %v5362 = vpop.f32.mrf.mxu0
  %v5363 = vadd.f32 %v5266, %v5362
  %v5364 = vpop.f32.mrf.mxu0
  %5365 = vdwg.mxu0
  %5366 = vrot.lane.b32.xlu0 %v3838, 112
  %v5367 = vpop.permute.xlu0 %5366
  %5368 = vrot.lane.b32.xlu0 %v3838, 80
  %v5369 = vpop.permute.xlu0 %5368
  %v5370 = vsel %vm339, %v5367, 0
  %v5372 = vsel %vm339, %v5369, 0
  %5374 = vmatprep.subr.mxu0 0.0
  %5375 = vmatpush1.xpose.msra.mxu0 0.0
  %5376 = vmatprep.subr.mxu0 0.0
  %5377 = vmatpush1.xpose.msra.mxu0 0.0
  %5378 = vmatprep.subr.mxu0 0.0
  %5379 = vmatpush1.xpose.msra.mxu0 0.0
  %5380 = vmatprep.subr.mxu0 0.0
  %5381 = vmatpush1.xpose.msra.mxu0 0.0
  %5382 = vmatprep.subr.mxu0 0.0
  %5383 = vmatpush1.xpose.msra.mxu0 0.0
  %5384 = vmatprep.subr.mxu0 0.0
  %5385 = vmatpush1.xpose.msra.mxu0 0.0
  %5386 = vmatprep.subr.mxu0 0.0
  %5387 = vmatpush1.xpose.msra.mxu0 0.0
  %5388 = vmatprep.subr.mxu0 0.0
  %5389 = vmatpush1.xpose.msra.mxu0 0.0
  %5390 = vmatprep.subr.mxu0 0.0
  %5391 = vmatpush1.xpose.msra.mxu0 0.0
  %5392 = vmatprep.subr.mxu0 0.0
  %5393 = vmatpush1.xpose.msra.mxu0 0.0
  %5394 = vmatprep.subr.mxu0 0.0
  %5395 = vmatpush1.xpose.msra.mxu0 0.0
  %5396 = vmatprep.subr.mxu0 0.0
  %5397 = vmatpush1.xpose.msra.mxu0 0.0
  %5398 = vmatprep.subr.mxu0 0.0
  %5399 = vmatpush1.xpose.msra.mxu0 0.0
  %5400 = vmatprep.subr.mxu0 0.0
  %5401 = vmatpush1.xpose.msra.mxu0 0.0
  %5402 = vmatprep.subr.mxu0 0.0
  %5403 = vmatpush1.xpose.msra.mxu0 0.0
  %5404 = vmatprep.subr.mxu0 0.0
  %5405 = vmatpush1.xpose.msra.mxu0 %v5372
  %5406 = vmatprep.subr.mxu0 0.0
  %5407 = vmatpush2.xpose.msra.mxu0 0.0
  %5408 = vmatprep.subr.mxu0 0.0
  %5409 = vmatpush2.xpose.msra.mxu0 0.0
  %5410 = vmatprep.subr.mxu0 0.0
  %5411 = vmatpush2.xpose.msra.mxu0 0.0
  %5412 = vmatprep.subr.mxu0 0.0
  %5413 = vmatpush2.xpose.msra.mxu0 0.0
  %5414 = vmatprep.subr.mxu0 0.0
  %5415 = vmatpush2.xpose.msra.mxu0 0.0
  %5416 = vmatprep.subr.mxu0 0.0
  %5417 = vmatpush2.xpose.msra.mxu0 0.0
  %5418 = vmatprep.subr.mxu0 0.0
  %5419 = vmatpush2.xpose.msra.mxu0 0.0
  %5420 = vmatprep.subr.mxu0 0.0
  %5421 = vmatpush2.xpose.msra.mxu0 0.0
  %5422 = vmatprep.subr.mxu0 0.0
  %5423 = vmatpush2.xpose.msra.mxu0 0.0
  %5424 = vmatprep.subr.mxu0 0.0
  %5425 = vmatpush2.xpose.msra.mxu0 0.0
  %5426 = vmatprep.subr.mxu0 0.0
  %5427 = vmatpush2.xpose.msra.mxu0 0.0
  %5428 = vmatprep.subr.mxu0 0.0
  %5429 = vmatpush2.xpose.msra.mxu0 0.0
  %5430 = vmatprep.subr.mxu0 0.0
  %5431 = vmatpush2.xpose.msra.mxu0 0.0
  %5432 = vmatprep.subr.mxu0 0.0
  %5433 = vmatpush2.xpose.msra.mxu0 0.0
  %5434 = vmatprep.subr.mxu0 0.0
  %5435 = vmatpush2.xpose.msra.mxu0 0.0
  %5436 = vmatprep.subr.mxu0 0.0
  %5437 = vmatpush2.xpose.msra.mxu0 0.0
  %5438 = vmatprep.mubr.f32.mxu0 0.0
  %5439 = vmatmul.mubr.f32.gmra.mxu0 %v5370
  %v5440 = vpop.f32.mrf.mxu0
  %v5441 = vadd.f32 0.0, %v5440
  %v5442 = vpop.f32.mrf.mxu0
  %5443 = vdwg.mxu0
  %5444 = vrot.lane.b32.xlu0 %v3843, 112
  %v5445 = vpop.permute.xlu0 %5444
  %5446 = vrot.lane.b32.xlu0 %v3843, 80
  %v5447 = vpop.permute.xlu0 %5446
  %v5448 = vsel %vm339, %v5445, 0
  %v5450 = vsel %vm339, %v5447, 0
  %5452 = vmatprep.subr.mxu0 0.0
  %5453 = vmatpush1.xpose.msra.mxu0 0.0
  %5454 = vmatprep.subr.mxu0 0.0
  %5455 = vmatpush1.xpose.msra.mxu0 0.0
  %5456 = vmatprep.subr.mxu0 0.0
  %5457 = vmatpush1.xpose.msra.mxu0 0.0
  %5458 = vmatprep.subr.mxu0 0.0
  %5459 = vmatpush1.xpose.msra.mxu0 0.0
  %5460 = vmatprep.subr.mxu0 0.0
  %5461 = vmatpush1.xpose.msra.mxu0 0.0
  %5462 = vmatprep.subr.mxu0 0.0
  %5463 = vmatpush1.xpose.msra.mxu0 0.0
  %5464 = vmatprep.subr.mxu0 0.0
  %5465 = vmatpush1.xpose.msra.mxu0 0.0
  %5466 = vmatprep.subr.mxu0 0.0
  %5467 = vmatpush1.xpose.msra.mxu0 0.0
  %5468 = vmatprep.subr.mxu0 0.0
  %5469 = vmatpush1.xpose.msra.mxu0 0.0
  %5470 = vmatprep.subr.mxu0 0.0
  %5471 = vmatpush1.xpose.msra.mxu0 0.0
  %5472 = vmatprep.subr.mxu0 0.0
  %5473 = vmatpush1.xpose.msra.mxu0 0.0
  %5474 = vmatprep.subr.mxu0 0.0
  %5475 = vmatpush1.xpose.msra.mxu0 0.0
  %5476 = vmatprep.subr.mxu0 0.0
  %5477 = vmatpush1.xpose.msra.mxu0 0.0
  %5478 = vmatprep.subr.mxu0 0.0
  %5479 = vmatpush1.xpose.msra.mxu0 0.0
  %5480 = vmatprep.subr.mxu0 0.0
  %5481 = vmatpush1.xpose.msra.mxu0 0.0
  %5482 = vmatprep.subr.mxu0 0.0
  %5483 = vmatpush1.xpose.msra.mxu0 %v5450
  %5484 = vmatprep.subr.mxu0 0.0
  %5485 = vmatpush2.xpose.msra.mxu0 0.0
  %5486 = vmatprep.subr.mxu0 0.0
  %5487 = vmatpush2.xpose.msra.mxu0 0.0
  %5488 = vmatprep.subr.mxu0 0.0
  %5489 = vmatpush2.xpose.msra.mxu0 0.0
  %5490 = vmatprep.subr.mxu0 0.0
  %5491 = vmatpush2.xpose.msra.mxu0 0.0
  %5492 = vmatprep.subr.mxu0 0.0
  %5493 = vmatpush2.xpose.msra.mxu0 0.0
  %5494 = vmatprep.subr.mxu0 0.0
  %5495 = vmatpush2.xpose.msra.mxu0 0.0
  %5496 = vmatprep.subr.mxu0 0.0
  %5497 = vmatpush2.xpose.msra.mxu0 0.0
  %5498 = vmatprep.subr.mxu0 0.0
  %5499 = vmatpush2.xpose.msra.mxu0 0.0
  %5500 = vmatprep.subr.mxu0 0.0
  %5501 = vmatpush2.xpose.msra.mxu0 0.0
  %5502 = vmatprep.subr.mxu0 0.0
  %5503 = vmatpush2.xpose.msra.mxu0 0.0
  %5504 = vmatprep.subr.mxu0 0.0
  %5505 = vmatpush2.xpose.msra.mxu0 0.0
  %5506 = vmatprep.subr.mxu0 0.0
  %5507 = vmatpush2.xpose.msra.mxu0 0.0
  %5508 = vmatprep.subr.mxu0 0.0
  %5509 = vmatpush2.xpose.msra.mxu0 0.0
  %5510 = vmatprep.subr.mxu0 0.0
  %5511 = vmatpush2.xpose.msra.mxu0 0.0
  %5512 = vmatprep.subr.mxu0 0.0
  %5513 = vmatpush2.xpose.msra.mxu0 0.0
  %5514 = vmatprep.subr.mxu0 0.0
  %5515 = vmatpush2.xpose.msra.mxu0 0.0
  %5516 = vmatprep.mubr.f32.mxu0 0.0
  %5517 = vmatmul.mubr.f32.gmra.mxu0 %v5448
  %v5518 = vpop.f32.mrf.mxu0
  %v5519 = vadd.f32 0.0, %v5518
  %v5520 = vpop.f32.mrf.mxu0
  %5521 = vdwg.mxu0
  %5522 = vrot.lane.b32.xlu0 %v3848, 112
  %v5523 = vpop.permute.xlu0 %5522
  %5524 = vrot.lane.b32.xlu0 %v3848, 80
  %v5525 = vpop.permute.xlu0 %5524
  %v5526 = vsel %vm339, %v5523, 0
  %v5528 = vsel %vm339, %v5525, 0
  %5530 = vmatprep.subr.mxu0 0.0
  %5531 = vmatpush1.xpose.msra.mxu0 0.0
  %5532 = vmatprep.subr.mxu0 0.0
  %5533 = vmatpush1.xpose.msra.mxu0 0.0
  %5534 = vmatprep.subr.mxu0 0.0
  %5535 = vmatpush1.xpose.msra.mxu0 0.0
  %5536 = vmatprep.subr.mxu0 0.0
  %5537 = vmatpush1.xpose.msra.mxu0 0.0
  %5538 = vmatprep.subr.mxu0 0.0
  %5539 = vmatpush1.xpose.msra.mxu0 0.0
  %5540 = vmatprep.subr.mxu0 0.0
  %5541 = vmatpush1.xpose.msra.mxu0 0.0
  %5542 = vmatprep.subr.mxu0 0.0
  %5543 = vmatpush1.xpose.msra.mxu0 0.0
  %5544 = vmatprep.subr.mxu0 0.0
  %5545 = vmatpush1.xpose.msra.mxu0 0.0
  %5546 = vmatprep.subr.mxu0 0.0
  %5547 = vmatpush1.xpose.msra.mxu0 0.0
  %5548 = vmatprep.subr.mxu0 0.0
  %5549 = vmatpush1.xpose.msra.mxu0 0.0
  %5550 = vmatprep.subr.mxu0 0.0
  %5551 = vmatpush1.xpose.msra.mxu0 0.0
  %5552 = vmatprep.subr.mxu0 0.0
  %5553 = vmatpush1.xpose.msra.mxu0 0.0
  %5554 = vmatprep.subr.mxu0 0.0
  %5555 = vmatpush1.xpose.msra.mxu0 0.0
  %5556 = vmatprep.subr.mxu0 0.0
  %5557 = vmatpush1.xpose.msra.mxu0 0.0
  %5558 = vmatprep.subr.mxu0 0.0
  %5559 = vmatpush1.xpose.msra.mxu0 0.0
  %5560 = vmatprep.subr.mxu0 0.0
  %5561 = vmatpush1.xpose.msra.mxu0 %v5528
  %5562 = vmatprep.subr.mxu0 0.0
  %5563 = vmatpush2.xpose.msra.mxu0 0.0
  %5564 = vmatprep.subr.mxu0 0.0
  %5565 = vmatpush2.xpose.msra.mxu0 0.0
  %5566 = vmatprep.subr.mxu0 0.0
  %5567 = vmatpush2.xpose.msra.mxu0 0.0
  %5568 = vmatprep.subr.mxu0 0.0
  %5569 = vmatpush2.xpose.msra.mxu0 0.0
  %5570 = vmatprep.subr.mxu0 0.0
  %5571 = vmatpush2.xpose.msra.mxu0 0.0
  %5572 = vmatprep.subr.mxu0 0.0
  %5573 = vmatpush2.xpose.msra.mxu0 0.0
  %5574 = vmatprep.subr.mxu0 0.0
  %5575 = vmatpush2.xpose.msra.mxu0 0.0
  %5576 = vmatprep.subr.mxu0 0.0
  %5577 = vmatpush2.xpose.msra.mxu0 0.0
  %5578 = vmatprep.subr.mxu0 0.0
  %5579 = vmatpush2.xpose.msra.mxu0 0.0
  %5580 = vmatprep.subr.mxu0 0.0
  %5581 = vmatpush2.xpose.msra.mxu0 0.0
  %5582 = vmatprep.subr.mxu0 0.0
  %5583 = vmatpush2.xpose.msra.mxu0 0.0
  %5584 = vmatprep.subr.mxu0 0.0
  %5585 = vmatpush2.xpose.msra.mxu0 0.0
  %5586 = vmatprep.subr.mxu0 0.0
  %5587 = vmatpush2.xpose.msra.mxu0 0.0
  %5588 = vmatprep.subr.mxu0 0.0
  %5589 = vmatpush2.xpose.msra.mxu0 0.0
  %5590 = vmatprep.subr.mxu0 0.0
  %5591 = vmatpush2.xpose.msra.mxu0 0.0
  %5592 = vmatprep.subr.mxu0 0.0
  %5593 = vmatpush2.xpose.msra.mxu0 0.0
  %5594 = vmatprep.mubr.f32.mxu0 0.0
  %5595 = vmatmul.mubr.f32.gmra.mxu0 %v5526
  %v5596 = vpop.f32.mrf.mxu0
  %v5597 = vadd.f32 0.0, %v5596
  %v5598 = vpop.f32.mrf.mxu0
  %5599 = vdwg.mxu0
  %5600 = vrot.lane.b32.xlu0 %v3853, 112
  %v5601 = vpop.permute.xlu0 %5600
  %5602 = vrot.lane.b32.xlu0 %v3853, 80
  %v5603 = vpop.permute.xlu0 %5602
  %v5604 = vsel %vm339, %v5601, 0
  %v5606 = vsel %vm339, %v5603, 0
  %5608 = vmatprep.subr.mxu0 0.0
  %5609 = vmatpush1.xpose.msra.mxu0 0.0
  %5610 = vmatprep.subr.mxu0 0.0
  %5611 = vmatpush1.xpose.msra.mxu0 0.0
  %5612 = vmatprep.subr.mxu0 0.0
  %5613 = vmatpush1.xpose.msra.mxu0 0.0
  %5614 = vmatprep.subr.mxu0 0.0
  %5615 = vmatpush1.xpose.msra.mxu0 0.0
  %5616 = vmatprep.subr.mxu0 0.0
  %5617 = vmatpush1.xpose.msra.mxu0 0.0
  %5618 = vmatprep.subr.mxu0 0.0
  %5619 = vmatpush1.xpose.msra.mxu0 0.0
  %5620 = vmatprep.subr.mxu0 0.0
  %5621 = vmatpush1.xpose.msra.mxu0 0.0
  %5622 = vmatprep.subr.mxu0 0.0
  %5623 = vmatpush1.xpose.msra.mxu0 0.0
  %5624 = vmatprep.subr.mxu0 0.0
  %5625 = vmatpush1.xpose.msra.mxu0 0.0
  %5626 = vmatprep.subr.mxu0 0.0
  %5627 = vmatpush1.xpose.msra.mxu0 0.0
  %5628 = vmatprep.subr.mxu0 0.0
  %5629 = vmatpush1.xpose.msra.mxu0 0.0
  %5630 = vmatprep.subr.mxu0 0.0
  %5631 = vmatpush1.xpose.msra.mxu0 0.0
  %5632 = vmatprep.subr.mxu0 0.0
  %5633 = vmatpush1.xpose.msra.mxu0 0.0
  %5634 = vmatprep.subr.mxu0 0.0
  %5635 = vmatpush1.xpose.msra.mxu0 0.0
  %5636 = vmatprep.subr.mxu0 0.0
  %5637 = vmatpush1.xpose.msra.mxu0 0.0
  %5638 = vmatprep.subr.mxu0 0.0
  %5639 = vmatpush1.xpose.msra.mxu0 %v5606
  %5640 = vmatprep.subr.mxu0 0.0
  %5641 = vmatpush2.xpose.msra.mxu0 0.0
  %5642 = vmatprep.subr.mxu0 0.0
  %5643 = vmatpush2.xpose.msra.mxu0 0.0
  %5644 = vmatprep.subr.mxu0 0.0
  %5645 = vmatpush2.xpose.msra.mxu0 0.0
  %5646 = vmatprep.subr.mxu0 0.0
  %5647 = vmatpush2.xpose.msra.mxu0 0.0
  %5648 = vmatprep.subr.mxu0 0.0
  %5649 = vmatpush2.xpose.msra.mxu0 0.0
  %5650 = vmatprep.subr.mxu0 0.0
  %5651 = vmatpush2.xpose.msra.mxu0 0.0
  %5652 = vmatprep.subr.mxu0 0.0
  %5653 = vmatpush2.xpose.msra.mxu0 0.0
  %5654 = vmatprep.subr.mxu0 0.0
  %5655 = vmatpush2.xpose.msra.mxu0 0.0
  %5656 = vmatprep.subr.mxu0 0.0
  %5657 = vmatpush2.xpose.msra.mxu0 0.0
  %5658 = vmatprep.subr.mxu0 0.0
  %5659 = vmatpush2.xpose.msra.mxu0 0.0
  %5660 = vmatprep.subr.mxu0 0.0
  %5661 = vmatpush2.xpose.msra.mxu0 0.0
  %5662 = vmatprep.subr.mxu0 0.0
  %5663 = vmatpush2.xpose.msra.mxu0 0.0
  %5664 = vmatprep.subr.mxu0 0.0
  %5665 = vmatpush2.xpose.msra.mxu0 0.0
  %5666 = vmatprep.subr.mxu0 0.0
  %5667 = vmatpush2.xpose.msra.mxu0 0.0
  %5668 = vmatprep.subr.mxu0 0.0
  %5669 = vmatpush2.xpose.msra.mxu0 0.0
  %5670 = vmatprep.subr.mxu0 0.0
  %5671 = vmatpush2.xpose.msra.mxu0 0.0
  %5672 = vmatprep.mubr.f32.mxu0 0.0
  %5673 = vmatmul.mubr.f32.gmra.mxu0 %v5604
  %v5674 = vpop.f32.mrf.mxu0
  %v5675 = vadd.f32 0.0, %v5674
  %v5676 = vpop.f32.mrf.mxu0
  %5677 = vdwg.mxu0
  %v5678 = vsel %vm339, %v5441, -inf
  %5679 = vmax.xlane.f32.xlu0 %v5678
  %v5680 = vpop.xlane.xlu0 %5679
  %v5681 = vsel %vm339, %v5519, -inf
  %5682 = vmax.xlane.f32.xlu0 %v5681
  %v5683 = vpop.xlane.xlu0 %5682
  %v5684 = vsel %vm339, %v5597, -inf
  %5685 = vmax.xlane.f32.xlu0 %v5684
  %v5686 = vpop.xlane.xlu0 %5685
  %v5687 = vsel %vm339, %v5675, -inf
  %5688 = vmax.xlane.f32.xlu0 %v5687
  %v5689 = vpop.xlane.xlu0 %5688
  %v5690 = vsub.f32 %v5441, %v5680
  %v5691 = vsub.f32 %v5519, %v5683
  %v5692 = vsub.f32 %v5597, %v5686
  %v5693 = vsub.f32 %v5675, %v5689
  %v5694 = vmul.f32 %v5690, 1.442695
  %v5695 = vpow.pop %v5694
  %v5696 = vmul.f32 %v5691, 1.442695
  %v5697 = vpow.pop %v5696
  %v5698 = vmul.f32 %v5692, 1.442695
  %v5699 = vpow.pop %v5698
  %v5700 = vmul.f32 %v5693, 1.442695
  %v5701 = vpow.pop %v5700
  %v5702 = vsel %vm339, %v5695, 0.0
  %5703 = vadd.xlane.f32.xlu0 %v5702
  %v5704 = vpop.xlane.xlu0 %5703
  %v5705 = vsel %vm339, %v5697, 0.0
  %5706 = vadd.xlane.f32.xlu0 %v5705
  %v5707 = vpop.xlane.xlu0 %5706
  %v5708 = vsel %vm339, %v5699, 0.0
  %5709 = vadd.xlane.f32.xlu0 %v5708
  %v5710 = vpop.xlane.xlu0 %5709
  %v5711 = vsel %vm339, %v5701, 0.0
  %5712 = vadd.xlane.f32.xlu0 %v5711
  %v5713 = vpop.xlane.xlu0 %5712
  %v5714 = vrcp.pop %v5704
  %v5715 = vmul.f32 %v5695, %v5714
  %v5716 = vrcp.pop %v5707
  %v5717 = vmul.f32 %v5697, %v5716
  %v5718 = vrcp.pop %v5710
  %v5719 = vmul.f32 %v5699, %v5718
  %v5720 = vrcp.pop %v5713
  %v5721 = vmul.f32 %v5701, %v5720
  %5722 = vrot.lane.b32.xlu0 %v3838, 48
  %v5723 = vpop.permute.xlu0 %5722
  %v5726 = vsel %vm339, %v5715, 0
  %5728 = vmatprep.subr.mxu0 0.0
  %5729 = vmatpush1.msra.mxu0 0.0
  %5730 = vmatprep.subr.mxu0 0.0
  %5731 = vmatpush1.msra.mxu0 0.0
  %5732 = vmatprep.subr.mxu0 0.0
  %5733 = vmatpush1.msra.mxu0 0.0
  %5734 = vmatprep.subr.mxu0 0.0
  %5735 = vmatpush1.msra.mxu0 0.0
  %5736 = vmatprep.subr.mxu0 0.0
  %5737 = vmatpush1.msra.mxu0 0.0
  %5738 = vmatprep.subr.mxu0 0.0
  %5739 = vmatpush1.msra.mxu0 0.0
  %5740 = vmatprep.subr.mxu0 0.0
  %5741 = vmatpush1.msra.mxu0 0.0
  %5742 = vmatprep.subr.mxu0 0.0
  %5743 = vmatpush1.msra.mxu0 0.0
  %5744 = vmatprep.subr.mxu0 0.0
  %5745 = vmatpush1.msra.mxu0 0.0
  %5746 = vmatprep.subr.mxu0 0.0
  %5747 = vmatpush1.msra.mxu0 0.0
  %5748 = vmatprep.subr.mxu0 0.0
  %5749 = vmatpush1.msra.mxu0 0.0
  %5750 = vmatprep.subr.mxu0 0.0
  %5751 = vmatpush1.msra.mxu0 0.0
  %5752 = vmatprep.subr.mxu0 0.0
  %5753 = vmatpush1.msra.mxu0 0.0
  %5754 = vmatprep.subr.mxu0 0.0
  %5755 = vmatpush1.msra.mxu0 0.0
  %5756 = vmatprep.subr.mxu0 0.0
  %5757 = vmatpush1.msra.mxu0 0.0
  %5758 = vmatprep.subr.mxu0 0.0
  %5759 = vmatpush1.msra.mxu0 %v5723
  %5760 = vmatprep.subr.mxu0 0.0
  %5761 = vmatpush2.msra.mxu0 0.0
  %5762 = vmatprep.subr.mxu0 0.0
  %5763 = vmatpush2.msra.mxu0 0.0
  %5764 = vmatprep.subr.mxu0 0.0
  %5765 = vmatpush2.msra.mxu0 0.0
  %5766 = vmatprep.subr.mxu0 0.0
  %5767 = vmatpush2.msra.mxu0 0.0
  %5768 = vmatprep.subr.mxu0 0.0
  %5769 = vmatpush2.msra.mxu0 0.0
  %5770 = vmatprep.subr.mxu0 0.0
  %5771 = vmatpush2.msra.mxu0 0.0
  %5772 = vmatprep.subr.mxu0 0.0
  %5773 = vmatpush2.msra.mxu0 0.0
  %5774 = vmatprep.subr.mxu0 0.0
  %5775 = vmatpush2.msra.mxu0 0.0
  %5776 = vmatprep.subr.mxu0 0.0
  %5777 = vmatpush2.msra.mxu0 0.0
  %5778 = vmatprep.subr.mxu0 0.0
  %5779 = vmatpush2.msra.mxu0 0.0
  %5780 = vmatprep.subr.mxu0 0.0
  %5781 = vmatpush2.msra.mxu0 0.0
  %5782 = vmatprep.subr.mxu0 0.0
  %5783 = vmatpush2.msra.mxu0 0.0
  %5784 = vmatprep.subr.mxu0 0.0
  %5785 = vmatpush2.msra.mxu0 0.0
  %5786 = vmatprep.subr.mxu0 0.0
  %5787 = vmatpush2.msra.mxu0 0.0
  %5788 = vmatprep.subr.mxu0 0.0
  %5789 = vmatpush2.msra.mxu0 0.0
  %5790 = vmatprep.subr.mxu0 0.0
  %5791 = vmatpush2.msra.mxu0 0.0
  %5792 = vmatprep.mubr.f32.mxu0 0.0
  %5793 = vmatmul.mubr.f32.gmra.mxu0 %v5726
  %v5794 = vpop.f32.mrf.mxu0
  %v5795 = vadd.f32 0.0, %v5794
  %v5796 = vpop.f32.mrf.mxu0
  %5797 = vdwg.mxu0
  %5798 = vrot.lane.b32.xlu0 %v3843, 48
  %v5799 = vpop.permute.xlu0 %5798
  %v5802 = vsel %vm339, %v5717, 0
  %5804 = vmatprep.subr.mxu0 0.0
  %5805 = vmatpush1.msra.mxu0 0.0
  %5806 = vmatprep.subr.mxu0 0.0
  %5807 = vmatpush1.msra.mxu0 0.0
  %5808 = vmatprep.subr.mxu0 0.0
  %5809 = vmatpush1.msra.mxu0 0.0
  %5810 = vmatprep.subr.mxu0 0.0
  %5811 = vmatpush1.msra.mxu0 0.0
  %5812 = vmatprep.subr.mxu0 0.0
  %5813 = vmatpush1.msra.mxu0 0.0
  %5814 = vmatprep.subr.mxu0 0.0
  %5815 = vmatpush1.msra.mxu0 0.0
  %5816 = vmatprep.subr.mxu0 0.0
  %5817 = vmatpush1.msra.mxu0 0.0
  %5818 = vmatprep.subr.mxu0 0.0
  %5819 = vmatpush1.msra.mxu0 0.0
  %5820 = vmatprep.subr.mxu0 0.0
  %5821 = vmatpush1.msra.mxu0 0.0
  %5822 = vmatprep.subr.mxu0 0.0
  %5823 = vmatpush1.msra.mxu0 0.0
  %5824 = vmatprep.subr.mxu0 0.0
  %5825 = vmatpush1.msra.mxu0 0.0
  %5826 = vmatprep.subr.mxu0 0.0
  %5827 = vmatpush1.msra.mxu0 0.0
  %5828 = vmatprep.subr.mxu0 0.0
  %5829 = vmatpush1.msra.mxu0 0.0
  %5830 = vmatprep.subr.mxu0 0.0
  %5831 = vmatpush1.msra.mxu0 0.0
  %5832 = vmatprep.subr.mxu0 0.0
  %5833 = vmatpush1.msra.mxu0 0.0
  %5834 = vmatprep.subr.mxu0 0.0
  %5835 = vmatpush1.msra.mxu0 %v5799
  %5836 = vmatprep.subr.mxu0 0.0
  %5837 = vmatpush2.msra.mxu0 0.0
  %5838 = vmatprep.subr.mxu0 0.0
  %5839 = vmatpush2.msra.mxu0 0.0
  %5840 = vmatprep.subr.mxu0 0.0
  %5841 = vmatpush2.msra.mxu0 0.0
  %5842 = vmatprep.subr.mxu0 0.0
  %5843 = vmatpush2.msra.mxu0 0.0
  %5844 = vmatprep.subr.mxu0 0.0
  %5845 = vmatpush2.msra.mxu0 0.0
  %5846 = vmatprep.subr.mxu0 0.0
  %5847 = vmatpush2.msra.mxu0 0.0
  %5848 = vmatprep.subr.mxu0 0.0
  %5849 = vmatpush2.msra.mxu0 0.0
  %5850 = vmatprep.subr.mxu0 0.0
  %5851 = vmatpush2.msra.mxu0 0.0
  %5852 = vmatprep.subr.mxu0 0.0
  %5853 = vmatpush2.msra.mxu0 0.0
  %5854 = vmatprep.subr.mxu0 0.0
  %5855 = vmatpush2.msra.mxu0 0.0
  %5856 = vmatprep.subr.mxu0 0.0
  %5857 = vmatpush2.msra.mxu0 0.0
  %5858 = vmatprep.subr.mxu0 0.0
  %5859 = vmatpush2.msra.mxu0 0.0
  %5860 = vmatprep.subr.mxu0 0.0
  %5861 = vmatpush2.msra.mxu0 0.0
  %5862 = vmatprep.subr.mxu0 0.0
  %5863 = vmatpush2.msra.mxu0 0.0
  %5864 = vmatprep.subr.mxu0 0.0
  %5865 = vmatpush2.msra.mxu0 0.0
  %5866 = vmatprep.subr.mxu0 0.0
  %5867 = vmatpush2.msra.mxu0 0.0
  %5868 = vmatprep.mubr.f32.mxu0 0.0
  %5869 = vmatmul.mubr.f32.gmra.mxu0 %v5802
  %v5870 = vpop.f32.mrf.mxu0
  %v5871 = vadd.f32 0.0, %v5870
  %v5872 = vpop.f32.mrf.mxu0
  %5873 = vdwg.mxu0
  %5874 = vrot.lane.b32.xlu0 %v3848, 48
  %v5875 = vpop.permute.xlu0 %5874
  %v5878 = vsel %vm339, %v5719, 0
  %5880 = vmatprep.subr.mxu0 0.0
  %5881 = vmatpush1.msra.mxu0 0.0
  %5882 = vmatprep.subr.mxu0 0.0
  %5883 = vmatpush1.msra.mxu0 0.0
  %5884 = vmatprep.subr.mxu0 0.0
  %5885 = vmatpush1.msra.mxu0 0.0
  %5886 = vmatprep.subr.mxu0 0.0
  %5887 = vmatpush1.msra.mxu0 0.0
  %5888 = vmatprep.subr.mxu0 0.0
  %5889 = vmatpush1.msra.mxu0 0.0
  %5890 = vmatprep.subr.mxu0 0.0
  %5891 = vmatpush1.msra.mxu0 0.0
  %5892 = vmatprep.subr.mxu0 0.0
  %5893 = vmatpush1.msra.mxu0 0.0
  %5894 = vmatprep.subr.mxu0 0.0
  %5895 = vmatpush1.msra.mxu0 0.0
  %5896 = vmatprep.subr.mxu0 0.0
  %5897 = vmatpush1.msra.mxu0 0.0
  %5898 = vmatprep.subr.mxu0 0.0
  %5899 = vmatpush1.msra.mxu0 0.0
  %5900 = vmatprep.subr.mxu0 0.0
  %5901 = vmatpush1.msra.mxu0 0.0
  %5902 = vmatprep.subr.mxu0 0.0
  %5903 = vmatpush1.msra.mxu0 0.0
  %5904 = vmatprep.subr.mxu0 0.0
  %5905 = vmatpush1.msra.mxu0 0.0
  %5906 = vmatprep.subr.mxu0 0.0
  %5907 = vmatpush1.msra.mxu0 0.0
  %5908 = vmatprep.subr.mxu0 0.0
  %5909 = vmatpush1.msra.mxu0 0.0
  %5910 = vmatprep.subr.mxu0 0.0
  %5911 = vmatpush1.msra.mxu0 %v5875
  %5912 = vmatprep.subr.mxu0 0.0
  %5913 = vmatpush2.msra.mxu0 0.0
  %5914 = vmatprep.subr.mxu0 0.0
  %5915 = vmatpush2.msra.mxu0 0.0
  %5916 = vmatprep.subr.mxu0 0.0
  %5917 = vmatpush2.msra.mxu0 0.0
  %5918 = vmatprep.subr.mxu0 0.0
  %5919 = vmatpush2.msra.mxu0 0.0
  %5920 = vmatprep.subr.mxu0 0.0
  %5921 = vmatpush2.msra.mxu0 0.0
  %5922 = vmatprep.subr.mxu0 0.0
  %5923 = vmatpush2.msra.mxu0 0.0
  %5924 = vmatprep.subr.mxu0 0.0
  %5925 = vmatpush2.msra.mxu0 0.0
  %5926 = vmatprep.subr.mxu0 0.0
  %5927 = vmatpush2.msra.mxu0 0.0
  %5928 = vmatprep.subr.mxu0 0.0
  %5929 = vmatpush2.msra.mxu0 0.0
  %5930 = vmatprep.subr.mxu0 0.0
  %5931 = vmatpush2.msra.mxu0 0.0
  %5932 = vmatprep.subr.mxu0 0.0
  %5933 = vmatpush2.msra.mxu0 0.0
  %5934 = vmatprep.subr.mxu0 0.0
  %5935 = vmatpush2.msra.mxu0 0.0
  %5936 = vmatprep.subr.mxu0 0.0
  %5937 = vmatpush2.msra.mxu0 0.0
  %5938 = vmatprep.subr.mxu0 0.0
  %5939 = vmatpush2.msra.mxu0 0.0
  %5940 = vmatprep.subr.mxu0 0.0
  %5941 = vmatpush2.msra.mxu0 0.0
  %5942 = vmatprep.subr.mxu0 0.0
  %5943 = vmatpush2.msra.mxu0 0.0
  %5944 = vmatprep.mubr.f32.mxu0 0.0
  %5945 = vmatmul.mubr.f32.gmra.mxu0 %v5878
  %v5946 = vpop.f32.mrf.mxu0
  %v5947 = vadd.f32 0.0, %v5946
  %v5948 = vpop.f32.mrf.mxu0
  %5949 = vdwg.mxu0
  %5950 = vrot.lane.b32.xlu0 %v3853, 48
  %v5951 = vpop.permute.xlu0 %5950
  %v5954 = vsel %vm339, %v5721, 0
  %5956 = vmatprep.subr.mxu0 0.0
  %5957 = vmatpush1.msra.mxu0 0.0
  %5958 = vmatprep.subr.mxu0 0.0
  %5959 = vmatpush1.msra.mxu0 0.0
  %5960 = vmatprep.subr.mxu0 0.0
  %5961 = vmatpush1.msra.mxu0 0.0
  %5962 = vmatprep.subr.mxu0 0.0
  %5963 = vmatpush1.msra.mxu0 0.0
  %5964 = vmatprep.subr.mxu0 0.0
  %5965 = vmatpush1.msra.mxu0 0.0
  %5966 = vmatprep.subr.mxu0 0.0
  %5967 = vmatpush1.msra.mxu0 0.0
  %5968 = vmatprep.subr.mxu0 0.0
  %5969 = vmatpush1.msra.mxu0 0.0
  %5970 = vmatprep.subr.mxu0 0.0
  %5971 = vmatpush1.msra.mxu0 0.0
  %5972 = vmatprep.subr.mxu0 0.0
  %5973 = vmatpush1.msra.mxu0 0.0
  %5974 = vmatprep.subr.mxu0 0.0
  %5975 = vmatpush1.msra.mxu0 0.0
  %5976 = vmatprep.subr.mxu0 0.0
  %5977 = vmatpush1.msra.mxu0 0.0
  %5978 = vmatprep.subr.mxu0 0.0
  %5979 = vmatpush1.msra.mxu0 0.0
  %5980 = vmatprep.subr.mxu0 0.0
  %5981 = vmatpush1.msra.mxu0 0.0
  %5982 = vmatprep.subr.mxu0 0.0
  %5983 = vmatpush1.msra.mxu0 0.0
  %5984 = vmatprep.subr.mxu0 0.0
  %5985 = vmatpush1.msra.mxu0 0.0
  %5986 = vmatprep.subr.mxu0 0.0
  %5987 = vmatpush1.msra.mxu0 %v5951
  %5988 = vmatprep.subr.mxu0 0.0
  %5989 = vmatpush2.msra.mxu0 0.0
  %5990 = vmatprep.subr.mxu0 0.0
  %5991 = vmatpush2.msra.mxu0 0.0
  %5992 = vmatprep.subr.mxu0 0.0
  %5993 = vmatpush2.msra.mxu0 0.0
  %5994 = vmatprep.subr.mxu0 0.0
  %5995 = vmatpush2.msra.mxu0 0.0
  %5996 = vmatprep.subr.mxu0 0.0
  %5997 = vmatpush2.msra.mxu0 0.0
  %5998 = vmatprep.subr.mxu0 0.0
  %5999 = vmatpush2.msra.mxu0 0.0
  %6000 = vmatprep.subr.mxu0 0.0
  %6001 = vmatpush2.msra.mxu0 0.0
  %6002 = vmatprep.subr.mxu0 0.0
  %6003 = vmatpush2.msra.mxu0 0.0
  %6004 = vmatprep.subr.mxu0 0.0
  %6005 = vmatpush2.msra.mxu0 0.0
  %6006 = vmatprep.subr.mxu0 0.0
  %6007 = vmatpush2.msra.mxu0 0.0
  %6008 = vmatprep.subr.mxu0 0.0
  %6009 = vmatpush2.msra.mxu0 0.0
  %6010 = vmatprep.subr.mxu0 0.0
  %6011 = vmatpush2.msra.mxu0 0.0
  %6012 = vmatprep.subr.mxu0 0.0
  %6013 = vmatpush2.msra.mxu0 0.0
  %6014 = vmatprep.subr.mxu0 0.0
  %6015 = vmatpush2.msra.mxu0 0.0
  %6016 = vmatprep.subr.mxu0 0.0
  %6017 = vmatpush2.msra.mxu0 0.0
  %6018 = vmatprep.subr.mxu0 0.0
  %6019 = vmatpush2.msra.mxu0 0.0
  %6020 = vmatprep.mubr.f32.mxu0 0.0
  %6021 = vmatmul.mubr.f32.gmra.mxu0 %v5954
  %v6022 = vpop.f32.mrf.mxu0
  %v6023 = vadd.f32 0.0, %v6022
  %v6024 = vpop.f32.mrf.mxu0
  %6025 = vdwg.mxu0
  %v6027 = vsel %vm339, %v5795, 0
  %v6030 = vsel %vm339, %v5871, 0
  %v6033 = vsel %vm339, %v5947, 0
  %v6036 = vsel %vm339, %v6023, 0
  %6038 = vmatprep.subr.mxu0 0.0
  %6039 = vmatpush1.msra.mxu0 0.0
  %6040 = vmatprep.subr.mxu0 0.0
  %6041 = vmatpush1.msra.mxu0 0.0
  %6042 = vmatprep.subr.mxu0 0.0
  %6043 = vmatpush1.msra.mxu0 0.0
  %6044 = vmatprep.subr.mxu0 0.0
  %6045 = vmatpush1.msra.mxu0 0.0
  %6046 = vmatprep.subr.mxu0 0.0
  %6047 = vmatpush1.msra.mxu0 0.0
  %6048 = vmatprep.subr.mxu0 0.0
  %6049 = vmatpush1.msra.mxu0 0.0
  %6050 = vmatprep.subr.mxu0 0.0
  %6051 = vmatpush1.msra.mxu0 0.0
  %6052 = vmatprep.subr.mxu0 0.0
  %6053 = vmatpush1.msra.mxu0 0.0
  %6054 = vmatprep.subr.mxu0 0.0
  %6055 = vmatpush1.msra.mxu0 0.0
  %6056 = vmatprep.subr.mxu0 0.0
  %6057 = vmatpush1.msra.mxu0 0.0
  %6058 = vmatprep.subr.mxu0 0.0
  %6059 = vmatpush1.msra.mxu0 0.0
  %6060 = vmatprep.subr.mxu0 0.0
  %6061 = vmatpush1.msra.mxu0 0.0
  %6062 = vmatprep.subr.mxu0 0.0
  %6063 = vmatpush1.msra.mxu0 0.0
  %6064 = vmatprep.subr.mxu0 0.0
  %6065 = vmatpush1.msra.mxu0 0.0
  %6066 = vmatprep.subr.mxu0 0.0
  %6067 = vmatpush1.msra.mxu0 0.0
  %6068 = vmatprep.subr.mxu0 0.0
  %6069 = vmatpush1.msra.mxu0 %v3653
  %6070 = vmatprep.subr.mxu0 0.0
  %6071 = vmatpush2.msra.mxu0 0.0
  %6072 = vmatprep.subr.mxu0 0.0
  %6073 = vmatpush2.msra.mxu0 0.0
  %6074 = vmatprep.subr.mxu0 0.0
  %6075 = vmatpush2.msra.mxu0 0.0
  %6076 = vmatprep.subr.mxu0 0.0
  %6077 = vmatpush2.msra.mxu0 0.0
  %6078 = vmatprep.subr.mxu0 0.0
  %6079 = vmatpush2.msra.mxu0 0.0
  %6080 = vmatprep.subr.mxu0 0.0
  %6081 = vmatpush2.msra.mxu0 0.0
  %6082 = vmatprep.subr.mxu0 0.0
  %6083 = vmatpush2.msra.mxu0 0.0
  %6084 = vmatprep.subr.mxu0 0.0
  %6085 = vmatpush2.msra.mxu0 0.0
  %6086 = vmatprep.subr.mxu0 0.0
  %6087 = vmatpush2.msra.mxu0 0.0
  %6088 = vmatprep.subr.mxu0 0.0
  %6089 = vmatpush2.msra.mxu0 0.0
  %6090 = vmatprep.subr.mxu0 0.0
  %6091 = vmatpush2.msra.mxu0 0.0
  %6092 = vmatprep.subr.mxu0 0.0
  %6093 = vmatpush2.msra.mxu0 0.0
  %6094 = vmatprep.subr.mxu0 0.0
  %6095 = vmatpush2.msra.mxu0 0.0
  %6096 = vmatprep.subr.mxu0 0.0
  %6097 = vmatpush2.msra.mxu0 0.0
  %6098 = vmatprep.subr.mxu0 0.0
  %6099 = vmatpush2.msra.mxu0 0.0
  %6100 = vmatprep.subr.mxu0 0.0
  %6101 = vmatpush2.msra.mxu0 0.0
  %6102 = vmatprep.mubr.f32.mxu0 0.0
  %6103 = vmatmul.mubr.f32.gmra.mxu0 %v6027
  %v6104 = vpop.f32.mrf.mxu0
  %v6105 = vadd.f32 0.0, %v6104
  %v6106 = vpop.f32.mrf.mxu0
  %6107 = vmatprep.mubr.f32.mxu0 0.0
  %6108 = vmatmul.mubr.f32.gmra.mxu0 %v6030
  %v6109 = vpop.f32.mrf.mxu0
  %v6110 = vadd.f32 0.0, %v6109
  %v6111 = vpop.f32.mrf.mxu0
  %6112 = vmatprep.mubr.f32.mxu0 0.0
  %6113 = vmatmul.mubr.f32.gmra.mxu0 %v6033
  %v6114 = vpop.f32.mrf.mxu0
  %v6115 = vadd.f32 0.0, %v6114
  %v6116 = vpop.f32.mrf.mxu0
  %6117 = vmatprep.mubr.f32.mxu0 0.0
  %6118 = vmatmul.mubr.f32.gmra.mxu0 %v6036
  %v6119 = vpop.f32.mrf.mxu0
  %v6120 = vadd.f32 0.0, %v6119
  %v6121 = vpop.f32.mrf.mxu0
  %6122 = vdwg.mxu0
  %v6123 = vadd.f32 %v5348, %v6105
  %v6124 = vadd.f32 %v5353, %v6110
  %v6125 = vadd.f32 %v5358, %v6115
  %v6126 = vadd.f32 %v5363, %v6120
  %6127 = vrot.lane.b32.xlu0 %v3838, 104
  %v6128 = vpop.permute.xlu0 %6127
  %6129 = vrot.lane.b32.xlu0 %v3838, 72
  %v6130 = vpop.permute.xlu0 %6129
  %v6131 = vsel %vm339, %v6128, 0
  %v6133 = vsel %vm339, %v6130, 0
  %6135 = vmatprep.subr.mxu0 0.0
  %6136 = vmatpush1.xpose.msra.mxu0 0.0
  %6137 = vmatprep.subr.mxu0 0.0
  %6138 = vmatpush1.xpose.msra.mxu0 0.0
  %6139 = vmatprep.subr.mxu0 0.0
  %6140 = vmatpush1.xpose.msra.mxu0 0.0
  %6141 = vmatprep.subr.mxu0 0.0
  %6142 = vmatpush1.xpose.msra.mxu0 0.0
  %6143 = vmatprep.subr.mxu0 0.0
  %6144 = vmatpush1.xpose.msra.mxu0 0.0
  %6145 = vmatprep.subr.mxu0 0.0
  %6146 = vmatpush1.xpose.msra.mxu0 0.0
  %6147 = vmatprep.subr.mxu0 0.0
  %6148 = vmatpush1.xpose.msra.mxu0 0.0
  %6149 = vmatprep.subr.mxu0 0.0
  %6150 = vmatpush1.xpose.msra.mxu0 0.0
  %6151 = vmatprep.subr.mxu0 0.0
  %6152 = vmatpush1.xpose.msra.mxu0 0.0
  %6153 = vmatprep.subr.mxu0 0.0
  %6154 = vmatpush1.xpose.msra.mxu0 0.0
  %6155 = vmatprep.subr.mxu0 0.0
  %6156 = vmatpush1.xpose.msra.mxu0 0.0
  %6157 = vmatprep.subr.mxu0 0.0
  %6158 = vmatpush1.xpose.msra.mxu0 0.0
  %6159 = vmatprep.subr.mxu0 0.0
  %6160 = vmatpush1.xpose.msra.mxu0 0.0
  %6161 = vmatprep.subr.mxu0 0.0
  %6162 = vmatpush1.xpose.msra.mxu0 0.0
  %6163 = vmatprep.subr.mxu0 0.0
  %6164 = vmatpush1.xpose.msra.mxu0 0.0
  %6165 = vmatprep.subr.mxu0 0.0
  %6166 = vmatpush1.xpose.msra.mxu0 %v6133
  %6167 = vmatprep.subr.mxu0 0.0
  %6168 = vmatpush2.xpose.msra.mxu0 0.0
  %6169 = vmatprep.subr.mxu0 0.0
  %6170 = vmatpush2.xpose.msra.mxu0 0.0
  %6171 = vmatprep.subr.mxu0 0.0
  %6172 = vmatpush2.xpose.msra.mxu0 0.0
  %6173 = vmatprep.subr.mxu0 0.0
  %6174 = vmatpush2.xpose.msra.mxu0 0.0
  %6175 = vmatprep.subr.mxu0 0.0
  %6176 = vmatpush2.xpose.msra.mxu0 0.0
  %6177 = vmatprep.subr.mxu0 0.0
  %6178 = vmatpush2.xpose.msra.mxu0 0.0
  %6179 = vmatprep.subr.mxu0 0.0
  %6180 = vmatpush2.xpose.msra.mxu0 0.0
  %6181 = vmatprep.subr.mxu0 0.0
  %6182 = vmatpush2.xpose.msra.mxu0 0.0
  %6183 = vmatprep.subr.mxu0 0.0
  %6184 = vmatpush2.xpose.msra.mxu0 0.0
  %6185 = vmatprep.subr.mxu0 0.0
  %6186 = vmatpush2.xpose.msra.mxu0 0.0
  %6187 = vmatprep.subr.mxu0 0.0
  %6188 = vmatpush2.xpose.msra.mxu0 0.0
  %6189 = vmatprep.subr.mxu0 0.0
  %6190 = vmatpush2.xpose.msra.mxu0 0.0
  %6191 = vmatprep.subr.mxu0 0.0
  %6192 = vmatpush2.xpose.msra.mxu0 0.0
  %6193 = vmatprep.subr.mxu0 0.0
  %6194 = vmatpush2.xpose.msra.mxu0 0.0
  %6195 = vmatprep.subr.mxu0 0.0
  %6196 = vmatpush2.xpose.msra.mxu0 0.0
  %6197 = vmatprep.subr.mxu0 0.0
  %6198 = vmatpush2.xpose.msra.mxu0 0.0
  %6199 = vmatprep.mubr.f32.mxu0 0.0
  %6200 = vmatmul.mubr.f32.gmra.mxu0 %v6131
  %v6201 = vpop.f32.mrf.mxu0
  %v6202 = vadd.f32 0.0, %v6201
  %v6203 = vpop.f32.mrf.mxu0
  %6204 = vdwg.mxu0
  %6205 = vrot.lane.b32.xlu0 %v3843, 104
  %v6206 = vpop.permute.xlu0 %6205
  %6207 = vrot.lane.b32.xlu0 %v3843, 72
  %v6208 = vpop.permute.xlu0 %6207
  %v6209 = vsel %vm339, %v6206, 0
  %v6211 = vsel %vm339, %v6208, 0
  %6213 = vmatprep.subr.mxu0 0.0
  %6214 = vmatpush1.xpose.msra.mxu0 0.0
  %6215 = vmatprep.subr.mxu0 0.0
  %6216 = vmatpush1.xpose.msra.mxu0 0.0
  %6217 = vmatprep.subr.mxu0 0.0
  %6218 = vmatpush1.xpose.msra.mxu0 0.0
  %6219 = vmatprep.subr.mxu0 0.0
  %6220 = vmatpush1.xpose.msra.mxu0 0.0
  %6221 = vmatprep.subr.mxu0 0.0
  %6222 = vmatpush1.xpose.msra.mxu0 0.0
  %6223 = vmatprep.subr.mxu0 0.0
  %6224 = vmatpush1.xpose.msra.mxu0 0.0
  %6225 = vmatprep.subr.mxu0 0.0
  %6226 = vmatpush1.xpose.msra.mxu0 0.0
  %6227 = vmatprep.subr.mxu0 0.0
  %6228 = vmatpush1.xpose.msra.mxu0 0.0
  %6229 = vmatprep.subr.mxu0 0.0
  %6230 = vmatpush1.xpose.msra.mxu0 0.0
  %6231 = vmatprep.subr.mxu0 0.0
  %6232 = vmatpush1.xpose.msra.mxu0 0.0
  %6233 = vmatprep.subr.mxu0 0.0
  %6234 = vmatpush1.xpose.msra.mxu0 0.0
  %6235 = vmatprep.subr.mxu0 0.0
  %6236 = vmatpush1.xpose.msra.mxu0 0.0
  %6237 = vmatprep.subr.mxu0 0.0
  %6238 = vmatpush1.xpose.msra.mxu0 0.0
  %6239 = vmatprep.subr.mxu0 0.0
  %6240 = vmatpush1.xpose.msra.mxu0 0.0
  %6241 = vmatprep.subr.mxu0 0.0
  %6242 = vmatpush1.xpose.msra.mxu0 0.0
  %6243 = vmatprep.subr.mxu0 0.0
  %6244 = vmatpush1.xpose.msra.mxu0 %v6211
  %6245 = vmatprep.subr.mxu0 0.0
  %6246 = vmatpush2.xpose.msra.mxu0 0.0
  %6247 = vmatprep.subr.mxu0 0.0
  %6248 = vmatpush2.xpose.msra.mxu0 0.0
  %6249 = vmatprep.subr.mxu0 0.0
  %6250 = vmatpush2.xpose.msra.mxu0 0.0
  %6251 = vmatprep.subr.mxu0 0.0
  %6252 = vmatpush2.xpose.msra.mxu0 0.0
  %6253 = vmatprep.subr.mxu0 0.0
  %6254 = vmatpush2.xpose.msra.mxu0 0.0
  %6255 = vmatprep.subr.mxu0 0.0
  %6256 = vmatpush2.xpose.msra.mxu0 0.0
  %6257 = vmatprep.subr.mxu0 0.0
  %6258 = vmatpush2.xpose.msra.mxu0 0.0
  %6259 = vmatprep.subr.mxu0 0.0
  %6260 = vmatpush2.xpose.msra.mxu0 0.0
  %6261 = vmatprep.subr.mxu0 0.0
  %6262 = vmatpush2.xpose.msra.mxu0 0.0
  %6263 = vmatprep.subr.mxu0 0.0
  %6264 = vmatpush2.xpose.msra.mxu0 0.0
  %6265 = vmatprep.subr.mxu0 0.0
  %6266 = vmatpush2.xpose.msra.mxu0 0.0
  %6267 = vmatprep.subr.mxu0 0.0
  %6268 = vmatpush2.xpose.msra.mxu0 0.0
  %6269 = vmatprep.subr.mxu0 0.0
  %6270 = vmatpush2.xpose.msra.mxu0 0.0
  %6271 = vmatprep.subr.mxu0 0.0
  %6272 = vmatpush2.xpose.msra.mxu0 0.0
  %6273 = vmatprep.subr.mxu0 0.0
  %6274 = vmatpush2.xpose.msra.mxu0 0.0
  %6275 = vmatprep.subr.mxu0 0.0
  %6276 = vmatpush2.xpose.msra.mxu0 0.0
  %6277 = vmatprep.mubr.f32.mxu0 0.0
  %6278 = vmatmul.mubr.f32.gmra.mxu0 %v6209
  %v6279 = vpop.f32.mrf.mxu0
  %v6280 = vadd.f32 0.0, %v6279
  %v6281 = vpop.f32.mrf.mxu0
  %6282 = vdwg.mxu0
  %6283 = vrot.lane.b32.xlu0 %v3848, 104
  %v6284 = vpop.permute.xlu0 %6283
  %6285 = vrot.lane.b32.xlu0 %v3848, 72
  %v6286 = vpop.permute.xlu0 %6285
  %v6287 = vsel %vm339, %v6284, 0
  %v6289 = vsel %vm339, %v6286, 0
  %6291 = vmatprep.subr.mxu0 0.0
  %6292 = vmatpush1.xpose.msra.mxu0 0.0
  %6293 = vmatprep.subr.mxu0 0.0
  %6294 = vmatpush1.xpose.msra.mxu0 0.0
  %6295 = vmatprep.subr.mxu0 0.0
  %6296 = vmatpush1.xpose.msra.mxu0 0.0
  %6297 = vmatprep.subr.mxu0 0.0
  %6298 = vmatpush1.xpose.msra.mxu0 0.0
  %6299 = vmatprep.subr.mxu0 0.0
  %6300 = vmatpush1.xpose.msra.mxu0 0.0
  %6301 = vmatprep.subr.mxu0 0.0
  %6302 = vmatpush1.xpose.msra.mxu0 0.0
  %6303 = vmatprep.subr.mxu0 0.0
  %6304 = vmatpush1.xpose.msra.mxu0 0.0
  %6305 = vmatprep.subr.mxu0 0.0
  %6306 = vmatpush1.xpose.msra.mxu0 0.0
  %6307 = vmatprep.subr.mxu0 0.0
  %6308 = vmatpush1.xpose.msra.mxu0 0.0
  %6309 = vmatprep.subr.mxu0 0.0
  %6310 = vmatpush1.xpose.msra.mxu0 0.0
  %6311 = vmatprep.subr.mxu0 0.0
  %6312 = vmatpush1.xpose.msra.mxu0 0.0
  %6313 = vmatprep.subr.mxu0 0.0
  %6314 = vmatpush1.xpose.msra.mxu0 0.0
  %6315 = vmatprep.subr.mxu0 0.0
  %6316 = vmatpush1.xpose.msra.mxu0 0.0
  %6317 = vmatprep.subr.mxu0 0.0
  %6318 = vmatpush1.xpose.msra.mxu0 0.0
  %6319 = vmatprep.subr.mxu0 0.0
  %6320 = vmatpush1.xpose.msra.mxu0 0.0
  %6321 = vmatprep.subr.mxu0 0.0
  %6322 = vmatpush1.xpose.msra.mxu0 %v6289
  %6323 = vmatprep.subr.mxu0 0.0
  %6324 = vmatpush2.xpose.msra.mxu0 0.0
  %6325 = vmatprep.subr.mxu0 0.0
  %6326 = vmatpush2.xpose.msra.mxu0 0.0
  %6327 = vmatprep.subr.mxu0 0.0
  %6328 = vmatpush2.xpose.msra.mxu0 0.0
  %6329 = vmatprep.subr.mxu0 0.0
  %6330 = vmatpush2.xpose.msra.mxu0 0.0
  %6331 = vmatprep.subr.mxu0 0.0
  %6332 = vmatpush2.xpose.msra.mxu0 0.0
  %6333 = vmatprep.subr.mxu0 0.0
  %6334 = vmatpush2.xpose.msra.mxu0 0.0
  %6335 = vmatprep.subr.mxu0 0.0
  %6336 = vmatpush2.xpose.msra.mxu0 0.0
  %6337 = vmatprep.subr.mxu0 0.0
  %6338 = vmatpush2.xpose.msra.mxu0 0.0
  %6339 = vmatprep.subr.mxu0 0.0
  %6340 = vmatpush2.xpose.msra.mxu0 0.0
  %6341 = vmatprep.subr.mxu0 0.0
  %6342 = vmatpush2.xpose.msra.mxu0 0.0
  %6343 = vmatprep.subr.mxu0 0.0
  %6344 = vmatpush2.xpose.msra.mxu0 0.0
  %6345 = vmatprep.subr.mxu0 0.0
  %6346 = vmatpush2.xpose.msra.mxu0 0.0
  %6347 = vmatprep.subr.mxu0 0.0
  %6348 = vmatpush2.xpose.msra.mxu0 0.0
  %6349 = vmatprep.subr.mxu0 0.0
  %6350 = vmatpush2.xpose.msra.mxu0 0.0
  %6351 = vmatprep.subr.mxu0 0.0
  %6352 = vmatpush2.xpose.msra.mxu0 0.0
  %6353 = vmatprep.subr.mxu0 0.0
  %6354 = vmatpush2.xpose.msra.mxu0 0.0
  %6355 = vmatprep.mubr.f32.mxu0 0.0
  %6356 = vmatmul.mubr.f32.gmra.mxu0 %v6287
  %v6357 = vpop.f32.mrf.mxu0
  %v6358 = vadd.f32 0.0, %v6357
  %v6359 = vpop.f32.mrf.mxu0
  %6360 = vdwg.mxu0
  %6361 = vrot.lane.b32.xlu0 %v3853, 104
  %v6362 = vpop.permute.xlu0 %6361
  %6363 = vrot.lane.b32.xlu0 %v3853, 72
  %v6364 = vpop.permute.xlu0 %6363
  %v6365 = vsel %vm339, %v6362, 0
  %v6367 = vsel %vm339, %v6364, 0
  %6369 = vmatprep.subr.mxu0 0.0
  %6370 = vmatpush1.xpose.msra.mxu0 0.0
  %6371 = vmatprep.subr.mxu0 0.0
  %6372 = vmatpush1.xpose.msra.mxu0 0.0
  %6373 = vmatprep.subr.mxu0 0.0
  %6374 = vmatpush1.xpose.msra.mxu0 0.0
  %6375 = vmatprep.subr.mxu0 0.0
  %6376 = vmatpush1.xpose.msra.mxu0 0.0
  %6377 = vmatprep.subr.mxu0 0.0
  %6378 = vmatpush1.xpose.msra.mxu0 0.0
  %6379 = vmatprep.subr.mxu0 0.0
  %6380 = vmatpush1.xpose.msra.mxu0 0.0
  %6381 = vmatprep.subr.mxu0 0.0
  %6382 = vmatpush1.xpose.msra.mxu0 0.0
  %6383 = vmatprep.subr.mxu0 0.0
  %6384 = vmatpush1.xpose.msra.mxu0 0.0
  %6385 = vmatprep.subr.mxu0 0.0
  %6386 = vmatpush1.xpose.msra.mxu0 0.0
  %6387 = vmatprep.subr.mxu0 0.0
  %6388 = vmatpush1.xpose.msra.mxu0 0.0
  %6389 = vmatprep.subr.mxu0 0.0
  %6390 = vmatpush1.xpose.msra.mxu0 0.0
  %6391 = vmatprep.subr.mxu0 0.0
  %6392 = vmatpush1.xpose.msra.mxu0 0.0
  %6393 = vmatprep.subr.mxu0 0.0
  %6394 = vmatpush1.xpose.msra.mxu0 0.0
  %6395 = vmatprep.subr.mxu0 0.0
  %6396 = vmatpush1.xpose.msra.mxu0 0.0
  %6397 = vmatprep.subr.mxu0 0.0
  %6398 = vmatpush1.xpose.msra.mxu0 0.0
  %6399 = vmatprep.subr.mxu0 0.0
  %6400 = vmatpush1.xpose.msra.mxu0 %v6367
  %6401 = vmatprep.subr.mxu0 0.0
  %6402 = vmatpush2.xpose.msra.mxu0 0.0
  %6403 = vmatprep.subr.mxu0 0.0
  %6404 = vmatpush2.xpose.msra.mxu0 0.0
  %6405 = vmatprep.subr.mxu0 0.0
  %6406 = vmatpush2.xpose.msra.mxu0 0.0
  %6407 = vmatprep.subr.mxu0 0.0
  %6408 = vmatpush2.xpose.msra.mxu0 0.0
  %6409 = vmatprep.subr.mxu0 0.0
  %6410 = vmatpush2.xpose.msra.mxu0 0.0
  %6411 = vmatprep.subr.mxu0 0.0
  %6412 = vmatpush2.xpose.msra.mxu0 0.0
  %6413 = vmatprep.subr.mxu0 0.0
  %6414 = vmatpush2.xpose.msra.mxu0 0.0
  %6415 = vmatprep.subr.mxu0 0.0
  %6416 = vmatpush2.xpose.msra.mxu0 0.0
  %6417 = vmatprep.subr.mxu0 0.0
  %6418 = vmatpush2.xpose.msra.mxu0 0.0
  %6419 = vmatprep.subr.mxu0 0.0
  %6420 = vmatpush2.xpose.msra.mxu0 0.0
  %6421 = vmatprep.subr.mxu0 0.0
  %6422 = vmatpush2.xpose.msra.mxu0 0.0
  %6423 = vmatprep.subr.mxu0 0.0
  %6424 = vmatpush2.xpose.msra.mxu0 0.0
  %6425 = vmatprep.subr.mxu0 0.0
  %6426 = vmatpush2.xpose.msra.mxu0 0.0
  %6427 = vmatprep.subr.mxu0 0.0
  %6428 = vmatpush2.xpose.msra.mxu0 0.0
  %6429 = vmatprep.subr.mxu0 0.0
  %6430 = vmatpush2.xpose.msra.mxu0 0.0
  %6431 = vmatprep.subr.mxu0 0.0
  %6432 = vmatpush2.xpose.msra.mxu0 0.0
  %6433 = vmatprep.mubr.f32.mxu0 0.0
  %6434 = vmatmul.mubr.f32.gmra.mxu0 %v6365
  %v6435 = vpop.f32.mrf.mxu0
  %v6436 = vadd.f32 0.0, %v6435
  %v6437 = vpop.f32.mrf.mxu0
  %6438 = vdwg.mxu0
  %v6439 = vsel %vm339, %v6202, -inf
  %6440 = vmax.xlane.f32.xlu0 %v6439
  %v6441 = vpop.xlane.xlu0 %6440
  %v6442 = vsel %vm339, %v6280, -inf
  %6443 = vmax.xlane.f32.xlu0 %v6442
  %v6444 = vpop.xlane.xlu0 %6443
  %v6445 = vsel %vm339, %v6358, -inf
  %6446 = vmax.xlane.f32.xlu0 %v6445
  %v6447 = vpop.xlane.xlu0 %6446
  %v6448 = vsel %vm339, %v6436, -inf
  %6449 = vmax.xlane.f32.xlu0 %v6448
  %v6450 = vpop.xlane.xlu0 %6449
  %v6451 = vsub.f32 %v6202, %v6441
  %v6452 = vsub.f32 %v6280, %v6444
  %v6453 = vsub.f32 %v6358, %v6447
  %v6454 = vsub.f32 %v6436, %v6450
  %v6455 = vmul.f32 %v6451, 1.442695
  %v6456 = vpow.pop %v6455
  %v6457 = vmul.f32 %v6452, 1.442695
  %v6458 = vpow.pop %v6457
  %v6459 = vmul.f32 %v6453, 1.442695
  %v6460 = vpow.pop %v6459
  %v6461 = vmul.f32 %v6454, 1.442695
  %v6462 = vpow.pop %v6461
  %v6463 = vsel %vm339, %v6456, 0.0
  %6464 = vadd.xlane.f32.xlu0 %v6463
  %v6465 = vpop.xlane.xlu0 %6464
  %v6466 = vsel %vm339, %v6458, 0.0
  %6467 = vadd.xlane.f32.xlu0 %v6466
  %v6468 = vpop.xlane.xlu0 %6467
  %v6469 = vsel %vm339, %v6460, 0.0
  %6470 = vadd.xlane.f32.xlu0 %v6469
  %v6471 = vpop.xlane.xlu0 %6470
  %v6472 = vsel %vm339, %v6462, 0.0
  %6473 = vadd.xlane.f32.xlu0 %v6472
  %v6474 = vpop.xlane.xlu0 %6473
  %v6475 = vrcp.pop %v6465
  %v6476 = vmul.f32 %v6456, %v6475
  %v6477 = vrcp.pop %v6468
  %v6478 = vmul.f32 %v6458, %v6477
  %v6479 = vrcp.pop %v6471
  %v6480 = vmul.f32 %v6460, %v6479
  %v6481 = vrcp.pop %v6474
  %v6482 = vmul.f32 %v6462, %v6481
  %6483 = vrot.lane.b32.xlu0 %v3838, 40
  %v6484 = vpop.permute.xlu0 %6483
  %v6487 = vsel %vm339, %v6476, 0
  %6489 = vmatprep.subr.mxu0 0.0
  %6490 = vmatpush1.msra.mxu0 0.0
  %6491 = vmatprep.subr.mxu0 0.0
  %6492 = vmatpush1.msra.mxu0 0.0
  %6493 = vmatprep.subr.mxu0 0.0
  %6494 = vmatpush1.msra.mxu0 0.0
  %6495 = vmatprep.subr.mxu0 0.0
  %6496 = vmatpush1.msra.mxu0 0.0
  %6497 = vmatprep.subr.mxu0 0.0
  %6498 = vmatpush1.msra.mxu0 0.0
  %6499 = vmatprep.subr.mxu0 0.0
  %6500 = vmatpush1.msra.mxu0 0.0
  %6501 = vmatprep.subr.mxu0 0.0
  %6502 = vmatpush1.msra.mxu0 0.0
  %6503 = vmatprep.subr.mxu0 0.0
  %6504 = vmatpush1.msra.mxu0 0.0
  %6505 = vmatprep.subr.mxu0 0.0
  %6506 = vmatpush1.msra.mxu0 0.0
  %6507 = vmatprep.subr.mxu0 0.0
  %6508 = vmatpush1.msra.mxu0 0.0
  %6509 = vmatprep.subr.mxu0 0.0
  %6510 = vmatpush1.msra.mxu0 0.0
  %6511 = vmatprep.subr.mxu0 0.0
  %6512 = vmatpush1.msra.mxu0 0.0
  %6513 = vmatprep.subr.mxu0 0.0
  %6514 = vmatpush1.msra.mxu0 0.0
  %6515 = vmatprep.subr.mxu0 0.0
  %6516 = vmatpush1.msra.mxu0 0.0
  %6517 = vmatprep.subr.mxu0 0.0
  %6518 = vmatpush1.msra.mxu0 0.0
  %6519 = vmatprep.subr.mxu0 0.0
  %6520 = vmatpush1.msra.mxu0 %v6484
  %6521 = vmatprep.subr.mxu0 0.0
  %6522 = vmatpush2.msra.mxu0 0.0
  %6523 = vmatprep.subr.mxu0 0.0
  %6524 = vmatpush2.msra.mxu0 0.0
  %6525 = vmatprep.subr.mxu0 0.0
  %6526 = vmatpush2.msra.mxu0 0.0
  %6527 = vmatprep.subr.mxu0 0.0
  %6528 = vmatpush2.msra.mxu0 0.0
  %6529 = vmatprep.subr.mxu0 0.0
  %6530 = vmatpush2.msra.mxu0 0.0
  %6531 = vmatprep.subr.mxu0 0.0
  %6532 = vmatpush2.msra.mxu0 0.0
  %6533 = vmatprep.subr.mxu0 0.0
  %6534 = vmatpush2.msra.mxu0 0.0
  %6535 = vmatprep.subr.mxu0 0.0
  %6536 = vmatpush2.msra.mxu0 0.0
  %6537 = vmatprep.subr.mxu0 0.0
  %6538 = vmatpush2.msra.mxu0 0.0
  %6539 = vmatprep.subr.mxu0 0.0
  %6540 = vmatpush2.msra.mxu0 0.0
  %6541 = vmatprep.subr.mxu0 0.0
  %6542 = vmatpush2.msra.mxu0 0.0
  %6543 = vmatprep.subr.mxu0 0.0
  %6544 = vmatpush2.msra.mxu0 0.0
  %6545 = vmatprep.subr.mxu0 0.0
  %6546 = vmatpush2.msra.mxu0 0.0
  %6547 = vmatprep.subr.mxu0 0.0
  %6548 = vmatpush2.msra.mxu0 0.0
  %6549 = vmatprep.subr.mxu0 0.0
  %6550 = vmatpush2.msra.mxu0 0.0
  %6551 = vmatprep.subr.mxu0 0.0
  %6552 = vmatpush2.msra.mxu0 0.0
  %6553 = vmatprep.mubr.f32.mxu0 0.0
  %6554 = vmatmul.mubr.f32.gmra.mxu0 %v6487
  %v6555 = vpop.f32.mrf.mxu0
  %v6556 = vadd.f32 0.0, %v6555
  %v6557 = vpop.f32.mrf.mxu0
  %6558 = vdwg.mxu0
  %6559 = vrot.lane.b32.xlu0 %v3843, 40
  %v6560 = vpop.permute.xlu0 %6559
  %v6563 = vsel %vm339, %v6478, 0
  %6565 = vmatprep.subr.mxu0 0.0
  %6566 = vmatpush1.msra.mxu0 0.0
  %6567 = vmatprep.subr.mxu0 0.0
  %6568 = vmatpush1.msra.mxu0 0.0
  %6569 = vmatprep.subr.mxu0 0.0
  %6570 = vmatpush1.msra.mxu0 0.0
  %6571 = vmatprep.subr.mxu0 0.0
  %6572 = vmatpush1.msra.mxu0 0.0
  %6573 = vmatprep.subr.mxu0 0.0
  %6574 = vmatpush1.msra.mxu0 0.0
  %6575 = vmatprep.subr.mxu0 0.0
  %6576 = vmatpush1.msra.mxu0 0.0
  %6577 = vmatprep.subr.mxu0 0.0
  %6578 = vmatpush1.msra.mxu0 0.0
  %6579 = vmatprep.subr.mxu0 0.0
  %6580 = vmatpush1.msra.mxu0 0.0
  %6581 = vmatprep.subr.mxu0 0.0
  %6582 = vmatpush1.msra.mxu0 0.0
  %6583 = vmatprep.subr.mxu0 0.0
  %6584 = vmatpush1.msra.mxu0 0.0
  %6585 = vmatprep.subr.mxu0 0.0
  %6586 = vmatpush1.msra.mxu0 0.0
  %6587 = vmatprep.subr.mxu0 0.0
  %6588 = vmatpush1.msra.mxu0 0.0
  %6589 = vmatprep.subr.mxu0 0.0
  %6590 = vmatpush1.msra.mxu0 0.0
  %6591 = vmatprep.subr.mxu0 0.0
  %6592 = vmatpush1.msra.mxu0 0.0
  %6593 = vmatprep.subr.mxu0 0.0
  %6594 = vmatpush1.msra.mxu0 0.0
  %6595 = vmatprep.subr.mxu0 0.0
  %6596 = vmatpush1.msra.mxu0 %v6560
  %6597 = vmatprep.subr.mxu0 0.0
  %6598 = vmatpush2.msra.mxu0 0.0
  %6599 = vmatprep.subr.mxu0 0.0
  %6600 = vmatpush2.msra.mxu0 0.0
  %6601 = vmatprep.subr.mxu0 0.0
  %6602 = vmatpush2.msra.mxu0 0.0
  %6603 = vmatprep.subr.mxu0 0.0
  %6604 = vmatpush2.msra.mxu0 0.0
  %6605 = vmatprep.subr.mxu0 0.0
  %6606 = vmatpush2.msra.mxu0 0.0
  %6607 = vmatprep.subr.mxu0 0.0
  %6608 = vmatpush2.msra.mxu0 0.0
  %6609 = vmatprep.subr.mxu0 0.0
  %6610 = vmatpush2.msra.mxu0 0.0
  %6611 = vmatprep.subr.mxu0 0.0
  %6612 = vmatpush2.msra.mxu0 0.0
  %6613 = vmatprep.subr.mxu0 0.0
  %6614 = vmatpush2.msra.mxu0 0.0
  %6615 = vmatprep.subr.mxu0 0.0
  %6616 = vmatpush2.msra.mxu0 0.0
  %6617 = vmatprep.subr.mxu0 0.0
  %6618 = vmatpush2.msra.mxu0 0.0
  %6619 = vmatprep.subr.mxu0 0.0
  %6620 = vmatpush2.msra.mxu0 0.0
  %6621 = vmatprep.subr.mxu0 0.0
  %6622 = vmatpush2.msra.mxu0 0.0
  %6623 = vmatprep.subr.mxu0 0.0
  %6624 = vmatpush2.msra.mxu0 0.0
  %6625 = vmatprep.subr.mxu0 0.0
  %6626 = vmatpush2.msra.mxu0 0.0
  %6627 = vmatprep.subr.mxu0 0.0
  %6628 = vmatpush2.msra.mxu0 0.0
  %6629 = vmatprep.mubr.f32.mxu0 0.0
  %6630 = vmatmul.mubr.f32.gmra.mxu0 %v6563
  %v6631 = vpop.f32.mrf.mxu0
  %v6632 = vadd.f32 0.0, %v6631
  %v6633 = vpop.f32.mrf.mxu0
  %6634 = vdwg.mxu0
  %6635 = vrot.lane.b32.xlu0 %v3848, 40
  %v6636 = vpop.permute.xlu0 %6635
  %v6639 = vsel %vm339, %v6480, 0
  %6641 = vmatprep.subr.mxu0 0.0
  %6642 = vmatpush1.msra.mxu0 0.0
  %6643 = vmatprep.subr.mxu0 0.0
  %6644 = vmatpush1.msra.mxu0 0.0
  %6645 = vmatprep.subr.mxu0 0.0
  %6646 = vmatpush1.msra.mxu0 0.0
  %6647 = vmatprep.subr.mxu0 0.0
  %6648 = vmatpush1.msra.mxu0 0.0
  %6649 = vmatprep.subr.mxu0 0.0
  %6650 = vmatpush1.msra.mxu0 0.0
  %6651 = vmatprep.subr.mxu0 0.0
  %6652 = vmatpush1.msra.mxu0 0.0
  %6653 = vmatprep.subr.mxu0 0.0
  %6654 = vmatpush1.msra.mxu0 0.0
  %6655 = vmatprep.subr.mxu0 0.0
  %6656 = vmatpush1.msra.mxu0 0.0
  %6657 = vmatprep.subr.mxu0 0.0
  %6658 = vmatpush1.msra.mxu0 0.0
  %6659 = vmatprep.subr.mxu0 0.0
  %6660 = vmatpush1.msra.mxu0 0.0
  %6661 = vmatprep.subr.mxu0 0.0
  %6662 = vmatpush1.msra.mxu0 0.0
  %6663 = vmatprep.subr.mxu0 0.0
  %6664 = vmatpush1.msra.mxu0 0.0
  %6665 = vmatprep.subr.mxu0 0.0
  %6666 = vmatpush1.msra.mxu0 0.0
  %6667 = vmatprep.subr.mxu0 0.0
  %6668 = vmatpush1.msra.mxu0 0.0
  %6669 = vmatprep.subr.mxu0 0.0
  %6670 = vmatpush1.msra.mxu0 0.0
  %6671 = vmatprep.subr.mxu0 0.0
  %6672 = vmatpush1.msra.mxu0 %v6636
  %6673 = vmatprep.subr.mxu0 0.0
  %6674 = vmatpush2.msra.mxu0 0.0
  %6675 = vmatprep.subr.mxu0 0.0
  %6676 = vmatpush2.msra.mxu0 0.0
  %6677 = vmatprep.subr.mxu0 0.0
  %6678 = vmatpush2.msra.mxu0 0.0
  %6679 = vmatprep.subr.mxu0 0.0
  %6680 = vmatpush2.msra.mxu0 0.0
  %6681 = vmatprep.subr.mxu0 0.0
  %6682 = vmatpush2.msra.mxu0 0.0
  %6683 = vmatprep.subr.mxu0 0.0
  %6684 = vmatpush2.msra.mxu0 0.0
  %6685 = vmatprep.subr.mxu0 0.0
  %6686 = vmatpush2.msra.mxu0 0.0
  %6687 = vmatprep.subr.mxu0 0.0
  %6688 = vmatpush2.msra.mxu0 0.0
  %6689 = vmatprep.subr.mxu0 0.0
  %6690 = vmatpush2.msra.mxu0 0.0
  %6691 = vmatprep.subr.mxu0 0.0
  %6692 = vmatpush2.msra.mxu0 0.0
  %6693 = vmatprep.subr.mxu0 0.0
  %6694 = vmatpush2.msra.mxu0 0.0
  %6695 = vmatprep.subr.mxu0 0.0
  %6696 = vmatpush2.msra.mxu0 0.0
  %6697 = vmatprep.subr.mxu0 0.0
  %6698 = vmatpush2.msra.mxu0 0.0
  %6699 = vmatprep.subr.mxu0 0.0
  %6700 = vmatpush2.msra.mxu0 0.0
  %6701 = vmatprep.subr.mxu0 0.0
  %6702 = vmatpush2.msra.mxu0 0.0
  %6703 = vmatprep.subr.mxu0 0.0
  %6704 = vmatpush2.msra.mxu0 0.0
  %6705 = vmatprep.mubr.f32.mxu0 0.0
  %6706 = vmatmul.mubr.f32.gmra.mxu0 %v6639
  %v6707 = vpop.f32.mrf.mxu0
  %v6708 = vadd.f32 0.0, %v6707
  %v6709 = vpop.f32.mrf.mxu0
  %6710 = vdwg.mxu0
  %6711 = vrot.lane.b32.xlu0 %v3853, 40
  %v6712 = vpop.permute.xlu0 %6711
  %v6715 = vsel %vm339, %v6482, 0
  %6717 = vmatprep.subr.mxu0 0.0
  %6718 = vmatpush1.msra.mxu0 0.0
  %6719 = vmatprep.subr.mxu0 0.0
  %6720 = vmatpush1.msra.mxu0 0.0
  %6721 = vmatprep.subr.mxu0 0.0
  %6722 = vmatpush1.msra.mxu0 0.0
  %6723 = vmatprep.subr.mxu0 0.0
  %6724 = vmatpush1.msra.mxu0 0.0
  %6725 = vmatprep.subr.mxu0 0.0
  %6726 = vmatpush1.msra.mxu0 0.0
  %6727 = vmatprep.subr.mxu0 0.0
  %6728 = vmatpush1.msra.mxu0 0.0
  %6729 = vmatprep.subr.mxu0 0.0
  %6730 = vmatpush1.msra.mxu0 0.0
  %6731 = vmatprep.subr.mxu0 0.0
  %6732 = vmatpush1.msra.mxu0 0.0
  %6733 = vmatprep.subr.mxu0 0.0
  %6734 = vmatpush1.msra.mxu0 0.0
  %6735 = vmatprep.subr.mxu0 0.0
  %6736 = vmatpush1.msra.mxu0 0.0
  %6737 = vmatprep.subr.mxu0 0.0
  %6738 = vmatpush1.msra.mxu0 0.0
  %6739 = vmatprep.subr.mxu0 0.0
  %6740 = vmatpush1.msra.mxu0 0.0
  %6741 = vmatprep.subr.mxu0 0.0
  %6742 = vmatpush1.msra.mxu0 0.0
  %6743 = vmatprep.subr.mxu0 0.0
  %6744 = vmatpush1.msra.mxu0 0.0
  %6745 = vmatprep.subr.mxu0 0.0
  %6746 = vmatpush1.msra.mxu0 0.0
  %6747 = vmatprep.subr.mxu0 0.0
  %6748 = vmatpush1.msra.mxu0 %v6712
  %6749 = vmatprep.subr.mxu0 0.0
  %6750 = vmatpush2.msra.mxu0 0.0
  %6751 = vmatprep.subr.mxu0 0.0
  %6752 = vmatpush2.msra.mxu0 0.0
  %6753 = vmatprep.subr.mxu0 0.0
  %6754 = vmatpush2.msra.mxu0 0.0
  %6755 = vmatprep.subr.mxu0 0.0
  %6756 = vmatpush2.msra.mxu0 0.0
  %6757 = vmatprep.subr.mxu0 0.0
  %6758 = vmatpush2.msra.mxu0 0.0
  %6759 = vmatprep.subr.mxu0 0.0
  %6760 = vmatpush2.msra.mxu0 0.0
  %6761 = vmatprep.subr.mxu0 0.0
  %6762 = vmatpush2.msra.mxu0 0.0
  %6763 = vmatprep.subr.mxu0 0.0
  %6764 = vmatpush2.msra.mxu0 0.0
  %6765 = vmatprep.subr.mxu0 0.0
  %6766 = vmatpush2.msra.mxu0 0.0
  %6767 = vmatprep.subr.mxu0 0.0
  %6768 = vmatpush2.msra.mxu0 0.0
  %6769 = vmatprep.subr.mxu0 0.0
  %6770 = vmatpush2.msra.mxu0 0.0
  %6771 = vmatprep.subr.mxu0 0.0
  %6772 = vmatpush2.msra.mxu0 0.0
  %6773 = vmatprep.subr.mxu0 0.0
  %6774 = vmatpush2.msra.mxu0 0.0
  %6775 = vmatprep.subr.mxu0 0.0
  %6776 = vmatpush2.msra.mxu0 0.0
  %6777 = vmatprep.subr.mxu0 0.0
  %6778 = vmatpush2.msra.mxu0 0.0
  %6779 = vmatprep.subr.mxu0 0.0
  %6780 = vmatpush2.msra.mxu0 0.0
  %6781 = vmatprep.mubr.f32.mxu0 0.0
  %6782 = vmatmul.mubr.f32.gmra.mxu0 %v6715
  %v6783 = vpop.f32.mrf.mxu0
  %v6784 = vadd.f32 0.0, %v6783
  %v6785 = vpop.f32.mrf.mxu0
  %6786 = vdwg.mxu0
  %v6788 = vsel %vm339, %v6556, 0
  %v6791 = vsel %vm339, %v6632, 0
  %v6794 = vsel %vm339, %v6708, 0
  %v6797 = vsel %vm339, %v6784, 0
  %6799 = vmatprep.subr.mxu0 0.0
  %6800 = vmatpush1.msra.mxu0 0.0
  %6801 = vmatprep.subr.mxu0 0.0
  %6802 = vmatpush1.msra.mxu0 0.0
  %6803 = vmatprep.subr.mxu0 0.0
  %6804 = vmatpush1.msra.mxu0 0.0
  %6805 = vmatprep.subr.mxu0 0.0
  %6806 = vmatpush1.msra.mxu0 0.0
  %6807 = vmatprep.subr.mxu0 0.0
  %6808 = vmatpush1.msra.mxu0 0.0
  %6809 = vmatprep.subr.mxu0 0.0
  %6810 = vmatpush1.msra.mxu0 0.0
  %6811 = vmatprep.subr.mxu0 0.0
  %6812 = vmatpush1.msra.mxu0 0.0
  %6813 = vmatprep.subr.mxu0 0.0
  %6814 = vmatpush1.msra.mxu0 0.0
  %6815 = vmatprep.subr.mxu0 0.0
  %6816 = vmatpush1.msra.mxu0 0.0
  %6817 = vmatprep.subr.mxu0 0.0
  %6818 = vmatpush1.msra.mxu0 0.0
  %6819 = vmatprep.subr.mxu0 0.0
  %6820 = vmatpush1.msra.mxu0 0.0
  %6821 = vmatprep.subr.mxu0 0.0
  %6822 = vmatpush1.msra.mxu0 0.0
  %6823 = vmatprep.subr.mxu0 0.0
  %6824 = vmatpush1.msra.mxu0 0.0
  %6825 = vmatprep.subr.mxu0 0.0
  %6826 = vmatpush1.msra.mxu0 0.0
  %6827 = vmatprep.subr.mxu0 0.0
  %6828 = vmatpush1.msra.mxu0 0.0
  %6829 = vmatprep.subr.mxu0 0.0
  %6830 = vmatpush1.msra.mxu0 %v3654
  %6831 = vmatprep.subr.mxu0 0.0
  %6832 = vmatpush2.msra.mxu0 0.0
  %6833 = vmatprep.subr.mxu0 0.0
  %6834 = vmatpush2.msra.mxu0 0.0
  %6835 = vmatprep.subr.mxu0 0.0
  %6836 = vmatpush2.msra.mxu0 0.0
  %6837 = vmatprep.subr.mxu0 0.0
  %6838 = vmatpush2.msra.mxu0 0.0
  %6839 = vmatprep.subr.mxu0 0.0
  %6840 = vmatpush2.msra.mxu0 0.0
  %6841 = vmatprep.subr.mxu0 0.0
  %6842 = vmatpush2.msra.mxu0 0.0
  %6843 = vmatprep.subr.mxu0 0.0
  %6844 = vmatpush2.msra.mxu0 0.0
  %6845 = vmatprep.subr.mxu0 0.0
  %6846 = vmatpush2.msra.mxu0 0.0
  %6847 = vmatprep.subr.mxu0 0.0
  %6848 = vmatpush2.msra.mxu0 0.0
  %6849 = vmatprep.subr.mxu0 0.0
  %6850 = vmatpush2.msra.mxu0 0.0
  %6851 = vmatprep.subr.mxu0 0.0
  %6852 = vmatpush2.msra.mxu0 0.0
  %6853 = vmatprep.subr.mxu0 0.0
  %6854 = vmatpush2.msra.mxu0 0.0
  %6855 = vmatprep.subr.mxu0 0.0
  %6856 = vmatpush2.msra.mxu0 0.0
  %6857 = vmatprep.subr.mxu0 0.0
  %6858 = vmatpush2.msra.mxu0 0.0
  %6859 = vmatprep.subr.mxu0 0.0
  %6860 = vmatpush2.msra.mxu0 0.0
  %6861 = vmatprep.subr.mxu0 0.0
  %6862 = vmatpush2.msra.mxu0 0.0
  %6863 = vmatprep.mubr.f32.mxu0 0.0
  %6864 = vmatmul.mubr.f32.gmra.mxu0 %v6788
  %v6865 = vpop.f32.mrf.mxu0
  %v6866 = vadd.f32 0.0, %v6865
  %v6867 = vpop.f32.mrf.mxu0
  %6868 = vmatprep.mubr.f32.mxu0 0.0
  %6869 = vmatmul.mubr.f32.gmra.mxu0 %v6791
  %v6870 = vpop.f32.mrf.mxu0
  %v6871 = vadd.f32 0.0, %v6870
  %v6872 = vpop.f32.mrf.mxu0
  %6873 = vmatprep.mubr.f32.mxu0 0.0
  %6874 = vmatmul.mubr.f32.gmra.mxu0 %v6794
  %v6875 = vpop.f32.mrf.mxu0
  %v6876 = vadd.f32 0.0, %v6875
  %v6877 = vpop.f32.mrf.mxu0
  %6878 = vmatprep.mubr.f32.mxu0 0.0
  %6879 = vmatmul.mubr.f32.gmra.mxu0 %v6797
  %v6880 = vpop.f32.mrf.mxu0
  %v6881 = vadd.f32 0.0, %v6880
  %v6882 = vpop.f32.mrf.mxu0
  %6883 = vdwg.mxu0
  %v6884 = vadd.f32 %v6123, %v6866
  %v6885 = vadd.f32 %v6124, %v6871
  %v6886 = vadd.f32 %v6125, %v6876
  %v6887 = vadd.f32 %v6126, %v6881
  %v6888 = vadd.f32 %v3647, %v6884
  %v6889 = vadd.f32 %v3648, %v6885
  %v6890 = vadd.f32 %v3649, %v6886
  %v6891 = vadd.f32 %v3650, %v6887
  %v6892 = vlaneseq
  %v6893 = vshrl.u32 %v6892, 7
  %v6894 = vsub.s32 0, %v6893
  %v6895 = vrot.slane %v3673, %v6894
  %v6896 = vadd.f32 %v6888, %v6895
  %v6897 = vadd.f32 %v6889, %v6895
  %v6898 = vadd.f32 %v6890, %v6895
  %v6899 = vadd.f32 %v6891, %v6895
  %v6900 = vsel %vm165, %v6896, 0.0
  %6901 = vadd.xlane.f32.xlu0 %v6900
  %v6902 = vpop.xlane.xlu0 %6901
  %v6903 = vsel %vm165, %v6897, 0.0
  %6904 = vadd.xlane.f32.xlu0 %v6903
  %v6905 = vpop.xlane.xlu0 %6904
  %v6906 = vsel %vm165, %v6898, 0.0
  %6907 = vadd.xlane.f32.xlu0 %v6906
  %v6908 = vpop.xlane.xlu0 %6907
  %v6909 = vsel %vm165, %v6899, 0.0
  %6910 = vadd.xlane.f32.xlu0 %v6909
  %v6911 = vpop.xlane.xlu0 %6910
  %v6912 = vmul.f32 %v6902, %v178
  %v6913 = vmul.f32 %v6905, %v178
  %v6914 = vmul.f32 %v6908, %v178
  %v6915 = vmul.f32 %v6911, %v178
  %v6916 = vsub.f32 %v6896, %v6912
  %v6917 = vsub.f32 %v6897, %v6913
  %v6918 = vsub.f32 %v6898, %v6914
  %v6919 = vsub.f32 %v6899, %v6915
  %v6920 = vmul.f32 %v6916, %v6916
  %v6921 = vmul.f32 %v6917, %v6917
  %v6922 = vmul.f32 %v6918, %v6918
  %v6923 = vmul.f32 %v6919, %v6919
  %v6924 = vsel %vm165, %v6920, 0.0
  %6925 = vadd.xlane.f32.xlu0 %v6924
  %v6926 = vpop.xlane.xlu0 %6925
  %v6927 = vsel %vm165, %v6921, 0.0
  %6928 = vadd.xlane.f32.xlu0 %v6927
  %v6929 = vpop.xlane.xlu0 %6928
  %v6930 = vsel %vm165, %v6922, 0.0
  %6931 = vadd.xlane.f32.xlu0 %v6930
  %v6932 = vpop.xlane.xlu0 %6931
  %v6933 = vsel %vm165, %v6923, 0.0
  %6934 = vadd.xlane.f32.xlu0 %v6933
  %v6935 = vpop.xlane.xlu0 %6934
  %v6936 = vmul.f32 %v6926, %v178
  %v6937 = vmul.f32 %v6929, %v178
  %v6938 = vmul.f32 %v6932, %v178
  %v6939 = vmul.f32 %v6935, %v178
  %v6940 = vadd.f32 %v6936, 1e-05
  %v6941 = vadd.f32 %v6937, 1e-05
  %v6942 = vadd.f32 %v6938, 1e-05
  %v6943 = vadd.f32 %v6939, 1e-05
  %v6944 = vrsqrt.pop %v6940
  %v6945 = vrsqrt.pop %v6941
  %v6946 = vrsqrt.pop %v6942
  %v6947 = vrsqrt.pop %v6943
  %v6948 = vmul.f32 %v6916, %v6944
  %v6949 = vmul.f32 %v6917, %v6945
  %v6950 = vmul.f32 %v6918, %v6946
  %v6951 = vmul.f32 %v6919, %v6947
  %v6952 = vlaneseq
  %v6953 = vshrl.u32 %v6952, 7
  %v6954 = vsub.s32 0, %v6953
  %v6955 = vrot.slane %v3674, %v6954
  %v6956 = vmul.f32 %v6948, %v6955
  %v6957 = vmul.f32 %v6949, %v6955
  %v6958 = vmul.f32 %v6950, %v6955
  %v6959 = vmul.f32 %v6951, %v6955
  %v6960 = vlaneseq
  %v6961 = vshrl.u32 %v6960, 7
  %v6962 = vsub.s32 0, %v6961
  %v6963 = vrot.slane %v3675, %v6962
  %v6964 = vadd.f32 %v6956, %v6963
  %v6965 = vadd.f32 %v6957, %v6963
  %v6966 = vadd.f32 %v6958, %v6963
  %v6967 = vadd.f32 %v6959, %v6963
  %v6968 = vlaneseq
  %v6969 = vshrl.u32 %v6968, 7
  %v6970 = vsub.s32 0, %v6969
  %v6971 = vrot.slane %v3686, %v6970
  %v6973 = vsel %vm165, %v6964, 0
  %v6976 = vsel %vm165, %v6965, 0
  %v6979 = vsel %vm165, %v6966, 0
  %v6982 = vsel %vm165, %v6967, 0
  %6984 = vmatprep.subr.mxu0 0.0
  %6985 = vmatpush1.msra.mxu0 0.0
  %6986 = vmatprep.subr.mxu0 0.0
  %6987 = vmatpush1.msra.mxu0 0.0
  %6988 = vmatprep.subr.mxu0 0.0
  %6989 = vmatpush1.msra.mxu0 0.0
  %6990 = vmatprep.subr.mxu0 0.0
  %6991 = vmatpush1.msra.mxu0 0.0
  %6992 = vmatprep.subr.mxu0 0.0
  %6993 = vmatpush1.msra.mxu0 0.0
  %6994 = vmatprep.subr.mxu0 0.0
  %6995 = vmatpush1.msra.mxu0 0.0
  %6996 = vmatprep.subr.mxu0 0.0
  %6997 = vmatpush1.msra.mxu0 0.0
  %6998 = vmatprep.subr.mxu0 0.0
  %6999 = vmatpush1.msra.mxu0 0.0
  %7000 = vmatprep.subr.mxu0 0.0
  %7001 = vmatpush1.msra.mxu0 0.0
  %7002 = vmatprep.subr.mxu0 0.0
  %7003 = vmatpush1.msra.mxu0 0.0
  %7004 = vmatprep.subr.mxu0 0.0
  %7005 = vmatpush1.msra.mxu0 0.0
  %7006 = vmatprep.subr.mxu0 0.0
  %7007 = vmatpush1.msra.mxu0 0.0
  %7008 = vmatprep.subr.mxu0 0.0
  %7009 = vmatpush1.msra.mxu0 %v3685
  %7010 = vmatprep.subr.mxu0 0.0
  %7011 = vmatpush1.msra.mxu0 %v3684
  %7012 = vmatprep.subr.mxu0 0.0
  %7013 = vmatpush1.msra.mxu0 %v3683
  %7014 = vmatprep.subr.mxu0 0.0
  %7015 = vmatpush1.msra.mxu0 %v3682
  %7016 = vmatprep.subr.mxu0 0.0
  %7017 = vmatpush2.msra.mxu0 0.0
  %7018 = vmatprep.subr.mxu0 0.0
  %7019 = vmatpush2.msra.mxu0 0.0
  %7020 = vmatprep.subr.mxu0 0.0
  %7021 = vmatpush2.msra.mxu0 0.0
  %7022 = vmatprep.subr.mxu0 0.0
  %7023 = vmatpush2.msra.mxu0 0.0
  %7024 = vmatprep.subr.mxu0 0.0
  %7025 = vmatpush2.msra.mxu0 0.0
  %7026 = vmatprep.subr.mxu0 0.0
  %7027 = vmatpush2.msra.mxu0 0.0
  %7028 = vmatprep.subr.mxu0 0.0
  %7029 = vmatpush2.msra.mxu0 0.0
  %7030 = vmatprep.subr.mxu0 0.0
  %7031 = vmatpush2.msra.mxu0 0.0
  %7032 = vmatprep.subr.mxu0 0.0
  %7033 = vmatpush2.msra.mxu0 0.0
  %7034 = vmatprep.subr.mxu0 0.0
  %7035 = vmatpush2.msra.mxu0 0.0
  %7036 = vmatprep.subr.mxu0 0.0
  %7037 = vmatpush2.msra.mxu0 0.0
  %7038 = vmatprep.subr.mxu0 0.0
  %7039 = vmatpush2.msra.mxu0 0.0
  %7040 = vmatprep.subr.mxu0 0.0
  %7041 = vmatpush2.msra.mxu0 0.0
  %7042 = vmatprep.subr.mxu0 0.0
  %7043 = vmatpush2.msra.mxu0 0.0
  %7044 = vmatprep.subr.mxu0 0.0
  %7045 = vmatpush2.msra.mxu0 0.0
  %7046 = vmatprep.subr.mxu0 0.0
  %7047 = vmatpush2.msra.mxu0 0.0
  %7048 = vmatprep.mubr.f32.mxu0 0.0
  %7049 = vmatmul.mubr.f32.gmra.mxu0 %v6973
  %v7050 = vpop.f32.mrf.mxu0
  %v7051 = vadd.f32 %v6971, %v7050
  %v7052 = vpop.f32.mrf.mxu0
  %7053 = vmatprep.mubr.f32.mxu0 0.0
  %7054 = vmatmul.mubr.f32.gmra.mxu0 %v6976
  %v7055 = vpop.f32.mrf.mxu0
  %v7056 = vadd.f32 %v6971, %v7055
  %v7057 = vpop.f32.mrf.mxu0
  %7058 = vmatprep.mubr.f32.mxu0 0.0
  %7059 = vmatmul.mubr.f32.gmra.mxu0 %v6979
  %v7060 = vpop.f32.mrf.mxu0
  %v7061 = vadd.f32 %v6971, %v7060
  %v7062 = vpop.f32.mrf.mxu0
  %7063 = vmatprep.mubr.f32.mxu0 0.0
  %7064 = vmatmul.mubr.f32.gmra.mxu0 %v6982
  %v7065 = vpop.f32.mrf.mxu0
  %v7066 = vadd.f32 %v6971, %v7065
  %v7067 = vpop.f32.mrf.mxu0
  %7068 = vdwg.mxu0
  %v7069 = vmax.f32 %v7051, 0.0
  %v7070 = vmax.f32 %v7056, 0.0
  %v7071 = vmax.f32 %v7061, 0.0
  %v7072 = vmax.f32 %v7066, 0.0
  %7073 = vmatprep.subr.mxu0 0.0
  %7074 = vmatpush1.msra.mxu0 %v3670
  %7075 = vmatprep.subr.mxu0 0.0
  %7076 = vmatpush1.msra.mxu0 %v3669
  %7077 = vmatprep.subr.mxu0 0.0
  %7078 = vmatpush1.msra.mxu0 %v3668
  %7079 = vmatprep.subr.mxu0 0.0
  %7080 = vmatpush1.msra.mxu0 %v3667
  %7081 = vmatprep.subr.mxu0 0.0
  %7082 = vmatpush1.msra.mxu0 %v3666
  %7083 = vmatprep.subr.mxu0 0.0
  %7084 = vmatpush1.msra.mxu0 %v3665
  %7085 = vmatprep.subr.mxu0 0.0
  %7086 = vmatpush1.msra.mxu0 %v3664
  %7087 = vmatprep.subr.mxu0 0.0
  %7088 = vmatpush1.msra.mxu0 %v3663
  %7089 = vmatprep.subr.mxu0 0.0
  %7090 = vmatpush1.msra.mxu0 %v3662
  %7091 = vmatprep.subr.mxu0 0.0
  %7092 = vmatpush1.msra.mxu0 %v3661
  %7093 = vmatprep.subr.mxu0 0.0
  %7094 = vmatpush1.msra.mxu0 %v3660
  %7095 = vmatprep.subr.mxu0 0.0
  %7096 = vmatpush1.msra.mxu0 %v3659
  %7097 = vmatprep.subr.mxu0 0.0
  %7098 = vmatpush1.msra.mxu0 %v3658
  %7099 = vmatprep.subr.mxu0 0.0
  %7100 = vmatpush1.msra.mxu0 %v3657
  %7101 = vmatprep.subr.mxu0 0.0
  %7102 = vmatpush1.msra.mxu0 %v3656
  %7103 = vmatprep.subr.mxu0 0.0
  %7104 = vmatpush1.msra.mxu0 %v3655
  %7105 = vmatprep.subr.mxu0 0.0
  %7106 = vmatpush2.msra.mxu0 0.0
  %7107 = vmatprep.subr.mxu0 0.0
  %7108 = vmatpush2.msra.mxu0 0.0
  %7109 = vmatprep.subr.mxu0 0.0
  %7110 = vmatpush2.msra.mxu0 0.0
  %7111 = vmatprep.subr.mxu0 0.0
  %7112 = vmatpush2.msra.mxu0 0.0
  %7113 = vmatprep.subr.mxu0 0.0
  %7114 = vmatpush2.msra.mxu0 0.0
  %7115 = vmatprep.subr.mxu0 0.0
  %7116 = vmatpush2.msra.mxu0 0.0
  %7117 = vmatprep.subr.mxu0 0.0
  %7118 = vmatpush2.msra.mxu0 0.0
  %7119 = vmatprep.subr.mxu0 0.0
  %7120 = vmatpush2.msra.mxu0 0.0
  %7121 = vmatprep.subr.mxu0 0.0
  %7122 = vmatpush2.msra.mxu0 0.0
  %7123 = vmatprep.subr.mxu0 0.0
  %7124 = vmatpush2.msra.mxu0 0.0
  %7125 = vmatprep.subr.mxu0 0.0
  %7126 = vmatpush2.msra.mxu0 0.0
  %7127 = vmatprep.subr.mxu0 0.0
  %7128 = vmatpush2.msra.mxu0 0.0
  %7129 = vmatprep.subr.mxu0 0.0
  %7130 = vmatpush2.msra.mxu0 0.0
  %7131 = vmatprep.subr.mxu0 0.0
  %7132 = vmatpush2.msra.mxu0 0.0
  %7133 = vmatprep.subr.mxu0 0.0
  %7134 = vmatpush2.msra.mxu0 0.0
  %7135 = vmatprep.subr.mxu0 0.0
  %7136 = vmatpush2.msra.mxu0 0.0
  %7137 = vmatprep.mubr.f32.mxu0 0.0
  %7138 = vmatmul.mubr.f32.gmra.mxu0 %v7069
  %v7139 = vpop.f32.mrf.mxu0
  %v7140 = vadd.f32 0.0, %v7139
  %v7141 = vpop.f32.mrf.mxu0
  %7142 = vmatprep.mubr.f32.mxu0 0.0
  %7143 = vmatmul.mubr.f32.gmra.mxu0 %v7070
  %v7144 = vpop.f32.mrf.mxu0
  %v7145 = vadd.f32 0.0, %v7144
  %v7146 = vpop.f32.mrf.mxu0
  %7147 = vmatprep.mubr.f32.mxu0 0.0
  %7148 = vmatmul.mubr.f32.gmra.mxu0 %v7071
  %v7149 = vpop.f32.mrf.mxu0
  %v7150 = vadd.f32 0.0, %v7149
  %v7151 = vpop.f32.mrf.mxu0
  %7152 = vmatprep.mubr.f32.mxu0 0.0
  %7153 = vmatmul.mubr.f32.gmra.mxu0 %v7072
  %v7154 = vpop.f32.mrf.mxu0
  %v7155 = vadd.f32 0.0, %v7154
  %v7156 = vpop.f32.mrf.mxu0
  %7157 = vdwg.mxu0
  %v7158 = vadd.f32 %v6896, %v7140
  %v7159 = vadd.f32 %v6897, %v7145
  %v7160 = vadd.f32 %v6898, %v7150
  %v7161 = vadd.f32 %v6899, %v7155
  %v7162 = vlaneseq
  %v7163 = vshrl.u32 %v7162, 7
  %v7164 = vsub.s32 0, %v7163
  %v7165 = vrot.slane %v3676, %v7164
  %v7166 = vadd.f32 %v7158, %v7165
  %v7167 = vadd.f32 %v7159, %v7165
  %v7168 = vadd.f32 %v7160, %v7165
  %v7169 = vadd.f32 %v7161, %v7165
  %v7170 = vld [vmem:[%s1 + $0x180] sm:$0x1]
  %v7171 = vld [vmem:[%s1 + $0x181] sm:$0x1]
  %v7176 = vrot.slane %v7167, 7
  %v7177 = vrot.slane %v7168, 6
  %vm7178 = vcmask 1041409
  %v7179 = vsel %vm7178, %v7177, %v7176
  %v7180 = vrot.slane %v7169, 5
  %vm7181 = vcmask 1042434
  %v7182 = vsel %vm7181, %v7180, %v7179
  %vm7185 = vcmask 261127
  %v7186 = vsel %vm7185, %v7166, 0.0
  %7187 = vadd.xlane.f32.xlu0 %v7186
  %v7188 = vpop.xlane.xlu0 %7187
  %vm7189 = vcmask 256000
  %v7190 = vsel %vm7189, %v7182, 0.0
  %7191 = vadd.xlane.f32.xlu0 %v7190
  %v7192 = vpop.xlane.xlu0 %7191
  %v7193 = vmul.f32 %v7188, %v178
  %v7194 = vmul.f32 %v7192, %v178
  %v7197 = vrot.slane %v7194, 1
  %v7198 = vrot.slane %v7194, 2
  %v7199 = vrot.slane %v7194, 3
  %v7204 = vsub.f32 %v7166, %v7193
  %v7205 = vsub.f32 %v7167, %v7197
  %v7206 = vsub.f32 %v7168, %v7198
  %v7207 = vsub.f32 %v7169, %v7199
  %v7208 = vmul.f32 %v7204, %v7204
  %v7209 = vmul.f32 %v7205, %v7205
  %v7210 = vmul.f32 %v7206, %v7206
  %v7211 = vmul.f32 %v7207, %v7207
  %v7216 = vrot.slane %v7209, 7
  %v7217 = vrot.slane %v7210, 6
  %v7218 = vsel %vm7178, %v7217, %v7216
  %v7219 = vrot.slane %v7211, 5
  %v7220 = vsel %vm7181, %v7219, %v7218
  %v7223 = vsel %vm7185, %v7208, 0.0
  %7224 = vadd.xlane.f32.xlu0 %v7223
  %v7225 = vpop.xlane.xlu0 %7224
  %v7226 = vsel %vm7189, %v7220, 0.0
  %7227 = vadd.xlane.f32.xlu0 %v7226
  %v7228 = vpop.xlane.xlu0 %7227
  %v7229 = vmul.f32 %v7225, %v178
  %v7230 = vmul.f32 %v7228, %v178
  %v7231 = vadd.f32 %v7229, 1e-05
  %v7232 = vadd.f32 %v7230, 1e-05
  %v7233 = vrsqrt.pop %v7231
  %v7234 = vrsqrt.pop %v7232
  %v7237 = vrot.slane %v7234, 1
  %v7238 = vrot.slane %v7234, 2
  %v7239 = vrot.slane %v7234, 3
  %v7244 = vmul.f32 %v7204, %v7233
  %v7245 = vmul.f32 %v7205, %v7237
  %v7246 = vmul.f32 %v7206, %v7238
  %v7247 = vmul.f32 %v7207, %v7239
  %v7248 = vlaneseq
  %v7249 = vshrl.u32 %v7248, 7
  %v7250 = vsub.s32 0, %v7249
  %v7251 = vrot.slane %v7170, %v7250
  %v7252 = vmul.f32 %v7244, %v7251
  %v7253 = vmul.f32 %v7245, %v7251
  %v7254 = vmul.f32 %v7246, %v7251
  %v7255 = vmul.f32 %v7247, %v7251
  %v7256 = vlaneseq
  %v7257 = vshrl.u32 %v7256, 7
  %v7258 = vsub.s32 0, %v7257
  %v7259 = vrot.slane %v7171, %v7258
  %v7260 = vadd.f32 %v7252, %v7259
  %v7261 = vadd.f32 %v7253, %v7259
  %v7262 = vadd.f32 %v7254, %v7259
  %v7263 = vadd.f32 %v7255, %v7259
  %v7268 = vrot.slane %v7261, 7
  %v7269 = vrot.slane %v7262, 6
  %v7270 = vsel %vm7178, %v7269, %v7268
  %v7271 = vrot.slane %v7263, 5
  %v7272 = vsel %vm7181, %v7271, %v7270
  %7275 = vst.msk [vmem:[%s4 - $0x7] sm:$0x80] %vm7185, %v7260
  %7276 = vst.msk [vmem:[%s4 + $0x1] sm:$0x7] %vm7189, %v7272
  // Predicated region
  $region18: #{model_forward.1} parent=0 // pred_check
    _
  $region19: #{model_forward.1} parent=0 // pred_check_branch
    %7278 = sbr.rel (0) target = $region21
  $region20: #{model_forward.1} parent=0 // pred_region
    _
  $region21: #{model_forward.1} parent=0 // pred_fallthru
    _
  // Predicated region
  $region22: #{model_forward.1} parent=0 // pred_check
    _
  $region23: #{model_forward.1} parent=0 // pred_check_branch
    %7280 = sbr.rel (0) target = $region25
  $region24: #{model_forward.1} parent=0 // pred_region
    _
  $region25: #{model_forward.1} parent=0 // pred_fallthru
    _

</llo_original>
